<compile_context>
chip_gen: v6e
topology: v6e:2x2x1
jax: 0.10.0
libtpu: 0.0.40
codegen_flags: <defaults>
</compile_context>

<pallas_src>
import math
import numpy as np

import jax
import jax.numpy as jnp
from jax import lax
from jax.experimental import pallas as pl
from jax.experimental.pallas import tpu as pltpu

# ----------------------------- config (synthetic, small) --------------------
IN_D = 1                    # dataset == 'mitbih' -> in_d = 1
CONV_K = 3
CONV_STRIDE = 2
EMBED = 32                  # conv feature dim (self.embed)
EMBED_DIM = 64              # cfgs.embed_dim (!= EMBED -> post_extract_proj)
NUM_HEADS = 4
HEAD_DIM = EMBED_DIM // NUM_HEADS
FFN_DIM = 128
NUM_LAYERS = 2
CONV_POS = 3                # pos-conv kernel (odd -> SamePad is a no-op)
CONV_POS_GROUPS = 16
LN_EPS = 1e-5

BATCH = 2
L_IN = 64
T1 = (L_IN - CONV_K) // CONV_STRIDE + 1        # 31 conv1 time steps
T_REAL = (T1 - CONV_K) // CONV_STRIDE + 1      # 15 conv2 time steps
T_PAD = 16                                     # sublane-aligned (power of 2)
KP1 = 8                                        # conv1 contraction pad (3 -> 8)
ROWS = BATCH * T_PAD                           # 32 encoder rows
P1_ROWS = 2 * ROWS                             # 64 conv1 rows (even+odd blocks)

assert (T_PAD & (T_PAD - 1)) == 0              # iota-mask uses `& (T_PAD-1)`
assert HEAD_DIM * NUM_HEADS == EMBED_DIM

# ----------------------------- packed small-vector slab ----------------------
(V_C1G, V_C1B, V_C2G, V_C2B, V_FEG, V_FEB,
 V_PPB, V_POSB, V_ENCG, V_ENCB) = range(10)


def _vrow(l, j):
    """Per-layer rows: 0=out-proj bias, 1/2=attn-LN g/b, 3=fc1 bias, 4=fc2 bias,
    5/6=final-LN g/b."""
    return 10 + 7 * l + j


NVEC = 10 + 7 * NUM_LAYERS                     # 24 rows (sublane aligned)
assert NVEC % 8 == 0


# ----------------------------- in-kernel math helpers ------------------------
def _gelu(x):
    # TODO(synk): PyTorch nn.GELU uses the exact erf form; tanh approximation
    # used here for guaranteed Mosaic lowering (~1e-3 relative difference).
    c = math.sqrt(2.0 / math.pi)
    return 0.5 * x * (1.0 + jnp.tanh(c * (x + 0.044715 * x * x * x)))


def _ln(x, g, b, eps=LN_EPS):
    mu = jnp.mean(x, axis=-1, keepdims=True)
    xc = x - mu
    var = jnp.mean(xc * xc, axis=-1, keepdims=True)
    return xc * lax.rsqrt(var + eps) * g + b


# ----------------------------- the fused kernel ------------------------------
def _wav2vec2_kernel(p1_ref, c1w_ref, c2w_ref, ppw_ref, posw_ref,
                     wq_ref, wk_ref, wv_ref, wo_ref, w1_ref, w2_ref,
                     ab_ref, vecs_ref, o_ref):
    def vec(row, n):
        return vecs_ref[row:row + 1, 0:n]                  # (1, n) gain/bias

    # ---- conv1 + LayerNorm + GELU --------------------------------------
    # p1 rows are pre-ordered [b0-even, b1-even, b0-odd, b1-odd] so that the
    # stride-2 im2col of conv2 below becomes three contiguous slab matmuls.
    x1 = jnp.dot(p1_ref[...], c1w_ref[...], preferred_element_type=jnp.float32)
    x1 = _gelu(_ln(x1, vec(V_C1G, EMBED), vec(V_C1B, EMBED)))     # (64, 32)

    # ---- conv2 (in-kernel stride-2 im2col) + LayerNorm + GELU -----------
    # output row r = b*T_PAD + t needs conv1 times 2t (even t), 2t+1 (odd t),
    # 2t+2 (even t+1)  ->  slabs [0:32], [32:64], [1:33] of the reordered x1.
    feats = (jnp.dot(x1[0:ROWS, :], c2w_ref[0],
                     preferred_element_type=jnp.float32)
             + jnp.dot(x1[ROWS:2 * ROWS, :], c2w_ref[1],
                       preferred_element_type=jnp.float32)
             + jnp.dot(x1[1:ROWS + 1, :], c2w_ref[2],
                       preferred_element_type=jnp.float32))
    feats = _gelu(_ln(feats, vec(V_C2G, EMBED), vec(V_C2B, EMBED)))  # (32, 32)

    # ---- features_pen = mean(features**2) over real B*T_REAL*EMBED ------
    rid = lax.broadcasted_iota(jnp.int32, (ROWS, EMBED), 0)
    fvalid = (rid & (T_PAD - 1)) < T_REAL
    fm = jnp.where(fvalid, feats, 0.0)
    ssq = jnp.sum(jnp.sum(fm * fm, axis=1, keepdims=True), axis=0, keepdims=True)
    pen = ssq * (1.0 / float(BATCH * T_REAL * EMBED))                # (1, 1)

    # ---- feature LayerNorm + post_extract_proj, zero padded time rows ---
    x = _ln(feats, vec(V_FEG, EMBED), vec(V_FEB, EMBED))
    x = jnp.dot(x, ppw_ref[...], preferred_element_type=jnp.float32) \
        + vec(V_PPB, EMBED_DIM)
    ridd = lax.broadcasted_iota(jnp.int32, (ROWS, EMBED_DIM), 0)
    dvalid = (ridd & (T_PAD - 1)) < T_REAL
    x = jnp.where(dvalid, x, 0.0)                                    # (32, 64)

    # ---- positional grouped Conv1d ('same' pad) + GELU + residual -------
    # Left/right taps via in-kernel shift matrices (sub-diagonal / super-
    # diagonal), which also supply the exact zero boundary rows.  Padded
    # time rows of x are zero, so batch boundaries stay correct.
    si = lax.broadcasted_iota(jnp.int32, (ROWS, ROWS), 0)
    sj = lax.broadcasted_iota(jnp.int32, (ROWS, ROWS), 1)
    shift_dn = jnp.where(si == sj + 1, 1.0, 0.0)   # result[r] = x[r-1]
    shift_up = jnp.where(si + 1 == sj, 1.0, 0.0)   # result[r] = x[r+1]
    x_left = jnp.dot(shift_dn, x, preferred_element_type=jnp.float32)
    x_right = jnp.dot(shift_up, x, preferred_element_type=jnp.float32)
    pc = (jnp.dot(x_left, posw_ref[0], preferred_element_type=jnp.float32)
          + jnp.dot(x, posw_ref[1], preferred_element_type=jnp.float32)
          + jnp.dot(x_right, posw_ref[2], preferred_element_type=jnp.float32)
          + vec(V_POSB, EMBED_DIM))
    xb = x + _gelu(pc)
    xb = _ln(xb, vec(V_ENCG, EMBED_DIM), vec(V_ENCB, EMBED_DIM))     # (32, 64)

    # ---- post-norm transformer layers -----------------------------------
    kmask2 = lax.broadcasted_iota(jnp.int32, (T_PAD, T_PAD), 1) < T_REAL
    kmask = jnp.broadcast_to(kmask2[None, :, :], (BATCH, T_PAD, T_PAD))
    scale = float(HEAD_DIM) ** -0.5
    dnum = (((1,), (1,)), ((), ()))      # contract last dims (no .T relayout)

    for l in range(NUM_LAYERS):
        ab_l = ab_ref[l]                                   # (3*H, HEAD_DIM)
        attn = jnp.zeros((ROWS, EMBED_DIM), jnp.float32)
        for h in range(NUM_HEADS):
            idx = l * NUM_HEADS + h
            q = lax.dot_general(xb, wq_ref[idx], dnum,
                                preferred_element_type=jnp.float32) \
                + ab_l[h:h + 1, :]
            k = lax.dot_general(xb, wk_ref[idx], dnum,
                                preferred_element_type=jnp.float32) \
                + ab_l[NUM_HEADS + h:NUM_HEADS + h + 1, :]
            v = lax.dot_general(xb, wv_ref[idx], dnum,
                                preferred_element_type=jnp.float32) \
                + ab_l[2 * NUM_HEADS + h:2 * NUM_HEADS + h + 1, :]
            # batch stays only as a dot_general batch dim (leading-dim reshape
            # of the (32, 16) slabs is free).
            q3 = (q * scale).reshape(BATCH, T_PAD, HEAD_DIM)
            k3 = k.reshape(BATCH, T_PAD, HEAD_DIM)
            v3 = v.reshape(BATCH, T_PAD, HEAD_DIM)
            s = jnp.einsum('bqd,bkd->bqk', q3, k3,
                           preferred_element_type=jnp.float32)
            s = jnp.where(kmask, s, -1e30)
            s = s - jnp.max(s, axis=-1, keepdims=True)
            p = jnp.exp(s)
            p = p * pl.reciprocal(jnp.sum(p, axis=-1, keepdims=True),
                                  approx=True)
            ctx = jnp.einsum('bqk,bkd->bqd', p, v3,
                             preferred_element_type=jnp.float32)
            ctx = ctx.reshape(ROWS, HEAD_DIM)
            # per-head contribution to the output projection (avoids a lane
            # concat relayout of the per-head contexts)
            attn = attn + jnp.dot(ctx, wo_ref[idx],
                                  preferred_element_type=jnp.float32)
        xb = xb + attn + vec(_vrow(l, 0), EMBED_DIM)       # residual + out bias
        xb = _ln(xb, vec(_vrow(l, 1), EMBED_DIM), vec(_vrow(l, 2), EMBED_DIM))

        hmid = _gelu(jnp.dot(xb, w1_ref[l], preferred_element_type=jnp.float32)
                     + vec(_vrow(l, 3), FFN_DIM))
        xb = xb + jnp.dot(hmid, w2_ref[l], preferred_element_type=jnp.float32) \
             + vec(_vrow(l, 4), EMBED_DIM)
        xb = _ln(xb, vec(_vrow(l, 5), EMBED_DIM), vec(_vrow(l, 6), EMBED_DIM))

    o_ref[...] = xb
    # features_pen folded into an element of a padded (cropped) output row:
    # single output array, no extra (1,1) VMEM tile / writeback DMA.
    o_ref[T_PAD - 1:T_PAD, 0:1] = pen


# ----------------------------- wrapper ---------------------------------------
def _build_conv1_patches(source):
    """conv1 im2col on the raw input, rows pre-ordered as
    [b0 even times, b1 even times, b0 odd times, b1 odd times]."""
    # TODO(synk): this raw-input gather stays wrapper-side (a single tiny XLA
    # gather); all activation-level glue is fused into the kernel.
    x = source[:, 0, :]                                # (B, L)
    xf = x.reshape(-1)                                 # (B*L,)
    r = np.arange(P1_ROWS)
    g = r // ROWS                                      # 0: even taps, 1: odd
    b = (r % ROWS) // T_PAD
    t = r % T_PAD
    t1 = 2 * t + g                                     # conv1 output time
    valid = (t1 < T1).astype(np.float32)
    start = np.where(t1 < T1, CONV_STRIDE * t1, 0)
    idx = (b * L_IN + start)[:, None] + np.arange(CONV_K)[None, :]   # (64, 3)
    p = xf[jnp.asarray(idx)] * jnp.asarray(valid)[:, None]
    return jnp.pad(p, ((0, 0), (0, KP1 - CONV_K)))     # (64, 8)


def wav2vec2_forward(params, source):
    """source: (B, in_d, L) — PyTorch NCW convention.  mask=False eval path."""
    p1 = _build_conv1_patches(source.astype(jnp.float32))

    args = (p1, params["c1w"], params["c2w"], params["ppw"], params["posw"],
            params["wq"], params["wk"], params["wv"], params["wo"],
            params["w1"], params["w2"], params["ab"], params["vecs"])

    y_flat = pl.pallas_call(
        _wav2vec2_kernel,
        out_shape=jax.ShapeDtypeStruct((ROWS, EMBED_DIM), jnp.float32),
        in_specs=[pl.BlockSpec(memory_space=pltpu.MemorySpace.VMEM)] * len(args),
        out_specs=pl.BlockSpec(memory_space=pltpu.MemorySpace.VMEM),
    )(*args)

    features_pen = y_flat[T_PAD - 1, 0]                # folded scalar
    y = y_flat.reshape(BATCH, T_PAD, EMBED_DIM)[:, :T_REAL, :]

    # quantizer is None; dropouts are identity in eval mode.
    return {"x": y, "padding_mask": None, "features_pen": features_pen}
    # TODO(synk): apply_mask/compute_mask_indices (numpy RNG), sample_negatives
    # (torch.randint), GumbelVectorQuantizer, GradMultiply (autograd hook) have
    # no deterministic Pallas equivalent and are outside this eval path.


# ----------------------------- deterministic init ----------------------------
def init_params(key):
    keys = jax.random.split(key, 32)
    it = iter(range(32))

    def nrm(shape, scale=0.02):
        return scale * jax.random.normal(keys[next(it)], shape, jnp.float32)

    p = {}
    # conv1: PyTorch (Cout, Cin, K) -> matmul weight (Cin*K, Cout), K-padded
    w1t = nrm((EMBED, IN_D, CONV_K), scale=0.1)
    w1m = jnp.transpose(w1t.reshape(EMBED, IN_D * CONV_K), (1, 0))   # (3, 32)
    p["c1w"] = jnp.pad(w1m, ((0, KP1 - IN_D * CONV_K), (0, 0)))      # (8, 32)
    # conv2: PyTorch (Cout, Cin, K) -> per-tap dense (K, Cin, Cout)
    w2t = nrm((EMBED, EMBED, CONV_K), scale=0.1)
    p["c2w"] = jnp.transpose(w2t, (2, 1, 0))                          # (3, 32, 32)
    # post_extract_proj
    p["ppw"] = nrm((EMBED, EMBED_DIM))
    # pos-conv: grouped (Cout, Cin//g, K) -> per-tap dense block-diagonal
    # (K, Cin, Cout).  TODO(synk): at real wav2vec2 sizes (C=768, K=128) use
    # per-group matmuls instead of a dense expansion.
    gw = np.asarray(nrm((EMBED_DIM, EMBED_DIM // CONV_POS_GROUPS, CONV_POS),
                        scale=0.1))
    cpg = EMBED_DIM // CONV_POS_GROUPS
    posw = np.zeros((CONV_POS, EMBED_DIM, EMBED_DIM), np.float32)
    for co in range(EMBED_DIM):
        g = co // cpg
        for jl in range(cpg):
            posw[:, g * cpg + jl, co] = gw[co, jl, :]
    p["posw"] = jnp.asarray(posw)

    # attention weights, head-major, stored (head_dim, embed_dim) so both the
    # projections (contract last dims) and VMEM tiles stay lane-dense.
    p["wq"] = nrm((NUM_LAYERS * NUM_HEADS, HEAD_DIM, EMBED_DIM))
    p["wk"] = nrm((NUM_LAYERS * NUM_HEADS, HEAD_DIM, EMBED_DIM))
    p["wv"] = nrm((NUM_LAYERS * NUM_HEADS, HEAD_DIM, EMBED_DIM))
    p["wo"] = nrm((NUM_LAYERS * NUM_HEADS, HEAD_DIM, EMBED_DIM))
    p["ab"] = nrm((NUM_LAYERS, 3 * NUM_HEADS, HEAD_DIM))   # q/k/v biases per head
    p["w1"] = nrm((NUM_LAYERS, EMBED_DIM, FFN_DIM))
    p["w2"] = nrm((NUM_LAYERS, FFN_DIM, EMBED_DIM))

    # packed gains / biases (one slab -> one DMA)
    vecs = np.zeros((NVEC, 128), np.float32)
    vecs[V_C1G, :EMBED] = 1.0
    vecs[V_C2G, :EMBED] = 1.0
    vecs[V_FEG, :EMBED] = 1.0
    vecs[V_ENCG, :EMBED_DIM] = 1.0
    vecs[V_PPB, :EMBED_DIM] = np.asarray(nrm((EMBED_DIM,)))
    vecs[V_POSB, :EMBED_DIM] = np.asarray(nrm((EMBED_DIM,)))
    for l in range(NUM_LAYERS):
        vecs[_vrow(l, 0), :EMBED_DIM] = np.asarray(nrm((EMBED_DIM,)))   # out bias
        vecs[_vrow(l, 1), :EMBED_DIM] = 1.0                             # LN1 gamma
        vecs[_vrow(l, 3), :FFN_DIM] = np.asarray(nrm((FFN_DIM,)))       # fc1 bias
        vecs[_vrow(l, 4), :EMBED_DIM] = np.asarray(nrm((EMBED_DIM,)))   # fc2 bias
        vecs[_vrow(l, 5), :EMBED_DIM] = 1.0                             # LN2 gamma
    p["vecs"] = jnp.asarray(vecs)
    return p


# ----------------------------- main ------------------------------------------
if __name__ == "__main__":
    root = jax.random.PRNGKey(0)
    pkey, dkey = jax.random.split(root)
    params = init_params(pkey)
    source = jax.random.normal(dkey, (BATCH, IN_D, L_IN), jnp.float32)

    fwd = jax.jit(lambda s: wav2vec2_forward(params, s))
    out = fwd(source)
    jax.block_until_ready(out["x"])
    jax.block_until_ready(out["features_pen"])

    assert out["x"].shape == (BATCH, T_REAL, EMBED_DIM)
    assert out["features_pen"].shape == ()
    assert bool(jnp.isfinite(out["features_pen"]))
    assert bool(jnp.all(jnp.isfinite(out["x"])))
    print("KERNEL_OK")
</pallas_src>

<mosaic_0001>
module attributes {stable_mosaic.version = 11 : i64} {
  func.func @_wav2vec2_kernel(%arg0: memref<64x8xf32, #tpu.memory_space<vmem>>, %arg1: memref<8x32xf32, #tpu.memory_space<vmem>>, %arg2: memref<3x32x32xf32, #tpu.memory_space<vmem>>, %arg3: memref<32x64xf32, #tpu.memory_space<vmem>>, %arg4: memref<3x64x64xf32, #tpu.memory_space<vmem>>, %arg5: memref<8x16x64xf32, #tpu.memory_space<vmem>>, %arg6: memref<8x16x64xf32, #tpu.memory_space<vmem>>, %arg7: memref<8x16x64xf32, #tpu.memory_space<vmem>>, %arg8: memref<8x16x64xf32, #tpu.memory_space<vmem>>, %arg9: memref<2x64x128xf32, #tpu.memory_space<vmem>>, %arg10: memref<2x128x64xf32, #tpu.memory_space<vmem>>, %arg11: memref<2x12x16xf32, #tpu.memory_space<vmem>>, %arg12: memref<24x128xf32, #tpu.memory_space<vmem>>, %arg13: memref<32x64xf32, #tpu.memory_space<vmem>>) attributes {dimension_semantics = [], scalar_prefetch = 0 : i64, scratch_operands = 0 : i64, tpu.core_type = #tpu.core_type<tc>} {
    %c0 = arith.constant 0 : index
    %c0_0 = arith.constant 0 : index
    %0 = vector.load %arg0[%c0, %c0_0] : memref<64x8xf32, #tpu.memory_space<vmem>>, vector<64x8xf32>
    %c0_1 = arith.constant 0 : index
    %c0_2 = arith.constant 0 : index
    %1 = vector.load %arg1[%c0_1, %c0_2] : memref<8x32xf32, #tpu.memory_space<vmem>>, vector<8x32xf32>
    %cst = arith.constant dense<0.000000e+00> : vector<64x32xf32>
    %2 = tpu.matmul %0, %1, %cst {dimension_numbers = #tpu.dot_dimension_numbers<[1], [0], [0], [1], [0, 0, 1, 1], [], []>} : vector<64x8xf32>, vector<8x32xf32>, vector<64x32xf32> -> vector<64x32xf32>
    %c0_3 = arith.constant 0 : index
    %c0_4 = arith.constant 0 : index
    %3 = vector.load %arg12[%c0_3, %c0_4] : memref<24x128xf32, #tpu.memory_space<vmem>>, vector<1x32xf32>
    %c1 = arith.constant 1 : index
    %c0_5 = arith.constant 0 : index
    %4 = vector.load %arg12[%c1, %c0_5] : memref<24x128xf32, #tpu.memory_space<vmem>>, vector<1x32xf32>
    %cst_6 = arith.constant dense<0.000000e+00> : vector<64xf32>
    %5 = vector.multi_reduction <add>, %2, %cst_6 [1] : vector<64x32xf32> to vector<64xf32>
    %6 = vector.shape_cast %5 : vector<64xf32> to vector<64x1xf32>
    %cst_7 = arith.constant 3.200000e+01 : f32
    %7 = vector.broadcast %cst_7 : f32 to vector<64x1xf32>
    %8 = arith.divf %6, %7 : vector<64x1xf32>
    %9 = vector.broadcast %8 : vector<64x1xf32> to vector<64x32xf32>
    %10 = arith.subf %2, %9 : vector<64x32xf32>
    %11 = arith.mulf %10, %10 : vector<64x32xf32>
    %cst_8 = arith.constant dense<0.000000e+00> : vector<64xf32>
    %12 = vector.multi_reduction <add>, %11, %cst_8 [1] : vector<64x32xf32> to vector<64xf32>
    %13 = vector.shape_cast %12 : vector<64xf32> to vector<64x1xf32>
    %cst_9 = arith.constant 3.200000e+01 : f32
    %14 = vector.broadcast %cst_9 : f32 to vector<64x1xf32>
    %15 = arith.divf %13, %14 : vector<64x1xf32>
    %cst_10 = arith.constant 9.99999974E-6 : f32
    %16 = vector.broadcast %cst_10 : f32 to vector<64x1xf32>
    %17 = arith.addf %15, %16 : vector<64x1xf32>
    %18 = math.rsqrt %17 : vector<64x1xf32>
    %19 = vector.broadcast %18 : vector<64x1xf32> to vector<64x32xf32>
    %20 = arith.mulf %10, %19 : vector<64x32xf32>
    %21 = vector.broadcast %3 : vector<1x32xf32> to vector<64x32xf32>
    %22 = arith.mulf %20, %21 : vector<64x32xf32>
    %23 = vector.broadcast %4 : vector<1x32xf32> to vector<64x32xf32>
    %24 = arith.addf %22, %23 : vector<64x32xf32>
    %cst_11 = arith.constant 5.000000e-01 : f32
    %25 = vector.broadcast %cst_11 : f32 to vector<64x32xf32>
    %26 = arith.mulf %25, %24 : vector<64x32xf32>
    %cst_12 = arith.constant 4.471500e-02 : f32
    %27 = vector.broadcast %cst_12 : f32 to vector<64x32xf32>
    %28 = arith.mulf %27, %24 : vector<64x32xf32>
    %29 = arith.mulf %28, %24 : vector<64x32xf32>
    %30 = arith.mulf %29, %24 : vector<64x32xf32>
    %31 = arith.addf %24, %30 : vector<64x32xf32>
    %cst_13 = arith.constant 0.797884583 : f32
    %32 = vector.broadcast %cst_13 : f32 to vector<64x32xf32>
    %33 = arith.mulf %32, %31 : vector<64x32xf32>
    %34 = math.tanh %33 : vector<64x32xf32>
    %cst_14 = arith.constant 1.000000e+00 : f32
    %35 = vector.broadcast %cst_14 : f32 to vector<64x32xf32>
    %36 = arith.addf %35, %34 : vector<64x32xf32>
    %37 = arith.mulf %26, %36 : vector<64x32xf32>
    %38 = vector.extract_strided_slice %37 {offsets = [0, 0], sizes = [32, 32], strides = [1, 1]} : vector<64x32xf32> to vector<32x32xf32>
    %c0_15 = arith.constant 0 : index
    %c0_16 = arith.constant 0 : index
    %c0_17 = arith.constant 0 : index
    %39 = vector.load %arg2[%c0_15, %c0_16, %c0_17] : memref<3x32x32xf32, #tpu.memory_space<vmem>>, vector<1x32x32xf32>
    %40 = vector.shape_cast %39 : vector<1x32x32xf32> to vector<32x32xf32>
    %cst_18 = arith.constant dense<0.000000e+00> : vector<32x32xf32>
    %41 = tpu.matmul %38, %40, %cst_18 {dimension_numbers = #tpu.dot_dimension_numbers<[1], [0], [0], [1], [0, 0, 1, 1], [], []>} : vector<32x32xf32>, vector<32x32xf32>, vector<32x32xf32> -> vector<32x32xf32>
    %42 = vector.extract_strided_slice %37 {offsets = [32, 0], sizes = [32, 32], strides = [1, 1]} : vector<64x32xf32> to vector<32x32xf32>
    %c1_19 = arith.constant 1 : index
    %c0_20 = arith.constant 0 : index
    %c0_21 = arith.constant 0 : index
    %43 = vector.load %arg2[%c1_19, %c0_20, %c0_21] : memref<3x32x32xf32, #tpu.memory_space<vmem>>, vector<1x32x32xf32>
    %44 = vector.shape_cast %43 : vector<1x32x32xf32> to vector<32x32xf32>
    %cst_22 = arith.constant dense<0.000000e+00> : vector<32x32xf32>
    %45 = tpu.matmul %42, %44, %cst_22 {dimension_numbers = #tpu.dot_dimension_numbers<[1], [0], [0], [1], [0, 0, 1, 1], [], []>} : vector<32x32xf32>, vector<32x32xf32>, vector<32x32xf32> -> vector<32x32xf32>
    %46 = arith.addf %41, %45 : vector<32x32xf32>
    %47 = vector.extract_strided_slice %37 {offsets = [1, 0], sizes = [32, 32], strides = [1, 1]} : vector<64x32xf32> to vector<32x32xf32>
    %c2 = arith.constant 2 : index
    %c0_23 = arith.constant 0 : index
    %c0_24 = arith.constant 0 : index
    %48 = vector.load %arg2[%c2, %c0_23, %c0_24] : memref<3x32x32xf32, #tpu.memory_space<vmem>>, vector<1x32x32xf32>
    %49 = vector.shape_cast %48 : vector<1x32x32xf32> to vector<32x32xf32>
    %cst_25 = arith.constant dense<0.000000e+00> : vector<32x32xf32>
    %50 = tpu.matmul %47, %49, %cst_25 {dimension_numbers = #tpu.dot_dimension_numbers<[1], [0], [0], [1], [0, 0, 1, 1], [], []>} : vector<32x32xf32>, vector<32x32xf32>, vector<32x32xf32> -> vector<32x32xf32>
    %51 = arith.addf %46, %50 : vector<32x32xf32>
    %c2_26 = arith.constant 2 : index
    %c0_27 = arith.constant 0 : index
    %52 = vector.load %arg12[%c2_26, %c0_27] : memref<24x128xf32, #tpu.memory_space<vmem>>, vector<1x32xf32>
    %c3 = arith.constant 3 : index
    %c0_28 = arith.constant 0 : index
    %53 = vector.load %arg12[%c3, %c0_28] : memref<24x128xf32, #tpu.memory_space<vmem>>, vector<1x32xf32>
    %cst_29 = arith.constant dense<0.000000e+00> : vector<32xf32>
    %54 = vector.multi_reduction <add>, %51, %cst_29 [1] : vector<32x32xf32> to vector<32xf32>
    %55 = vector.shape_cast %54 : vector<32xf32> to vector<32x1xf32>
    %cst_30 = arith.constant 3.200000e+01 : f32
    %56 = vector.broadcast %cst_30 : f32 to vector<32x1xf32>
    %57 = arith.divf %55, %56 : vector<32x1xf32>
    %58 = vector.broadcast %57 : vector<32x1xf32> to vector<32x32xf32>
    %59 = arith.subf %51, %58 : vector<32x32xf32>
    %60 = arith.mulf %59, %59 : vector<32x32xf32>
    %cst_31 = arith.constant dense<0.000000e+00> : vector<32xf32>
    %61 = vector.multi_reduction <add>, %60, %cst_31 [1] : vector<32x32xf32> to vector<32xf32>
    %62 = vector.shape_cast %61 : vector<32xf32> to vector<32x1xf32>
    %cst_32 = arith.constant 3.200000e+01 : f32
    %63 = vector.broadcast %cst_32 : f32 to vector<32x1xf32>
    %64 = arith.divf %62, %63 : vector<32x1xf32>
    %cst_33 = arith.constant 9.99999974E-6 : f32
    %65 = vector.broadcast %cst_33 : f32 to vector<32x1xf32>
    %66 = arith.addf %64, %65 : vector<32x1xf32>
    %67 = math.rsqrt %66 : vector<32x1xf32>
    %68 = vector.broadcast %67 : vector<32x1xf32> to vector<32x32xf32>
    %69 = arith.mulf %59, %68 : vector<32x32xf32>
    %70 = vector.broadcast %52 : vector<1x32xf32> to vector<32x32xf32>
    %71 = arith.mulf %69, %70 : vector<32x32xf32>
    %72 = vector.broadcast %53 : vector<1x32xf32> to vector<32x32xf32>
    %73 = arith.addf %71, %72 : vector<32x32xf32>
    %cst_34 = arith.constant 5.000000e-01 : f32
    %74 = vector.broadcast %cst_34 : f32 to vector<32x32xf32>
    %75 = arith.mulf %74, %73 : vector<32x32xf32>
    %cst_35 = arith.constant 4.471500e-02 : f32
    %76 = vector.broadcast %cst_35 : f32 to vector<32x32xf32>
    %77 = arith.mulf %76, %73 : vector<32x32xf32>
    %78 = arith.mulf %77, %73 : vector<32x32xf32>
    %79 = arith.mulf %78, %73 : vector<32x32xf32>
    %80 = arith.addf %73, %79 : vector<32x32xf32>
    %cst_36 = arith.constant 0.797884583 : f32
    %81 = vector.broadcast %cst_36 : f32 to vector<32x32xf32>
    %82 = arith.mulf %81, %80 : vector<32x32xf32>
    %83 = math.tanh %82 : vector<32x32xf32>
    %cst_37 = arith.constant 1.000000e+00 : f32
    %84 = vector.broadcast %cst_37 : f32 to vector<32x32xf32>
    %85 = arith.addf %84, %83 : vector<32x32xf32>
    %86 = arith.mulf %75, %85 : vector<32x32xf32>
    %87 = tpu.iota {dimensions = array<i32: 0>} : vector<32x32xi32>
    %c15_i32 = arith.constant 15 : i32
    %88 = vector.broadcast %c15_i32 : i32 to vector<32x32xi32>
    %89 = arith.andi %87, %88 : vector<32x32xi32>
    %c15_i32_38 = arith.constant 15 : i32
    %90 = vector.broadcast %c15_i32_38 : i32 to vector<32x32xi32>
    %91 = arith.cmpi slt, %89, %90 : vector<32x32xi32>
    %cst_39 = arith.constant 0.000000e+00 : f32
    %92 = vector.broadcast %cst_39 : f32 to vector<32x32xf32>
    %93 = arith.select %91, %86, %92 : vector<32x32xi1>, vector<32x32xf32>
    %94 = arith.mulf %93, %93 : vector<32x32xf32>
    %cst_40 = arith.constant dense<0.000000e+00> : vector<32xf32>
    %95 = vector.multi_reduction <add>, %94, %cst_40 [1] : vector<32x32xf32> to vector<32xf32>
    %96 = vector.shape_cast %95 : vector<32xf32> to vector<32x1xf32>
    %cst_41 = arith.constant dense<0.000000e+00> : vector<1xf32>
    %97 = vector.multi_reduction <add>, %96, %cst_41 [0] : vector<32x1xf32> to vector<1xf32>
    %98 = vector.shape_cast %97 : vector<1xf32> to vector<1x1xf32>
    %cst_42 = arith.constant 0.00104166672 : f32
    %99 = vector.broadcast %cst_42 : f32 to vector<1x1xf32>
    %100 = arith.mulf %98, %99 : vector<1x1xf32>
    %c4 = arith.constant 4 : index
    %c0_43 = arith.constant 0 : index
    %101 = vector.load %arg12[%c4, %c0_43] : memref<24x128xf32, #tpu.memory_space<vmem>>, vector<1x32xf32>
    %c5 = arith.constant 5 : index
    %c0_44 = arith.constant 0 : index
    %102 = vector.load %arg12[%c5, %c0_44] : memref<24x128xf32, #tpu.memory_space<vmem>>, vector<1x32xf32>
    %cst_45 = arith.constant dense<0.000000e+00> : vector<32xf32>
    %103 = vector.multi_reduction <add>, %86, %cst_45 [1] : vector<32x32xf32> to vector<32xf32>
    %104 = vector.shape_cast %103 : vector<32xf32> to vector<32x1xf32>
    %cst_46 = arith.constant 3.200000e+01 : f32
    %105 = vector.broadcast %cst_46 : f32 to vector<32x1xf32>
    %106 = arith.divf %104, %105 : vector<32x1xf32>
    %107 = vector.broadcast %106 : vector<32x1xf32> to vector<32x32xf32>
    %108 = arith.subf %86, %107 : vector<32x32xf32>
    %109 = arith.mulf %108, %108 : vector<32x32xf32>
    %cst_47 = arith.constant dense<0.000000e+00> : vector<32xf32>
    %110 = vector.multi_reduction <add>, %109, %cst_47 [1] : vector<32x32xf32> to vector<32xf32>
    %111 = vector.shape_cast %110 : vector<32xf32> to vector<32x1xf32>
    %cst_48 = arith.constant 3.200000e+01 : f32
    %112 = vector.broadcast %cst_48 : f32 to vector<32x1xf32>
    %113 = arith.divf %111, %112 : vector<32x1xf32>
    %cst_49 = arith.constant 9.99999974E-6 : f32
    %114 = vector.broadcast %cst_49 : f32 to vector<32x1xf32>
    %115 = arith.addf %113, %114 : vector<32x1xf32>
    %116 = math.rsqrt %115 : vector<32x1xf32>
    %117 = vector.broadcast %116 : vector<32x1xf32> to vector<32x32xf32>
    %118 = arith.mulf %108, %117 : vector<32x32xf32>
    %119 = vector.broadcast %101 : vector<1x32xf32> to vector<32x32xf32>
    %120 = arith.mulf %118, %119 : vector<32x32xf32>
    %121 = vector.broadcast %102 : vector<1x32xf32> to vector<32x32xf32>
    %122 = arith.addf %120, %121 : vector<32x32xf32>
    %c0_50 = arith.constant 0 : index
    %c0_51 = arith.constant 0 : index
    %123 = vector.load %arg3[%c0_50, %c0_51] : memref<32x64xf32, #tpu.memory_space<vmem>>, vector<32x64xf32>
    %cst_52 = arith.constant dense<0.000000e+00> : vector<32x64xf32>
    %124 = tpu.matmul %122, %123, %cst_52 {dimension_numbers = #tpu.dot_dimension_numbers<[1], [0], [0], [1], [0, 0, 1, 1], [], []>} : vector<32x32xf32>, vector<32x64xf32>, vector<32x64xf32> -> vector<32x64xf32>
    %c6 = arith.constant 6 : index
    %c0_53 = arith.constant 0 : index
    %125 = vector.load %arg12[%c6, %c0_53] : memref<24x128xf32, #tpu.memory_space<vmem>>, vector<1x64xf32>
    %126 = vector.broadcast %125 : vector<1x64xf32> to vector<32x64xf32>
    %127 = arith.addf %124, %126 : vector<32x64xf32>
    %128 = tpu.iota {dimensions = array<i32: 0>} : vector<32x64xi32>
    %c15_i32_54 = arith.constant 15 : i32
    %129 = vector.broadcast %c15_i32_54 : i32 to vector<32x64xi32>
    %130 = arith.andi %128, %129 : vector<32x64xi32>
    %c15_i32_55 = arith.constant 15 : i32
    %131 = vector.broadcast %c15_i32_55 : i32 to vector<32x64xi32>
    %132 = arith.cmpi slt, %130, %131 : vector<32x64xi32>
    %cst_56 = arith.constant 0.000000e+00 : f32
    %133 = vector.broadcast %cst_56 : f32 to vector<32x64xf32>
    %134 = arith.select %132, %127, %133 : vector<32x64xi1>, vector<32x64xf32>
    %135 = tpu.iota {dimensions = array<i32: 0>} : vector<32x32xi32>
    %136 = tpu.iota {dimensions = array<i32: 1>} : vector<32x32xi32>
    %c1_i32 = arith.constant 1 : i32
    %137 = vector.broadcast %c1_i32 : i32 to vector<32x32xi32>
    %138 = arith.addi %136, %137 : vector<32x32xi32>
    %139 = arith.cmpi eq, %135, %138 : vector<32x32xi32>
    %cst_57 = arith.constant 1.000000e+00 : f32
    %cst_58 = arith.constant 0.000000e+00 : f32
    %140 = vector.broadcast %cst_57 : f32 to vector<32x32xf32>
    %141 = vector.broadcast %cst_58 : f32 to vector<32x32xf32>
    %142 = arith.select %139, %140, %141 : vector<32x32xi1>, vector<32x32xf32>
    %c1_i32_59 = arith.constant 1 : i32
    %143 = vector.broadcast %c1_i32_59 : i32 to vector<32x32xi32>
    %144 = arith.addi %135, %143 : vector<32x32xi32>
    %145 = arith.cmpi eq, %144, %136 : vector<32x32xi32>
    %cst_60 = arith.constant 1.000000e+00 : f32
    %cst_61 = arith.constant 0.000000e+00 : f32
    %146 = vector.broadcast %cst_60 : f32 to vector<32x32xf32>
    %147 = vector.broadcast %cst_61 : f32 to vector<32x32xf32>
    %148 = arith.select %145, %146, %147 : vector<32x32xi1>, vector<32x32xf32>
    %cst_62 = arith.constant dense<0.000000e+00> : vector<32x64xf32>
    %149 = tpu.matmul %142, %134, %cst_62 {dimension_numbers = #tpu.dot_dimension_numbers<[1], [0], [0], [1], [0, 0, 1, 1], [], []>} : vector<32x32xf32>, vector<32x64xf32>, vector<32x64xf32> -> vector<32x64xf32>
    %cst_63 = arith.constant dense<0.000000e+00> : vector<32x64xf32>
    %150 = tpu.matmul %148, %134, %cst_63 {dimension_numbers = #tpu.dot_dimension_numbers<[1], [0], [0], [1], [0, 0, 1, 1], [], []>} : vector<32x32xf32>, vector<32x64xf32>, vector<32x64xf32> -> vector<32x64xf32>
    %c0_64 = arith.constant 0 : index
    %c0_65 = arith.constant 0 : index
    %c0_66 = arith.constant 0 : index
    %151 = vector.load %arg4[%c0_64, %c0_65, %c0_66] : memref<3x64x64xf32, #tpu.memory_space<vmem>>, vector<1x64x64xf32>
    %152 = vector.shape_cast %151 : vector<1x64x64xf32> to vector<64x64xf32>
    %cst_67 = arith.constant dense<0.000000e+00> : vector<32x64xf32>
    %153 = tpu.matmul %149, %152, %cst_67 {dimension_numbers = #tpu.dot_dimension_numbers<[1], [0], [0], [1], [0, 0, 1, 1], [], []>} : vector<32x64xf32>, vector<64x64xf32>, vector<32x64xf32> -> vector<32x64xf32>
    %c1_68 = arith.constant 1 : index
    %c0_69 = arith.constant 0 : index
    %c0_70 = arith.constant 0 : index
    %154 = vector.load %arg4[%c1_68, %c0_69, %c0_70] : memref<3x64x64xf32, #tpu.memory_space<vmem>>, vector<1x64x64xf32>
    %155 = vector.shape_cast %154 : vector<1x64x64xf32> to vector<64x64xf32>
    %cst_71 = arith.constant dense<0.000000e+00> : vector<32x64xf32>
    %156 = tpu.matmul %134, %155, %cst_71 {dimension_numbers = #tpu.dot_dimension_numbers<[1], [0], [0], [1], [0, 0, 1, 1], [], []>} : vector<32x64xf32>, vector<64x64xf32>, vector<32x64xf32> -> vector<32x64xf32>
    %157 = arith.addf %153, %156 : vector<32x64xf32>
    %c2_72 = arith.constant 2 : index
    %c0_73 = arith.constant 0 : index
    %c0_74 = arith.constant 0 : index
    %158 = vector.load %arg4[%c2_72, %c0_73, %c0_74] : memref<3x64x64xf32, #tpu.memory_space<vmem>>, vector<1x64x64xf32>
    %159 = vector.shape_cast %158 : vector<1x64x64xf32> to vector<64x64xf32>
    %cst_75 = arith.constant dense<0.000000e+00> : vector<32x64xf32>
    %160 = tpu.matmul %150, %159, %cst_75 {dimension_numbers = #tpu.dot_dimension_numbers<[1], [0], [0], [1], [0, 0, 1, 1], [], []>} : vector<32x64xf32>, vector<64x64xf32>, vector<32x64xf32> -> vector<32x64xf32>
    %161 = arith.addf %157, %160 : vector<32x64xf32>
    %c7 = arith.constant 7 : index
    %c0_76 = arith.constant 0 : index
    %162 = vector.load %arg12[%c7, %c0_76] : memref<24x128xf32, #tpu.memory_space<vmem>>, vector<1x64xf32>
    %163 = vector.broadcast %162 : vector<1x64xf32> to vector<32x64xf32>
    %164 = arith.addf %161, %163 : vector<32x64xf32>
    %cst_77 = arith.constant 5.000000e-01 : f32
    %165 = vector.broadcast %cst_77 : f32 to vector<32x64xf32>
    %166 = arith.mulf %165, %164 : vector<32x64xf32>
    %cst_78 = arith.constant 4.471500e-02 : f32
    %167 = vector.broadcast %cst_78 : f32 to vector<32x64xf32>
    %168 = arith.mulf %167, %164 : vector<32x64xf32>
    %169 = arith.mulf %168, %164 : vector<32x64xf32>
    %170 = arith.mulf %169, %164 : vector<32x64xf32>
    %171 = arith.addf %164, %170 : vector<32x64xf32>
    %cst_79 = arith.constant 0.797884583 : f32
    %172 = vector.broadcast %cst_79 : f32 to vector<32x64xf32>
    %173 = arith.mulf %172, %171 : vector<32x64xf32>
    %174 = math.tanh %173 : vector<32x64xf32>
    %cst_80 = arith.constant 1.000000e+00 : f32
    %175 = vector.broadcast %cst_80 : f32 to vector<32x64xf32>
    %176 = arith.addf %175, %174 : vector<32x64xf32>
    %177 = arith.mulf %166, %176 : vector<32x64xf32>
    %178 = arith.addf %134, %177 : vector<32x64xf32>
    %c8 = arith.constant 8 : index
    %c0_81 = arith.constant 0 : index
    %179 = vector.load %arg12[%c8, %c0_81] : memref<24x128xf32, #tpu.memory_space<vmem>>, vector<1x64xf32>
    %c9 = arith.constant 9 : index
    %c0_82 = arith.constant 0 : index
    %180 = vector.load %arg12[%c9, %c0_82] : memref<24x128xf32, #tpu.memory_space<vmem>>, vector<1x64xf32>
    %cst_83 = arith.constant dense<0.000000e+00> : vector<32xf32>
    %181 = vector.multi_reduction <add>, %178, %cst_83 [1] : vector<32x64xf32> to vector<32xf32>
    %182 = vector.shape_cast %181 : vector<32xf32> to vector<32x1xf32>
    %cst_84 = arith.constant 6.400000e+01 : f32
    %183 = vector.broadcast %cst_84 : f32 to vector<32x1xf32>
    %184 = arith.divf %182, %183 : vector<32x1xf32>
    %185 = vector.broadcast %184 : vector<32x1xf32> to vector<32x64xf32>
    %186 = arith.subf %178, %185 : vector<32x64xf32>
    %187 = arith.mulf %186, %186 : vector<32x64xf32>
    %cst_85 = arith.constant dense<0.000000e+00> : vector<32xf32>
    %188 = vector.multi_reduction <add>, %187, %cst_85 [1] : vector<32x64xf32> to vector<32xf32>
    %189 = vector.shape_cast %188 : vector<32xf32> to vector<32x1xf32>
    %cst_86 = arith.constant 6.400000e+01 : f32
    %190 = vector.broadcast %cst_86 : f32 to vector<32x1xf32>
    %191 = arith.divf %189, %190 : vector<32x1xf32>
    %cst_87 = arith.constant 9.99999974E-6 : f32
    %192 = vector.broadcast %cst_87 : f32 to vector<32x1xf32>
    %193 = arith.addf %191, %192 : vector<32x1xf32>
    %194 = math.rsqrt %193 : vector<32x1xf32>
    %195 = vector.broadcast %194 : vector<32x1xf32> to vector<32x64xf32>
    %196 = arith.mulf %186, %195 : vector<32x64xf32>
    %197 = vector.broadcast %179 : vector<1x64xf32> to vector<32x64xf32>
    %198 = arith.mulf %196, %197 : vector<32x64xf32>
    %199 = vector.broadcast %180 : vector<1x64xf32> to vector<32x64xf32>
    %200 = arith.addf %198, %199 : vector<32x64xf32>
    %201 = tpu.iota {dimensions = array<i32: 1>} : vector<16x16xi32>
    %c15_i32_88 = arith.constant 15 : i32
    %202 = vector.broadcast %c15_i32_88 : i32 to vector<16x16xi32>
    %203 = arith.cmpi slt, %201, %202 : vector<16x16xi32>
    %204 = vector.shape_cast %203 : vector<16x16xi1> to vector<1x16x16xi1>
    %205 = vector.shape_cast %204 : vector<1x16x16xi1> to vector<1x16x16xi1>
    %206 = vector.broadcast %205 : vector<1x16x16xi1> to vector<2x16x16xi1>
    %c0_89 = arith.constant 0 : index
    %c0_90 = arith.constant 0 : index
    %c0_91 = arith.constant 0 : index
    %207 = vector.load %arg11[%c0_89, %c0_90, %c0_91] : memref<2x12x16xf32, #tpu.memory_space<vmem>>, vector<1x12x16xf32>
    %208 = vector.shape_cast %207 : vector<1x12x16xf32> to vector<12x16xf32>
    %cst_92 = arith.constant 0.000000e+00 : f32
    %209 = vector.broadcast %cst_92 : f32 to vector<32x64xf32>
    %c0_93 = arith.constant 0 : index
    %c0_94 = arith.constant 0 : index
    %c0_95 = arith.constant 0 : index
    %210 = vector.load %arg5[%c0_93, %c0_94, %c0_95] : memref<8x16x64xf32, #tpu.memory_space<vmem>>, vector<1x16x64xf32>
    %211 = vector.shape_cast %210 : vector<1x16x64xf32> to vector<16x64xf32>
    %cst_96 = arith.constant dense<0.000000e+00> : vector<32x16xf32>
    %212 = tpu.matmul %200, %211, %cst_96 {dimension_numbers = #tpu.dot_dimension_numbers<[1], [1], [0], [0], [0, 0, 1, 0], [], []>} : vector<32x64xf32>, vector<16x64xf32>, vector<32x16xf32> -> vector<32x16xf32>
    %213 = vector.extract_strided_slice %208 {offsets = [0, 0], sizes = [1, 16], strides = [1, 1]} : vector<12x16xf32> to vector<1x16xf32>
    %214 = vector.broadcast %213 : vector<1x16xf32> to vector<32x16xf32>
    %215 = arith.addf %212, %214 : vector<32x16xf32>
    %c0_97 = arith.constant 0 : index
    %c0_98 = arith.constant 0 : index
    %c0_99 = arith.constant 0 : index
    %216 = vector.load %arg6[%c0_97, %c0_98, %c0_99] : memref<8x16x64xf32, #tpu.memory_space<vmem>>, vector<1x16x64xf32>
    %217 = vector.shape_cast %216 : vector<1x16x64xf32> to vector<16x64xf32>
    %cst_100 = arith.constant dense<0.000000e+00> : vector<32x16xf32>
    %218 = tpu.matmul %200, %217, %cst_100 {dimension_numbers = #tpu.dot_dimension_numbers<[1], [1], [0], [0], [0, 0, 1, 0], [], []>} : vector<32x64xf32>, vector<16x64xf32>, vector<32x16xf32> -> vector<32x16xf32>
    %219 = vector.extract_strided_slice %208 {offsets = [4, 0], sizes = [1, 16], strides = [1, 1]} : vector<12x16xf32> to vector<1x16xf32>
    %220 = vector.broadcast %219 : vector<1x16xf32> to vector<32x16xf32>
    %221 = arith.addf %218, %220 : vector<32x16xf32>
    %c0_101 = arith.constant 0 : index
    %c0_102 = arith.constant 0 : index
    %c0_103 = arith.constant 0 : index
    %222 = vector.load %arg7[%c0_101, %c0_102, %c0_103] : memref<8x16x64xf32, #tpu.memory_space<vmem>>, vector<1x16x64xf32>
    %223 = vector.shape_cast %222 : vector<1x16x64xf32> to vector<16x64xf32>
    %cst_104 = arith.constant dense<0.000000e+00> : vector<32x16xf32>
    %224 = tpu.matmul %200, %223, %cst_104 {dimension_numbers = #tpu.dot_dimension_numbers<[1], [1], [0], [0], [0, 0, 1, 0], [], []>} : vector<32x64xf32>, vector<16x64xf32>, vector<32x16xf32> -> vector<32x16xf32>
    %225 = vector.extract_strided_slice %208 {offsets = [8, 0], sizes = [1, 16], strides = [1, 1]} : vector<12x16xf32> to vector<1x16xf32>
    %226 = vector.broadcast %225 : vector<1x16xf32> to vector<32x16xf32>
    %227 = arith.addf %224, %226 : vector<32x16xf32>
    %cst_105 = arith.constant 2.500000e-01 : f32
    %228 = vector.broadcast %cst_105 : f32 to vector<32x16xf32>
    %229 = arith.mulf %215, %228 : vector<32x16xf32>
    %230 = vector.shape_cast %229 : vector<32x16xf32> to vector<2x16x16xf32>
    %231 = vector.shape_cast %221 : vector<32x16xf32> to vector<2x16x16xf32>
    %232 = vector.shape_cast %227 : vector<32x16xf32> to vector<2x16x16xf32>
    "tpu.trace_start"() <{level = 10 : i32, message = "bqd,bkd->bqk"}> : () -> ()
    %cst_106 = arith.constant dense<0.000000e+00> : vector<2x16x16xf32>
    %233 = tpu.matmul %230, %231, %cst_106 {dimension_numbers = #tpu.dot_dimension_numbers<[2], [2], [1], [1], [0, 0, 0, 1, 1, 1], [0], [0]>} : vector<2x16x16xf32>, vector<2x16x16xf32>, vector<2x16x16xf32> -> vector<2x16x16xf32>
    %cst_107 = arith.constant -1.000000e+30 : f32
    "tpu.trace_stop"() : () -> ()
    %234 = vector.broadcast %cst_107 : f32 to vector<2x16x16xf32>
    %235 = arith.select %206, %233, %234 : vector<2x16x16xi1>, vector<2x16x16xf32>
    %cst_108 = arith.constant dense<0xFF800000> : vector<2x16xf32>
    %236 = vector.multi_reduction <maximumf>, %235, %cst_108 [2] : vector<2x16x16xf32> to vector<2x16xf32>
    %237 = vector.shape_cast %236 : vector<2x16xf32> to vector<2x16x1xf32>
    %238 = vector.broadcast %237 : vector<2x16x1xf32> to vector<2x16x16xf32>
    %239 = arith.subf %235, %238 : vector<2x16x16xf32>
    %240 = math.exp %239 : vector<2x16x16xf32>
    %cst_109 = arith.constant dense<0.000000e+00> : vector<2x16xf32>
    %241 = vector.multi_reduction <add>, %240, %cst_109 [2] : vector<2x16x16xf32> to vector<2x16xf32>
    %242 = vector.shape_cast %241 : vector<2x16xf32> to vector<2x16x1xf32>
    %243 = tpu.reciprocal %242 {approx = true} : vector<2x16x1xf32> -> vector<2x16x1xf32>
    %244 = vector.broadcast %243 : vector<2x16x1xf32> to vector<2x16x16xf32>
    %245 = arith.mulf %240, %244 : vector<2x16x16xf32>
    "tpu.trace_start"() <{level = 10 : i32, message = "bqk,bkd->bqd"}> : () -> ()
    %cst_110 = arith.constant dense<0.000000e+00> : vector<2x16x16xf32>
    %246 = tpu.matmul %245, %232, %cst_110 {dimension_numbers = #tpu.dot_dimension_numbers<[2], [1], [1], [2], [0, 0, 0, 1, 1, 2], [0], [0]>} : vector<2x16x16xf32>, vector<2x16x16xf32>, vector<2x16x16xf32> -> vector<2x16x16xf32>
    "tpu.trace_stop"() : () -> ()
    %247 = vector.shape_cast %246 : vector<2x16x16xf32> to vector<32x16xf32>
    %c0_111 = arith.constant 0 : index
    %c0_112 = arith.constant 0 : index
    %c0_113 = arith.constant 0 : index
    %248 = vector.load %arg8[%c0_111, %c0_112, %c0_113] : memref<8x16x64xf32, #tpu.memory_space<vmem>>, vector<1x16x64xf32>
    %249 = vector.shape_cast %248 : vector<1x16x64xf32> to vector<16x64xf32>
    %cst_114 = arith.constant dense<0.000000e+00> : vector<32x64xf32>
    %250 = tpu.matmul %247, %249, %cst_114 {dimension_numbers = #tpu.dot_dimension_numbers<[1], [0], [0], [1], [0, 0, 1, 1], [], []>} : vector<32x16xf32>, vector<16x64xf32>, vector<32x64xf32> -> vector<32x64xf32>
    %251 = arith.addf %209, %250 : vector<32x64xf32>
    %c1_115 = arith.constant 1 : index
    %c0_116 = arith.constant 0 : index
    %c0_117 = arith.constant 0 : index
    %252 = vector.load %arg5[%c1_115, %c0_116, %c0_117] : memref<8x16x64xf32, #tpu.memory_space<vmem>>, vector<1x16x64xf32>
    %253 = vector.shape_cast %252 : vector<1x16x64xf32> to vector<16x64xf32>
    %cst_118 = arith.constant dense<0.000000e+00> : vector<32x16xf32>
    %254 = tpu.matmul %200, %253, %cst_118 {dimension_numbers = #tpu.dot_dimension_numbers<[1], [1], [0], [0], [0, 0, 1, 0], [], []>} : vector<32x64xf32>, vector<16x64xf32>, vector<32x16xf32> -> vector<32x16xf32>
    %255 = vector.extract_strided_slice %208 {offsets = [1, 0], sizes = [1, 16], strides = [1, 1]} : vector<12x16xf32> to vector<1x16xf32>
    %256 = vector.broadcast %255 : vector<1x16xf32> to vector<32x16xf32>
    %257 = arith.addf %254, %256 : vector<32x16xf32>
    %c1_119 = arith.constant 1 : index
    %c0_120 = arith.constant 0 : index
    %c0_121 = arith.constant 0 : index
    %258 = vector.load %arg6[%c1_119, %c0_120, %c0_121] : memref<8x16x64xf32, #tpu.memory_space<vmem>>, vector<1x16x64xf32>
    %259 = vector.shape_cast %258 : vector<1x16x64xf32> to vector<16x64xf32>
    %cst_122 = arith.constant dense<0.000000e+00> : vector<32x16xf32>
    %260 = tpu.matmul %200, %259, %cst_122 {dimension_numbers = #tpu.dot_dimension_numbers<[1], [1], [0], [0], [0, 0, 1, 0], [], []>} : vector<32x64xf32>, vector<16x64xf32>, vector<32x16xf32> -> vector<32x16xf32>
    %261 = vector.extract_strided_slice %208 {offsets = [5, 0], sizes = [1, 16], strides = [1, 1]} : vector<12x16xf32> to vector<1x16xf32>
    %262 = vector.broadcast %261 : vector<1x16xf32> to vector<32x16xf32>
    %263 = arith.addf %260, %262 : vector<32x16xf32>
    %c1_123 = arith.constant 1 : index
    %c0_124 = arith.constant 0 : index
    %c0_125 = arith.constant 0 : index
    %264 = vector.load %arg7[%c1_123, %c0_124, %c0_125] : memref<8x16x64xf32, #tpu.memory_space<vmem>>, vector<1x16x64xf32>
    %265 = vector.shape_cast %264 : vector<1x16x64xf32> to vector<16x64xf32>
    %cst_126 = arith.constant dense<0.000000e+00> : vector<32x16xf32>
    %266 = tpu.matmul %200, %265, %cst_126 {dimension_numbers = #tpu.dot_dimension_numbers<[1], [1], [0], [0], [0, 0, 1, 0], [], []>} : vector<32x64xf32>, vector<16x64xf32>, vector<32x16xf32> -> vector<32x16xf32>
    %267 = vector.extract_strided_slice %208 {offsets = [9, 0], sizes = [1, 16], strides = [1, 1]} : vector<12x16xf32> to vector<1x16xf32>
    %268 = vector.broadcast %267 : vector<1x16xf32> to vector<32x16xf32>
    %269 = arith.addf %266, %268 : vector<32x16xf32>
    %cst_127 = arith.constant 2.500000e-01 : f32
    %270 = vector.broadcast %cst_127 : f32 to vector<32x16xf32>
    %271 = arith.mulf %257, %270 : vector<32x16xf32>
    %272 = vector.shape_cast %271 : vector<32x16xf32> to vector<2x16x16xf32>
    %273 = vector.shape_cast %263 : vector<32x16xf32> to vector<2x16x16xf32>
    %274 = vector.shape_cast %269 : vector<32x16xf32> to vector<2x16x16xf32>
    "tpu.trace_start"() <{level = 10 : i32, message = "bqd,bkd->bqk"}> : () -> ()
    %cst_128 = arith.constant dense<0.000000e+00> : vector<2x16x16xf32>
    %275 = tpu.matmul %272, %273, %cst_128 {dimension_numbers = #tpu.dot_dimension_numbers<[2], [2], [1], [1], [0, 0, 0, 1, 1, 1], [0], [0]>} : vector<2x16x16xf32>, vector<2x16x16xf32>, vector<2x16x16xf32> -> vector<2x16x16xf32>
    %cst_129 = arith.constant -1.000000e+30 : f32
    "tpu.trace_stop"() : () -> ()
    %276 = vector.broadcast %cst_129 : f32 to vector<2x16x16xf32>
    %277 = arith.select %206, %275, %276 : vector<2x16x16xi1>, vector<2x16x16xf32>
    %cst_130 = arith.constant dense<0xFF800000> : vector<2x16xf32>
    %278 = vector.multi_reduction <maximumf>, %277, %cst_130 [2] : vector<2x16x16xf32> to vector<2x16xf32>
    %279 = vector.shape_cast %278 : vector<2x16xf32> to vector<2x16x1xf32>
    %280 = vector.broadcast %279 : vector<2x16x1xf32> to vector<2x16x16xf32>
    %281 = arith.subf %277, %280 : vector<2x16x16xf32>
    %282 = math.exp %281 : vector<2x16x16xf32>
    %cst_131 = arith.constant dense<0.000000e+00> : vector<2x16xf32>
    %283 = vector.multi_reduction <add>, %282, %cst_131 [2] : vector<2x16x16xf32> to vector<2x16xf32>
    %284 = vector.shape_cast %283 : vector<2x16xf32> to vector<2x16x1xf32>
    %285 = tpu.reciprocal %284 {approx = true} : vector<2x16x1xf32> -> vector<2x16x1xf32>
    %286 = vector.broadcast %285 : vector<2x16x1xf32> to vector<2x16x16xf32>
    %287 = arith.mulf %282, %286 : vector<2x16x16xf32>
    "tpu.trace_start"() <{level = 10 : i32, message = "bqk,bkd->bqd"}> : () -> ()
    %cst_132 = arith.constant dense<0.000000e+00> : vector<2x16x16xf32>
    %288 = tpu.matmul %287, %274, %cst_132 {dimension_numbers = #tpu.dot_dimension_numbers<[2], [1], [1], [2], [0, 0, 0, 1, 1, 2], [0], [0]>} : vector<2x16x16xf32>, vector<2x16x16xf32>, vector<2x16x16xf32> -> vector<2x16x16xf32>
    "tpu.trace_stop"() : () -> ()
    %289 = vector.shape_cast %288 : vector<2x16x16xf32> to vector<32x16xf32>
    %c1_133 = arith.constant 1 : index
    %c0_134 = arith.constant 0 : index
    %c0_135 = arith.constant 0 : index
    %290 = vector.load %arg8[%c1_133, %c0_134, %c0_135] : memref<8x16x64xf32, #tpu.memory_space<vmem>>, vector<1x16x64xf32>
    %291 = vector.shape_cast %290 : vector<1x16x64xf32> to vector<16x64xf32>
    %cst_136 = arith.constant dense<0.000000e+00> : vector<32x64xf32>
    %292 = tpu.matmul %289, %291, %cst_136 {dimension_numbers = #tpu.dot_dimension_numbers<[1], [0], [0], [1], [0, 0, 1, 1], [], []>} : vector<32x16xf32>, vector<16x64xf32>, vector<32x64xf32> -> vector<32x64xf32>
    %293 = arith.addf %251, %292 : vector<32x64xf32>
    %c2_137 = arith.constant 2 : index
    %c0_138 = arith.constant 0 : index
    %c0_139 = arith.constant 0 : index
    %294 = vector.load %arg5[%c2_137, %c0_138, %c0_139] : memref<8x16x64xf32, #tpu.memory_space<vmem>>, vector<1x16x64xf32>
    %295 = vector.shape_cast %294 : vector<1x16x64xf32> to vector<16x64xf32>
    %cst_140 = arith.constant dense<0.000000e+00> : vector<32x16xf32>
    %296 = tpu.matmul %200, %295, %cst_140 {dimension_numbers = #tpu.dot_dimension_numbers<[1], [1], [0], [0], [0, 0, 1, 0], [], []>} : vector<32x64xf32>, vector<16x64xf32>, vector<32x16xf32> -> vector<32x16xf32>
    %297 = vector.extract_strided_slice %208 {offsets = [2, 0], sizes = [1, 16], strides = [1, 1]} : vector<12x16xf32> to vector<1x16xf32>
    %298 = vector.broadcast %297 : vector<1x16xf32> to vector<32x16xf32>
    %299 = arith.addf %296, %298 : vector<32x16xf32>
    %c2_141 = arith.constant 2 : index
    %c0_142 = arith.constant 0 : index
    %c0_143 = arith.constant 0 : index
    %300 = vector.load %arg6[%c2_141, %c0_142, %c0_143] : memref<8x16x64xf32, #tpu.memory_space<vmem>>, vector<1x16x64xf32>
    %301 = vector.shape_cast %300 : vector<1x16x64xf32> to vector<16x64xf32>
    %cst_144 = arith.constant dense<0.000000e+00> : vector<32x16xf32>
    %302 = tpu.matmul %200, %301, %cst_144 {dimension_numbers = #tpu.dot_dimension_numbers<[1], [1], [0], [0], [0, 0, 1, 0], [], []>} : vector<32x64xf32>, vector<16x64xf32>, vector<32x16xf32> -> vector<32x16xf32>
    %303 = vector.extract_strided_slice %208 {offsets = [6, 0], sizes = [1, 16], strides = [1, 1]} : vector<12x16xf32> to vector<1x16xf32>
    %304 = vector.broadcast %303 : vector<1x16xf32> to vector<32x16xf32>
    %305 = arith.addf %302, %304 : vector<32x16xf32>
    %c2_145 = arith.constant 2 : index
    %c0_146 = arith.constant 0 : index
    %c0_147 = arith.constant 0 : index
    %306 = vector.load %arg7[%c2_145, %c0_146, %c0_147] : memref<8x16x64xf32, #tpu.memory_space<vmem>>, vector<1x16x64xf32>
    %307 = vector.shape_cast %306 : vector<1x16x64xf32> to vector<16x64xf32>
    %cst_148 = arith.constant dense<0.000000e+00> : vector<32x16xf32>
    %308 = tpu.matmul %200, %307, %cst_148 {dimension_numbers = #tpu.dot_dimension_numbers<[1], [1], [0], [0], [0, 0, 1, 0], [], []>} : vector<32x64xf32>, vector<16x64xf32>, vector<32x16xf32> -> vector<32x16xf32>
    %309 = vector.extract_strided_slice %208 {offsets = [10, 0], sizes = [1, 16], strides = [1, 1]} : vector<12x16xf32> to vector<1x16xf32>
    %310 = vector.broadcast %309 : vector<1x16xf32> to vector<32x16xf32>
    %311 = arith.addf %308, %310 : vector<32x16xf32>
    %cst_149 = arith.constant 2.500000e-01 : f32
    %312 = vector.broadcast %cst_149 : f32 to vector<32x16xf32>
    %313 = arith.mulf %299, %312 : vector<32x16xf32>
    %314 = vector.shape_cast %313 : vector<32x16xf32> to vector<2x16x16xf32>
    %315 = vector.shape_cast %305 : vector<32x16xf32> to vector<2x16x16xf32>
    %316 = vector.shape_cast %311 : vector<32x16xf32> to vector<2x16x16xf32>
    "tpu.trace_start"() <{level = 10 : i32, message = "bqd,bkd->bqk"}> : () -> ()
    %cst_150 = arith.constant dense<0.000000e+00> : vector<2x16x16xf32>
    %317 = tpu.matmul %314, %315, %cst_150 {dimension_numbers = #tpu.dot_dimension_numbers<[2], [2], [1], [1], [0, 0, 0, 1, 1, 1], [0], [0]>} : vector<2x16x16xf32>, vector<2x16x16xf32>, vector<2x16x16xf32> -> vector<2x16x16xf32>
    %cst_151 = arith.constant -1.000000e+30 : f32
    "tpu.trace_stop"() : () -> ()
    %318 = vector.broadcast %cst_151 : f32 to vector<2x16x16xf32>
    %319 = arith.select %206, %317, %318 : vector<2x16x16xi1>, vector<2x16x16xf32>
    %cst_152 = arith.constant dense<0xFF800000> : vector<2x16xf32>
    %320 = vector.multi_reduction <maximumf>, %319, %cst_152 [2] : vector<2x16x16xf32> to vector<2x16xf32>
    %321 = vector.shape_cast %320 : vector<2x16xf32> to vector<2x16x1xf32>
    %322 = vector.broadcast %321 : vector<2x16x1xf32> to vector<2x16x16xf32>
    %323 = arith.subf %319, %322 : vector<2x16x16xf32>
    %324 = math.exp %323 : vector<2x16x16xf32>
    %cst_153 = arith.constant dense<0.000000e+00> : vector<2x16xf32>
    %325 = vector.multi_reduction <add>, %324, %cst_153 [2] : vector<2x16x16xf32> to vector<2x16xf32>
    %326 = vector.shape_cast %325 : vector<2x16xf32> to vector<2x16x1xf32>
    %327 = tpu.reciprocal %326 {approx = true} : vector<2x16x1xf32> -> vector<2x16x1xf32>
    %328 = vector.broadcast %327 : vector<2x16x1xf32> to vector<2x16x16xf32>
    %329 = arith.mulf %324, %328 : vector<2x16x16xf32>
    "tpu.trace_start"() <{level = 10 : i32, message = "bqk,bkd->bqd"}> : () -> ()
    %cst_154 = arith.constant dense<0.000000e+00> : vector<2x16x16xf32>
    %330 = tpu.matmul %329, %316, %cst_154 {dimension_numbers = #tpu.dot_dimension_numbers<[2], [1], [1], [2], [0, 0, 0, 1, 1, 2], [0], [0]>} : vector<2x16x16xf32>, vector<2x16x16xf32>, vector<2x16x16xf32> -> vector<2x16x16xf32>
    "tpu.trace_stop"() : () -> ()
    %331 = vector.shape_cast %330 : vector<2x16x16xf32> to vector<32x16xf32>
    %c2_155 = arith.constant 2 : index
    %c0_156 = arith.constant 0 : index
    %c0_157 = arith.constant 0 : index
    %332 = vector.load %arg8[%c2_155, %c0_156, %c0_157] : memref<8x16x64xf32, #tpu.memory_space<vmem>>, vector<1x16x64xf32>
    %333 = vector.shape_cast %332 : vector<1x16x64xf32> to vector<16x64xf32>
    %cst_158 = arith.constant dense<0.000000e+00> : vector<32x64xf32>
    %334 = tpu.matmul %331, %333, %cst_158 {dimension_numbers = #tpu.dot_dimension_numbers<[1], [0], [0], [1], [0, 0, 1, 1], [], []>} : vector<32x16xf32>, vector<16x64xf32>, vector<32x64xf32> -> vector<32x64xf32>
    %335 = arith.addf %293, %334 : vector<32x64xf32>
    %c3_159 = arith.constant 3 : index
    %c0_160 = arith.constant 0 : index
    %c0_161 = arith.constant 0 : index
    %336 = vector.load %arg5[%c3_159, %c0_160, %c0_161] : memref<8x16x64xf32, #tpu.memory_space<vmem>>, vector<1x16x64xf32>
    %337 = vector.shape_cast %336 : vector<1x16x64xf32> to vector<16x64xf32>
    %cst_162 = arith.constant dense<0.000000e+00> : vector<32x16xf32>
    %338 = tpu.matmul %200, %337, %cst_162 {dimension_numbers = #tpu.dot_dimension_numbers<[1], [1], [0], [0], [0, 0, 1, 0], [], []>} : vector<32x64xf32>, vector<16x64xf32>, vector<32x16xf32> -> vector<32x16xf32>
    %339 = vector.extract_strided_slice %208 {offsets = [3, 0], sizes = [1, 16], strides = [1, 1]} : vector<12x16xf32> to vector<1x16xf32>
    %340 = vector.broadcast %339 : vector<1x16xf32> to vector<32x16xf32>
    %341 = arith.addf %338, %340 : vector<32x16xf32>
    %c3_163 = arith.constant 3 : index
    %c0_164 = arith.constant 0 : index
    %c0_165 = arith.constant 0 : index
    %342 = vector.load %arg6[%c3_163, %c0_164, %c0_165] : memref<8x16x64xf32, #tpu.memory_space<vmem>>, vector<1x16x64xf32>
    %343 = vector.shape_cast %342 : vector<1x16x64xf32> to vector<16x64xf32>
    %cst_166 = arith.constant dense<0.000000e+00> : vector<32x16xf32>
    %344 = tpu.matmul %200, %343, %cst_166 {dimension_numbers = #tpu.dot_dimension_numbers<[1], [1], [0], [0], [0, 0, 1, 0], [], []>} : vector<32x64xf32>, vector<16x64xf32>, vector<32x16xf32> -> vector<32x16xf32>
    %345 = vector.extract_strided_slice %208 {offsets = [7, 0], sizes = [1, 16], strides = [1, 1]} : vector<12x16xf32> to vector<1x16xf32>
    %346 = vector.broadcast %345 : vector<1x16xf32> to vector<32x16xf32>
    %347 = arith.addf %344, %346 : vector<32x16xf32>
    %c3_167 = arith.constant 3 : index
    %c0_168 = arith.constant 0 : index
    %c0_169 = arith.constant 0 : index
    %348 = vector.load %arg7[%c3_167, %c0_168, %c0_169] : memref<8x16x64xf32, #tpu.memory_space<vmem>>, vector<1x16x64xf32>
    %349 = vector.shape_cast %348 : vector<1x16x64xf32> to vector<16x64xf32>
    %cst_170 = arith.constant dense<0.000000e+00> : vector<32x16xf32>
    %350 = tpu.matmul %200, %349, %cst_170 {dimension_numbers = #tpu.dot_dimension_numbers<[1], [1], [0], [0], [0, 0, 1, 0], [], []>} : vector<32x64xf32>, vector<16x64xf32>, vector<32x16xf32> -> vector<32x16xf32>
    %351 = vector.extract_strided_slice %208 {offsets = [11, 0], sizes = [1, 16], strides = [1, 1]} : vector<12x16xf32> to vector<1x16xf32>
    %352 = vector.broadcast %351 : vector<1x16xf32> to vector<32x16xf32>
    %353 = arith.addf %350, %352 : vector<32x16xf32>
    %cst_171 = arith.constant 2.500000e-01 : f32
    %354 = vector.broadcast %cst_171 : f32 to vector<32x16xf32>
    %355 = arith.mulf %341, %354 : vector<32x16xf32>
    %356 = vector.shape_cast %355 : vector<32x16xf32> to vector<2x16x16xf32>
    %357 = vector.shape_cast %347 : vector<32x16xf32> to vector<2x16x16xf32>
    %358 = vector.shape_cast %353 : vector<32x16xf32> to vector<2x16x16xf32>
    "tpu.trace_start"() <{level = 10 : i32, message = "bqd,bkd->bqk"}> : () -> ()
    %cst_172 = arith.constant dense<0.000000e+00> : vector<2x16x16xf32>
    %359 = tpu.matmul %356, %357, %cst_172 {dimension_numbers = #tpu.dot_dimension_numbers<[2], [2], [1], [1], [0, 0, 0, 1, 1, 1], [0], [0]>} : vector<2x16x16xf32>, vector<2x16x16xf32>, vector<2x16x16xf32> -> vector<2x16x16xf32>
    %cst_173 = arith.constant -1.000000e+30 : f32
    "tpu.trace_stop"() : () -> ()
    %360 = vector.broadcast %cst_173 : f32 to vector<2x16x16xf32>
    %361 = arith.select %206, %359, %360 : vector<2x16x16xi1>, vector<2x16x16xf32>
    %cst_174 = arith.constant dense<0xFF800000> : vector<2x16xf32>
    %362 = vector.multi_reduction <maximumf>, %361, %cst_174 [2] : vector<2x16x16xf32> to vector<2x16xf32>
    %363 = vector.shape_cast %362 : vector<2x16xf32> to vector<2x16x1xf32>
    %364 = vector.broadcast %363 : vector<2x16x1xf32> to vector<2x16x16xf32>
    %365 = arith.subf %361, %364 : vector<2x16x16xf32>
    %366 = math.exp %365 : vector<2x16x16xf32>
    %cst_175 = arith.constant dense<0.000000e+00> : vector<2x16xf32>
    %367 = vector.multi_reduction <add>, %366, %cst_175 [2] : vector<2x16x16xf32> to vector<2x16xf32>
    %368 = vector.shape_cast %367 : vector<2x16xf32> to vector<2x16x1xf32>
    %369 = tpu.reciprocal %368 {approx = true} : vector<2x16x1xf32> -> vector<2x16x1xf32>
    %370 = vector.broadcast %369 : vector<2x16x1xf32> to vector<2x16x16xf32>
    %371 = arith.mulf %366, %370 : vector<2x16x16xf32>
    "tpu.trace_start"() <{level = 10 : i32, message = "bqk,bkd->bqd"}> : () -> ()
    %cst_176 = arith.constant dense<0.000000e+00> : vector<2x16x16xf32>
    %372 = tpu.matmul %371, %358, %cst_176 {dimension_numbers = #tpu.dot_dimension_numbers<[2], [1], [1], [2], [0, 0, 0, 1, 1, 2], [0], [0]>} : vector<2x16x16xf32>, vector<2x16x16xf32>, vector<2x16x16xf32> -> vector<2x16x16xf32>
    "tpu.trace_stop"() : () -> ()
    %373 = vector.shape_cast %372 : vector<2x16x16xf32> to vector<32x16xf32>
    %c3_177 = arith.constant 3 : index
    %c0_178 = arith.constant 0 : index
    %c0_179 = arith.constant 0 : index
    %374 = vector.load %arg8[%c3_177, %c0_178, %c0_179] : memref<8x16x64xf32, #tpu.memory_space<vmem>>, vector<1x16x64xf32>
    %375 = vector.shape_cast %374 : vector<1x16x64xf32> to vector<16x64xf32>
    %cst_180 = arith.constant dense<0.000000e+00> : vector<32x64xf32>
    %376 = tpu.matmul %373, %375, %cst_180 {dimension_numbers = #tpu.dot_dimension_numbers<[1], [0], [0], [1], [0, 0, 1, 1], [], []>} : vector<32x16xf32>, vector<16x64xf32>, vector<32x64xf32> -> vector<32x64xf32>
    %377 = arith.addf %335, %376 : vector<32x64xf32>
    %378 = arith.addf %200, %377 : vector<32x64xf32>
    %c10 = arith.constant 10 : index
    %c0_181 = arith.constant 0 : index
    %379 = vector.load %arg12[%c10, %c0_181] : memref<24x128xf32, #tpu.memory_space<vmem>>, vector<1x64xf32>
    %380 = vector.broadcast %379 : vector<1x64xf32> to vector<32x64xf32>
    %381 = arith.addf %378, %380 : vector<32x64xf32>
    %c11 = arith.constant 11 : index
    %c0_182 = arith.constant 0 : index
    %382 = vector.load %arg12[%c11, %c0_182] : memref<24x128xf32, #tpu.memory_space<vmem>>, vector<1x64xf32>
    %c12 = arith.constant 12 : index
    %c0_183 = arith.constant 0 : index
    %383 = vector.load %arg12[%c12, %c0_183] : memref<24x128xf32, #tpu.memory_space<vmem>>, vector<1x64xf32>
    %cst_184 = arith.constant dense<0.000000e+00> : vector<32xf32>
    %384 = vector.multi_reduction <add>, %381, %cst_184 [1] : vector<32x64xf32> to vector<32xf32>
    %385 = vector.shape_cast %384 : vector<32xf32> to vector<32x1xf32>
    %cst_185 = arith.constant 6.400000e+01 : f32
    %386 = vector.broadcast %cst_185 : f32 to vector<32x1xf32>
    %387 = arith.divf %385, %386 : vector<32x1xf32>
    %388 = vector.broadcast %387 : vector<32x1xf32> to vector<32x64xf32>
    %389 = arith.subf %381, %388 : vector<32x64xf32>
    %390 = arith.mulf %389, %389 : vector<32x64xf32>
    %cst_186 = arith.constant dense<0.000000e+00> : vector<32xf32>
    %391 = vector.multi_reduction <add>, %390, %cst_186 [1] : vector<32x64xf32> to vector<32xf32>
    %392 = vector.shape_cast %391 : vector<32xf32> to vector<32x1xf32>
    %cst_187 = arith.constant 6.400000e+01 : f32
    %393 = vector.broadcast %cst_187 : f32 to vector<32x1xf32>
    %394 = arith.divf %392, %393 : vector<32x1xf32>
    %cst_188 = arith.constant 9.99999974E-6 : f32
    %395 = vector.broadcast %cst_188 : f32 to vector<32x1xf32>
    %396 = arith.addf %394, %395 : vector<32x1xf32>
    %397 = math.rsqrt %396 : vector<32x1xf32>
    %398 = vector.broadcast %397 : vector<32x1xf32> to vector<32x64xf32>
    %399 = arith.mulf %389, %398 : vector<32x64xf32>
    %400 = vector.broadcast %382 : vector<1x64xf32> to vector<32x64xf32>
    %401 = arith.mulf %399, %400 : vector<32x64xf32>
    %402 = vector.broadcast %383 : vector<1x64xf32> to vector<32x64xf32>
    %403 = arith.addf %401, %402 : vector<32x64xf32>
    %c0_189 = arith.constant 0 : index
    %c0_190 = arith.constant 0 : index
    %c0_191 = arith.constant 0 : index
    %404 = vector.load %arg9[%c0_189, %c0_190, %c0_191] : memref<2x64x128xf32, #tpu.memory_space<vmem>>, vector<1x64x128xf32>
    %405 = vector.shape_cast %404 : vector<1x64x128xf32> to vector<64x128xf32>
    %cst_192 = arith.constant dense<0.000000e+00> : vector<32x128xf32>
    %406 = tpu.matmul %403, %405, %cst_192 {dimension_numbers = #tpu.dot_dimension_numbers<[1], [0], [0], [1], [0, 0, 1, 1], [], []>} : vector<32x64xf32>, vector<64x128xf32>, vector<32x128xf32> -> vector<32x128xf32>
    %c13 = arith.constant 13 : index
    %c0_193 = arith.constant 0 : index
    %407 = vector.load %arg12[%c13, %c0_193] : memref<24x128xf32, #tpu.memory_space<vmem>>, vector<1x128xf32>
    %408 = vector.broadcast %407 : vector<1x128xf32> to vector<32x128xf32>
    %409 = arith.addf %406, %408 : vector<32x128xf32>
    %cst_194 = arith.constant 5.000000e-01 : f32
    %410 = vector.broadcast %cst_194 : f32 to vector<32x128xf32>
    %411 = arith.mulf %410, %409 : vector<32x128xf32>
    %cst_195 = arith.constant 4.471500e-02 : f32
    %412 = vector.broadcast %cst_195 : f32 to vector<32x128xf32>
    %413 = arith.mulf %412, %409 : vector<32x128xf32>
    %414 = arith.mulf %413, %409 : vector<32x128xf32>
    %415 = arith.mulf %414, %409 : vector<32x128xf32>
    %416 = arith.addf %409, %415 : vector<32x128xf32>
    %cst_196 = arith.constant 0.797884583 : f32
    %417 = vector.broadcast %cst_196 : f32 to vector<32x128xf32>
    %418 = arith.mulf %417, %416 : vector<32x128xf32>
    %419 = math.tanh %418 : vector<32x128xf32>
    %cst_197 = arith.constant 1.000000e+00 : f32
    %420 = vector.broadcast %cst_197 : f32 to vector<32x128xf32>
    %421 = arith.addf %420, %419 : vector<32x128xf32>
    %422 = arith.mulf %411, %421 : vector<32x128xf32>
    %c0_198 = arith.constant 0 : index
    %c0_199 = arith.constant 0 : index
    %c0_200 = arith.constant 0 : index
    %423 = vector.load %arg10[%c0_198, %c0_199, %c0_200] : memref<2x128x64xf32, #tpu.memory_space<vmem>>, vector<1x128x64xf32>
    %424 = vector.shape_cast %423 : vector<1x128x64xf32> to vector<128x64xf32>
    %cst_201 = arith.constant dense<0.000000e+00> : vector<32x64xf32>
    %425 = tpu.matmul %422, %424, %cst_201 {dimension_numbers = #tpu.dot_dimension_numbers<[1], [0], [0], [1], [0, 0, 1, 1], [], []>} : vector<32x128xf32>, vector<128x64xf32>, vector<32x64xf32> -> vector<32x64xf32>
    %426 = arith.addf %403, %425 : vector<32x64xf32>
    %c14 = arith.constant 14 : index
    %c0_202 = arith.constant 0 : index
    %427 = vector.load %arg12[%c14, %c0_202] : memref<24x128xf32, #tpu.memory_space<vmem>>, vector<1x64xf32>
    %428 = vector.broadcast %427 : vector<1x64xf32> to vector<32x64xf32>
    %429 = arith.addf %426, %428 : vector<32x64xf32>
    %c15 = arith.constant 15 : index
    %c0_203 = arith.constant 0 : index
    %430 = vector.load %arg12[%c15, %c0_203] : memref<24x128xf32, #tpu.memory_space<vmem>>, vector<1x64xf32>
    %c16 = arith.constant 16 : index
    %c0_204 = arith.constant 0 : index
    %431 = vector.load %arg12[%c16, %c0_204] : memref<24x128xf32, #tpu.memory_space<vmem>>, vector<1x64xf32>
    %cst_205 = arith.constant dense<0.000000e+00> : vector<32xf32>
    %432 = vector.multi_reduction <add>, %429, %cst_205 [1] : vector<32x64xf32> to vector<32xf32>
    %433 = vector.shape_cast %432 : vector<32xf32> to vector<32x1xf32>
    %cst_206 = arith.constant 6.400000e+01 : f32
    %434 = vector.broadcast %cst_206 : f32 to vector<32x1xf32>
    %435 = arith.divf %433, %434 : vector<32x1xf32>
    %436 = vector.broadcast %435 : vector<32x1xf32> to vector<32x64xf32>
    %437 = arith.subf %429, %436 : vector<32x64xf32>
    %438 = arith.mulf %437, %437 : vector<32x64xf32>
    %cst_207 = arith.constant dense<0.000000e+00> : vector<32xf32>
    %439 = vector.multi_reduction <add>, %438, %cst_207 [1] : vector<32x64xf32> to vector<32xf32>
    %440 = vector.shape_cast %439 : vector<32xf32> to vector<32x1xf32>
    %cst_208 = arith.constant 6.400000e+01 : f32
    %441 = vector.broadcast %cst_208 : f32 to vector<32x1xf32>
    %442 = arith.divf %440, %441 : vector<32x1xf32>
    %cst_209 = arith.constant 9.99999974E-6 : f32
    %443 = vector.broadcast %cst_209 : f32 to vector<32x1xf32>
    %444 = arith.addf %442, %443 : vector<32x1xf32>
    %445 = math.rsqrt %444 : vector<32x1xf32>
    %446 = vector.broadcast %445 : vector<32x1xf32> to vector<32x64xf32>
    %447 = arith.mulf %437, %446 : vector<32x64xf32>
    %448 = vector.broadcast %430 : vector<1x64xf32> to vector<32x64xf32>
    %449 = arith.mulf %447, %448 : vector<32x64xf32>
    %450 = vector.broadcast %431 : vector<1x64xf32> to vector<32x64xf32>
    %451 = arith.addf %449, %450 : vector<32x64xf32>
    %c1_210 = arith.constant 1 : index
    %c0_211 = arith.constant 0 : index
    %c0_212 = arith.constant 0 : index
    %452 = vector.load %arg11[%c1_210, %c0_211, %c0_212] : memref<2x12x16xf32, #tpu.memory_space<vmem>>, vector<1x12x16xf32>
    %453 = vector.shape_cast %452 : vector<1x12x16xf32> to vector<12x16xf32>
    %cst_213 = arith.constant 0.000000e+00 : f32
    %454 = vector.broadcast %cst_213 : f32 to vector<32x64xf32>
    %c4_214 = arith.constant 4 : index
    %c0_215 = arith.constant 0 : index
    %c0_216 = arith.constant 0 : index
    %455 = vector.load %arg5[%c4_214, %c0_215, %c0_216] : memref<8x16x64xf32, #tpu.memory_space<vmem>>, vector<1x16x64xf32>
    %456 = vector.shape_cast %455 : vector<1x16x64xf32> to vector<16x64xf32>
    %cst_217 = arith.constant dense<0.000000e+00> : vector<32x16xf32>
    %457 = tpu.matmul %451, %456, %cst_217 {dimension_numbers = #tpu.dot_dimension_numbers<[1], [1], [0], [0], [0, 0, 1, 0], [], []>} : vector<32x64xf32>, vector<16x64xf32>, vector<32x16xf32> -> vector<32x16xf32>
    %458 = vector.extract_strided_slice %453 {offsets = [0, 0], sizes = [1, 16], strides = [1, 1]} : vector<12x16xf32> to vector<1x16xf32>
    %459 = vector.broadcast %458 : vector<1x16xf32> to vector<32x16xf32>
    %460 = arith.addf %457, %459 : vector<32x16xf32>
    %c4_218 = arith.constant 4 : index
    %c0_219 = arith.constant 0 : index
    %c0_220 = arith.constant 0 : index
    %461 = vector.load %arg6[%c4_218, %c0_219, %c0_220] : memref<8x16x64xf32, #tpu.memory_space<vmem>>, vector<1x16x64xf32>
    %462 = vector.shape_cast %461 : vector<1x16x64xf32> to vector<16x64xf32>
    %cst_221 = arith.constant dense<0.000000e+00> : vector<32x16xf32>
    %463 = tpu.matmul %451, %462, %cst_221 {dimension_numbers = #tpu.dot_dimension_numbers<[1], [1], [0], [0], [0, 0, 1, 0], [], []>} : vector<32x64xf32>, vector<16x64xf32>, vector<32x16xf32> -> vector<32x16xf32>
    %464 = vector.extract_strided_slice %453 {offsets = [4, 0], sizes = [1, 16], strides = [1, 1]} : vector<12x16xf32> to vector<1x16xf32>
    %465 = vector.broadcast %464 : vector<1x16xf32> to vector<32x16xf32>
    %466 = arith.addf %463, %465 : vector<32x16xf32>
    %c4_222 = arith.constant 4 : index
    %c0_223 = arith.constant 0 : index
    %c0_224 = arith.constant 0 : index
    %467 = vector.load %arg7[%c4_222, %c0_223, %c0_224] : memref<8x16x64xf32, #tpu.memory_space<vmem>>, vector<1x16x64xf32>
    %468 = vector.shape_cast %467 : vector<1x16x64xf32> to vector<16x64xf32>
    %cst_225 = arith.constant dense<0.000000e+00> : vector<32x16xf32>
    %469 = tpu.matmul %451, %468, %cst_225 {dimension_numbers = #tpu.dot_dimension_numbers<[1], [1], [0], [0], [0, 0, 1, 0], [], []>} : vector<32x64xf32>, vector<16x64xf32>, vector<32x16xf32> -> vector<32x16xf32>
    %470 = vector.extract_strided_slice %453 {offsets = [8, 0], sizes = [1, 16], strides = [1, 1]} : vector<12x16xf32> to vector<1x16xf32>
    %471 = vector.broadcast %470 : vector<1x16xf32> to vector<32x16xf32>
    %472 = arith.addf %469, %471 : vector<32x16xf32>
    %cst_226 = arith.constant 2.500000e-01 : f32
    %473 = vector.broadcast %cst_226 : f32 to vector<32x16xf32>
    %474 = arith.mulf %460, %473 : vector<32x16xf32>
    %475 = vector.shape_cast %474 : vector<32x16xf32> to vector<2x16x16xf32>
    %476 = vector.shape_cast %466 : vector<32x16xf32> to vector<2x16x16xf32>
    %477 = vector.shape_cast %472 : vector<32x16xf32> to vector<2x16x16xf32>
    "tpu.trace_start"() <{level = 10 : i32, message = "bqd,bkd->bqk"}> : () -> ()
    %cst_227 = arith.constant dense<0.000000e+00> : vector<2x16x16xf32>
    %478 = tpu.matmul %475, %476, %cst_227 {dimension_numbers = #tpu.dot_dimension_numbers<[2], [2], [1], [1], [0, 0, 0, 1, 1, 1], [0], [0]>} : vector<2x16x16xf32>, vector<2x16x16xf32>, vector<2x16x16xf32> -> vector<2x16x16xf32>
    %cst_228 = arith.constant -1.000000e+30 : f32
    "tpu.trace_stop"() : () -> ()
    %479 = vector.broadcast %cst_228 : f32 to vector<2x16x16xf32>
    %480 = arith.select %206, %478, %479 : vector<2x16x16xi1>, vector<2x16x16xf32>
    %cst_229 = arith.constant dense<0xFF800000> : vector<2x16xf32>
    %481 = vector.multi_reduction <maximumf>, %480, %cst_229 [2] : vector<2x16x16xf32> to vector<2x16xf32>
    %482 = vector.shape_cast %481 : vector<2x16xf32> to vector<2x16x1xf32>
    %483 = vector.broadcast %482 : vector<2x16x1xf32> to vector<2x16x16xf32>
    %484 = arith.subf %480, %483 : vector<2x16x16xf32>
    %485 = math.exp %484 : vector<2x16x16xf32>
    %cst_230 = arith.constant dense<0.000000e+00> : vector<2x16xf32>
    %486 = vector.multi_reduction <add>, %485, %cst_230 [2] : vector<2x16x16xf32> to vector<2x16xf32>
    %487 = vector.shape_cast %486 : vector<2x16xf32> to vector<2x16x1xf32>
    %488 = tpu.reciprocal %487 {approx = true} : vector<2x16x1xf32> -> vector<2x16x1xf32>
    %489 = vector.broadcast %488 : vector<2x16x1xf32> to vector<2x16x16xf32>
    %490 = arith.mulf %485, %489 : vector<2x16x16xf32>
    "tpu.trace_start"() <{level = 10 : i32, message = "bqk,bkd->bqd"}> : () -> ()
    %cst_231 = arith.constant dense<0.000000e+00> : vector<2x16x16xf32>
    %491 = tpu.matmul %490, %477, %cst_231 {dimension_numbers = #tpu.dot_dimension_numbers<[2], [1], [1], [2], [0, 0, 0, 1, 1, 2], [0], [0]>} : vector<2x16x16xf32>, vector<2x16x16xf32>, vector<2x16x16xf32> -> vector<2x16x16xf32>
    "tpu.trace_stop"() : () -> ()
    %492 = vector.shape_cast %491 : vector<2x16x16xf32> to vector<32x16xf32>
    %c4_232 = arith.constant 4 : index
    %c0_233 = arith.constant 0 : index
    %c0_234 = arith.constant 0 : index
    %493 = vector.load %arg8[%c4_232, %c0_233, %c0_234] : memref<8x16x64xf32, #tpu.memory_space<vmem>>, vector<1x16x64xf32>
    %494 = vector.shape_cast %493 : vector<1x16x64xf32> to vector<16x64xf32>
    %cst_235 = arith.constant dense<0.000000e+00> : vector<32x64xf32>
    %495 = tpu.matmul %492, %494, %cst_235 {dimension_numbers = #tpu.dot_dimension_numbers<[1], [0], [0], [1], [0, 0, 1, 1], [], []>} : vector<32x16xf32>, vector<16x64xf32>, vector<32x64xf32> -> vector<32x64xf32>
    %496 = arith.addf %454, %495 : vector<32x64xf32>
    %c5_236 = arith.constant 5 : index
    %c0_237 = arith.constant 0 : index
    %c0_238 = arith.constant 0 : index
    %497 = vector.load %arg5[%c5_236, %c0_237, %c0_238] : memref<8x16x64xf32, #tpu.memory_space<vmem>>, vector<1x16x64xf32>
    %498 = vector.shape_cast %497 : vector<1x16x64xf32> to vector<16x64xf32>
    %cst_239 = arith.constant dense<0.000000e+00> : vector<32x16xf32>
    %499 = tpu.matmul %451, %498, %cst_239 {dimension_numbers = #tpu.dot_dimension_numbers<[1], [1], [0], [0], [0, 0, 1, 0], [], []>} : vector<32x64xf32>, vector<16x64xf32>, vector<32x16xf32> -> vector<32x16xf32>
    %500 = vector.extract_strided_slice %453 {offsets = [1, 0], sizes = [1, 16], strides = [1, 1]} : vector<12x16xf32> to vector<1x16xf32>
    %501 = vector.broadcast %500 : vector<1x16xf32> to vector<32x16xf32>
    %502 = arith.addf %499, %501 : vector<32x16xf32>
    %c5_240 = arith.constant 5 : index
    %c0_241 = arith.constant 0 : index
    %c0_242 = arith.constant 0 : index
    %503 = vector.load %arg6[%c5_240, %c0_241, %c0_242] : memref<8x16x64xf32, #tpu.memory_space<vmem>>, vector<1x16x64xf32>
    %504 = vector.shape_cast %503 : vector<1x16x64xf32> to vector<16x64xf32>
    %cst_243 = arith.constant dense<0.000000e+00> : vector<32x16xf32>
    %505 = tpu.matmul %451, %504, %cst_243 {dimension_numbers = #tpu.dot_dimension_numbers<[1], [1], [0], [0], [0, 0, 1, 0], [], []>} : vector<32x64xf32>, vector<16x64xf32>, vector<32x16xf32> -> vector<32x16xf32>
    %506 = vector.extract_strided_slice %453 {offsets = [5, 0], sizes = [1, 16], strides = [1, 1]} : vector<12x16xf32> to vector<1x16xf32>
    %507 = vector.broadcast %506 : vector<1x16xf32> to vector<32x16xf32>
    %508 = arith.addf %505, %507 : vector<32x16xf32>
    %c5_244 = arith.constant 5 : index
    %c0_245 = arith.constant 0 : index
    %c0_246 = arith.constant 0 : index
    %509 = vector.load %arg7[%c5_244, %c0_245, %c0_246] : memref<8x16x64xf32, #tpu.memory_space<vmem>>, vector<1x16x64xf32>
    %510 = vector.shape_cast %509 : vector<1x16x64xf32> to vector<16x64xf32>
    %cst_247 = arith.constant dense<0.000000e+00> : vector<32x16xf32>
    %511 = tpu.matmul %451, %510, %cst_247 {dimension_numbers = #tpu.dot_dimension_numbers<[1], [1], [0], [0], [0, 0, 1, 0], [], []>} : vector<32x64xf32>, vector<16x64xf32>, vector<32x16xf32> -> vector<32x16xf32>
    %512 = vector.extract_strided_slice %453 {offsets = [9, 0], sizes = [1, 16], strides = [1, 1]} : vector<12x16xf32> to vector<1x16xf32>
    %513 = vector.broadcast %512 : vector<1x16xf32> to vector<32x16xf32>
    %514 = arith.addf %511, %513 : vector<32x16xf32>
    %cst_248 = arith.constant 2.500000e-01 : f32
    %515 = vector.broadcast %cst_248 : f32 to vector<32x16xf32>
    %516 = arith.mulf %502, %515 : vector<32x16xf32>
    %517 = vector.shape_cast %516 : vector<32x16xf32> to vector<2x16x16xf32>
    %518 = vector.shape_cast %508 : vector<32x16xf32> to vector<2x16x16xf32>
    %519 = vector.shape_cast %514 : vector<32x16xf32> to vector<2x16x16xf32>
    "tpu.trace_start"() <{level = 10 : i32, message = "bqd,bkd->bqk"}> : () -> ()
    %cst_249 = arith.constant dense<0.000000e+00> : vector<2x16x16xf32>
    %520 = tpu.matmul %517, %518, %cst_249 {dimension_numbers = #tpu.dot_dimension_numbers<[2], [2], [1], [1], [0, 0, 0, 1, 1, 1], [0], [0]>} : vector<2x16x16xf32>, vector<2x16x16xf32>, vector<2x16x16xf32> -> vector<2x16x16xf32>
    %cst_250 = arith.constant -1.000000e+30 : f32
    "tpu.trace_stop"() : () -> ()
    %521 = vector.broadcast %cst_250 : f32 to vector<2x16x16xf32>
    %522 = arith.select %206, %520, %521 : vector<2x16x16xi1>, vector<2x16x16xf32>
    %cst_251 = arith.constant dense<0xFF800000> : vector<2x16xf32>
    %523 = vector.multi_reduction <maximumf>, %522, %cst_251 [2] : vector<2x16x16xf32> to vector<2x16xf32>
    %524 = vector.shape_cast %523 : vector<2x16xf32> to vector<2x16x1xf32>
    %525 = vector.broadcast %524 : vector<2x16x1xf32> to vector<2x16x16xf32>
    %526 = arith.subf %522, %525 : vector<2x16x16xf32>
    %527 = math.exp %526 : vector<2x16x16xf32>
    %cst_252 = arith.constant dense<0.000000e+00> : vector<2x16xf32>
    %528 = vector.multi_reduction <add>, %527, %cst_252 [2] : vector<2x16x16xf32> to vector<2x16xf32>
    %529 = vector.shape_cast %528 : vector<2x16xf32> to vector<2x16x1xf32>
    %530 = tpu.reciprocal %529 {approx = true} : vector<2x16x1xf32> -> vector<2x16x1xf32>
    %531 = vector.broadcast %530 : vector<2x16x1xf32> to vector<2x16x16xf32>
    %532 = arith.mulf %527, %531 : vector<2x16x16xf32>
    "tpu.trace_start"() <{level = 10 : i32, message = "bqk,bkd->bqd"}> : () -> ()
    %cst_253 = arith.constant dense<0.000000e+00> : vector<2x16x16xf32>
    %533 = tpu.matmul %532, %519, %cst_253 {dimension_numbers = #tpu.dot_dimension_numbers<[2], [1], [1], [2], [0, 0, 0, 1, 1, 2], [0], [0]>} : vector<2x16x16xf32>, vector<2x16x16xf32>, vector<2x16x16xf32> -> vector<2x16x16xf32>
    "tpu.trace_stop"() : () -> ()
    %534 = vector.shape_cast %533 : vector<2x16x16xf32> to vector<32x16xf32>
    %c5_254 = arith.constant 5 : index
    %c0_255 = arith.constant 0 : index
    %c0_256 = arith.constant 0 : index
    %535 = vector.load %arg8[%c5_254, %c0_255, %c0_256] : memref<8x16x64xf32, #tpu.memory_space<vmem>>, vector<1x16x64xf32>
    %536 = vector.shape_cast %535 : vector<1x16x64xf32> to vector<16x64xf32>
    %cst_257 = arith.constant dense<0.000000e+00> : vector<32x64xf32>
    %537 = tpu.matmul %534, %536, %cst_257 {dimension_numbers = #tpu.dot_dimension_numbers<[1], [0], [0], [1], [0, 0, 1, 1], [], []>} : vector<32x16xf32>, vector<16x64xf32>, vector<32x64xf32> -> vector<32x64xf32>
    %538 = arith.addf %496, %537 : vector<32x64xf32>
    %c6_258 = arith.constant 6 : index
    %c0_259 = arith.constant 0 : index
    %c0_260 = arith.constant 0 : index
    %539 = vector.load %arg5[%c6_258, %c0_259, %c0_260] : memref<8x16x64xf32, #tpu.memory_space<vmem>>, vector<1x16x64xf32>
    %540 = vector.shape_cast %539 : vector<1x16x64xf32> to vector<16x64xf32>
    %cst_261 = arith.constant dense<0.000000e+00> : vector<32x16xf32>
    %541 = tpu.matmul %451, %540, %cst_261 {dimension_numbers = #tpu.dot_dimension_numbers<[1], [1], [0], [0], [0, 0, 1, 0], [], []>} : vector<32x64xf32>, vector<16x64xf32>, vector<32x16xf32> -> vector<32x16xf32>
    %542 = vector.extract_strided_slice %453 {offsets = [2, 0], sizes = [1, 16], strides = [1, 1]} : vector<12x16xf32> to vector<1x16xf32>
    %543 = vector.broadcast %542 : vector<1x16xf32> to vector<32x16xf32>
    %544 = arith.addf %541, %543 : vector<32x16xf32>
    %c6_262 = arith.constant 6 : index
    %c0_263 = arith.constant 0 : index
    %c0_264 = arith.constant 0 : index
    %545 = vector.load %arg6[%c6_262, %c0_263, %c0_264] : memref<8x16x64xf32, #tpu.memory_space<vmem>>, vector<1x16x64xf32>
    %546 = vector.shape_cast %545 : vector<1x16x64xf32> to vector<16x64xf32>
    %cst_265 = arith.constant dense<0.000000e+00> : vector<32x16xf32>
    %547 = tpu.matmul %451, %546, %cst_265 {dimension_numbers = #tpu.dot_dimension_numbers<[1], [1], [0], [0], [0, 0, 1, 0], [], []>} : vector<32x64xf32>, vector<16x64xf32>, vector<32x16xf32> -> vector<32x16xf32>
    %548 = vector.extract_strided_slice %453 {offsets = [6, 0], sizes = [1, 16], strides = [1, 1]} : vector<12x16xf32> to vector<1x16xf32>
    %549 = vector.broadcast %548 : vector<1x16xf32> to vector<32x16xf32>
    %550 = arith.addf %547, %549 : vector<32x16xf32>
    %c6_266 = arith.constant 6 : index
    %c0_267 = arith.constant 0 : index
    %c0_268 = arith.constant 0 : index
    %551 = vector.load %arg7[%c6_266, %c0_267, %c0_268] : memref<8x16x64xf32, #tpu.memory_space<vmem>>, vector<1x16x64xf32>
    %552 = vector.shape_cast %551 : vector<1x16x64xf32> to vector<16x64xf32>
    %cst_269 = arith.constant dense<0.000000e+00> : vector<32x16xf32>
    %553 = tpu.matmul %451, %552, %cst_269 {dimension_numbers = #tpu.dot_dimension_numbers<[1], [1], [0], [0], [0, 0, 1, 0], [], []>} : vector<32x64xf32>, vector<16x64xf32>, vector<32x16xf32> -> vector<32x16xf32>
    %554 = vector.extract_strided_slice %453 {offsets = [10, 0], sizes = [1, 16], strides = [1, 1]} : vector<12x16xf32> to vector<1x16xf32>
    %555 = vector.broadcast %554 : vector<1x16xf32> to vector<32x16xf32>
    %556 = arith.addf %553, %555 : vector<32x16xf32>
    %cst_270 = arith.constant 2.500000e-01 : f32
    %557 = vector.broadcast %cst_270 : f32 to vector<32x16xf32>
    %558 = arith.mulf %544, %557 : vector<32x16xf32>
    %559 = vector.shape_cast %558 : vector<32x16xf32> to vector<2x16x16xf32>
    %560 = vector.shape_cast %550 : vector<32x16xf32> to vector<2x16x16xf32>
    %561 = vector.shape_cast %556 : vector<32x16xf32> to vector<2x16x16xf32>
    "tpu.trace_start"() <{level = 10 : i32, message = "bqd,bkd->bqk"}> : () -> ()
    %cst_271 = arith.constant dense<0.000000e+00> : vector<2x16x16xf32>
    %562 = tpu.matmul %559, %560, %cst_271 {dimension_numbers = #tpu.dot_dimension_numbers<[2], [2], [1], [1], [0, 0, 0, 1, 1, 1], [0], [0]>} : vector<2x16x16xf32>, vector<2x16x16xf32>, vector<2x16x16xf32> -> vector<2x16x16xf32>
    %cst_272 = arith.constant -1.000000e+30 : f32
    "tpu.trace_stop"() : () -> ()
    %563 = vector.broadcast %cst_272 : f32 to vector<2x16x16xf32>
    %564 = arith.select %206, %562, %563 : vector<2x16x16xi1>, vector<2x16x16xf32>
    %cst_273 = arith.constant dense<0xFF800000> : vector<2x16xf32>
    %565 = vector.multi_reduction <maximumf>, %564, %cst_273 [2] : vector<2x16x16xf32> to vector<2x16xf32>
    %566 = vector.shape_cast %565 : vector<2x16xf32> to vector<2x16x1xf32>
    %567 = vector.broadcast %566 : vector<2x16x1xf32> to vector<2x16x16xf32>
    %568 = arith.subf %564, %567 : vector<2x16x16xf32>
    %569 = math.exp %568 : vector<2x16x16xf32>
    %cst_274 = arith.constant dense<0.000000e+00> : vector<2x16xf32>
    %570 = vector.multi_reduction <add>, %569, %cst_274 [2] : vector<2x16x16xf32> to vector<2x16xf32>
    %571 = vector.shape_cast %570 : vector<2x16xf32> to vector<2x16x1xf32>
    %572 = tpu.reciprocal %571 {approx = true} : vector<2x16x1xf32> -> vector<2x16x1xf32>
    %573 = vector.broadcast %572 : vector<2x16x1xf32> to vector<2x16x16xf32>
    %574 = arith.mulf %569, %573 : vector<2x16x16xf32>
    "tpu.trace_start"() <{level = 10 : i32, message = "bqk,bkd->bqd"}> : () -> ()
    %cst_275 = arith.constant dense<0.000000e+00> : vector<2x16x16xf32>
    %575 = tpu.matmul %574, %561, %cst_275 {dimension_numbers = #tpu.dot_dimension_numbers<[2], [1], [1], [2], [0, 0, 0, 1, 1, 2], [0], [0]>} : vector<2x16x16xf32>, vector<2x16x16xf32>, vector<2x16x16xf32> -> vector<2x16x16xf32>
    "tpu.trace_stop"() : () -> ()
    %576 = vector.shape_cast %575 : vector<2x16x16xf32> to vector<32x16xf32>
    %c6_276 = arith.constant 6 : index
    %c0_277 = arith.constant 0 : index
    %c0_278 = arith.constant 0 : index
    %577 = vector.load %arg8[%c6_276, %c0_277, %c0_278] : memref<8x16x64xf32, #tpu.memory_space<vmem>>, vector<1x16x64xf32>
    %578 = vector.shape_cast %577 : vector<1x16x64xf32> to vector<16x64xf32>
    %cst_279 = arith.constant dense<0.000000e+00> : vector<32x64xf32>
    %579 = tpu.matmul %576, %578, %cst_279 {dimension_numbers = #tpu.dot_dimension_numbers<[1], [0], [0], [1], [0, 0, 1, 1], [], []>} : vector<32x16xf32>, vector<16x64xf32>, vector<32x64xf32> -> vector<32x64xf32>
    %580 = arith.addf %538, %579 : vector<32x64xf32>
    %c7_280 = arith.constant 7 : index
    %c0_281 = arith.constant 0 : index
    %c0_282 = arith.constant 0 : index
    %581 = vector.load %arg5[%c7_280, %c0_281, %c0_282] : memref<8x16x64xf32, #tpu.memory_space<vmem>>, vector<1x16x64xf32>
    %582 = vector.shape_cast %581 : vector<1x16x64xf32> to vector<16x64xf32>
    %cst_283 = arith.constant dense<0.000000e+00> : vector<32x16xf32>
    %583 = tpu.matmul %451, %582, %cst_283 {dimension_numbers = #tpu.dot_dimension_numbers<[1], [1], [0], [0], [0, 0, 1, 0], [], []>} : vector<32x64xf32>, vector<16x64xf32>, vector<32x16xf32> -> vector<32x16xf32>
    %584 = vector.extract_strided_slice %453 {offsets = [3, 0], sizes = [1, 16], strides = [1, 1]} : vector<12x16xf32> to vector<1x16xf32>
    %585 = vector.broadcast %584 : vector<1x16xf32> to vector<32x16xf32>
    %586 = arith.addf %583, %585 : vector<32x16xf32>
    %c7_284 = arith.constant 7 : index
    %c0_285 = arith.constant 0 : index
    %c0_286 = arith.constant 0 : index
    %587 = vector.load %arg6[%c7_284, %c0_285, %c0_286] : memref<8x16x64xf32, #tpu.memory_space<vmem>>, vector<1x16x64xf32>
    %588 = vector.shape_cast %587 : vector<1x16x64xf32> to vector<16x64xf32>
    %cst_287 = arith.constant dense<0.000000e+00> : vector<32x16xf32>
    %589 = tpu.matmul %451, %588, %cst_287 {dimension_numbers = #tpu.dot_dimension_numbers<[1], [1], [0], [0], [0, 0, 1, 0], [], []>} : vector<32x64xf32>, vector<16x64xf32>, vector<32x16xf32> -> vector<32x16xf32>
    %590 = vector.extract_strided_slice %453 {offsets = [7, 0], sizes = [1, 16], strides = [1, 1]} : vector<12x16xf32> to vector<1x16xf32>
    %591 = vector.broadcast %590 : vector<1x16xf32> to vector<32x16xf32>
    %592 = arith.addf %589, %591 : vector<32x16xf32>
    %c7_288 = arith.constant 7 : index
    %c0_289 = arith.constant 0 : index
    %c0_290 = arith.constant 0 : index
    %593 = vector.load %arg7[%c7_288, %c0_289, %c0_290] : memref<8x16x64xf32, #tpu.memory_space<vmem>>, vector<1x16x64xf32>
    %594 = vector.shape_cast %593 : vector<1x16x64xf32> to vector<16x64xf32>
    %cst_291 = arith.constant dense<0.000000e+00> : vector<32x16xf32>
    %595 = tpu.matmul %451, %594, %cst_291 {dimension_numbers = #tpu.dot_dimension_numbers<[1], [1], [0], [0], [0, 0, 1, 0], [], []>} : vector<32x64xf32>, vector<16x64xf32>, vector<32x16xf32> -> vector<32x16xf32>
    %596 = vector.extract_strided_slice %453 {offsets = [11, 0], sizes = [1, 16], strides = [1, 1]} : vector<12x16xf32> to vector<1x16xf32>
    %597 = vector.broadcast %596 : vector<1x16xf32> to vector<32x16xf32>
    %598 = arith.addf %595, %597 : vector<32x16xf32>
    %cst_292 = arith.constant 2.500000e-01 : f32
    %599 = vector.broadcast %cst_292 : f32 to vector<32x16xf32>
    %600 = arith.mulf %586, %599 : vector<32x16xf32>
    %601 = vector.shape_cast %600 : vector<32x16xf32> to vector<2x16x16xf32>
    %602 = vector.shape_cast %592 : vector<32x16xf32> to vector<2x16x16xf32>
    %603 = vector.shape_cast %598 : vector<32x16xf32> to vector<2x16x16xf32>
    "tpu.trace_start"() <{level = 10 : i32, message = "bqd,bkd->bqk"}> : () -> ()
    %cst_293 = arith.constant dense<0.000000e+00> : vector<2x16x16xf32>
    %604 = tpu.matmul %601, %602, %cst_293 {dimension_numbers = #tpu.dot_dimension_numbers<[2], [2], [1], [1], [0, 0, 0, 1, 1, 1], [0], [0]>} : vector<2x16x16xf32>, vector<2x16x16xf32>, vector<2x16x16xf32> -> vector<2x16x16xf32>
    %cst_294 = arith.constant -1.000000e+30 : f32
    "tpu.trace_stop"() : () -> ()
    %605 = vector.broadcast %cst_294 : f32 to vector<2x16x16xf32>
    %606 = arith.select %206, %604, %605 : vector<2x16x16xi1>, vector<2x16x16xf32>
    %cst_295 = arith.constant dense<0xFF800000> : vector<2x16xf32>
    %607 = vector.multi_reduction <maximumf>, %606, %cst_295 [2] : vector<2x16x16xf32> to vector<2x16xf32>
    %608 = vector.shape_cast %607 : vector<2x16xf32> to vector<2x16x1xf32>
    %609 = vector.broadcast %608 : vector<2x16x1xf32> to vector<2x16x16xf32>
    %610 = arith.subf %606, %609 : vector<2x16x16xf32>
    %611 = math.exp %610 : vector<2x16x16xf32>
    %cst_296 = arith.constant dense<0.000000e+00> : vector<2x16xf32>
    %612 = vector.multi_reduction <add>, %611, %cst_296 [2] : vector<2x16x16xf32> to vector<2x16xf32>
    %613 = vector.shape_cast %612 : vector<2x16xf32> to vector<2x16x1xf32>
    %614 = tpu.reciprocal %613 {approx = true} : vector<2x16x1xf32> -> vector<2x16x1xf32>
    %615 = vector.broadcast %614 : vector<2x16x1xf32> to vector<2x16x16xf32>
    %616 = arith.mulf %611, %615 : vector<2x16x16xf32>
    "tpu.trace_start"() <{level = 10 : i32, message = "bqk,bkd->bqd"}> : () -> ()
    %cst_297 = arith.constant dense<0.000000e+00> : vector<2x16x16xf32>
    %617 = tpu.matmul %616, %603, %cst_297 {dimension_numbers = #tpu.dot_dimension_numbers<[2], [1], [1], [2], [0, 0, 0, 1, 1, 2], [0], [0]>} : vector<2x16x16xf32>, vector<2x16x16xf32>, vector<2x16x16xf32> -> vector<2x16x16xf32>
    "tpu.trace_stop"() : () -> ()
    %618 = vector.shape_cast %617 : vector<2x16x16xf32> to vector<32x16xf32>
    %c7_298 = arith.constant 7 : index
    %c0_299 = arith.constant 0 : index
    %c0_300 = arith.constant 0 : index
    %619 = vector.load %arg8[%c7_298, %c0_299, %c0_300] : memref<8x16x64xf32, #tpu.memory_space<vmem>>, vector<1x16x64xf32>
    %620 = vector.shape_cast %619 : vector<1x16x64xf32> to vector<16x64xf32>
    %cst_301 = arith.constant dense<0.000000e+00> : vector<32x64xf32>
    %621 = tpu.matmul %618, %620, %cst_301 {dimension_numbers = #tpu.dot_dimension_numbers<[1], [0], [0], [1], [0, 0, 1, 1], [], []>} : vector<32x16xf32>, vector<16x64xf32>, vector<32x64xf32> -> vector<32x64xf32>
    %622 = arith.addf %580, %621 : vector<32x64xf32>
    %623 = arith.addf %451, %622 : vector<32x64xf32>
    %c17 = arith.constant 17 : index
    %c0_302 = arith.constant 0 : index
    %624 = vector.load %arg12[%c17, %c0_302] : memref<24x128xf32, #tpu.memory_space<vmem>>, vector<1x64xf32>
    %625 = vector.broadcast %624 : vector<1x64xf32> to vector<32x64xf32>
    %626 = arith.addf %623, %625 : vector<32x64xf32>
    %c18 = arith.constant 18 : index
    %c0_303 = arith.constant 0 : index
    %627 = vector.load %arg12[%c18, %c0_303] : memref<24x128xf32, #tpu.memory_space<vmem>>, vector<1x64xf32>
    %c19 = arith.constant 19 : index
    %c0_304 = arith.constant 0 : index
    %628 = vector.load %arg12[%c19, %c0_304] : memref<24x128xf32, #tpu.memory_space<vmem>>, vector<1x64xf32>
    %cst_305 = arith.constant dense<0.000000e+00> : vector<32xf32>
    %629 = vector.multi_reduction <add>, %626, %cst_305 [1] : vector<32x64xf32> to vector<32xf32>
    %630 = vector.shape_cast %629 : vector<32xf32> to vector<32x1xf32>
    %cst_306 = arith.constant 6.400000e+01 : f32
    %631 = vector.broadcast %cst_306 : f32 to vector<32x1xf32>
    %632 = arith.divf %630, %631 : vector<32x1xf32>
    %633 = vector.broadcast %632 : vector<32x1xf32> to vector<32x64xf32>
    %634 = arith.subf %626, %633 : vector<32x64xf32>
    %635 = arith.mulf %634, %634 : vector<32x64xf32>
    %cst_307 = arith.constant dense<0.000000e+00> : vector<32xf32>
    %636 = vector.multi_reduction <add>, %635, %cst_307 [1] : vector<32x64xf32> to vector<32xf32>
    %637 = vector.shape_cast %636 : vector<32xf32> to vector<32x1xf32>
    %cst_308 = arith.constant 6.400000e+01 : f32
    %638 = vector.broadcast %cst_308 : f32 to vector<32x1xf32>
    %639 = arith.divf %637, %638 : vector<32x1xf32>
    %cst_309 = arith.constant 9.99999974E-6 : f32
    %640 = vector.broadcast %cst_309 : f32 to vector<32x1xf32>
    %641 = arith.addf %639, %640 : vector<32x1xf32>
    %642 = math.rsqrt %641 : vector<32x1xf32>
    %643 = vector.broadcast %642 : vector<32x1xf32> to vector<32x64xf32>
    %644 = arith.mulf %634, %643 : vector<32x64xf32>
    %645 = vector.broadcast %627 : vector<1x64xf32> to vector<32x64xf32>
    %646 = arith.mulf %644, %645 : vector<32x64xf32>
    %647 = vector.broadcast %628 : vector<1x64xf32> to vector<32x64xf32>
    %648 = arith.addf %646, %647 : vector<32x64xf32>
    %c1_310 = arith.constant 1 : index
    %c0_311 = arith.constant 0 : index
    %c0_312 = arith.constant 0 : index
    %649 = vector.load %arg9[%c1_310, %c0_311, %c0_312] : memref<2x64x128xf32, #tpu.memory_space<vmem>>, vector<1x64x128xf32>
    %650 = vector.shape_cast %649 : vector<1x64x128xf32> to vector<64x128xf32>
    %cst_313 = arith.constant dense<0.000000e+00> : vector<32x128xf32>
    %651 = tpu.matmul %648, %650, %cst_313 {dimension_numbers = #tpu.dot_dimension_numbers<[1], [0], [0], [1], [0, 0, 1, 1], [], []>} : vector<32x64xf32>, vector<64x128xf32>, vector<32x128xf32> -> vector<32x128xf32>
    %c20 = arith.constant 20 : index
    %c0_314 = arith.constant 0 : index
    %652 = vector.load %arg12[%c20, %c0_314] : memref<24x128xf32, #tpu.memory_space<vmem>>, vector<1x128xf32>
    %653 = vector.broadcast %652 : vector<1x128xf32> to vector<32x128xf32>
    %654 = arith.addf %651, %653 : vector<32x128xf32>
    %cst_315 = arith.constant 5.000000e-01 : f32
    %655 = vector.broadcast %cst_315 : f32 to vector<32x128xf32>
    %656 = arith.mulf %655, %654 : vector<32x128xf32>
    %cst_316 = arith.constant 4.471500e-02 : f32
    %657 = vector.broadcast %cst_316 : f32 to vector<32x128xf32>
    %658 = arith.mulf %657, %654 : vector<32x128xf32>
    %659 = arith.mulf %658, %654 : vector<32x128xf32>
    %660 = arith.mulf %659, %654 : vector<32x128xf32>
    %661 = arith.addf %654, %660 : vector<32x128xf32>
    %cst_317 = arith.constant 0.797884583 : f32
    %662 = vector.broadcast %cst_317 : f32 to vector<32x128xf32>
    %663 = arith.mulf %662, %661 : vector<32x128xf32>
    %664 = math.tanh %663 : vector<32x128xf32>
    %cst_318 = arith.constant 1.000000e+00 : f32
    %665 = vector.broadcast %cst_318 : f32 to vector<32x128xf32>
    %666 = arith.addf %665, %664 : vector<32x128xf32>
    %667 = arith.mulf %656, %666 : vector<32x128xf32>
    %c1_319 = arith.constant 1 : index
    %c0_320 = arith.constant 0 : index
    %c0_321 = arith.constant 0 : index
    %668 = vector.load %arg10[%c1_319, %c0_320, %c0_321] : memref<2x128x64xf32, #tpu.memory_space<vmem>>, vector<1x128x64xf32>
    %669 = vector.shape_cast %668 : vector<1x128x64xf32> to vector<128x64xf32>
    %cst_322 = arith.constant dense<0.000000e+00> : vector<32x64xf32>
    %670 = tpu.matmul %667, %669, %cst_322 {dimension_numbers = #tpu.dot_dimension_numbers<[1], [0], [0], [1], [0, 0, 1, 1], [], []>} : vector<32x128xf32>, vector<128x64xf32>, vector<32x64xf32> -> vector<32x64xf32>
    %671 = arith.addf %648, %670 : vector<32x64xf32>
    %c21 = arith.constant 21 : index
    %c0_323 = arith.constant 0 : index
    %672 = vector.load %arg12[%c21, %c0_323] : memref<24x128xf32, #tpu.memory_space<vmem>>, vector<1x64xf32>
    %673 = vector.broadcast %672 : vector<1x64xf32> to vector<32x64xf32>
    %674 = arith.addf %671, %673 : vector<32x64xf32>
    %c22 = arith.constant 22 : index
    %c0_324 = arith.constant 0 : index
    %675 = vector.load %arg12[%c22, %c0_324] : memref<24x128xf32, #tpu.memory_space<vmem>>, vector<1x64xf32>
    %c23 = arith.constant 23 : index
    %c0_325 = arith.constant 0 : index
    %676 = vector.load %arg12[%c23, %c0_325] : memref<24x128xf32, #tpu.memory_space<vmem>>, vector<1x64xf32>
    %cst_326 = arith.constant dense<0.000000e+00> : vector<32xf32>
    %677 = vector.multi_reduction <add>, %674, %cst_326 [1] : vector<32x64xf32> to vector<32xf32>
    %678 = vector.shape_cast %677 : vector<32xf32> to vector<32x1xf32>
    %cst_327 = arith.constant 6.400000e+01 : f32
    %679 = vector.broadcast %cst_327 : f32 to vector<32x1xf32>
    %680 = arith.divf %678, %679 : vector<32x1xf32>
    %681 = vector.broadcast %680 : vector<32x1xf32> to vector<32x64xf32>
    %682 = arith.subf %674, %681 : vector<32x64xf32>
    %683 = arith.mulf %682, %682 : vector<32x64xf32>
    %cst_328 = arith.constant dense<0.000000e+00> : vector<32xf32>
    %684 = vector.multi_reduction <add>, %683, %cst_328 [1] : vector<32x64xf32> to vector<32xf32>
    %685 = vector.shape_cast %684 : vector<32xf32> to vector<32x1xf32>
    %cst_329 = arith.constant 6.400000e+01 : f32
    %686 = vector.broadcast %cst_329 : f32 to vector<32x1xf32>
    %687 = arith.divf %685, %686 : vector<32x1xf32>
    %cst_330 = arith.constant 9.99999974E-6 : f32
    %688 = vector.broadcast %cst_330 : f32 to vector<32x1xf32>
    %689 = arith.addf %687, %688 : vector<32x1xf32>
    %690 = math.rsqrt %689 : vector<32x1xf32>
    %691 = vector.broadcast %690 : vector<32x1xf32> to vector<32x64xf32>
    %692 = arith.mulf %682, %691 : vector<32x64xf32>
    %693 = vector.broadcast %675 : vector<1x64xf32> to vector<32x64xf32>
    %694 = arith.mulf %692, %693 : vector<32x64xf32>
    %695 = vector.broadcast %676 : vector<1x64xf32> to vector<32x64xf32>
    %696 = arith.addf %694, %695 : vector<32x64xf32>
    %c0_331 = arith.constant 0 : index
    %c0_332 = arith.constant 0 : index
    %697 = vector.load %arg13[%c0_331, %c0_332] : memref<32x64xf32, #tpu.memory_space<vmem>>, vector<32x64xf32>
    tpu.vector_store %arg13[%c0_331, %c0_332], %696 {strides = array<i32>} : memref<32x64xf32, #tpu.memory_space<vmem>>, vector<32x64xf32>,
    %c15_333 = arith.constant 15 : index
    %c0_334 = arith.constant 0 : index
    %698 = vector.load %arg13[%c15_333, %c0_334] : memref<32x64xf32, #tpu.memory_space<vmem>>, vector<1x1xf32>
    tpu.vector_store %arg13[%c15_333, %c0_334], %100 {strides = array<i32>} : memref<32x64xf32, #tpu.memory_space<vmem>>, vector<1x1xf32>,
    return
  }
}

</mosaic_0001>

<llo_original>
// kernel: squeeze.2
$region0: #{squeeze.2}
  %s0 = inlined_call_operand.vmem [shape: f32[2,64], index: 0, kind: input, shape index: {}]
  %s1 = inlined_call_operand.vmem [shape: f32[128], index: 1, kind: output, shape index: {}]
  $region1: #{squeeze.2} parent=0
    #allocation0 [shape = 'u8[4096]{0}', space=vmem, size = 0x1000, scoped, tag = 'scoped mem for output reshape']
    #allocation1 [shape = 'u8[4096]{0}', space=vmem, size = 0x1000, scoped, tag = 'scoped mem for input reshape']
    %s3 = sshll.u32 1, 2
    %s4 = ssub.s32 %s3, 1
    %v5 = vld [vmem:[%s0] sm:%s4]
    %6 = vst [vmem:[#allocation1] sm:%s4] %v5
    %v7 = vld [vmem:[#allocation1] sm:$0x1]
    %vm8 = vcmask 523264
    %9 = vst.msk [vmem:[#allocation0] sm:$0x1] %vm8, %v7
    %s10 = scalar_lea.vmem [#allocation1], 1
    %v11 = vld [vmem:[%s10] sm:$0x1]
    %12 = vrot.lane.b32.xlu0 %v11, 64
    %v13 = vpop.permute.xlu0 %12
    %vm14 = vcmask 1048064
    %15 = vst.msk [vmem:[#allocation0] sm:$0x1] %vm14, %v13
    %s17 = sshll.u32 1, 1
    %s18 = ssub.s32 %s17, 1
    %v20 = vld [vmem:[#allocation0] sm:%s18]
    %s21 = sshll.u32 1, 1
    %s22 = ssub.s32 %s21, 1
    %23 = vst [vmem:[%s1] sm:%s22] %v20

// kernel: _lambda_.1
$region0: #{_lambda_.1}
  #allocation0 [shape = 'u32[]', space=smem, size = 0x4, offset = 0x4, fixed_abs, tag = 'smem constant byte address 0x4 - core index']
  #allocation1 [shape = 'u32[144,128]{1,0:T(1,128)}', space=vmem, size = 0x12000, scoped, tag = 'internal scratch']
  %s0 = inlined_call_operand.vmem [shape: f32[64,8], index: 0, kind: input, shape index: {}]
  %s1 = inlined_call_operand.vmem [shape: f32[8,32], index: 1, kind: input, shape index: {}]
  %s2 = inlined_call_operand.vmem [shape: f32[3,32,32], index: 2, kind: input, shape index: {}]
  %s3 = inlined_call_operand.vmem [shape: f32[32,64], index: 3, kind: input, shape index: {}]
  %s4 = inlined_call_operand.vmem [shape: f32[3,64,64], index: 4, kind: input, shape index: {}]
  %s5 = inlined_call_operand.vmem [shape: f32[8,16,64], index: 5, kind: input, shape index: {}]
  %s6 = inlined_call_operand.vmem [shape: f32[8,16,64], index: 6, kind: input, shape index: {}]
  %s7 = inlined_call_operand.vmem [shape: f32[8,16,64], index: 7, kind: input, shape index: {}]
  %s8 = inlined_call_operand.vmem [shape: f32[8,16,64], index: 8, kind: input, shape index: {}]
  %s9 = inlined_call_operand.vmem [shape: f32[2,64,128], index: 9, kind: input, shape index: {}]
  %s10 = inlined_call_operand.vmem [shape: f32[2,128,64], index: 10, kind: input, shape index: {}]
  %s11 = inlined_call_operand.vmem [shape: f32[2,12,16], index: 11, kind: input, shape index: {}]
  %s12 = inlined_call_operand.vmem [shape: f32[24,128], index: 12, kind: input, shape index: {}]
  %s13 = inlined_call_operand.vmem [shape: f32[32,64], index: 13, kind: output, shape index: {}]
  %s14 = sld [smem:[#allocation0]]
  $region62: #{_lambda_.1} parent=0
    _
  %s16 = ssub.s32 1, %s14
  %s17 = scalar_select 0, %s16, %s14
  // Predicated region
  $region2: #{_lambda_.1} parent=0 // pred_check
    _
  $region3: #{_lambda_.1} parent=0 // pred_check_branch
    %19 = sbr.rel (0) target = $region5
  $region4: #{_lambda_.1} parent=0 // pred_region
    _
  $region5: #{_lambda_.1} parent=0 // pred_fallthru
    _
  // Predicated region
  $region6: #{_lambda_.1} parent=0 // pred_check
    _
  $region7: #{_lambda_.1} parent=0 // pred_check_branch
    %21 = sbr.rel (0) target = $region9
  $region8: #{_lambda_.1} parent=0 // pred_region
    _
  $region9: #{_lambda_.1} parent=0 // pred_fallthru
    _
  // Predicated region
  $region10: #{_lambda_.1} parent=0 // pred_check
    _
  $region11: #{_lambda_.1} parent=0 // pred_check_branch
    %23 = sbr.rel (0) target = $region13
  $region12: #{_lambda_.1} parent=0 // pred_region
    _
  $region13: #{_lambda_.1} parent=0 // pred_fallthru
    _
  // Predicated region
  $region14: #{_lambda_.1} parent=0 // pred_check
    _
  $region15: #{_lambda_.1} parent=0 // pred_check_branch
    %25 = sbr.rel (0) target = $region17
  $region16: #{_lambda_.1} parent=0 // pred_region
    _
  $region17: #{_lambda_.1} parent=0 // pred_fallthru
    _
  // Predicated region
  $region18: #{_lambda_.1} parent=0 // pred_check
    _
  $region19: #{_lambda_.1} parent=0 // pred_check_branch
    %27 = sbr.rel (0) target = $region21
  $region20: #{_lambda_.1} parent=0 // pred_region
    _
  $region21: #{_lambda_.1} parent=0 // pred_fallthru
    _
  // Predicated region
  $region22: #{_lambda_.1} parent=0 // pred_check
    _
  $region23: #{_lambda_.1} parent=0 // pred_check_branch
    %29 = sbr.rel (0) target = $region25
  $region24: #{_lambda_.1} parent=0 // pred_region
    _
  $region25: #{_lambda_.1} parent=0 // pred_fallthru
    _
  // Predicated region
  $region26: #{_lambda_.1} parent=0 // pred_check
    _
  $region27: #{_lambda_.1} parent=0 // pred_check_branch
    %31 = sbr.rel (0) target = $region29
  $region28: #{_lambda_.1} parent=0 // pred_region
    _
  $region29: #{_lambda_.1} parent=0 // pred_fallthru
    _
  // Predicated region
  $region30: #{_lambda_.1} parent=0 // pred_check
    _
  $region31: #{_lambda_.1} parent=0 // pred_check_branch
    %33 = sbr.rel (0) target = $region33
  $region32: #{_lambda_.1} parent=0 // pred_region
    _
  $region33: #{_lambda_.1} parent=0 // pred_fallthru
    _
  // Predicated region
  $region34: #{_lambda_.1} parent=0 // pred_check
    _
  $region35: #{_lambda_.1} parent=0 // pred_check_branch
    %35 = sbr.rel (0) target = $region37
  $region36: #{_lambda_.1} parent=0 // pred_region
    _
  $region37: #{_lambda_.1} parent=0 // pred_fallthru
    _
  // Predicated region
  $region38: #{_lambda_.1} parent=0 // pred_check
    _
  $region39: #{_lambda_.1} parent=0 // pred_check_branch
    %37 = sbr.rel (0) target = $region41
  $region40: #{_lambda_.1} parent=0 // pred_region
    _
  $region41: #{_lambda_.1} parent=0 // pred_fallthru
    _
  // Predicated region
  $region42: #{_lambda_.1} parent=0 // pred_check
    _
  $region43: #{_lambda_.1} parent=0 // pred_check_branch
    %39 = sbr.rel (0) target = $region45
  $region44: #{_lambda_.1} parent=0 // pred_region
    _
  $region45: #{_lambda_.1} parent=0 // pred_fallthru
    _
  // Predicated region
  $region46: #{_lambda_.1} parent=0 // pred_check
    _
  $region47: #{_lambda_.1} parent=0 // pred_check_branch
    %41 = sbr.rel (0) target = $region49
  $region48: #{_lambda_.1} parent=0 // pred_region
    _
  $region49: #{_lambda_.1} parent=0 // pred_fallthru
    _
  // Predicated region
  $region50: #{_lambda_.1} parent=0 // pred_check
    _
  $region51: #{_lambda_.1} parent=0 // pred_check_branch
    %43 = sbr.rel (0) target = $region53
  $region52: #{_lambda_.1} parent=0 // pred_region
    _
  $region53: #{_lambda_.1} parent=0 // pred_fallthru
    _
  %v44 = vld [vmem:[%s0] sm:$0xff]
  %v45 = vld [vmem:[%s0 + $0x8] sm:$0xff]
  %v46 = vld [vmem:[%s0 + $0x10] sm:$0xff]
  %v47 = vld [vmem:[%s0 + $0x18] sm:$0xff]
  %v48 = vld [vmem:[%s0 + $0x20] sm:$0xff]
  %v49 = vld [vmem:[%s0 + $0x28] sm:$0xff]
  %v50 = vld [vmem:[%s0 + $0x30] sm:$0xff]
  %v51 = vld [vmem:[%s0 + $0x38] sm:$0xff]
  %v52 = vld [vmem:[%s1] sm:$0xff]
  %vm53 = vcmask 64512
  %v55 = vsel %vm53, %v44, 0
  %v58 = vsel %vm53, %v45, 0
  %v61 = vsel %vm53, %v46, 0
  %v64 = vsel %vm53, %v47, 0
  %v67 = vsel %vm53, %v48, 0
  %v70 = vsel %vm53, %v49, 0
  %v73 = vsel %vm53, %v50, 0
  %v76 = vsel %vm53, %v51, 0
  %78 = vmatprep.subr.mxu0 0.0
  %79 = vmatpush1.msra.mxu0 0.0
  %80 = vmatprep.subr.mxu0 0.0
  %81 = vmatpush1.msra.mxu0 0.0
  %82 = vmatprep.subr.mxu0 0.0
  %83 = vmatpush1.msra.mxu0 0.0
  %84 = vmatprep.subr.mxu0 0.0
  %85 = vmatpush1.msra.mxu0 0.0
  %86 = vmatprep.subr.mxu0 0.0
  %87 = vmatpush1.msra.mxu0 0.0
  %88 = vmatprep.subr.mxu0 0.0
  %89 = vmatpush1.msra.mxu0 0.0
  %90 = vmatprep.subr.mxu0 0.0
  %91 = vmatpush1.msra.mxu0 0.0
  %92 = vmatprep.subr.mxu0 0.0
  %93 = vmatpush1.msra.mxu0 0.0
  %94 = vmatprep.subr.mxu0 0.0
  %95 = vmatpush1.msra.mxu0 0.0
  %96 = vmatprep.subr.mxu0 0.0
  %97 = vmatpush1.msra.mxu0 0.0
  %98 = vmatprep.subr.mxu0 0.0
  %99 = vmatpush1.msra.mxu0 0.0
  %100 = vmatprep.subr.mxu0 0.0
  %101 = vmatpush1.msra.mxu0 0.0
  %102 = vmatprep.subr.mxu0 0.0
  %103 = vmatpush1.msra.mxu0 0.0
  %104 = vmatprep.subr.mxu0 0.0
  %105 = vmatpush1.msra.mxu0 0.0
  %106 = vmatprep.subr.mxu0 0.0
  %107 = vmatpush1.msra.mxu0 0.0
  %108 = vmatprep.subr.mxu0 0.0
  %109 = vmatpush1.msra.mxu0 %v52
  %110 = vmatprep.subr.mxu0 0.0
  %111 = vmatpush2.msra.mxu0 0.0
  %112 = vmatprep.subr.mxu0 0.0
  %113 = vmatpush2.msra.mxu0 0.0
  %114 = vmatprep.subr.mxu0 0.0
  %115 = vmatpush2.msra.mxu0 0.0
  %116 = vmatprep.subr.mxu0 0.0
  %117 = vmatpush2.msra.mxu0 0.0
  %118 = vmatprep.subr.mxu0 0.0
  %119 = vmatpush2.msra.mxu0 0.0
  %120 = vmatprep.subr.mxu0 0.0
  %121 = vmatpush2.msra.mxu0 0.0
  %122 = vmatprep.subr.mxu0 0.0
  %123 = vmatpush2.msra.mxu0 0.0
  %124 = vmatprep.subr.mxu0 0.0
  %125 = vmatpush2.msra.mxu0 0.0
  %126 = vmatprep.subr.mxu0 0.0
  %127 = vmatpush2.msra.mxu0 0.0
  %128 = vmatprep.subr.mxu0 0.0
  %129 = vmatpush2.msra.mxu0 0.0
  %130 = vmatprep.subr.mxu0 0.0
  %131 = vmatpush2.msra.mxu0 0.0
  %132 = vmatprep.subr.mxu0 0.0
  %133 = vmatpush2.msra.mxu0 0.0
  %134 = vmatprep.subr.mxu0 0.0
  %135 = vmatpush2.msra.mxu0 0.0
  %136 = vmatprep.subr.mxu0 0.0
  %137 = vmatpush2.msra.mxu0 0.0
  %138 = vmatprep.subr.mxu0 0.0
  %139 = vmatpush2.msra.mxu0 0.0
  %140 = vmatprep.subr.mxu0 0.0
  %141 = vmatpush2.msra.mxu0 0.0
  %142 = vmatprep.mubr.f32.mxu0 0.0
  %143 = vmatmul.mubr.f32.gmra.mxu0 %v55
  %v144 = vpop.f32.mrf.mxu0
  %v145 = vadd.f32 0.0, %v144
  %v146 = vpop.f32.mrf.mxu0
  %147 = vmatprep.mubr.f32.mxu0 0.0
  %148 = vmatmul.mubr.f32.gmra.mxu0 %v58
  %v149 = vpop.f32.mrf.mxu0
  %v150 = vadd.f32 0.0, %v149
  %v151 = vpop.f32.mrf.mxu0
  %152 = vmatprep.mubr.f32.mxu0 0.0
  %153 = vmatmul.mubr.f32.gmra.mxu0 %v61
  %v154 = vpop.f32.mrf.mxu0
  %v155 = vadd.f32 0.0, %v154
  %v156 = vpop.f32.mrf.mxu0
  %157 = vmatprep.mubr.f32.mxu0 0.0
  %158 = vmatmul.mubr.f32.gmra.mxu0 %v64
  %v159 = vpop.f32.mrf.mxu0
  %v160 = vadd.f32 0.0, %v159
  %v161 = vpop.f32.mrf.mxu0
  %162 = vmatprep.mubr.f32.mxu0 0.0
  %163 = vmatmul.mubr.f32.gmra.mxu0 %v67
  %v164 = vpop.f32.mrf.mxu0
  %v165 = vadd.f32 0.0, %v164
  %v166 = vpop.f32.mrf.mxu0
  %167 = vmatprep.mubr.f32.mxu0 0.0
  %168 = vmatmul.mubr.f32.gmra.mxu0 %v70
  %v169 = vpop.f32.mrf.mxu0
  %v170 = vadd.f32 0.0, %v169
  %v171 = vpop.f32.mrf.mxu0
  %172 = vmatprep.mubr.f32.mxu0 0.0
  %173 = vmatmul.mubr.f32.gmra.mxu0 %v73
  %v174 = vpop.f32.mrf.mxu0
  %v175 = vadd.f32 0.0, %v174
  %v176 = vpop.f32.mrf.mxu0
  %177 = vmatprep.mubr.f32.mxu0 0.0
  %178 = vmatmul.mubr.f32.gmra.mxu0 %v76
  %v179 = vpop.f32.mrf.mxu0
  %v180 = vadd.f32 0.0, %v179
  %v181 = vpop.f32.mrf.mxu0
  %182 = vdwg.mxu0
  %v183 = vld [vmem:[%s12] sm:$0x1]
  %v184 = vld [vmem:[%s12 + $0x1] sm:$0x1]
  %vm185 = vcmask 261120
  %v186 = vsel %vm185, %v145, 0.0
  %187 = vadd.xlane.f32.xlu0 %v186
  %v188 = vpop.xlane.xlu0 %187
  %v189 = vsel %vm185, %v150, 0.0
  %190 = vadd.xlane.f32.xlu0 %v189
  %v191 = vpop.xlane.xlu0 %190
  %v192 = vsel %vm185, %v155, 0.0
  %193 = vadd.xlane.f32.xlu0 %v192
  %v194 = vpop.xlane.xlu0 %193
  %v195 = vsel %vm185, %v160, 0.0
  %196 = vadd.xlane.f32.xlu0 %v195
  %v197 = vpop.xlane.xlu0 %196
  %v198 = vsel %vm185, %v165, 0.0
  %199 = vadd.xlane.f32.xlu0 %v198
  %v200 = vpop.xlane.xlu0 %199
  %v201 = vsel %vm185, %v170, 0.0
  %202 = vadd.xlane.f32.xlu0 %v201
  %v203 = vpop.xlane.xlu0 %202
  %v204 = vsel %vm185, %v175, 0.0
  %205 = vadd.xlane.f32.xlu0 %v204
  %v206 = vpop.xlane.xlu0 %205
  %v207 = vsel %vm185, %v180, 0.0
  %208 = vadd.xlane.f32.xlu0 %v207
  %v209 = vpop.xlane.xlu0 %208
  %v210 = vrcp.pop 32.0
  %v211 = vmul.f32 %v188, %v210
  %v212 = vmul.f32 %v191, %v210
  %v213 = vmul.f32 %v194, %v210
  %v214 = vmul.f32 %v197, %v210
  %v215 = vmul.f32 %v200, %v210
  %v216 = vmul.f32 %v203, %v210
  %v217 = vmul.f32 %v206, %v210
  %v218 = vmul.f32 %v209, %v210
  %v219 = vsub.f32 %v145, %v211
  %v220 = vsub.f32 %v150, %v212
  %v221 = vsub.f32 %v155, %v213
  %v222 = vsub.f32 %v160, %v214
  %v223 = vsub.f32 %v165, %v215
  %v224 = vsub.f32 %v170, %v216
  %v225 = vsub.f32 %v175, %v217
  %v226 = vsub.f32 %v180, %v218
  %v227 = vmul.f32 %v219, %v219
  %v228 = vmul.f32 %v220, %v220
  %v229 = vmul.f32 %v221, %v221
  %v230 = vmul.f32 %v222, %v222
  %v231 = vmul.f32 %v223, %v223
  %v232 = vmul.f32 %v224, %v224
  %v233 = vmul.f32 %v225, %v225
  %v234 = vmul.f32 %v226, %v226
  %v235 = vsel %vm185, %v227, 0.0
  %236 = vadd.xlane.f32.xlu0 %v235
  %v237 = vpop.xlane.xlu0 %236
  %v238 = vsel %vm185, %v228, 0.0
  %239 = vadd.xlane.f32.xlu0 %v238
  %v240 = vpop.xlane.xlu0 %239
  %v241 = vsel %vm185, %v229, 0.0
  %242 = vadd.xlane.f32.xlu0 %v241
  %v243 = vpop.xlane.xlu0 %242
  %v244 = vsel %vm185, %v230, 0.0
  %245 = vadd.xlane.f32.xlu0 %v244
  %v246 = vpop.xlane.xlu0 %245
  %v247 = vsel %vm185, %v231, 0.0
  %248 = vadd.xlane.f32.xlu0 %v247
  %v249 = vpop.xlane.xlu0 %248
  %v250 = vsel %vm185, %v232, 0.0
  %251 = vadd.xlane.f32.xlu0 %v250
  %v252 = vpop.xlane.xlu0 %251
  %v253 = vsel %vm185, %v233, 0.0
  %254 = vadd.xlane.f32.xlu0 %v253
  %v255 = vpop.xlane.xlu0 %254
  %v256 = vsel %vm185, %v234, 0.0
  %257 = vadd.xlane.f32.xlu0 %v256
  %v258 = vpop.xlane.xlu0 %257
  %v259 = vmul.f32 %v237, %v210
  %v260 = vmul.f32 %v240, %v210
  %v261 = vmul.f32 %v243, %v210
  %v262 = vmul.f32 %v246, %v210
  %v263 = vmul.f32 %v249, %v210
  %v264 = vmul.f32 %v252, %v210
  %v265 = vmul.f32 %v255, %v210
  %v266 = vmul.f32 %v258, %v210
  %v267 = vadd.f32 %v259, 1e-05
  %v268 = vadd.f32 %v260, 1e-05
  %v269 = vadd.f32 %v261, 1e-05
  %v270 = vadd.f32 %v262, 1e-05
  %v271 = vadd.f32 %v263, 1e-05
  %v272 = vadd.f32 %v264, 1e-05
  %v273 = vadd.f32 %v265, 1e-05
  %v274 = vadd.f32 %v266, 1e-05
  %v275 = vrsqrt.pop %v267
  %v276 = vrsqrt.pop %v268
  %v277 = vrsqrt.pop %v269
  %v278 = vrsqrt.pop %v270
  %v279 = vrsqrt.pop %v271
  %v280 = vrsqrt.pop %v272
  %v281 = vrsqrt.pop %v273
  %v282 = vrsqrt.pop %v274
  %v283 = vmul.f32 %v219, %v275
  %v284 = vmul.f32 %v220, %v276
  %v285 = vmul.f32 %v221, %v277
  %v286 = vmul.f32 %v222, %v278
  %v287 = vmul.f32 %v223, %v279
  %v288 = vmul.f32 %v224, %v280
  %v289 = vmul.f32 %v225, %v281
  %v290 = vmul.f32 %v226, %v282
  %v291 = vlaneseq
  %v292 = vshrl.u32 %v291, 7
  %v293 = vsub.s32 0, %v292
  %v294 = vrot.slane %v183, %v293
  %v295 = vmul.f32 %v283, %v294
  %v296 = vmul.f32 %v284, %v294
  %v297 = vmul.f32 %v285, %v294
  %v298 = vmul.f32 %v286, %v294
  %v299 = vmul.f32 %v287, %v294
  %v300 = vmul.f32 %v288, %v294
  %v301 = vmul.f32 %v289, %v294
  %v302 = vmul.f32 %v290, %v294
  %v303 = vlaneseq
  %v304 = vshrl.u32 %v303, 7
  %v305 = vsub.s32 0, %v304
  %v306 = vrot.slane %v184, %v305
  %v307 = vadd.f32 %v295, %v306
  %v308 = vadd.f32 %v296, %v306
  %v309 = vadd.f32 %v297, %v306
  %v310 = vadd.f32 %v298, %v306
  %v311 = vadd.f32 %v299, %v306
  %v312 = vadd.f32 %v300, %v306
  %v313 = vadd.f32 %v301, %v306
  %v314 = vadd.f32 %v302, %v306
  %v315 = vmul.f32 %v307, 0.5
  %v316 = vmul.f32 %v308, 0.5
  %v317 = vmul.f32 %v309, 0.5
  %v318 = vmul.f32 %v310, 0.5
  %v319 = vmul.f32 %v311, 0.5
  %v320 = vmul.f32 %v312, 0.5
  %v321 = vmul.f32 %v313, 0.5
  %v322 = vmul.f32 %v314, 0.5
  %v323 = vmul.f32 %v307, 0.044715
  %v324 = vmul.f32 %v308, 0.044715
  %v325 = vmul.f32 %v309, 0.044715
  %v326 = vmul.f32 %v310, 0.044715
  %v327 = vmul.f32 %v311, 0.044715
  %v328 = vmul.f32 %v312, 0.044715
  %v329 = vmul.f32 %v313, 0.044715
  %v330 = vmul.f32 %v314, 0.044715
  %v331 = vmul.f32 %v323, %v307
  %v332 = vmul.f32 %v324, %v308
  %v333 = vmul.f32 %v325, %v309
  %v334 = vmul.f32 %v326, %v310
  %v335 = vmul.f32 %v327, %v311
  %v336 = vmul.f32 %v328, %v312
  %v337 = vmul.f32 %v329, %v313
  %v338 = vmul.f32 %v330, %v314
  %v339 = vmul.f32 %v331, %v307
  %v340 = vmul.f32 %v332, %v308
  %v341 = vmul.f32 %v333, %v309
  %v342 = vmul.f32 %v334, %v310
  %v343 = vmul.f32 %v335, %v311
  %v344 = vmul.f32 %v336, %v312
  %v345 = vmul.f32 %v337, %v313
  %v346 = vmul.f32 %v338, %v314
  %v347 = vadd.f32 %v307, %v339
  %v348 = vadd.f32 %v308, %v340
  %v349 = vadd.f32 %v309, %v341
  %v350 = vadd.f32 %v310, %v342
  %v351 = vadd.f32 %v311, %v343
  %v352 = vadd.f32 %v312, %v344
  %v353 = vadd.f32 %v313, %v345
  %v354 = vadd.f32 %v314, %v346
  %v355 = vmul.f32 %v347, 0.7978846
  %v356 = vmul.f32 %v348, 0.7978846
  %v357 = vmul.f32 %v349, 0.7978846
  %v358 = vmul.f32 %v350, 0.7978846
  %v359 = vmul.f32 %v351, 0.7978846
  %v360 = vmul.f32 %v352, 0.7978846
  %v361 = vmul.f32 %v353, 0.7978846
  %v362 = vmul.f32 %v354, 0.7978846
  %v363 = vtanh.pop %v355
  %v364 = vtanh.pop %v356
  %v365 = vtanh.pop %v357
  %v366 = vtanh.pop %v358
  %v367 = vtanh.pop %v359
  %v368 = vtanh.pop %v360
  %v369 = vtanh.pop %v361
  %v370 = vtanh.pop %v362
  %v371 = vadd.f32 %v363, 1.0
  %v372 = vadd.f32 %v364, 1.0
  %v373 = vadd.f32 %v365, 1.0
  %v374 = vadd.f32 %v366, 1.0
  %v375 = vadd.f32 %v367, 1.0
  %v376 = vadd.f32 %v368, 1.0
  %v377 = vadd.f32 %v369, 1.0
  %v378 = vadd.f32 %v370, 1.0
  %v379 = vmul.f32 %v315, %v371
  %v380 = vmul.f32 %v316, %v372
  %v381 = vmul.f32 %v317, %v373
  %v382 = vmul.f32 %v318, %v374
  %v383 = vmul.f32 %v319, %v375
  %v384 = vmul.f32 %v320, %v376
  %v385 = vmul.f32 %v321, %v377
  %v386 = vmul.f32 %v322, %v378
  %v387 = vld [vmem:[%s2] sm:$0xff]
  %v388 = vld [vmem:[%s2 + $0x8] sm:$0xff]
  %v389 = vld [vmem:[%s2 + $0x10] sm:$0xff]
  %v390 = vld [vmem:[%s2 + $0x18] sm:$0xff]
  %s391 = scalar_lea.vmem %s2, 32
  %v392 = vld [vmem:[%s391] sm:$0xff]
  %v393 = vld [vmem:[%s391 + $0x8] sm:$0xff]
  %v394 = vld [vmem:[%s391 + $0x10] sm:$0xff]
  %v395 = vld [vmem:[%s391 + $0x18] sm:$0xff]
  %v397 = vsel %vm185, %v383, 0
  %v400 = vsel %vm185, %v384, 0
  %v403 = vsel %vm185, %v385, 0
  %v406 = vsel %vm185, %v386, 0
  %408 = vmatprep.subr.mxu0 0.0
  %409 = vmatpush1.msra.mxu0 0.0
  %410 = vmatprep.subr.mxu0 0.0
  %411 = vmatpush1.msra.mxu0 0.0
  %412 = vmatprep.subr.mxu0 0.0
  %413 = vmatpush1.msra.mxu0 0.0
  %414 = vmatprep.subr.mxu0 0.0
  %415 = vmatpush1.msra.mxu0 0.0
  %416 = vmatprep.subr.mxu0 0.0
  %417 = vmatpush1.msra.mxu0 0.0
  %418 = vmatprep.subr.mxu0 0.0
  %419 = vmatpush1.msra.mxu0 0.0
  %420 = vmatprep.subr.mxu0 0.0
  %421 = vmatpush1.msra.mxu0 0.0
  %422 = vmatprep.subr.mxu0 0.0
  %423 = vmatpush1.msra.mxu0 0.0
  %424 = vmatprep.subr.mxu0 0.0
  %425 = vmatpush1.msra.mxu0 0.0
  %426 = vmatprep.subr.mxu0 0.0
  %427 = vmatpush1.msra.mxu0 0.0
  %428 = vmatprep.subr.mxu0 0.0
  %429 = vmatpush1.msra.mxu0 0.0
  %430 = vmatprep.subr.mxu0 0.0
  %431 = vmatpush1.msra.mxu0 0.0
  %432 = vmatprep.subr.mxu0 0.0
  %433 = vmatpush1.msra.mxu0 %v395
  %434 = vmatprep.subr.mxu0 0.0
  %435 = vmatpush1.msra.mxu0 %v394
  %436 = vmatprep.subr.mxu0 0.0
  %437 = vmatpush1.msra.mxu0 %v393
  %438 = vmatprep.subr.mxu0 0.0
  %439 = vmatpush1.msra.mxu0 %v392
  %440 = vmatprep.subr.mxu0 0.0
  %441 = vmatpush2.msra.mxu0 0.0
  %442 = vmatprep.subr.mxu0 0.0
  %443 = vmatpush2.msra.mxu0 0.0
  %444 = vmatprep.subr.mxu0 0.0
  %445 = vmatpush2.msra.mxu0 0.0
  %446 = vmatprep.subr.mxu0 0.0
  %447 = vmatpush2.msra.mxu0 0.0
  %448 = vmatprep.subr.mxu0 0.0
  %449 = vmatpush2.msra.mxu0 0.0
  %450 = vmatprep.subr.mxu0 0.0
  %451 = vmatpush2.msra.mxu0 0.0
  %452 = vmatprep.subr.mxu0 0.0
  %453 = vmatpush2.msra.mxu0 0.0
  %454 = vmatprep.subr.mxu0 0.0
  %455 = vmatpush2.msra.mxu0 0.0
  %456 = vmatprep.subr.mxu0 0.0
  %457 = vmatpush2.msra.mxu0 0.0
  %458 = vmatprep.subr.mxu0 0.0
  %459 = vmatpush2.msra.mxu0 0.0
  %460 = vmatprep.subr.mxu0 0.0
  %461 = vmatpush2.msra.mxu0 0.0
  %462 = vmatprep.subr.mxu0 0.0
  %463 = vmatpush2.msra.mxu0 0.0
  %464 = vmatprep.subr.mxu0 0.0
  %465 = vmatpush2.msra.mxu0 0.0
  %466 = vmatprep.subr.mxu0 0.0
  %467 = vmatpush2.msra.mxu0 0.0
  %468 = vmatprep.subr.mxu0 0.0
  %469 = vmatpush2.msra.mxu0 0.0
  %470 = vmatprep.subr.mxu0 0.0
  %471 = vmatpush2.msra.mxu0 0.0
  %472 = vmatprep.mubr.f32.mxu0 0.0
  %473 = vmatmul.mubr.f32.gmra.mxu0 %v397
  %v474 = vpop.f32.mrf.mxu0
  %v475 = vadd.f32 0.0, %v474
  %v476 = vpop.f32.mrf.mxu0
  %477 = vmatprep.mubr.f32.mxu0 0.0
  %478 = vmatmul.mubr.f32.gmra.mxu0 %v400
  %v479 = vpop.f32.mrf.mxu0
  %v480 = vadd.f32 0.0, %v479
  %v481 = vpop.f32.mrf.mxu0
  %482 = vmatprep.mubr.f32.mxu0 0.0
  %483 = vmatmul.mubr.f32.gmra.mxu0 %v403
  %v484 = vpop.f32.mrf.mxu0
  %v485 = vadd.f32 0.0, %v484
  %v486 = vpop.f32.mrf.mxu0
  %487 = vmatprep.mubr.f32.mxu0 0.0
  %488 = vmatmul.mubr.f32.gmra.mxu0 %v406
  %v489 = vpop.f32.mrf.mxu0
  %v490 = vadd.f32 0.0, %v489
  %v491 = vpop.f32.mrf.mxu0
  %492 = vdwg.mxu0
  %v494 = vsel %vm185, %v379, 0
  %v497 = vsel %vm185, %v380, 0
  %v500 = vsel %vm185, %v381, 0
  %v503 = vsel %vm185, %v382, 0
  %505 = vmatprep.subr.mxu0 0.0
  %506 = vmatpush1.msra.mxu0 0.0
  %507 = vmatprep.subr.mxu0 0.0
  %508 = vmatpush1.msra.mxu0 0.0
  %509 = vmatprep.subr.mxu0 0.0
  %510 = vmatpush1.msra.mxu0 0.0
  %511 = vmatprep.subr.mxu0 0.0
  %512 = vmatpush1.msra.mxu0 0.0
  %513 = vmatprep.subr.mxu0 0.0
  %514 = vmatpush1.msra.mxu0 0.0
  %515 = vmatprep.subr.mxu0 0.0
  %516 = vmatpush1.msra.mxu0 0.0
  %517 = vmatprep.subr.mxu0 0.0
  %518 = vmatpush1.msra.mxu0 0.0
  %519 = vmatprep.subr.mxu0 0.0
  %520 = vmatpush1.msra.mxu0 0.0
  %521 = vmatprep.subr.mxu0 0.0
  %522 = vmatpush1.msra.mxu0 0.0
  %523 = vmatprep.subr.mxu0 0.0
  %524 = vmatpush1.msra.mxu0 0.0
  %525 = vmatprep.subr.mxu0 0.0
  %526 = vmatpush1.msra.mxu0 0.0
  %527 = vmatprep.subr.mxu0 0.0
  %528 = vmatpush1.msra.mxu0 0.0
  %529 = vmatprep.subr.mxu0 0.0
  %530 = vmatpush1.msra.mxu0 %v390
  %531 = vmatprep.subr.mxu0 0.0
  %532 = vmatpush1.msra.mxu0 %v389
  %533 = vmatprep.subr.mxu0 0.0
  %534 = vmatpush1.msra.mxu0 %v388
  %535 = vmatprep.subr.mxu0 0.0
  %536 = vmatpush1.msra.mxu0 %v387
  %537 = vmatprep.subr.mxu0 0.0
  %538 = vmatpush2.msra.mxu0 0.0
  %539 = vmatprep.subr.mxu0 0.0
  %540 = vmatpush2.msra.mxu0 0.0
  %541 = vmatprep.subr.mxu0 0.0
  %542 = vmatpush2.msra.mxu0 0.0
  %543 = vmatprep.subr.mxu0 0.0
  %544 = vmatpush2.msra.mxu0 0.0
  %545 = vmatprep.subr.mxu0 0.0
  %546 = vmatpush2.msra.mxu0 0.0
  %547 = vmatprep.subr.mxu0 0.0
  %548 = vmatpush2.msra.mxu0 0.0
  %549 = vmatprep.subr.mxu0 0.0
  %550 = vmatpush2.msra.mxu0 0.0
  %551 = vmatprep.subr.mxu0 0.0
  %552 = vmatpush2.msra.mxu0 0.0
  %553 = vmatprep.subr.mxu0 0.0
  %554 = vmatpush2.msra.mxu0 0.0
  %555 = vmatprep.subr.mxu0 0.0
  %556 = vmatpush2.msra.mxu0 0.0
  %557 = vmatprep.subr.mxu0 0.0
  %558 = vmatpush2.msra.mxu0 0.0
  %559 = vmatprep.subr.mxu0 0.0
  %560 = vmatpush2.msra.mxu0 0.0
  %561 = vmatprep.subr.mxu0 0.0
  %562 = vmatpush2.msra.mxu0 0.0
  %563 = vmatprep.subr.mxu0 0.0
  %564 = vmatpush2.msra.mxu0 0.0
  %565 = vmatprep.subr.mxu0 0.0
  %566 = vmatpush2.msra.mxu0 0.0
  %567 = vmatprep.subr.mxu0 0.0
  %568 = vmatpush2.msra.mxu0 0.0
  %569 = vmatprep.mubr.f32.mxu0 0.0
  %570 = vmatmul.mubr.f32.gmra.mxu0 %v494
  %v571 = vpop.f32.mrf.mxu0
  %v572 = vadd.f32 %v475, %v571
  %v573 = vpop.f32.mrf.mxu0
  %574 = vmatprep.mubr.f32.mxu0 0.0
  %575 = vmatmul.mubr.f32.gmra.mxu0 %v497
  %v576 = vpop.f32.mrf.mxu0
  %v577 = vadd.f32 %v480, %v576
  %v578 = vpop.f32.mrf.mxu0
  %579 = vmatprep.mubr.f32.mxu0 0.0
  %580 = vmatmul.mubr.f32.gmra.mxu0 %v500
  %v581 = vpop.f32.mrf.mxu0
  %v582 = vadd.f32 %v485, %v581
  %v583 = vpop.f32.mrf.mxu0
  %584 = vmatprep.mubr.f32.mxu0 0.0
  %585 = vmatmul.mubr.f32.gmra.mxu0 %v503
  %v586 = vpop.f32.mrf.mxu0
  %v587 = vadd.f32 %v490, %v586
  %v588 = vpop.f32.mrf.mxu0
  %589 = vdwg.mxu0
  %s590 = scalar_lea.vmem %s2, 64
  %v591 = vld [vmem:[%s590] sm:$0xff]
  %v592 = vld [vmem:[%s590 + $0x8] sm:$0xff]
  %v593 = vld [vmem:[%s590 + $0x10] sm:$0xff]
  %v594 = vld [vmem:[%s590 + $0x18] sm:$0xff]
  %vm595 = vcmask 1046528
  %v596 = vrot.slane %v379, 1
  %v597 = vrot.slane %v380, 1
  %v598 = vsel %vm595, %v596, %v597
  %v599 = vrot.slane %v381, 1
  %v600 = vsel %vm595, %v597, %v599
  %v601 = vrot.slane %v382, 1
  %v602 = vsel %vm595, %v599, %v601
  %v603 = vrot.slane %v383, 1
  %v604 = vsel %vm595, %v601, %v603
  %v605 = vsel %vm185, %v598, 0
  %v607 = vsel %vm185, %v600, 0
  %v609 = vsel %vm185, %v602, 0
  %v611 = vsel %vm185, %v604, 0
  %613 = vmatprep.subr.mxu0 0.0
  %614 = vmatpush1.msra.mxu0 0.0
  %615 = vmatprep.subr.mxu0 0.0
  %616 = vmatpush1.msra.mxu0 0.0
  %617 = vmatprep.subr.mxu0 0.0
  %618 = vmatpush1.msra.mxu0 0.0
  %619 = vmatprep.subr.mxu0 0.0
  %620 = vmatpush1.msra.mxu0 0.0
  %621 = vmatprep.subr.mxu0 0.0
  %622 = vmatpush1.msra.mxu0 0.0
  %623 = vmatprep.subr.mxu0 0.0
  %624 = vmatpush1.msra.mxu0 0.0
  %625 = vmatprep.subr.mxu0 0.0
  %626 = vmatpush1.msra.mxu0 0.0
  %627 = vmatprep.subr.mxu0 0.0
  %628 = vmatpush1.msra.mxu0 0.0
  %629 = vmatprep.subr.mxu0 0.0
  %630 = vmatpush1.msra.mxu0 0.0
  %631 = vmatprep.subr.mxu0 0.0
  %632 = vmatpush1.msra.mxu0 0.0
  %633 = vmatprep.subr.mxu0 0.0
  %634 = vmatpush1.msra.mxu0 0.0
  %635 = vmatprep.subr.mxu0 0.0
  %636 = vmatpush1.msra.mxu0 0.0
  %637 = vmatprep.subr.mxu0 0.0
  %638 = vmatpush1.msra.mxu0 %v594
  %639 = vmatprep.subr.mxu0 0.0
  %640 = vmatpush1.msra.mxu0 %v593
  %641 = vmatprep.subr.mxu0 0.0
  %642 = vmatpush1.msra.mxu0 %v592
  %643 = vmatprep.subr.mxu0 0.0
  %644 = vmatpush1.msra.mxu0 %v591
  %645 = vmatprep.subr.mxu0 0.0
  %646 = vmatpush2.msra.mxu0 0.0
  %647 = vmatprep.subr.mxu0 0.0
  %648 = vmatpush2.msra.mxu0 0.0
  %649 = vmatprep.subr.mxu0 0.0
  %650 = vmatpush2.msra.mxu0 0.0
  %651 = vmatprep.subr.mxu0 0.0
  %652 = vmatpush2.msra.mxu0 0.0
  %653 = vmatprep.subr.mxu0 0.0
  %654 = vmatpush2.msra.mxu0 0.0
  %655 = vmatprep.subr.mxu0 0.0
  %656 = vmatpush2.msra.mxu0 0.0
  %657 = vmatprep.subr.mxu0 0.0
  %658 = vmatpush2.msra.mxu0 0.0
  %659 = vmatprep.subr.mxu0 0.0
  %660 = vmatpush2.msra.mxu0 0.0
  %661 = vmatprep.subr.mxu0 0.0
  %662 = vmatpush2.msra.mxu0 0.0
  %663 = vmatprep.subr.mxu0 0.0
  %664 = vmatpush2.msra.mxu0 0.0
  %665 = vmatprep.subr.mxu0 0.0
  %666 = vmatpush2.msra.mxu0 0.0
  %667 = vmatprep.subr.mxu0 0.0
  %668 = vmatpush2.msra.mxu0 0.0
  %669 = vmatprep.subr.mxu0 0.0
  %670 = vmatpush2.msra.mxu0 0.0
  %671 = vmatprep.subr.mxu0 0.0
  %672 = vmatpush2.msra.mxu0 0.0
  %673 = vmatprep.subr.mxu0 0.0
  %674 = vmatpush2.msra.mxu0 0.0
  %675 = vmatprep.subr.mxu0 0.0
  %676 = vmatpush2.msra.mxu0 0.0
  %677 = vmatprep.mubr.f32.mxu0 0.0
  %678 = vmatmul.mubr.f32.gmra.mxu0 %v605
  %v679 = vpop.f32.mrf.mxu0
  %v680 = vadd.f32 0.0, %v679
  %v681 = vpop.f32.mrf.mxu0
  %682 = vmatprep.mubr.f32.mxu0 0.0
  %683 = vmatmul.mubr.f32.gmra.mxu0 %v607
  %v684 = vpop.f32.mrf.mxu0
  %v685 = vadd.f32 0.0, %v684
  %v686 = vpop.f32.mrf.mxu0
  %687 = vmatprep.mubr.f32.mxu0 0.0
  %688 = vmatmul.mubr.f32.gmra.mxu0 %v609
  %v689 = vpop.f32.mrf.mxu0
  %v690 = vadd.f32 0.0, %v689
  %v691 = vpop.f32.mrf.mxu0
  %692 = vmatprep.mubr.f32.mxu0 0.0
  %693 = vmatmul.mubr.f32.gmra.mxu0 %v611
  %v694 = vpop.f32.mrf.mxu0
  %v695 = vadd.f32 0.0, %v694
  %v696 = vpop.f32.mrf.mxu0
  %697 = vdwg.mxu0
  %v698 = vadd.f32 %v572, %v680
  %v699 = vadd.f32 %v577, %v685
  %v700 = vadd.f32 %v582, %v690
  %v701 = vadd.f32 %v587, %v695
  %v702 = vld [vmem:[%s12 + $0x2] sm:$0x1]
  %v703 = vld [vmem:[%s12 + $0x3] sm:$0x1]
  %v704 = vsel %vm185, %v698, 0.0
  %705 = vadd.xlane.f32.xlu0 %v704
  %v706 = vpop.xlane.xlu0 %705
  %v707 = vsel %vm185, %v699, 0.0
  %708 = vadd.xlane.f32.xlu0 %v707
  %v709 = vpop.xlane.xlu0 %708
  %v710 = vsel %vm185, %v700, 0.0
  %711 = vadd.xlane.f32.xlu0 %v710
  %v712 = vpop.xlane.xlu0 %711
  %v713 = vsel %vm185, %v701, 0.0
  %714 = vadd.xlane.f32.xlu0 %v713
  %v715 = vpop.xlane.xlu0 %714
  %v716 = vmul.f32 %v706, %v210
  %v717 = vmul.f32 %v709, %v210
  %v718 = vmul.f32 %v712, %v210
  %v719 = vmul.f32 %v715, %v210
  %v720 = vsub.f32 %v698, %v716
  %v721 = vsub.f32 %v699, %v717
  %v722 = vsub.f32 %v700, %v718
  %v723 = vsub.f32 %v701, %v719
  %v724 = vmul.f32 %v720, %v720
  %v725 = vmul.f32 %v721, %v721
  %v726 = vmul.f32 %v722, %v722
  %v727 = vmul.f32 %v723, %v723
  %v728 = vsel %vm185, %v724, 0.0
  %729 = vadd.xlane.f32.xlu0 %v728
  %v730 = vpop.xlane.xlu0 %729
  %v731 = vsel %vm185, %v725, 0.0
  %732 = vadd.xlane.f32.xlu0 %v731
  %v733 = vpop.xlane.xlu0 %732
  %v734 = vsel %vm185, %v726, 0.0
  %735 = vadd.xlane.f32.xlu0 %v734
  %v736 = vpop.xlane.xlu0 %735
  %v737 = vsel %vm185, %v727, 0.0
  %738 = vadd.xlane.f32.xlu0 %v737
  %v739 = vpop.xlane.xlu0 %738
  %v740 = vmul.f32 %v730, %v210
  %v741 = vmul.f32 %v733, %v210
  %v742 = vmul.f32 %v736, %v210
  %v743 = vmul.f32 %v739, %v210
  %v744 = vadd.f32 %v740, 1e-05
  %v745 = vadd.f32 %v741, 1e-05
  %v746 = vadd.f32 %v742, 1e-05
  %v747 = vadd.f32 %v743, 1e-05
  %v748 = vrsqrt.pop %v744
  %v749 = vrsqrt.pop %v745
  %v750 = vrsqrt.pop %v746
  %v751 = vrsqrt.pop %v747
  %v752 = vmul.f32 %v720, %v748
  %v753 = vmul.f32 %v721, %v749
  %v754 = vmul.f32 %v722, %v750
  %v755 = vmul.f32 %v723, %v751
  %v756 = vlaneseq
  %v757 = vshrl.u32 %v756, 7
  %v758 = vsub.s32 0, %v757
  %v759 = vrot.slane %v702, %v758
  %v760 = vmul.f32 %v752, %v759
  %v761 = vmul.f32 %v753, %v759
  %v762 = vmul.f32 %v754, %v759
  %v763 = vmul.f32 %v755, %v759
  %v764 = vlaneseq
  %v765 = vshrl.u32 %v764, 7
  %v766 = vsub.s32 0, %v765
  %v767 = vrot.slane %v703, %v766
  %v768 = vadd.f32 %v760, %v767
  %v769 = vadd.f32 %v761, %v767
  %v770 = vadd.f32 %v762, %v767
  %v771 = vadd.f32 %v763, %v767
  %v772 = vmul.f32 %v768, 0.5
  %v773 = vmul.f32 %v769, 0.5
  %v774 = vmul.f32 %v770, 0.5
  %v775 = vmul.f32 %v771, 0.5
  %v776 = vmul.f32 %v768, 0.044715
  %v777 = vmul.f32 %v769, 0.044715
  %v778 = vmul.f32 %v770, 0.044715
  %v779 = vmul.f32 %v771, 0.044715
  %v780 = vmul.f32 %v776, %v768
  %v781 = vmul.f32 %v777, %v769
  %v782 = vmul.f32 %v778, %v770
  %v783 = vmul.f32 %v779, %v771
  %v784 = vmul.f32 %v780, %v768
  %v785 = vmul.f32 %v781, %v769
  %v786 = vmul.f32 %v782, %v770
  %v787 = vmul.f32 %v783, %v771
  %v788 = vadd.f32 %v768, %v784
  %v789 = vadd.f32 %v769, %v785
  %v790 = vadd.f32 %v770, %v786
  %v791 = vadd.f32 %v771, %v787
  %v792 = vmul.f32 %v788, 0.7978846
  %v793 = vmul.f32 %v789, 0.7978846
  %v794 = vmul.f32 %v790, 0.7978846
  %v795 = vmul.f32 %v791, 0.7978846
  %v796 = vtanh.pop %v792
  %v797 = vtanh.pop %v793
  %v798 = vtanh.pop %v794
  %v799 = vtanh.pop %v795
  %v800 = vadd.f32 %v796, 1.0
  %v801 = vadd.f32 %v797, 1.0
  %v802 = vadd.f32 %v798, 1.0
  %v803 = vadd.f32 %v799, 1.0
  %v804 = vmul.f32 %v772, %v800
  %v805 = vmul.f32 %v773, %v801
  %v806 = vmul.f32 %v774, %v802
  %v807 = vmul.f32 %v775, %v803
  %v808 = vlaneseq
  %v809 = vshrl.u32 %v808, 7
  %v810 = vadd.s32 %v809, 8
  %v811 = vadd.s32 %v809, 16
  %v812 = vadd.s32 %v809, 24
  %v813 = vand.u32 %v809, 15
  %v814 = vand.u32 %v810, 15
  %v815 = vand.u32 %v811, 15
  %v816 = vand.u32 %v812, 15
  %vm817 = vcmp.lt.s32.totalorder %v813, 15
  %vm818 = vcmp.lt.s32.totalorder %v814, 15
  %vm819 = vcmp.lt.s32.totalorder %v815, 15
  %vm820 = vcmp.lt.s32.totalorder %v816, 15
  %v821 = vsel %vm817, %v804, 0.0
  %v822 = vsel %vm818, %v805, 0.0
  %v823 = vsel %vm819, %v806, 0.0
  %v824 = vsel %vm820, %v807, 0.0
  %v825 = vmul.f32 %v821, %v821
  %v826 = vmul.f32 %v822, %v822
  %v827 = vmul.f32 %v823, %v823
  %v828 = vmul.f32 %v824, %v824
  %v829 = vsel %vm185, %v825, 0.0
  %830 = vadd.xlane.f32.xlu0 %v829
  %v831 = vpop.xlane.xlu0 %830
  %v832 = vsel %vm185, %v826, 0.0
  %833 = vadd.xlane.f32.xlu0 %v832
  %v834 = vpop.xlane.xlu0 %833
  %v835 = vsel %vm185, %v827, 0.0
  %836 = vadd.xlane.f32.xlu0 %v835
  %v837 = vpop.xlane.xlu0 %836
  %v838 = vsel %vm185, %v828, 0.0
  %839 = vadd.xlane.f32.xlu0 %v838
  %v840 = vpop.xlane.xlu0 %839
  %v841 = vadd.f32 %v831, %v834
  %v842 = vadd.f32 %v841, %v837
  %v843 = vadd.f32 %v842, %v840
  %v844 = vrot.slane %v843, 4
  %v845 = vadd.f32 %v843, %v844
  %v846 = vrot.slane %v845, 2
  %v847 = vadd.f32 %v845, %v846
  %v848 = vrot.slane %v847, 1
  %v849 = vadd.f32 %v847, %v848
  %v850 = vmul.f32 %v849, 0.0010416667
  %v851 = vld [vmem:[%s12 + $0x4] sm:$0x1]
  %v852 = vld [vmem:[%s12 + $0x5] sm:$0x1]
  %v853 = vsel %vm185, %v804, 0.0
  %854 = vadd.xlane.f32.xlu0 %v853
  %v855 = vpop.xlane.xlu0 %854
  %v856 = vsel %vm185, %v805, 0.0
  %857 = vadd.xlane.f32.xlu0 %v856
  %v858 = vpop.xlane.xlu0 %857
  %v859 = vsel %vm185, %v806, 0.0
  %860 = vadd.xlane.f32.xlu0 %v859
  %v861 = vpop.xlane.xlu0 %860
  %v862 = vsel %vm185, %v807, 0.0
  %863 = vadd.xlane.f32.xlu0 %v862
  %v864 = vpop.xlane.xlu0 %863
  %v865 = vmul.f32 %v855, %v210
  %v866 = vmul.f32 %v858, %v210
  %v867 = vmul.f32 %v861, %v210
  %v868 = vmul.f32 %v864, %v210
  %v869 = vsub.f32 %v804, %v865
  %v870 = vsub.f32 %v805, %v866
  %v871 = vsub.f32 %v806, %v867
  %v872 = vsub.f32 %v807, %v868
  %v873 = vmul.f32 %v869, %v869
  %v874 = vmul.f32 %v870, %v870
  %v875 = vmul.f32 %v871, %v871
  %v876 = vmul.f32 %v872, %v872
  %v877 = vsel %vm185, %v873, 0.0
  %878 = vadd.xlane.f32.xlu0 %v877
  %v879 = vpop.xlane.xlu0 %878
  %v880 = vsel %vm185, %v874, 0.0
  %881 = vadd.xlane.f32.xlu0 %v880
  %v882 = vpop.xlane.xlu0 %881
  %v883 = vsel %vm185, %v875, 0.0
  %884 = vadd.xlane.f32.xlu0 %v883
  %v885 = vpop.xlane.xlu0 %884
  %v886 = vsel %vm185, %v876, 0.0
  %887 = vadd.xlane.f32.xlu0 %v886
  %v888 = vpop.xlane.xlu0 %887
  %v889 = vmul.f32 %v879, %v210
  %v890 = vmul.f32 %v882, %v210
  %v891 = vmul.f32 %v885, %v210
  %v892 = vmul.f32 %v888, %v210
  %v893 = vadd.f32 %v889, 1e-05
  %v894 = vadd.f32 %v890, 1e-05
  %v895 = vadd.f32 %v891, 1e-05
  %v896 = vadd.f32 %v892, 1e-05
  %v897 = vrsqrt.pop %v893
  %v898 = vrsqrt.pop %v894
  %v899 = vrsqrt.pop %v895
  %v900 = vrsqrt.pop %v896
  %v901 = vmul.f32 %v869, %v897
  %v902 = vmul.f32 %v870, %v898
  %v903 = vmul.f32 %v871, %v899
  %v904 = vmul.f32 %v872, %v900
  %v905 = vlaneseq
  %v906 = vshrl.u32 %v905, 7
  %v907 = vsub.s32 0, %v906
  %v908 = vrot.slane %v851, %v907
  %v909 = vmul.f32 %v901, %v908
  %v910 = vmul.f32 %v902, %v908
  %v911 = vmul.f32 %v903, %v908
  %v912 = vmul.f32 %v904, %v908
  %v913 = vlaneseq
  %v914 = vshrl.u32 %v913, 7
  %v915 = vsub.s32 0, %v914
  %v916 = vrot.slane %v852, %v915
  %v917 = vadd.f32 %v909, %v916
  %v918 = vadd.f32 %v910, %v916
  %v919 = vadd.f32 %v911, %v916
  %v920 = vadd.f32 %v912, %v916
  %v921 = vld [vmem:[%s3] sm:$0xff]
  %v922 = vld [vmem:[%s3 + $0x8] sm:$0xff]
  %v923 = vld [vmem:[%s3 + $0x10] sm:$0xff]
  %v924 = vld [vmem:[%s3 + $0x18] sm:$0xff]
  %v925 = vld [vmem:[%s12 + $0x6] sm:$0x1]
  %v926 = vlaneseq
  %v927 = vshrl.u32 %v926, 7
  %v928 = vsub.s32 0, %v927
  %v929 = vrot.slane %v925, %v928
  %v931 = vsel %vm185, %v917, 0
  %v934 = vsel %vm185, %v918, 0
  %v937 = vsel %vm185, %v919, 0
  %v940 = vsel %vm185, %v920, 0
  %942 = vmatprep.subr.mxu0 0.0
  %943 = vmatpush1.msra.mxu0 0.0
  %944 = vmatprep.subr.mxu0 0.0
  %945 = vmatpush1.msra.mxu0 0.0
  %946 = vmatprep.subr.mxu0 0.0
  %947 = vmatpush1.msra.mxu0 0.0
  %948 = vmatprep.subr.mxu0 0.0
  %949 = vmatpush1.msra.mxu0 0.0
  %950 = vmatprep.subr.mxu0 0.0
  %951 = vmatpush1.msra.mxu0 0.0
  %952 = vmatprep.subr.mxu0 0.0
  %953 = vmatpush1.msra.mxu0 0.0
  %954 = vmatprep.subr.mxu0 0.0
  %955 = vmatpush1.msra.mxu0 0.0
  %956 = vmatprep.subr.mxu0 0.0
  %957 = vmatpush1.msra.mxu0 0.0
  %958 = vmatprep.subr.mxu0 0.0
  %959 = vmatpush1.msra.mxu0 0.0
  %960 = vmatprep.subr.mxu0 0.0
  %961 = vmatpush1.msra.mxu0 0.0
  %962 = vmatprep.subr.mxu0 0.0
  %963 = vmatpush1.msra.mxu0 0.0
  %964 = vmatprep.subr.mxu0 0.0
  %965 = vmatpush1.msra.mxu0 0.0
  %966 = vmatprep.subr.mxu0 0.0
  %967 = vmatpush1.msra.mxu0 %v924
  %968 = vmatprep.subr.mxu0 0.0
  %969 = vmatpush1.msra.mxu0 %v923
  %970 = vmatprep.subr.mxu0 0.0
  %971 = vmatpush1.msra.mxu0 %v922
  %972 = vmatprep.subr.mxu0 0.0
  %973 = vmatpush1.msra.mxu0 %v921
  %974 = vmatprep.subr.mxu0 0.0
  %975 = vmatpush2.msra.mxu0 0.0
  %976 = vmatprep.subr.mxu0 0.0
  %977 = vmatpush2.msra.mxu0 0.0
  %978 = vmatprep.subr.mxu0 0.0
  %979 = vmatpush2.msra.mxu0 0.0
  %980 = vmatprep.subr.mxu0 0.0
  %981 = vmatpush2.msra.mxu0 0.0
  %982 = vmatprep.subr.mxu0 0.0
  %983 = vmatpush2.msra.mxu0 0.0
  %984 = vmatprep.subr.mxu0 0.0
  %985 = vmatpush2.msra.mxu0 0.0
  %986 = vmatprep.subr.mxu0 0.0
  %987 = vmatpush2.msra.mxu0 0.0
  %988 = vmatprep.subr.mxu0 0.0
  %989 = vmatpush2.msra.mxu0 0.0
  %990 = vmatprep.subr.mxu0 0.0
  %991 = vmatpush2.msra.mxu0 0.0
  %992 = vmatprep.subr.mxu0 0.0
  %993 = vmatpush2.msra.mxu0 0.0
  %994 = vmatprep.subr.mxu0 0.0
  %995 = vmatpush2.msra.mxu0 0.0
  %996 = vmatprep.subr.mxu0 0.0
  %997 = vmatpush2.msra.mxu0 0.0
  %998 = vmatprep.subr.mxu0 0.0
  %999 = vmatpush2.msra.mxu0 0.0
  %1000 = vmatprep.subr.mxu0 0.0
  %1001 = vmatpush2.msra.mxu0 0.0
  %1002 = vmatprep.subr.mxu0 0.0
  %1003 = vmatpush2.msra.mxu0 0.0
  %1004 = vmatprep.subr.mxu0 0.0
  %1005 = vmatpush2.msra.mxu0 0.0
  %1006 = vmatprep.mubr.f32.mxu0 0.0
  %1007 = vmatmul.mubr.f32.gmra.mxu0 %v931
  %v1008 = vpop.f32.mrf.mxu0
  %v1009 = vadd.f32 %v929, %v1008
  %v1010 = vpop.f32.mrf.mxu0
  %1011 = vmatprep.mubr.f32.mxu0 0.0
  %1012 = vmatmul.mubr.f32.gmra.mxu0 %v934
  %v1013 = vpop.f32.mrf.mxu0
  %v1014 = vadd.f32 %v929, %v1013
  %v1015 = vpop.f32.mrf.mxu0
  %1016 = vmatprep.mubr.f32.mxu0 0.0
  %1017 = vmatmul.mubr.f32.gmra.mxu0 %v937
  %v1018 = vpop.f32.mrf.mxu0
  %v1019 = vadd.f32 %v929, %v1018
  %v1020 = vpop.f32.mrf.mxu0
  %1021 = vmatprep.mubr.f32.mxu0 0.0
  %1022 = vmatmul.mubr.f32.gmra.mxu0 %v940
  %v1023 = vpop.f32.mrf.mxu0
  %v1024 = vadd.f32 %v929, %v1023
  %v1025 = vpop.f32.mrf.mxu0
  %1026 = vdwg.mxu0
  %v1027 = vsel %vm817, %v1009, 0.0
  %v1028 = vsel %vm818, %v1014, 0.0
  %v1029 = vsel %vm819, %v1019, 0.0
  %v1030 = vsel %vm820, %v1024, 0.0
  %v1031 = vlaneseq
  %v1032 = vand.u32 %v1031, 127
  %v1033 = vadd.s32 %v1032, 1
  %vm1034 = vcmp.eq.s32.totalorder %v809, %v1033
  %vm1035 = vcmp.eq.s32.totalorder %v810, %v1033
  %vm1036 = vcmp.eq.s32.totalorder %v811, %v1033
  %vm1037 = vcmp.eq.s32.totalorder %v812, %v1033
  %v1038 = vsel %vm1034, 1.0, 0.0
  %v1039 = vsel %vm1035, 1.0, 0.0
  %v1040 = vsel %vm1036, 1.0, 0.0
  %v1041 = vsel %vm1037, 1.0, 0.0
  %v1042 = vadd.s32 %v809, 1
  %v1043 = vadd.s32 %v810, 1
  %v1044 = vadd.s32 %v811, 1
  %v1045 = vadd.s32 %v812, 1
  %vm1046 = vcmp.eq.s32.totalorder %v1042, %v1032
  %vm1047 = vcmp.eq.s32.totalorder %v1043, %v1032
  %vm1048 = vcmp.eq.s32.totalorder %v1044, %v1032
  %vm1049 = vcmp.eq.s32.totalorder %v1045, %v1032
  %v1050 = vsel %vm1046, 1.0, 0.0
  %v1051 = vsel %vm1047, 1.0, 0.0
  %v1052 = vsel %vm1048, 1.0, 0.0
  %v1053 = vsel %vm1049, 1.0, 0.0
  %v1055 = vsel %vm185, %v1038, 0
  %v1058 = vsel %vm185, %v1039, 0
  %v1061 = vsel %vm185, %v1040, 0
  %v1064 = vsel %vm185, %v1041, 0
  %1066 = vmatprep.subr.mxu0 0.0
  %1067 = vmatpush1.msra.mxu0 0.0
  %1068 = vmatprep.subr.mxu0 0.0
  %1069 = vmatpush1.msra.mxu0 0.0
  %1070 = vmatprep.subr.mxu0 0.0
  %1071 = vmatpush1.msra.mxu0 0.0
  %1072 = vmatprep.subr.mxu0 0.0
  %1073 = vmatpush1.msra.mxu0 0.0
  %1074 = vmatprep.subr.mxu0 0.0
  %1075 = vmatpush1.msra.mxu0 0.0
  %1076 = vmatprep.subr.mxu0 0.0
  %1077 = vmatpush1.msra.mxu0 0.0
  %1078 = vmatprep.subr.mxu0 0.0
  %1079 = vmatpush1.msra.mxu0 0.0
  %1080 = vmatprep.subr.mxu0 0.0
  %1081 = vmatpush1.msra.mxu0 0.0
  %1082 = vmatprep.subr.mxu0 0.0
  %1083 = vmatpush1.msra.mxu0 0.0
  %1084 = vmatprep.subr.mxu0 0.0
  %1085 = vmatpush1.msra.mxu0 0.0
  %1086 = vmatprep.subr.mxu0 0.0
  %1087 = vmatpush1.msra.mxu0 0.0
  %1088 = vmatprep.subr.mxu0 0.0
  %1089 = vmatpush1.msra.mxu0 0.0
  %1090 = vmatprep.subr.mxu0 0.0
  %1091 = vmatpush1.msra.mxu0 %v1030
  %1092 = vmatprep.subr.mxu0 0.0
  %1093 = vmatpush1.msra.mxu0 %v1029
  %1094 = vmatprep.subr.mxu0 0.0
  %1095 = vmatpush1.msra.mxu0 %v1028
  %1096 = vmatprep.subr.mxu0 0.0
  %1097 = vmatpush1.msra.mxu0 %v1027
  %1098 = vmatprep.subr.mxu0 0.0
  %1099 = vmatpush2.msra.mxu0 0.0
  %1100 = vmatprep.subr.mxu0 0.0
  %1101 = vmatpush2.msra.mxu0 0.0
  %1102 = vmatprep.subr.mxu0 0.0
  %1103 = vmatpush2.msra.mxu0 0.0
  %1104 = vmatprep.subr.mxu0 0.0
  %1105 = vmatpush2.msra.mxu0 0.0
  %1106 = vmatprep.subr.mxu0 0.0
  %1107 = vmatpush2.msra.mxu0 0.0
  %1108 = vmatprep.subr.mxu0 0.0
  %1109 = vmatpush2.msra.mxu0 0.0
  %1110 = vmatprep.subr.mxu0 0.0
  %1111 = vmatpush2.msra.mxu0 0.0
  %1112 = vmatprep.subr.mxu0 0.0
  %1113 = vmatpush2.msra.mxu0 0.0
  %1114 = vmatprep.subr.mxu0 0.0
  %1115 = vmatpush2.msra.mxu0 0.0
  %1116 = vmatprep.subr.mxu0 0.0
  %1117 = vmatpush2.msra.mxu0 0.0
  %1118 = vmatprep.subr.mxu0 0.0
  %1119 = vmatpush2.msra.mxu0 0.0
  %1120 = vmatprep.subr.mxu0 0.0
  %1121 = vmatpush2.msra.mxu0 0.0
  %1122 = vmatprep.subr.mxu0 0.0
  %1123 = vmatpush2.msra.mxu0 0.0
  %1124 = vmatprep.subr.mxu0 0.0
  %1125 = vmatpush2.msra.mxu0 0.0
  %1126 = vmatprep.subr.mxu0 0.0
  %1127 = vmatpush2.msra.mxu0 0.0
  %1128 = vmatprep.subr.mxu0 0.0
  %1129 = vmatpush2.msra.mxu0 0.0
  %1130 = vmatprep.mubr.f32.mxu0 0.0
  %1131 = vmatmul.mubr.f32.gmra.mxu0 %v1055
  %v1132 = vpop.f32.mrf.mxu0
  %v1133 = vadd.f32 0.0, %v1132
  %v1134 = vpop.f32.mrf.mxu0
  %1135 = vmatprep.mubr.f32.mxu0 0.0
  %1136 = vmatmul.mubr.f32.gmra.mxu0 %v1058
  %v1137 = vpop.f32.mrf.mxu0
  %v1138 = vadd.f32 0.0, %v1137
  %v1139 = vpop.f32.mrf.mxu0
  %1140 = vmatprep.mubr.f32.mxu0 0.0
  %1141 = vmatmul.mubr.f32.gmra.mxu0 %v1061
  %v1142 = vpop.f32.mrf.mxu0
  %v1143 = vadd.f32 0.0, %v1142
  %v1144 = vpop.f32.mrf.mxu0
  %1145 = vmatprep.mubr.f32.mxu0 0.0
  %1146 = vmatmul.mubr.f32.gmra.mxu0 %v1064
  %v1147 = vpop.f32.mrf.mxu0
  %v1148 = vadd.f32 0.0, %v1147
  %v1149 = vpop.f32.mrf.mxu0
  %1150 = vdwg.mxu0
  %v1152 = vsel %vm185, %v1050, 0
  %v1155 = vsel %vm185, %v1051, 0
  %v1158 = vsel %vm185, %v1052, 0
  %v1161 = vsel %vm185, %v1053, 0
  %1163 = vmatprep.subr.mxu0 0.0
  %1164 = vmatpush1.msra.mxu0 0.0
  %1165 = vmatprep.subr.mxu0 0.0
  %1166 = vmatpush1.msra.mxu0 0.0
  %1167 = vmatprep.subr.mxu0 0.0
  %1168 = vmatpush1.msra.mxu0 0.0
  %1169 = vmatprep.subr.mxu0 0.0
  %1170 = vmatpush1.msra.mxu0 0.0
  %1171 = vmatprep.subr.mxu0 0.0
  %1172 = vmatpush1.msra.mxu0 0.0
  %1173 = vmatprep.subr.mxu0 0.0
  %1174 = vmatpush1.msra.mxu0 0.0
  %1175 = vmatprep.subr.mxu0 0.0
  %1176 = vmatpush1.msra.mxu0 0.0
  %1177 = vmatprep.subr.mxu0 0.0
  %1178 = vmatpush1.msra.mxu0 0.0
  %1179 = vmatprep.subr.mxu0 0.0
  %1180 = vmatpush1.msra.mxu0 0.0
  %1181 = vmatprep.subr.mxu0 0.0
  %1182 = vmatpush1.msra.mxu0 0.0
  %1183 = vmatprep.subr.mxu0 0.0
  %1184 = vmatpush1.msra.mxu0 0.0
  %1185 = vmatprep.subr.mxu0 0.0
  %1186 = vmatpush1.msra.mxu0 0.0
  %1187 = vmatprep.subr.mxu0 0.0
  %1188 = vmatpush1.msra.mxu0 %v1030
  %1189 = vmatprep.subr.mxu0 0.0
  %1190 = vmatpush1.msra.mxu0 %v1029
  %1191 = vmatprep.subr.mxu0 0.0
  %1192 = vmatpush1.msra.mxu0 %v1028
  %1193 = vmatprep.subr.mxu0 0.0
  %1194 = vmatpush1.msra.mxu0 %v1027
  %1195 = vmatprep.subr.mxu0 0.0
  %1196 = vmatpush2.msra.mxu0 0.0
  %1197 = vmatprep.subr.mxu0 0.0
  %1198 = vmatpush2.msra.mxu0 0.0
  %1199 = vmatprep.subr.mxu0 0.0
  %1200 = vmatpush2.msra.mxu0 0.0
  %1201 = vmatprep.subr.mxu0 0.0
  %1202 = vmatpush2.msra.mxu0 0.0
  %1203 = vmatprep.subr.mxu0 0.0
  %1204 = vmatpush2.msra.mxu0 0.0
  %1205 = vmatprep.subr.mxu0 0.0
  %1206 = vmatpush2.msra.mxu0 0.0
  %1207 = vmatprep.subr.mxu0 0.0
  %1208 = vmatpush2.msra.mxu0 0.0
  %1209 = vmatprep.subr.mxu0 0.0
  %1210 = vmatpush2.msra.mxu0 0.0
  %1211 = vmatprep.subr.mxu0 0.0
  %1212 = vmatpush2.msra.mxu0 0.0
  %1213 = vmatprep.subr.mxu0 0.0
  %1214 = vmatpush2.msra.mxu0 0.0
  %1215 = vmatprep.subr.mxu0 0.0
  %1216 = vmatpush2.msra.mxu0 0.0
  %1217 = vmatprep.subr.mxu0 0.0
  %1218 = vmatpush2.msra.mxu0 0.0
  %1219 = vmatprep.subr.mxu0 0.0
  %1220 = vmatpush2.msra.mxu0 0.0
  %1221 = vmatprep.subr.mxu0 0.0
  %1222 = vmatpush2.msra.mxu0 0.0
  %1223 = vmatprep.subr.mxu0 0.0
  %1224 = vmatpush2.msra.mxu0 0.0
  %1225 = vmatprep.subr.mxu0 0.0
  %1226 = vmatpush2.msra.mxu0 0.0
  %1227 = vmatprep.mubr.f32.mxu0 0.0
  %1228 = vmatmul.mubr.f32.gmra.mxu0 %v1152
  %v1229 = vpop.f32.mrf.mxu0
  %v1230 = vadd.f32 0.0, %v1229
  %v1231 = vpop.f32.mrf.mxu0
  %1232 = vmatprep.mubr.f32.mxu0 0.0
  %1233 = vmatmul.mubr.f32.gmra.mxu0 %v1155
  %v1234 = vpop.f32.mrf.mxu0
  %v1235 = vadd.f32 0.0, %v1234
  %v1236 = vpop.f32.mrf.mxu0
  %1237 = vmatprep.mubr.f32.mxu0 0.0
  %1238 = vmatmul.mubr.f32.gmra.mxu0 %v1158
  %v1239 = vpop.f32.mrf.mxu0
  %v1240 = vadd.f32 0.0, %v1239
  %v1241 = vpop.f32.mrf.mxu0
  %1242 = vmatprep.mubr.f32.mxu0 0.0
  %1243 = vmatmul.mubr.f32.gmra.mxu0 %v1161
  %v1244 = vpop.f32.mrf.mxu0
  %v1245 = vadd.f32 0.0, %v1244
  %v1246 = vpop.f32.mrf.mxu0
  %1247 = vdwg.mxu0
  %v1248 = vld [vmem:[%s4] sm:$0xff]
  %v1249 = vld [vmem:[%s4 + $0x8] sm:$0xff]
  %v1250 = vld [vmem:[%s4 + $0x10] sm:$0xff]
  %v1251 = vld [vmem:[%s4 + $0x18] sm:$0xff]
  %v1252 = vld [vmem:[%s4 + $0x20] sm:$0xff]
  %v1253 = vld [vmem:[%s4 + $0x28] sm:$0xff]
  %v1254 = vld [vmem:[%s4 + $0x30] sm:$0xff]
  %v1255 = vld [vmem:[%s4 + $0x38] sm:$0xff]
  %s1256 = scalar_lea.vmem %s4, 64
  %v1257 = vld [vmem:[%s1256] sm:$0xff]
  %v1258 = vld [vmem:[%s1256 + $0x8] sm:$0xff]
  %v1259 = vld [vmem:[%s1256 + $0x10] sm:$0xff]
  %v1260 = vld [vmem:[%s1256 + $0x18] sm:$0xff]
  %v1261 = vld [vmem:[%s1256 + $0x20] sm:$0xff]
  %v1262 = vld [vmem:[%s1256 + $0x28] sm:$0xff]
  %v1263 = vld [vmem:[%s1256 + $0x30] sm:$0xff]
  %v1264 = vld [vmem:[%s1256 + $0x38] sm:$0xff]
  %vm1265 = vcmask 523264
  %v1267 = vsel %vm1265, %v1027, 0
  %v1270 = vsel %vm1265, %v1028, 0
  %v1273 = vsel %vm1265, %v1029, 0
  %v1276 = vsel %vm1265, %v1030, 0
  %1278 = vmatprep.subr.mxu0 0.0
  %1279 = vmatpush1.msra.mxu0 0.0
  %1280 = vmatprep.subr.mxu0 0.0
  %1281 = vmatpush1.msra.mxu0 0.0
  %1282 = vmatprep.subr.mxu0 0.0
  %1283 = vmatpush1.msra.mxu0 0.0
  %1284 = vmatprep.subr.mxu0 0.0
  %1285 = vmatpush1.msra.mxu0 0.0
  %1286 = vmatprep.subr.mxu0 0.0
  %1287 = vmatpush1.msra.mxu0 0.0
  %1288 = vmatprep.subr.mxu0 0.0
  %1289 = vmatpush1.msra.mxu0 0.0
  %1290 = vmatprep.subr.mxu0 0.0
  %1291 = vmatpush1.msra.mxu0 0.0
  %1292 = vmatprep.subr.mxu0 0.0
  %1293 = vmatpush1.msra.mxu0 0.0
  %1294 = vmatprep.subr.mxu0 0.0
  %1295 = vmatpush1.msra.mxu0 %v1264
  %1296 = vmatprep.subr.mxu0 0.0
  %1297 = vmatpush1.msra.mxu0 %v1263
  %1298 = vmatprep.subr.mxu0 0.0
  %1299 = vmatpush1.msra.mxu0 %v1262
  %1300 = vmatprep.subr.mxu0 0.0
  %1301 = vmatpush1.msra.mxu0 %v1261
  %1302 = vmatprep.subr.mxu0 0.0
  %1303 = vmatpush1.msra.mxu0 %v1260
  %1304 = vmatprep.subr.mxu0 0.0
  %1305 = vmatpush1.msra.mxu0 %v1259
  %1306 = vmatprep.subr.mxu0 0.0
  %1307 = vmatpush1.msra.mxu0 %v1258
  %1308 = vmatprep.subr.mxu0 0.0
  %1309 = vmatpush1.msra.mxu0 %v1257
  %1310 = vmatprep.subr.mxu0 0.0
  %1311 = vmatpush2.msra.mxu0 0.0
  %1312 = vmatprep.subr.mxu0 0.0
  %1313 = vmatpush2.msra.mxu0 0.0
  %1314 = vmatprep.subr.mxu0 0.0
  %1315 = vmatpush2.msra.mxu0 0.0
  %1316 = vmatprep.subr.mxu0 0.0
  %1317 = vmatpush2.msra.mxu0 0.0
  %1318 = vmatprep.subr.mxu0 0.0
  %1319 = vmatpush2.msra.mxu0 0.0
  %1320 = vmatprep.subr.mxu0 0.0
  %1321 = vmatpush2.msra.mxu0 0.0
  %1322 = vmatprep.subr.mxu0 0.0
  %1323 = vmatpush2.msra.mxu0 0.0
  %1324 = vmatprep.subr.mxu0 0.0
  %1325 = vmatpush2.msra.mxu0 0.0
  %1326 = vmatprep.subr.mxu0 0.0
  %1327 = vmatpush2.msra.mxu0 0.0
  %1328 = vmatprep.subr.mxu0 0.0
  %1329 = vmatpush2.msra.mxu0 0.0
  %1330 = vmatprep.subr.mxu0 0.0
  %1331 = vmatpush2.msra.mxu0 0.0
  %1332 = vmatprep.subr.mxu0 0.0
  %1333 = vmatpush2.msra.mxu0 0.0
  %1334 = vmatprep.subr.mxu0 0.0
  %1335 = vmatpush2.msra.mxu0 0.0
  %1336 = vmatprep.subr.mxu0 0.0
  %1337 = vmatpush2.msra.mxu0 0.0
  %1338 = vmatprep.subr.mxu0 0.0
  %1339 = vmatpush2.msra.mxu0 0.0
  %1340 = vmatprep.subr.mxu0 0.0
  %1341 = vmatpush2.msra.mxu0 0.0
  %1342 = vmatprep.mubr.f32.mxu0 0.0
  %1343 = vmatmul.mubr.f32.gmra.mxu0 %v1267
  %v1344 = vpop.f32.mrf.mxu0
  %v1345 = vadd.f32 0.0, %v1344
  %v1346 = vpop.f32.mrf.mxu0
  %1347 = vmatprep.mubr.f32.mxu0 0.0
  %1348 = vmatmul.mubr.f32.gmra.mxu0 %v1270
  %v1349 = vpop.f32.mrf.mxu0
  %v1350 = vadd.f32 0.0, %v1349
  %v1351 = vpop.f32.mrf.mxu0
  %1352 = vmatprep.mubr.f32.mxu0 0.0
  %1353 = vmatmul.mubr.f32.gmra.mxu0 %v1273
  %v1354 = vpop.f32.mrf.mxu0
  %v1355 = vadd.f32 0.0, %v1354
  %v1356 = vpop.f32.mrf.mxu0
  %1357 = vmatprep.mubr.f32.mxu0 0.0
  %1358 = vmatmul.mubr.f32.gmra.mxu0 %v1276
  %v1359 = vpop.f32.mrf.mxu0
  %v1360 = vadd.f32 0.0, %v1359
  %v1361 = vpop.f32.mrf.mxu0
  %1362 = vdwg.mxu0
  %v1364 = vsel %vm1265, %v1133, 0
  %v1367 = vsel %vm1265, %v1138, 0
  %v1370 = vsel %vm1265, %v1143, 0
  %v1373 = vsel %vm1265, %v1148, 0
  %1375 = vmatprep.subr.mxu0 0.0
  %1376 = vmatpush1.msra.mxu0 0.0
  %1377 = vmatprep.subr.mxu0 0.0
  %1378 = vmatpush1.msra.mxu0 0.0
  %1379 = vmatprep.subr.mxu0 0.0
  %1380 = vmatpush1.msra.mxu0 0.0
  %1381 = vmatprep.subr.mxu0 0.0
  %1382 = vmatpush1.msra.mxu0 0.0
  %1383 = vmatprep.subr.mxu0 0.0
  %1384 = vmatpush1.msra.mxu0 0.0
  %1385 = vmatprep.subr.mxu0 0.0
  %1386 = vmatpush1.msra.mxu0 0.0
  %1387 = vmatprep.subr.mxu0 0.0
  %1388 = vmatpush1.msra.mxu0 0.0
  %1389 = vmatprep.subr.mxu0 0.0
  %1390 = vmatpush1.msra.mxu0 0.0
  %1391 = vmatprep.subr.mxu0 0.0
  %1392 = vmatpush1.msra.mxu0 %v1255
  %1393 = vmatprep.subr.mxu0 0.0
  %1394 = vmatpush1.msra.mxu0 %v1254
  %1395 = vmatprep.subr.mxu0 0.0
  %1396 = vmatpush1.msra.mxu0 %v1253
  %1397 = vmatprep.subr.mxu0 0.0
  %1398 = vmatpush1.msra.mxu0 %v1252
  %1399 = vmatprep.subr.mxu0 0.0
  %1400 = vmatpush1.msra.mxu0 %v1251
  %1401 = vmatprep.subr.mxu0 0.0
  %1402 = vmatpush1.msra.mxu0 %v1250
  %1403 = vmatprep.subr.mxu0 0.0
  %1404 = vmatpush1.msra.mxu0 %v1249
  %1405 = vmatprep.subr.mxu0 0.0
  %1406 = vmatpush1.msra.mxu0 %v1248
  %1407 = vmatprep.subr.mxu0 0.0
  %1408 = vmatpush2.msra.mxu0 0.0
  %1409 = vmatprep.subr.mxu0 0.0
  %1410 = vmatpush2.msra.mxu0 0.0
  %1411 = vmatprep.subr.mxu0 0.0
  %1412 = vmatpush2.msra.mxu0 0.0
  %1413 = vmatprep.subr.mxu0 0.0
  %1414 = vmatpush2.msra.mxu0 0.0
  %1415 = vmatprep.subr.mxu0 0.0
  %1416 = vmatpush2.msra.mxu0 0.0
  %1417 = vmatprep.subr.mxu0 0.0
  %1418 = vmatpush2.msra.mxu0 0.0
  %1419 = vmatprep.subr.mxu0 0.0
  %1420 = vmatpush2.msra.mxu0 0.0
  %1421 = vmatprep.subr.mxu0 0.0
  %1422 = vmatpush2.msra.mxu0 0.0
  %1423 = vmatprep.subr.mxu0 0.0
  %1424 = vmatpush2.msra.mxu0 0.0
  %1425 = vmatprep.subr.mxu0 0.0
  %1426 = vmatpush2.msra.mxu0 0.0
  %1427 = vmatprep.subr.mxu0 0.0
  %1428 = vmatpush2.msra.mxu0 0.0
  %1429 = vmatprep.subr.mxu0 0.0
  %1430 = vmatpush2.msra.mxu0 0.0
  %1431 = vmatprep.subr.mxu0 0.0
  %1432 = vmatpush2.msra.mxu0 0.0
  %1433 = vmatprep.subr.mxu0 0.0
  %1434 = vmatpush2.msra.mxu0 0.0
  %1435 = vmatprep.subr.mxu0 0.0
  %1436 = vmatpush2.msra.mxu0 0.0
  %1437 = vmatprep.subr.mxu0 0.0
  %1438 = vmatpush2.msra.mxu0 0.0
  %1439 = vmatprep.mubr.f32.mxu0 0.0
  %1440 = vmatmul.mubr.f32.gmra.mxu0 %v1364
  %v1441 = vpop.f32.mrf.mxu0
  %v1442 = vadd.f32 %v1345, %v1441
  %v1443 = vpop.f32.mrf.mxu0
  %1444 = vmatprep.mubr.f32.mxu0 0.0
  %1445 = vmatmul.mubr.f32.gmra.mxu0 %v1367
  %v1446 = vpop.f32.mrf.mxu0
  %v1447 = vadd.f32 %v1350, %v1446
  %v1448 = vpop.f32.mrf.mxu0
  %1449 = vmatprep.mubr.f32.mxu0 0.0
  %1450 = vmatmul.mubr.f32.gmra.mxu0 %v1370
  %v1451 = vpop.f32.mrf.mxu0
  %v1452 = vadd.f32 %v1355, %v1451
  %v1453 = vpop.f32.mrf.mxu0
  %1454 = vmatprep.mubr.f32.mxu0 0.0
  %1455 = vmatmul.mubr.f32.gmra.mxu0 %v1373
  %v1456 = vpop.f32.mrf.mxu0
  %v1457 = vadd.f32 %v1360, %v1456
  %v1458 = vpop.f32.mrf.mxu0
  %1459 = vdwg.mxu0
  %s1460 = scalar_lea.vmem %s4, 128
  %v1461 = vld [vmem:[%s1460] sm:$0xff]
  %v1462 = vld [vmem:[%s1460 + $0x8] sm:$0xff]
  %v1463 = vld [vmem:[%s1460 + $0x10] sm:$0xff]
  %v1464 = vld [vmem:[%s1460 + $0x18] sm:$0xff]
  %v1465 = vld [vmem:[%s1460 + $0x20] sm:$0xff]
  %v1466 = vld [vmem:[%s1460 + $0x28] sm:$0xff]
  %v1467 = vld [vmem:[%s1460 + $0x30] sm:$0xff]
  %v1468 = vld [vmem:[%s1460 + $0x38] sm:$0xff]
  %v1470 = vsel %vm1265, %v1230, 0
  %v1473 = vsel %vm1265, %v1235, 0
  %v1476 = vsel %vm1265, %v1240, 0
  %v1479 = vsel %vm1265, %v1245, 0
  %1481 = vmatprep.subr.mxu0 0.0
  %1482 = vmatpush1.msra.mxu0 0.0
  %1483 = vmatprep.subr.mxu0 0.0
  %1484 = vmatpush1.msra.mxu0 0.0
  %1485 = vmatprep.subr.mxu0 0.0
  %1486 = vmatpush1.msra.mxu0 0.0
  %1487 = vmatprep.subr.mxu0 0.0
  %1488 = vmatpush1.msra.mxu0 0.0
  %1489 = vmatprep.subr.mxu0 0.0
  %1490 = vmatpush1.msra.mxu0 0.0
  %1491 = vmatprep.subr.mxu0 0.0
  %1492 = vmatpush1.msra.mxu0 0.0
  %1493 = vmatprep.subr.mxu0 0.0
  %1494 = vmatpush1.msra.mxu0 0.0
  %1495 = vmatprep.subr.mxu0 0.0
  %1496 = vmatpush1.msra.mxu0 0.0
  %1497 = vmatprep.subr.mxu0 0.0
  %1498 = vmatpush1.msra.mxu0 %v1468
  %1499 = vmatprep.subr.mxu0 0.0
  %1500 = vmatpush1.msra.mxu0 %v1467
  %1501 = vmatprep.subr.mxu0 0.0
  %1502 = vmatpush1.msra.mxu0 %v1466
  %1503 = vmatprep.subr.mxu0 0.0
  %1504 = vmatpush1.msra.mxu0 %v1465
  %1505 = vmatprep.subr.mxu0 0.0
  %1506 = vmatpush1.msra.mxu0 %v1464
  %1507 = vmatprep.subr.mxu0 0.0
  %1508 = vmatpush1.msra.mxu0 %v1463
  %1509 = vmatprep.subr.mxu0 0.0
  %1510 = vmatpush1.msra.mxu0 %v1462
  %1511 = vmatprep.subr.mxu0 0.0
  %1512 = vmatpush1.msra.mxu0 %v1461
  %1513 = vmatprep.subr.mxu0 0.0
  %1514 = vmatpush2.msra.mxu0 0.0
  %1515 = vmatprep.subr.mxu0 0.0
  %1516 = vmatpush2.msra.mxu0 0.0
  %1517 = vmatprep.subr.mxu0 0.0
  %1518 = vmatpush2.msra.mxu0 0.0
  %1519 = vmatprep.subr.mxu0 0.0
  %1520 = vmatpush2.msra.mxu0 0.0
  %1521 = vmatprep.subr.mxu0 0.0
  %1522 = vmatpush2.msra.mxu0 0.0
  %1523 = vmatprep.subr.mxu0 0.0
  %1524 = vmatpush2.msra.mxu0 0.0
  %1525 = vmatprep.subr.mxu0 0.0
  %1526 = vmatpush2.msra.mxu0 0.0
  %1527 = vmatprep.subr.mxu0 0.0
  %1528 = vmatpush2.msra.mxu0 0.0
  %1529 = vmatprep.subr.mxu0 0.0
  %1530 = vmatpush2.msra.mxu0 0.0
  %1531 = vmatprep.subr.mxu0 0.0
  %1532 = vmatpush2.msra.mxu0 0.0
  %1533 = vmatprep.subr.mxu0 0.0
  %1534 = vmatpush2.msra.mxu0 0.0
  %1535 = vmatprep.subr.mxu0 0.0
  %1536 = vmatpush2.msra.mxu0 0.0
  %1537 = vmatprep.subr.mxu0 0.0
  %1538 = vmatpush2.msra.mxu0 0.0
  %1539 = vmatprep.subr.mxu0 0.0
  %1540 = vmatpush2.msra.mxu0 0.0
  %1541 = vmatprep.subr.mxu0 0.0
  %1542 = vmatpush2.msra.mxu0 0.0
  %1543 = vmatprep.subr.mxu0 0.0
  %1544 = vmatpush2.msra.mxu0 0.0
  %1545 = vmatprep.mubr.f32.mxu0 0.0
  %1546 = vmatmul.mubr.f32.gmra.mxu0 %v1470
  %v1547 = vpop.f32.mrf.mxu0
  %v1548 = vadd.f32 0.0, %v1547
  %v1549 = vpop.f32.mrf.mxu0
  %1550 = vmatprep.mubr.f32.mxu0 0.0
  %1551 = vmatmul.mubr.f32.gmra.mxu0 %v1473
  %v1552 = vpop.f32.mrf.mxu0
  %v1553 = vadd.f32 0.0, %v1552
  %v1554 = vpop.f32.mrf.mxu0
  %1555 = vmatprep.mubr.f32.mxu0 0.0
  %1556 = vmatmul.mubr.f32.gmra.mxu0 %v1476
  %v1557 = vpop.f32.mrf.mxu0
  %v1558 = vadd.f32 0.0, %v1557
  %v1559 = vpop.f32.mrf.mxu0
  %1560 = vmatprep.mubr.f32.mxu0 0.0
  %1561 = vmatmul.mubr.f32.gmra.mxu0 %v1479
  %v1562 = vpop.f32.mrf.mxu0
  %v1563 = vadd.f32 0.0, %v1562
  %v1564 = vpop.f32.mrf.mxu0
  %1565 = vdwg.mxu0
  %v1566 = vadd.f32 %v1442, %v1548
  %v1567 = vadd.f32 %v1447, %v1553
  %v1568 = vadd.f32 %v1452, %v1558
  %v1569 = vadd.f32 %v1457, %v1563
  %v1570 = vld [vmem:[%s12 + $0x7] sm:$0x1]
  %v1571 = vlaneseq
  %v1572 = vshrl.u32 %v1571, 7
  %v1573 = vsub.s32 0, %v1572
  %v1574 = vrot.slane %v1570, %v1573
  %v1575 = vadd.f32 %v1566, %v1574
  %v1576 = vadd.f32 %v1567, %v1574
  %v1577 = vadd.f32 %v1568, %v1574
  %v1578 = vadd.f32 %v1569, %v1574
  %v1579 = vmul.f32 %v1575, 0.5
  %v1580 = vmul.f32 %v1576, 0.5
  %v1581 = vmul.f32 %v1577, 0.5
  %v1582 = vmul.f32 %v1578, 0.5
  %v1583 = vmul.f32 %v1575, 0.044715
  %v1584 = vmul.f32 %v1576, 0.044715
  %v1585 = vmul.f32 %v1577, 0.044715
  %v1586 = vmul.f32 %v1578, 0.044715
  %v1587 = vmul.f32 %v1583, %v1575
  %v1588 = vmul.f32 %v1584, %v1576
  %v1589 = vmul.f32 %v1585, %v1577
  %v1590 = vmul.f32 %v1586, %v1578
  %v1591 = vmul.f32 %v1587, %v1575
  %v1592 = vmul.f32 %v1588, %v1576
  %v1593 = vmul.f32 %v1589, %v1577
  %v1594 = vmul.f32 %v1590, %v1578
  %v1595 = vadd.f32 %v1575, %v1591
  %v1596 = vadd.f32 %v1576, %v1592
  %v1597 = vadd.f32 %v1577, %v1593
  %v1598 = vadd.f32 %v1578, %v1594
  %v1599 = vmul.f32 %v1595, 0.7978846
  %v1600 = vmul.f32 %v1596, 0.7978846
  %v1601 = vmul.f32 %v1597, 0.7978846
  %v1602 = vmul.f32 %v1598, 0.7978846
  %v1603 = vtanh.pop %v1599
  %v1604 = vtanh.pop %v1600
  %v1605 = vtanh.pop %v1601
  %v1606 = vtanh.pop %v1602
  %v1607 = vadd.f32 %v1603, 1.0
  %v1608 = vadd.f32 %v1604, 1.0
  %v1609 = vadd.f32 %v1605, 1.0
  %v1610 = vadd.f32 %v1606, 1.0
  %v1611 = vmul.f32 %v1579, %v1607
  %v1612 = vmul.f32 %v1580, %v1608
  %v1613 = vmul.f32 %v1581, %v1609
  %v1614 = vmul.f32 %v1582, %v1610
  %v1615 = vadd.f32 %v1027, %v1611
  %v1616 = vadd.f32 %v1028, %v1612
  %v1617 = vadd.f32 %v1029, %v1613
  %v1618 = vadd.f32 %v1030, %v1614
  %v1619 = vld [vmem:[%s12 + $0x8] sm:$0x1]
  %v1620 = vld [vmem:[%s12 + $0x9] sm:$0x1]
  %v1621 = vsel %vm1265, %v1615, 0.0
  %1622 = vadd.xlane.f32.xlu0 %v1621
  %v1623 = vpop.xlane.xlu0 %1622
  %v1624 = vsel %vm1265, %v1616, 0.0
  %1625 = vadd.xlane.f32.xlu0 %v1624
  %v1626 = vpop.xlane.xlu0 %1625
  %v1627 = vsel %vm1265, %v1617, 0.0
  %1628 = vadd.xlane.f32.xlu0 %v1627
  %v1629 = vpop.xlane.xlu0 %1628
  %v1630 = vsel %vm1265, %v1618, 0.0
  %1631 = vadd.xlane.f32.xlu0 %v1630
  %v1632 = vpop.xlane.xlu0 %1631
  %v1633 = vrcp.pop 64.0
  %v1634 = vmul.f32 %v1623, %v1633
  %v1635 = vmul.f32 %v1626, %v1633
  %v1636 = vmul.f32 %v1629, %v1633
  %v1637 = vmul.f32 %v1632, %v1633
  %v1638 = vsub.f32 %v1615, %v1634
  %v1639 = vsub.f32 %v1616, %v1635
  %v1640 = vsub.f32 %v1617, %v1636
  %v1641 = vsub.f32 %v1618, %v1637
  %v1642 = vmul.f32 %v1638, %v1638
  %v1643 = vmul.f32 %v1639, %v1639
  %v1644 = vmul.f32 %v1640, %v1640
  %v1645 = vmul.f32 %v1641, %v1641
  %v1646 = vsel %vm1265, %v1642, 0.0
  %1647 = vadd.xlane.f32.xlu0 %v1646
  %v1648 = vpop.xlane.xlu0 %1647
  %v1649 = vsel %vm1265, %v1643, 0.0
  %1650 = vadd.xlane.f32.xlu0 %v1649
  %v1651 = vpop.xlane.xlu0 %1650
  %v1652 = vsel %vm1265, %v1644, 0.0
  %1653 = vadd.xlane.f32.xlu0 %v1652
  %v1654 = vpop.xlane.xlu0 %1653
  %v1655 = vsel %vm1265, %v1645, 0.0
  %1656 = vadd.xlane.f32.xlu0 %v1655
  %v1657 = vpop.xlane.xlu0 %1656
  %v1658 = vmul.f32 %v1648, %v1633
  %v1659 = vmul.f32 %v1651, %v1633
  %v1660 = vmul.f32 %v1654, %v1633
  %v1661 = vmul.f32 %v1657, %v1633
  %v1662 = vadd.f32 %v1658, 1e-05
  %v1663 = vadd.f32 %v1659, 1e-05
  %v1664 = vadd.f32 %v1660, 1e-05
  %v1665 = vadd.f32 %v1661, 1e-05
  %v1666 = vrsqrt.pop %v1662
  %v1667 = vrsqrt.pop %v1663
  %v1668 = vrsqrt.pop %v1664
  %v1669 = vrsqrt.pop %v1665
  %v1670 = vmul.f32 %v1638, %v1666
  %v1671 = vmul.f32 %v1639, %v1667
  %v1672 = vmul.f32 %v1640, %v1668
  %v1673 = vmul.f32 %v1641, %v1669
  %v1674 = vlaneseq
  %v1675 = vshrl.u32 %v1674, 7
  %v1676 = vsub.s32 0, %v1675
  %v1677 = vrot.slane %v1619, %v1676
  %v1678 = vmul.f32 %v1670, %v1677
  %v1679 = vmul.f32 %v1671, %v1677
  %v1680 = vmul.f32 %v1672, %v1677
  %v1681 = vmul.f32 %v1673, %v1677
  %v1682 = vlaneseq
  %v1683 = vshrl.u32 %v1682, 7
  %v1684 = vsub.s32 0, %v1683
  %v1685 = vrot.slane %v1620, %v1684
  %v1686 = vadd.f32 %v1678, %v1685
  %v1687 = vadd.f32 %v1679, %v1685
  %v1688 = vadd.f32 %v1680, %v1685
  %v1689 = vadd.f32 %v1681, %v1685
  %vm1690 = vcmp.lt.s32.totalorder %v1032, 15
  %v1691 = vsel %vm1690, 1, 0
  %vm1692 = vcmp.eq.s32.totalorder %v1691, 1
  %v1693 = vld [vmem:[%s11] sm:$0xff]
  %v1694 = vld [vmem:[%s11 + $0x8] sm:$0xf]
  %v1695 = vld [vmem:[%s5] sm:$0xff]
  %v1696 = vld [vmem:[%s5 + $0x8] sm:$0xff]
  %v1697 = vlaneseq
  %v1698 = vshrl.u32 %v1697, 7
  %v1699 = vsub.s32 0, %v1698
  %v1700 = vrot.slane %v1693, %v1699
  %v1702 = vsel %vm1265, %v1686, 0
  %v1705 = vsel %vm1265, %v1687, 0
  %v1708 = vsel %vm1265, %v1688, 0
  %v1711 = vsel %vm1265, %v1689, 0
  %v1714 = vsel %vm1265, %v1695, 0
  %v1717 = vsel %vm1265, %v1696, 0
  %1719 = vmatprep.subr.mxu0 0.0
  %1720 = vmatpush1.xpose.msra.mxu0 0.0
  %1721 = vmatprep.subr.mxu0 0.0
  %1722 = vmatpush1.xpose.msra.mxu0 0.0
  %1723 = vmatprep.subr.mxu0 0.0
  %1724 = vmatpush1.xpose.msra.mxu0 0.0
  %1725 = vmatprep.subr.mxu0 0.0
  %1726 = vmatpush1.xpose.msra.mxu0 0.0
  %1727 = vmatprep.subr.mxu0 0.0
  %1728 = vmatpush1.xpose.msra.mxu0 0.0
  %1729 = vmatprep.subr.mxu0 0.0
  %1730 = vmatpush1.xpose.msra.mxu0 0.0
  %1731 = vmatprep.subr.mxu0 0.0
  %1732 = vmatpush1.xpose.msra.mxu0 0.0
  %1733 = vmatprep.subr.mxu0 0.0
  %1734 = vmatpush1.xpose.msra.mxu0 0.0
  %1735 = vmatprep.subr.mxu0 0.0
  %1736 = vmatpush1.xpose.msra.mxu0 0.0
  %1737 = vmatprep.subr.mxu0 0.0
  %1738 = vmatpush1.xpose.msra.mxu0 0.0
  %1739 = vmatprep.subr.mxu0 0.0
  %1740 = vmatpush1.xpose.msra.mxu0 0.0
  %1741 = vmatprep.subr.mxu0 0.0
  %1742 = vmatpush1.xpose.msra.mxu0 0.0
  %1743 = vmatprep.subr.mxu0 0.0
  %1744 = vmatpush1.xpose.msra.mxu0 0.0
  %1745 = vmatprep.subr.mxu0 0.0
  %1746 = vmatpush1.xpose.msra.mxu0 0.0
  %1747 = vmatprep.subr.mxu0 0.0
  %1748 = vmatpush1.xpose.msra.mxu0 %v1717
  %1749 = vmatprep.subr.mxu0 0.0
  %1750 = vmatpush1.xpose.msra.mxu0 %v1714
  %1751 = vmatprep.subr.mxu0 0.0
  %1752 = vmatpush2.xpose.msra.mxu0 0.0
  %1753 = vmatprep.subr.mxu0 0.0
  %1754 = vmatpush2.xpose.msra.mxu0 0.0
  %1755 = vmatprep.subr.mxu0 0.0
  %1756 = vmatpush2.xpose.msra.mxu0 0.0
  %1757 = vmatprep.subr.mxu0 0.0
  %1758 = vmatpush2.xpose.msra.mxu0 0.0
  %1759 = vmatprep.subr.mxu0 0.0
  %1760 = vmatpush2.xpose.msra.mxu0 0.0
  %1761 = vmatprep.subr.mxu0 0.0
  %1762 = vmatpush2.xpose.msra.mxu0 0.0
  %1763 = vmatprep.subr.mxu0 0.0
  %1764 = vmatpush2.xpose.msra.mxu0 0.0
  %1765 = vmatprep.subr.mxu0 0.0
  %1766 = vmatpush2.xpose.msra.mxu0 0.0
  %1767 = vmatprep.subr.mxu0 0.0
  %1768 = vmatpush2.xpose.msra.mxu0 0.0
  %1769 = vmatprep.subr.mxu0 0.0
  %1770 = vmatpush2.xpose.msra.mxu0 0.0
  %1771 = vmatprep.subr.mxu0 0.0
  %1772 = vmatpush2.xpose.msra.mxu0 0.0
  %1773 = vmatprep.subr.mxu0 0.0
  %1774 = vmatpush2.xpose.msra.mxu0 0.0
  %1775 = vmatprep.subr.mxu0 0.0
  %1776 = vmatpush2.xpose.msra.mxu0 0.0
  %1777 = vmatprep.subr.mxu0 0.0
  %1778 = vmatpush2.xpose.msra.mxu0 0.0
  %1779 = vmatprep.subr.mxu0 0.0
  %1780 = vmatpush2.xpose.msra.mxu0 0.0
  %1781 = vmatprep.subr.mxu0 0.0
  %1782 = vmatpush2.xpose.msra.mxu0 0.0
  %1783 = vmatprep.mubr.f32.mxu0 0.0
  %1784 = vmatmul.mubr.f32.gmra.mxu0 %v1702
  %v1785 = vpop.f32.mrf.mxu0
  %v1786 = vadd.f32 %v1700, %v1785
  %v1787 = vpop.f32.mrf.mxu0
  %1788 = vmatprep.mubr.f32.mxu0 0.0
  %1789 = vmatmul.mubr.f32.gmra.mxu0 %v1705
  %v1790 = vpop.f32.mrf.mxu0
  %v1791 = vadd.f32 %v1700, %v1790
  %v1792 = vpop.f32.mrf.mxu0
  %1793 = vmatprep.mubr.f32.mxu0 0.0
  %1794 = vmatmul.mubr.f32.gmra.mxu0 %v1708
  %v1795 = vpop.f32.mrf.mxu0
  %v1796 = vadd.f32 %v1700, %v1795
  %v1797 = vpop.f32.mrf.mxu0
  %1798 = vmatprep.mubr.f32.mxu0 0.0
  %1799 = vmatmul.mubr.f32.gmra.mxu0 %v1711
  %v1800 = vpop.f32.mrf.mxu0
  %v1801 = vadd.f32 %v1700, %v1800
  %v1802 = vpop.f32.mrf.mxu0
  %1803 = vdwg.mxu0
  %v1804 = vld [vmem:[%s6] sm:$0xff]
  %v1805 = vld [vmem:[%s6 + $0x8] sm:$0xff]
  %v1806 = vlaneseq
  %v1807 = vshrl.u32 %v1806, 7
  %v1808 = vsub.s32 4, %v1807
  %v1809 = vrot.slane %v1693, %v1808
  %v1811 = vsel %vm1265, %v1804, 0
  %v1814 = vsel %vm1265, %v1805, 0
  %1816 = vmatprep.subr.mxu0 0.0
  %1817 = vmatpush1.xpose.msra.mxu0 0.0
  %1818 = vmatprep.subr.mxu0 0.0
  %1819 = vmatpush1.xpose.msra.mxu0 0.0
  %1820 = vmatprep.subr.mxu0 0.0
  %1821 = vmatpush1.xpose.msra.mxu0 0.0
  %1822 = vmatprep.subr.mxu0 0.0
  %1823 = vmatpush1.xpose.msra.mxu0 0.0
  %1824 = vmatprep.subr.mxu0 0.0
  %1825 = vmatpush1.xpose.msra.mxu0 0.0
  %1826 = vmatprep.subr.mxu0 0.0
  %1827 = vmatpush1.xpose.msra.mxu0 0.0
  %1828 = vmatprep.subr.mxu0 0.0
  %1829 = vmatpush1.xpose.msra.mxu0 0.0
  %1830 = vmatprep.subr.mxu0 0.0
  %1831 = vmatpush1.xpose.msra.mxu0 0.0
  %1832 = vmatprep.subr.mxu0 0.0
  %1833 = vmatpush1.xpose.msra.mxu0 0.0
  %1834 = vmatprep.subr.mxu0 0.0
  %1835 = vmatpush1.xpose.msra.mxu0 0.0
  %1836 = vmatprep.subr.mxu0 0.0
  %1837 = vmatpush1.xpose.msra.mxu0 0.0
  %1838 = vmatprep.subr.mxu0 0.0
  %1839 = vmatpush1.xpose.msra.mxu0 0.0
  %1840 = vmatprep.subr.mxu0 0.0
  %1841 = vmatpush1.xpose.msra.mxu0 0.0
  %1842 = vmatprep.subr.mxu0 0.0
  %1843 = vmatpush1.xpose.msra.mxu0 0.0
  %1844 = vmatprep.subr.mxu0 0.0
  %1845 = vmatpush1.xpose.msra.mxu0 %v1814
  %1846 = vmatprep.subr.mxu0 0.0
  %1847 = vmatpush1.xpose.msra.mxu0 %v1811
  %1848 = vmatprep.subr.mxu0 0.0
  %1849 = vmatpush2.xpose.msra.mxu0 0.0
  %1850 = vmatprep.subr.mxu0 0.0
  %1851 = vmatpush2.xpose.msra.mxu0 0.0
  %1852 = vmatprep.subr.mxu0 0.0
  %1853 = vmatpush2.xpose.msra.mxu0 0.0
  %1854 = vmatprep.subr.mxu0 0.0
  %1855 = vmatpush2.xpose.msra.mxu0 0.0
  %1856 = vmatprep.subr.mxu0 0.0
  %1857 = vmatpush2.xpose.msra.mxu0 0.0
  %1858 = vmatprep.subr.mxu0 0.0
  %1859 = vmatpush2.xpose.msra.mxu0 0.0
  %1860 = vmatprep.subr.mxu0 0.0
  %1861 = vmatpush2.xpose.msra.mxu0 0.0
  %1862 = vmatprep.subr.mxu0 0.0
  %1863 = vmatpush2.xpose.msra.mxu0 0.0
  %1864 = vmatprep.subr.mxu0 0.0
  %1865 = vmatpush2.xpose.msra.mxu0 0.0
  %1866 = vmatprep.subr.mxu0 0.0
  %1867 = vmatpush2.xpose.msra.mxu0 0.0
  %1868 = vmatprep.subr.mxu0 0.0
  %1869 = vmatpush2.xpose.msra.mxu0 0.0
  %1870 = vmatprep.subr.mxu0 0.0
  %1871 = vmatpush2.xpose.msra.mxu0 0.0
  %1872 = vmatprep.subr.mxu0 0.0
  %1873 = vmatpush2.xpose.msra.mxu0 0.0
  %1874 = vmatprep.subr.mxu0 0.0
  %1875 = vmatpush2.xpose.msra.mxu0 0.0
  %1876 = vmatprep.subr.mxu0 0.0
  %1877 = vmatpush2.xpose.msra.mxu0 0.0
  %1878 = vmatprep.subr.mxu0 0.0
  %1879 = vmatpush2.xpose.msra.mxu0 0.0
  %1880 = vmatprep.mubr.f32.mxu0 0.0
  %1881 = vmatmul.mubr.f32.gmra.mxu0 %v1702
  %v1882 = vpop.f32.mrf.mxu0
  %v1883 = vadd.f32 %v1809, %v1882
  %v1884 = vpop.f32.mrf.mxu0
  %1885 = vmatprep.mubr.f32.mxu0 0.0
  %1886 = vmatmul.mubr.f32.gmra.mxu0 %v1705
  %v1887 = vpop.f32.mrf.mxu0
  %v1888 = vadd.f32 %v1809, %v1887
  %v1889 = vpop.f32.mrf.mxu0
  %1890 = vmatprep.mubr.f32.mxu0 0.0
  %1891 = vmatmul.mubr.f32.gmra.mxu0 %v1708
  %v1892 = vpop.f32.mrf.mxu0
  %v1893 = vadd.f32 %v1809, %v1892
  %v1894 = vpop.f32.mrf.mxu0
  %1895 = vmatprep.mubr.f32.mxu0 0.0
  %1896 = vmatmul.mubr.f32.gmra.mxu0 %v1711
  %v1897 = vpop.f32.mrf.mxu0
  %v1898 = vadd.f32 %v1809, %v1897
  %v1899 = vpop.f32.mrf.mxu0
  %1900 = vdwg.mxu0
  %v1901 = vld [vmem:[%s7] sm:$0xff]
  %v1902 = vld [vmem:[%s7 + $0x8] sm:$0xff]
  %v1903 = vlaneseq
  %v1904 = vshrl.u32 %v1903, 7
  %v1905 = vsub.s32 0, %v1904
  %v1906 = vrot.slane %v1694, %v1905
  %v1908 = vsel %vm1265, %v1901, 0
  %v1911 = vsel %vm1265, %v1902, 0
  %1913 = vmatprep.subr.mxu0 0.0
  %1914 = vmatpush1.xpose.msra.mxu0 0.0
  %1915 = vmatprep.subr.mxu0 0.0
  %1916 = vmatpush1.xpose.msra.mxu0 0.0
  %1917 = vmatprep.subr.mxu0 0.0
  %1918 = vmatpush1.xpose.msra.mxu0 0.0
  %1919 = vmatprep.subr.mxu0 0.0
  %1920 = vmatpush1.xpose.msra.mxu0 0.0
  %1921 = vmatprep.subr.mxu0 0.0
  %1922 = vmatpush1.xpose.msra.mxu0 0.0
  %1923 = vmatprep.subr.mxu0 0.0
  %1924 = vmatpush1.xpose.msra.mxu0 0.0
  %1925 = vmatprep.subr.mxu0 0.0
  %1926 = vmatpush1.xpose.msra.mxu0 0.0
  %1927 = vmatprep.subr.mxu0 0.0
  %1928 = vmatpush1.xpose.msra.mxu0 0.0
  %1929 = vmatprep.subr.mxu0 0.0
  %1930 = vmatpush1.xpose.msra.mxu0 0.0
  %1931 = vmatprep.subr.mxu0 0.0
  %1932 = vmatpush1.xpose.msra.mxu0 0.0
  %1933 = vmatprep.subr.mxu0 0.0
  %1934 = vmatpush1.xpose.msra.mxu0 0.0
  %1935 = vmatprep.subr.mxu0 0.0
  %1936 = vmatpush1.xpose.msra.mxu0 0.0
  %1937 = vmatprep.subr.mxu0 0.0
  %1938 = vmatpush1.xpose.msra.mxu0 0.0
  %1939 = vmatprep.subr.mxu0 0.0
  %1940 = vmatpush1.xpose.msra.mxu0 0.0
  %1941 = vmatprep.subr.mxu0 0.0
  %1942 = vmatpush1.xpose.msra.mxu0 %v1911
  %1943 = vmatprep.subr.mxu0 0.0
  %1944 = vmatpush1.xpose.msra.mxu0 %v1908
  %1945 = vmatprep.subr.mxu0 0.0
  %1946 = vmatpush2.xpose.msra.mxu0 0.0
  %1947 = vmatprep.subr.mxu0 0.0
  %1948 = vmatpush2.xpose.msra.mxu0 0.0
  %1949 = vmatprep.subr.mxu0 0.0
  %1950 = vmatpush2.xpose.msra.mxu0 0.0
  %1951 = vmatprep.subr.mxu0 0.0
  %1952 = vmatpush2.xpose.msra.mxu0 0.0
  %1953 = vmatprep.subr.mxu0 0.0
  %1954 = vmatpush2.xpose.msra.mxu0 0.0
  %1955 = vmatprep.subr.mxu0 0.0
  %1956 = vmatpush2.xpose.msra.mxu0 0.0
  %1957 = vmatprep.subr.mxu0 0.0
  %1958 = vmatpush2.xpose.msra.mxu0 0.0
  %1959 = vmatprep.subr.mxu0 0.0
  %1960 = vmatpush2.xpose.msra.mxu0 0.0
  %1961 = vmatprep.subr.mxu0 0.0
  %1962 = vmatpush2.xpose.msra.mxu0 0.0
  %1963 = vmatprep.subr.mxu0 0.0
  %1964 = vmatpush2.xpose.msra.mxu0 0.0
  %1965 = vmatprep.subr.mxu0 0.0
  %1966 = vmatpush2.xpose.msra.mxu0 0.0
  %1967 = vmatprep.subr.mxu0 0.0
  %1968 = vmatpush2.xpose.msra.mxu0 0.0
  %1969 = vmatprep.subr.mxu0 0.0
  %1970 = vmatpush2.xpose.msra.mxu0 0.0
  %1971 = vmatprep.subr.mxu0 0.0
  %1972 = vmatpush2.xpose.msra.mxu0 0.0
  %1973 = vmatprep.subr.mxu0 0.0
  %1974 = vmatpush2.xpose.msra.mxu0 0.0
  %1975 = vmatprep.subr.mxu0 0.0
  %1976 = vmatpush2.xpose.msra.mxu0 0.0
  %1977 = vmatprep.mubr.f32.mxu0 0.0
  %1978 = vmatmul.mubr.f32.gmra.mxu0 %v1702
  %v1979 = vpop.f32.mrf.mxu0
  %v1980 = vadd.f32 %v1906, %v1979
  %v1981 = vpop.f32.mrf.mxu0
  %1982 = vmatprep.mubr.f32.mxu0 0.0
  %1983 = vmatmul.mubr.f32.gmra.mxu0 %v1705
  %v1984 = vpop.f32.mrf.mxu0
  %v1985 = vadd.f32 %v1906, %v1984
  %v1986 = vpop.f32.mrf.mxu0
  %1987 = vmatprep.mubr.f32.mxu0 0.0
  %1988 = vmatmul.mubr.f32.gmra.mxu0 %v1708
  %v1989 = vpop.f32.mrf.mxu0
  %v1990 = vadd.f32 %v1906, %v1989
  %v1991 = vpop.f32.mrf.mxu0
  %1992 = vmatprep.mubr.f32.mxu0 0.0
  %1993 = vmatmul.mubr.f32.gmra.mxu0 %v1711
  %v1994 = vpop.f32.mrf.mxu0
  %v1995 = vadd.f32 %v1906, %v1994
  %v1996 = vpop.f32.mrf.mxu0
  %1997 = vdwg.mxu0
  %v1998 = vmul.f32 %v1786, 0.25
  %v1999 = vmul.f32 %v1791, 0.25
  %v2000 = vmul.f32 %v1796, 0.25
  %v2001 = vmul.f32 %v1801, 0.25
  %vm2002 = vcmask 130048
  %v2004 = vsel %vm2002, %v1998, 0
  %v2007 = vsel %vm2002, %v1999, 0
  %v2010 = vsel %vm2002, %v1883, 0
  %v2013 = vsel %vm2002, %v1888, 0
  %2015 = vmatprep.subr.mxu0 0.0
  %2016 = vmatpush1.xpose.msra.mxu0 0.0
  %2017 = vmatprep.subr.mxu0 0.0
  %2018 = vmatpush1.xpose.msra.mxu0 0.0
  %2019 = vmatprep.subr.mxu0 0.0
  %2020 = vmatpush1.xpose.msra.mxu0 0.0
  %2021 = vmatprep.subr.mxu0 0.0
  %2022 = vmatpush1.xpose.msra.mxu0 0.0
  %2023 = vmatprep.subr.mxu0 0.0
  %2024 = vmatpush1.xpose.msra.mxu0 0.0
  %2025 = vmatprep.subr.mxu0 0.0
  %2026 = vmatpush1.xpose.msra.mxu0 0.0
  %2027 = vmatprep.subr.mxu0 0.0
  %2028 = vmatpush1.xpose.msra.mxu0 0.0
  %2029 = vmatprep.subr.mxu0 0.0
  %2030 = vmatpush1.xpose.msra.mxu0 0.0
  %2031 = vmatprep.subr.mxu0 0.0
  %2032 = vmatpush1.xpose.msra.mxu0 0.0
  %2033 = vmatprep.subr.mxu0 0.0
  %2034 = vmatpush1.xpose.msra.mxu0 0.0
  %2035 = vmatprep.subr.mxu0 0.0
  %2036 = vmatpush1.xpose.msra.mxu0 0.0
  %2037 = vmatprep.subr.mxu0 0.0
  %2038 = vmatpush1.xpose.msra.mxu0 0.0
  %2039 = vmatprep.subr.mxu0 0.0
  %2040 = vmatpush1.xpose.msra.mxu0 0.0
  %2041 = vmatprep.subr.mxu0 0.0
  %2042 = vmatpush1.xpose.msra.mxu0 0.0
  %2043 = vmatprep.subr.mxu0 0.0
  %2044 = vmatpush1.xpose.msra.mxu0 %v2013
  %2045 = vmatprep.subr.mxu0 0.0
  %2046 = vmatpush1.xpose.msra.mxu0 %v2010
  %2047 = vmatprep.subr.mxu0 0.0
  %2048 = vmatpush2.xpose.msra.mxu0 0.0
  %2049 = vmatprep.subr.mxu0 0.0
  %2050 = vmatpush2.xpose.msra.mxu0 0.0
  %2051 = vmatprep.subr.mxu0 0.0
  %2052 = vmatpush2.xpose.msra.mxu0 0.0
  %2053 = vmatprep.subr.mxu0 0.0
  %2054 = vmatpush2.xpose.msra.mxu0 0.0
  %2055 = vmatprep.subr.mxu0 0.0
  %2056 = vmatpush2.xpose.msra.mxu0 0.0
  %2057 = vmatprep.subr.mxu0 0.0
  %2058 = vmatpush2.xpose.msra.mxu0 0.0
  %2059 = vmatprep.subr.mxu0 0.0
  %2060 = vmatpush2.xpose.msra.mxu0 0.0
  %2061 = vmatprep.subr.mxu0 0.0
  %2062 = vmatpush2.xpose.msra.mxu0 0.0
  %2063 = vmatprep.subr.mxu0 0.0
  %2064 = vmatpush2.xpose.msra.mxu0 0.0
  %2065 = vmatprep.subr.mxu0 0.0
  %2066 = vmatpush2.xpose.msra.mxu0 0.0
  %2067 = vmatprep.subr.mxu0 0.0
  %2068 = vmatpush2.xpose.msra.mxu0 0.0
  %2069 = vmatprep.subr.mxu0 0.0
  %2070 = vmatpush2.xpose.msra.mxu0 0.0
  %2071 = vmatprep.subr.mxu0 0.0
  %2072 = vmatpush2.xpose.msra.mxu0 0.0
  %2073 = vmatprep.subr.mxu0 0.0
  %2074 = vmatpush2.xpose.msra.mxu0 0.0
  %2075 = vmatprep.subr.mxu0 0.0
  %2076 = vmatpush2.xpose.msra.mxu0 0.0
  %2077 = vmatprep.subr.mxu0 0.0
  %2078 = vmatpush2.xpose.msra.mxu0 0.0
  %2079 = vmatprep.mubr.f32.mxu0 0.0
  %2080 = vmatmul.mubr.f32.gmra.mxu0 %v2004
  %v2081 = vpop.f32.mrf.mxu0
  %v2082 = vadd.f32 0.0, %v2081
  %v2083 = vpop.f32.mrf.mxu0
  %2084 = vmatprep.mubr.f32.mxu0 0.0
  %2085 = vmatmul.mubr.f32.gmra.mxu0 %v2007
  %v2086 = vpop.f32.mrf.mxu0
  %v2087 = vadd.f32 0.0, %v2086
  %v2088 = vpop.f32.mrf.mxu0
  %2089 = vdwg.mxu0
  %v2091 = vsel %vm2002, %v2000, 0
  %v2094 = vsel %vm2002, %v2001, 0
  %v2097 = vsel %vm2002, %v1893, 0
  %v2100 = vsel %vm2002, %v1898, 0
  %2102 = vmatprep.subr.mxu0 0.0
  %2103 = vmatpush1.xpose.msra.mxu0 0.0
  %2104 = vmatprep.subr.mxu0 0.0
  %2105 = vmatpush1.xpose.msra.mxu0 0.0
  %2106 = vmatprep.subr.mxu0 0.0
  %2107 = vmatpush1.xpose.msra.mxu0 0.0
  %2108 = vmatprep.subr.mxu0 0.0
  %2109 = vmatpush1.xpose.msra.mxu0 0.0
  %2110 = vmatprep.subr.mxu0 0.0
  %2111 = vmatpush1.xpose.msra.mxu0 0.0
  %2112 = vmatprep.subr.mxu0 0.0
  %2113 = vmatpush1.xpose.msra.mxu0 0.0
  %2114 = vmatprep.subr.mxu0 0.0
  %2115 = vmatpush1.xpose.msra.mxu0 0.0
  %2116 = vmatprep.subr.mxu0 0.0
  %2117 = vmatpush1.xpose.msra.mxu0 0.0
  %2118 = vmatprep.subr.mxu0 0.0
  %2119 = vmatpush1.xpose.msra.mxu0 0.0
  %2120 = vmatprep.subr.mxu0 0.0
  %2121 = vmatpush1.xpose.msra.mxu0 0.0
  %2122 = vmatprep.subr.mxu0 0.0
  %2123 = vmatpush1.xpose.msra.mxu0 0.0
  %2124 = vmatprep.subr.mxu0 0.0
  %2125 = vmatpush1.xpose.msra.mxu0 0.0
  %2126 = vmatprep.subr.mxu0 0.0
  %2127 = vmatpush1.xpose.msra.mxu0 0.0
  %2128 = vmatprep.subr.mxu0 0.0
  %2129 = vmatpush1.xpose.msra.mxu0 0.0
  %2130 = vmatprep.subr.mxu0 0.0
  %2131 = vmatpush1.xpose.msra.mxu0 %v2100
  %2132 = vmatprep.subr.mxu0 0.0
  %2133 = vmatpush1.xpose.msra.mxu0 %v2097
  %2134 = vmatprep.subr.mxu0 0.0
  %2135 = vmatpush2.xpose.msra.mxu0 0.0
  %2136 = vmatprep.subr.mxu0 0.0
  %2137 = vmatpush2.xpose.msra.mxu0 0.0
  %2138 = vmatprep.subr.mxu0 0.0
  %2139 = vmatpush2.xpose.msra.mxu0 0.0
  %2140 = vmatprep.subr.mxu0 0.0
  %2141 = vmatpush2.xpose.msra.mxu0 0.0
  %2142 = vmatprep.subr.mxu0 0.0
  %2143 = vmatpush2.xpose.msra.mxu0 0.0
  %2144 = vmatprep.subr.mxu0 0.0
  %2145 = vmatpush2.xpose.msra.mxu0 0.0
  %2146 = vmatprep.subr.mxu0 0.0
  %2147 = vmatpush2.xpose.msra.mxu0 0.0
  %2148 = vmatprep.subr.mxu0 0.0
  %2149 = vmatpush2.xpose.msra.mxu0 0.0
  %2150 = vmatprep.subr.mxu0 0.0
  %2151 = vmatpush2.xpose.msra.mxu0 0.0
  %2152 = vmatprep.subr.mxu0 0.0
  %2153 = vmatpush2.xpose.msra.mxu0 0.0
  %2154 = vmatprep.subr.mxu0 0.0
  %2155 = vmatpush2.xpose.msra.mxu0 0.0
  %2156 = vmatprep.subr.mxu0 0.0
  %2157 = vmatpush2.xpose.msra.mxu0 0.0
  %2158 = vmatprep.subr.mxu0 0.0
  %2159 = vmatpush2.xpose.msra.mxu0 0.0
  %2160 = vmatprep.subr.mxu0 0.0
  %2161 = vmatpush2.xpose.msra.mxu0 0.0
  %2162 = vmatprep.subr.mxu0 0.0
  %2163 = vmatpush2.xpose.msra.mxu0 0.0
  %2164 = vmatprep.subr.mxu0 0.0
  %2165 = vmatpush2.xpose.msra.mxu0 0.0
  %2166 = vmatprep.mubr.f32.mxu0 0.0
  %2167 = vmatmul.mubr.f32.gmra.mxu0 %v2091
  %v2168 = vpop.f32.mrf.mxu0
  %v2169 = vadd.f32 0.0, %v2168
  %v2170 = vpop.f32.mrf.mxu0
  %2171 = vmatprep.mubr.f32.mxu0 0.0
  %2172 = vmatmul.mubr.f32.gmra.mxu0 %v2094
  %v2173 = vpop.f32.mrf.mxu0
  %v2174 = vadd.f32 0.0, %v2173
  %v2175 = vpop.f32.mrf.mxu0
  %2176 = vdwg.mxu0
  %v2177 = vsel %vm1692, %v2082, -1e+30
  %v2178 = vsel %vm1692, %v2087, -1e+30
  %v2179 = vsel %vm1692, %v2169, -1e+30
  %v2180 = vsel %vm1692, %v2174, -1e+30
  %v2181 = vsel %vm2002, %v2177, -inf
  %2182 = vmax.xlane.f32.xlu0 %v2181
  %v2183 = vpop.xlane.xlu0 %2182
  %v2184 = vsel %vm2002, %v2178, -inf
  %2185 = vmax.xlane.f32.xlu0 %v2184
  %v2186 = vpop.xlane.xlu0 %2185
  %v2187 = vsel %vm2002, %v2179, -inf
  %2188 = vmax.xlane.f32.xlu0 %v2187
  %v2189 = vpop.xlane.xlu0 %2188
  %v2190 = vsel %vm2002, %v2180, -inf
  %2191 = vmax.xlane.f32.xlu0 %v2190
  %v2192 = vpop.xlane.xlu0 %2191
  %v2193 = vsub.f32 %v2177, %v2183
  %v2194 = vsub.f32 %v2178, %v2186
  %v2195 = vsub.f32 %v2179, %v2189
  %v2196 = vsub.f32 %v2180, %v2192
  %v2197 = vmul.f32 %v2193, 1.442695
  %v2198 = vpow.pop %v2197
  %v2199 = vmul.f32 %v2194, 1.442695
  %v2200 = vpow.pop %v2199
  %v2201 = vmul.f32 %v2195, 1.442695
  %v2202 = vpow.pop %v2201
  %v2203 = vmul.f32 %v2196, 1.442695
  %v2204 = vpow.pop %v2203
  %v2205 = vsel %vm2002, %v2198, 0.0
  %2206 = vadd.xlane.f32.xlu0 %v2205
  %v2207 = vpop.xlane.xlu0 %2206
  %v2208 = vsel %vm2002, %v2200, 0.0
  %2209 = vadd.xlane.f32.xlu0 %v2208
  %v2210 = vpop.xlane.xlu0 %2209
  %v2211 = vsel %vm2002, %v2202, 0.0
  %2212 = vadd.xlane.f32.xlu0 %v2211
  %v2213 = vpop.xlane.xlu0 %2212
  %v2214 = vsel %vm2002, %v2204, 0.0
  %2215 = vadd.xlane.f32.xlu0 %v2214
  %v2216 = vpop.xlane.xlu0 %2215
  %v2217 = vrcp.pop %v2207
  %v2218 = vrcp.pop %v2210
  %v2219 = vrcp.pop %v2213
  %v2220 = vrcp.pop %v2216
  %v2221 = vmul.f32 %v2198, %v2217
  %v2222 = vmul.f32 %v2200, %v2218
  %v2223 = vmul.f32 %v2202, %v2219
  %v2224 = vmul.f32 %v2204, %v2220
  %v2226 = vsel %vm2002, %v2221, 0
  %v2229 = vsel %vm2002, %v2222, 0
  %2231 = vmatprep.subr.mxu0 0.0
  %2232 = vmatpush1.msra.mxu0 0.0
  %2233 = vmatprep.subr.mxu0 0.0
  %2234 = vmatpush1.msra.mxu0 0.0
  %2235 = vmatprep.subr.mxu0 0.0
  %2236 = vmatpush1.msra.mxu0 0.0
  %2237 = vmatprep.subr.mxu0 0.0
  %2238 = vmatpush1.msra.mxu0 0.0
  %2239 = vmatprep.subr.mxu0 0.0
  %2240 = vmatpush1.msra.mxu0 0.0
  %2241 = vmatprep.subr.mxu0 0.0
  %2242 = vmatpush1.msra.mxu0 0.0
  %2243 = vmatprep.subr.mxu0 0.0
  %2244 = vmatpush1.msra.mxu0 0.0
  %2245 = vmatprep.subr.mxu0 0.0
  %2246 = vmatpush1.msra.mxu0 0.0
  %2247 = vmatprep.subr.mxu0 0.0
  %2248 = vmatpush1.msra.mxu0 0.0
  %2249 = vmatprep.subr.mxu0 0.0
  %2250 = vmatpush1.msra.mxu0 0.0
  %2251 = vmatprep.subr.mxu0 0.0
  %2252 = vmatpush1.msra.mxu0 0.0
  %2253 = vmatprep.subr.mxu0 0.0
  %2254 = vmatpush1.msra.mxu0 0.0
  %2255 = vmatprep.subr.mxu0 0.0
  %2256 = vmatpush1.msra.mxu0 0.0
  %2257 = vmatprep.subr.mxu0 0.0
  %2258 = vmatpush1.msra.mxu0 0.0
  %2259 = vmatprep.subr.mxu0 0.0
  %2260 = vmatpush1.msra.mxu0 %v1985
  %2261 = vmatprep.subr.mxu0 0.0
  %2262 = vmatpush1.msra.mxu0 %v1980
  %2263 = vmatprep.subr.mxu0 0.0
  %2264 = vmatpush2.msra.mxu0 0.0
  %2265 = vmatprep.subr.mxu0 0.0
  %2266 = vmatpush2.msra.mxu0 0.0
  %2267 = vmatprep.subr.mxu0 0.0
  %2268 = vmatpush2.msra.mxu0 0.0
  %2269 = vmatprep.subr.mxu0 0.0
  %2270 = vmatpush2.msra.mxu0 0.0
  %2271 = vmatprep.subr.mxu0 0.0
  %2272 = vmatpush2.msra.mxu0 0.0
  %2273 = vmatprep.subr.mxu0 0.0
  %2274 = vmatpush2.msra.mxu0 0.0
  %2275 = vmatprep.subr.mxu0 0.0
  %2276 = vmatpush2.msra.mxu0 0.0
  %2277 = vmatprep.subr.mxu0 0.0
  %2278 = vmatpush2.msra.mxu0 0.0
  %2279 = vmatprep.subr.mxu0 0.0
  %2280 = vmatpush2.msra.mxu0 0.0
  %2281 = vmatprep.subr.mxu0 0.0
  %2282 = vmatpush2.msra.mxu0 0.0
  %2283 = vmatprep.subr.mxu0 0.0
  %2284 = vmatpush2.msra.mxu0 0.0
  %2285 = vmatprep.subr.mxu0 0.0
  %2286 = vmatpush2.msra.mxu0 0.0
  %2287 = vmatprep.subr.mxu0 0.0
  %2288 = vmatpush2.msra.mxu0 0.0
  %2289 = vmatprep.subr.mxu0 0.0
  %2290 = vmatpush2.msra.mxu0 0.0
  %2291 = vmatprep.subr.mxu0 0.0
  %2292 = vmatpush2.msra.mxu0 0.0
  %2293 = vmatprep.subr.mxu0 0.0
  %2294 = vmatpush2.msra.mxu0 0.0
  %2295 = vmatprep.mubr.f32.mxu0 0.0
  %2296 = vmatmul.mubr.f32.gmra.mxu0 %v2226
  %v2297 = vpop.f32.mrf.mxu0
  %v2298 = vadd.f32 0.0, %v2297
  %v2299 = vpop.f32.mrf.mxu0
  %2300 = vmatprep.mubr.f32.mxu0 0.0
  %2301 = vmatmul.mubr.f32.gmra.mxu0 %v2229
  %v2302 = vpop.f32.mrf.mxu0
  %v2303 = vadd.f32 0.0, %v2302
  %v2304 = vpop.f32.mrf.mxu0
  %2305 = vdwg.mxu0
  %v2307 = vsel %vm2002, %v2223, 0
  %v2310 = vsel %vm2002, %v2224, 0
  %2312 = vmatprep.subr.mxu0 0.0
  %2313 = vmatpush1.msra.mxu0 0.0
  %2314 = vmatprep.subr.mxu0 0.0
  %2315 = vmatpush1.msra.mxu0 0.0
  %2316 = vmatprep.subr.mxu0 0.0
  %2317 = vmatpush1.msra.mxu0 0.0
  %2318 = vmatprep.subr.mxu0 0.0
  %2319 = vmatpush1.msra.mxu0 0.0
  %2320 = vmatprep.subr.mxu0 0.0
  %2321 = vmatpush1.msra.mxu0 0.0
  %2322 = vmatprep.subr.mxu0 0.0
  %2323 = vmatpush1.msra.mxu0 0.0
  %2324 = vmatprep.subr.mxu0 0.0
  %2325 = vmatpush1.msra.mxu0 0.0
  %2326 = vmatprep.subr.mxu0 0.0
  %2327 = vmatpush1.msra.mxu0 0.0
  %2328 = vmatprep.subr.mxu0 0.0
  %2329 = vmatpush1.msra.mxu0 0.0
  %2330 = vmatprep.subr.mxu0 0.0
  %2331 = vmatpush1.msra.mxu0 0.0
  %2332 = vmatprep.subr.mxu0 0.0
  %2333 = vmatpush1.msra.mxu0 0.0
  %2334 = vmatprep.subr.mxu0 0.0
  %2335 = vmatpush1.msra.mxu0 0.0
  %2336 = vmatprep.subr.mxu0 0.0
  %2337 = vmatpush1.msra.mxu0 0.0
  %2338 = vmatprep.subr.mxu0 0.0
  %2339 = vmatpush1.msra.mxu0 0.0
  %2340 = vmatprep.subr.mxu0 0.0
  %2341 = vmatpush1.msra.mxu0 %v1995
  %2342 = vmatprep.subr.mxu0 0.0
  %2343 = vmatpush1.msra.mxu0 %v1990
  %2344 = vmatprep.subr.mxu0 0.0
  %2345 = vmatpush2.msra.mxu0 0.0
  %2346 = vmatprep.subr.mxu0 0.0
  %2347 = vmatpush2.msra.mxu0 0.0
  %2348 = vmatprep.subr.mxu0 0.0
  %2349 = vmatpush2.msra.mxu0 0.0
  %2350 = vmatprep.subr.mxu0 0.0
  %2351 = vmatpush2.msra.mxu0 0.0
  %2352 = vmatprep.subr.mxu0 0.0
  %2353 = vmatpush2.msra.mxu0 0.0
  %2354 = vmatprep.subr.mxu0 0.0
  %2355 = vmatpush2.msra.mxu0 0.0
  %2356 = vmatprep.subr.mxu0 0.0
  %2357 = vmatpush2.msra.mxu0 0.0
  %2358 = vmatprep.subr.mxu0 0.0
  %2359 = vmatpush2.msra.mxu0 0.0
  %2360 = vmatprep.subr.mxu0 0.0
  %2361 = vmatpush2.msra.mxu0 0.0
  %2362 = vmatprep.subr.mxu0 0.0
  %2363 = vmatpush2.msra.mxu0 0.0
  %2364 = vmatprep.subr.mxu0 0.0
  %2365 = vmatpush2.msra.mxu0 0.0
  %2366 = vmatprep.subr.mxu0 0.0
  %2367 = vmatpush2.msra.mxu0 0.0
  %2368 = vmatprep.subr.mxu0 0.0
  %2369 = vmatpush2.msra.mxu0 0.0
  %2370 = vmatprep.subr.mxu0 0.0
  %2371 = vmatpush2.msra.mxu0 0.0
  %2372 = vmatprep.subr.mxu0 0.0
  %2373 = vmatpush2.msra.mxu0 0.0
  %2374 = vmatprep.subr.mxu0 0.0
  %2375 = vmatpush2.msra.mxu0 0.0
  %2376 = vmatprep.mubr.f32.mxu0 0.0
  %2377 = vmatmul.mubr.f32.gmra.mxu0 %v2307
  %v2378 = vpop.f32.mrf.mxu0
  %v2379 = vadd.f32 0.0, %v2378
  %v2380 = vpop.f32.mrf.mxu0
  %2381 = vmatprep.mubr.f32.mxu0 0.0
  %2382 = vmatmul.mubr.f32.gmra.mxu0 %v2310
  %v2383 = vpop.f32.mrf.mxu0
  %v2384 = vadd.f32 0.0, %v2383
  %v2385 = vpop.f32.mrf.mxu0
  %2386 = vdwg.mxu0
  %v2387 = vld [vmem:[%s8] sm:$0xff]
  %v2388 = vld [vmem:[%s8 + $0x8] sm:$0xff]
  %s2389 = scalar_lea.vmem %s5, 16
  %v2390 = vld [vmem:[%s2389] sm:$0xff]
  %v2391 = vld [vmem:[%s2389 + $0x8] sm:$0xff]
  %v2392 = vlaneseq
  %v2393 = vshrl.u32 %v2392, 7
  %v2394 = vsub.s32 1, %v2393
  %v2395 = vrot.slane %v1693, %v2394
  %v2397 = vsel %vm1265, %v2390, 0
  %v2400 = vsel %vm1265, %v2391, 0
  %2402 = vmatprep.subr.mxu0 0.0
  %2403 = vmatpush1.xpose.msra.mxu0 0.0
  %2404 = vmatprep.subr.mxu0 0.0
  %2405 = vmatpush1.xpose.msra.mxu0 0.0
  %2406 = vmatprep.subr.mxu0 0.0
  %2407 = vmatpush1.xpose.msra.mxu0 0.0
  %2408 = vmatprep.subr.mxu0 0.0
  %2409 = vmatpush1.xpose.msra.mxu0 0.0
  %2410 = vmatprep.subr.mxu0 0.0
  %2411 = vmatpush1.xpose.msra.mxu0 0.0
  %2412 = vmatprep.subr.mxu0 0.0
  %2413 = vmatpush1.xpose.msra.mxu0 0.0
  %2414 = vmatprep.subr.mxu0 0.0
  %2415 = vmatpush1.xpose.msra.mxu0 0.0
  %2416 = vmatprep.subr.mxu0 0.0
  %2417 = vmatpush1.xpose.msra.mxu0 0.0
  %2418 = vmatprep.subr.mxu0 0.0
  %2419 = vmatpush1.xpose.msra.mxu0 0.0
  %2420 = vmatprep.subr.mxu0 0.0
  %2421 = vmatpush1.xpose.msra.mxu0 0.0
  %2422 = vmatprep.subr.mxu0 0.0
  %2423 = vmatpush1.xpose.msra.mxu0 0.0
  %2424 = vmatprep.subr.mxu0 0.0
  %2425 = vmatpush1.xpose.msra.mxu0 0.0
  %2426 = vmatprep.subr.mxu0 0.0
  %2427 = vmatpush1.xpose.msra.mxu0 0.0
  %2428 = vmatprep.subr.mxu0 0.0
  %2429 = vmatpush1.xpose.msra.mxu0 0.0
  %2430 = vmatprep.subr.mxu0 0.0
  %2431 = vmatpush1.xpose.msra.mxu0 %v2400
  %2432 = vmatprep.subr.mxu0 0.0
  %2433 = vmatpush1.xpose.msra.mxu0 %v2397
  %2434 = vmatprep.subr.mxu0 0.0
  %2435 = vmatpush2.xpose.msra.mxu0 0.0
  %2436 = vmatprep.subr.mxu0 0.0
  %2437 = vmatpush2.xpose.msra.mxu0 0.0
  %2438 = vmatprep.subr.mxu0 0.0
  %2439 = vmatpush2.xpose.msra.mxu0 0.0
  %2440 = vmatprep.subr.mxu0 0.0
  %2441 = vmatpush2.xpose.msra.mxu0 0.0
  %2442 = vmatprep.subr.mxu0 0.0
  %2443 = vmatpush2.xpose.msra.mxu0 0.0
  %2444 = vmatprep.subr.mxu0 0.0
  %2445 = vmatpush2.xpose.msra.mxu0 0.0
  %2446 = vmatprep.subr.mxu0 0.0
  %2447 = vmatpush2.xpose.msra.mxu0 0.0
  %2448 = vmatprep.subr.mxu0 0.0
  %2449 = vmatpush2.xpose.msra.mxu0 0.0
  %2450 = vmatprep.subr.mxu0 0.0
  %2451 = vmatpush2.xpose.msra.mxu0 0.0
  %2452 = vmatprep.subr.mxu0 0.0
  %2453 = vmatpush2.xpose.msra.mxu0 0.0
  %2454 = vmatprep.subr.mxu0 0.0
  %2455 = vmatpush2.xpose.msra.mxu0 0.0
  %2456 = vmatprep.subr.mxu0 0.0
  %2457 = vmatpush2.xpose.msra.mxu0 0.0
  %2458 = vmatprep.subr.mxu0 0.0
  %2459 = vmatpush2.xpose.msra.mxu0 0.0
  %2460 = vmatprep.subr.mxu0 0.0
  %2461 = vmatpush2.xpose.msra.mxu0 0.0
  %2462 = vmatprep.subr.mxu0 0.0
  %2463 = vmatpush2.xpose.msra.mxu0 0.0
  %2464 = vmatprep.subr.mxu0 0.0
  %2465 = vmatpush2.xpose.msra.mxu0 0.0
  %2466 = vmatprep.mubr.f32.mxu0 0.0
  %2467 = vmatmul.mubr.f32.gmra.mxu0 %v1702
  %v2468 = vpop.f32.mrf.mxu0
  %v2469 = vadd.f32 %v2395, %v2468
  %v2470 = vpop.f32.mrf.mxu0
  %2471 = vmatprep.mubr.f32.mxu0 0.0
  %2472 = vmatmul.mubr.f32.gmra.mxu0 %v1705
  %v2473 = vpop.f32.mrf.mxu0
  %v2474 = vadd.f32 %v2395, %v2473
  %v2475 = vpop.f32.mrf.mxu0
  %2476 = vmatprep.mubr.f32.mxu0 0.0
  %2477 = vmatmul.mubr.f32.gmra.mxu0 %v1708
  %v2478 = vpop.f32.mrf.mxu0
  %v2479 = vadd.f32 %v2395, %v2478
  %v2480 = vpop.f32.mrf.mxu0
  %2481 = vmatprep.mubr.f32.mxu0 0.0
  %2482 = vmatmul.mubr.f32.gmra.mxu0 %v1711
  %v2483 = vpop.f32.mrf.mxu0
  %v2484 = vadd.f32 %v2395, %v2483
  %v2485 = vpop.f32.mrf.mxu0
  %2486 = vdwg.mxu0
  %s2487 = scalar_lea.vmem %s6, 16
  %v2488 = vld [vmem:[%s2487] sm:$0xff]
  %v2489 = vld [vmem:[%s2487 + $0x8] sm:$0xff]
  %v2490 = vlaneseq
  %v2491 = vshrl.u32 %v2490, 7
  %v2492 = vsub.s32 5, %v2491
  %v2493 = vrot.slane %v1693, %v2492
  %v2495 = vsel %vm1265, %v2488, 0
  %v2498 = vsel %vm1265, %v2489, 0
  %2500 = vmatprep.subr.mxu0 0.0
  %2501 = vmatpush1.xpose.msra.mxu0 0.0
  %2502 = vmatprep.subr.mxu0 0.0
  %2503 = vmatpush1.xpose.msra.mxu0 0.0
  %2504 = vmatprep.subr.mxu0 0.0
  %2505 = vmatpush1.xpose.msra.mxu0 0.0
  %2506 = vmatprep.subr.mxu0 0.0
  %2507 = vmatpush1.xpose.msra.mxu0 0.0
  %2508 = vmatprep.subr.mxu0 0.0
  %2509 = vmatpush1.xpose.msra.mxu0 0.0
  %2510 = vmatprep.subr.mxu0 0.0
  %2511 = vmatpush1.xpose.msra.mxu0 0.0
  %2512 = vmatprep.subr.mxu0 0.0
  %2513 = vmatpush1.xpose.msra.mxu0 0.0
  %2514 = vmatprep.subr.mxu0 0.0
  %2515 = vmatpush1.xpose.msra.mxu0 0.0
  %2516 = vmatprep.subr.mxu0 0.0
  %2517 = vmatpush1.xpose.msra.mxu0 0.0
  %2518 = vmatprep.subr.mxu0 0.0
  %2519 = vmatpush1.xpose.msra.mxu0 0.0
  %2520 = vmatprep.subr.mxu0 0.0
  %2521 = vmatpush1.xpose.msra.mxu0 0.0
  %2522 = vmatprep.subr.mxu0 0.0
  %2523 = vmatpush1.xpose.msra.mxu0 0.0
  %2524 = vmatprep.subr.mxu0 0.0
  %2525 = vmatpush1.xpose.msra.mxu0 0.0
  %2526 = vmatprep.subr.mxu0 0.0
  %2527 = vmatpush1.xpose.msra.mxu0 0.0
  %2528 = vmatprep.subr.mxu0 0.0
  %2529 = vmatpush1.xpose.msra.mxu0 %v2498
  %2530 = vmatprep.subr.mxu0 0.0
  %2531 = vmatpush1.xpose.msra.mxu0 %v2495
  %2532 = vmatprep.subr.mxu0 0.0
  %2533 = vmatpush2.xpose.msra.mxu0 0.0
  %2534 = vmatprep.subr.mxu0 0.0
  %2535 = vmatpush2.xpose.msra.mxu0 0.0
  %2536 = vmatprep.subr.mxu0 0.0
  %2537 = vmatpush2.xpose.msra.mxu0 0.0
  %2538 = vmatprep.subr.mxu0 0.0
  %2539 = vmatpush2.xpose.msra.mxu0 0.0
  %2540 = vmatprep.subr.mxu0 0.0
  %2541 = vmatpush2.xpose.msra.mxu0 0.0
  %2542 = vmatprep.subr.mxu0 0.0
  %2543 = vmatpush2.xpose.msra.mxu0 0.0
  %2544 = vmatprep.subr.mxu0 0.0
  %2545 = vmatpush2.xpose.msra.mxu0 0.0
  %2546 = vmatprep.subr.mxu0 0.0
  %2547 = vmatpush2.xpose.msra.mxu0 0.0
  %2548 = vmatprep.subr.mxu0 0.0
  %2549 = vmatpush2.xpose.msra.mxu0 0.0
  %2550 = vmatprep.subr.mxu0 0.0
  %2551 = vmatpush2.xpose.msra.mxu0 0.0
  %2552 = vmatprep.subr.mxu0 0.0
  %2553 = vmatpush2.xpose.msra.mxu0 0.0
  %2554 = vmatprep.subr.mxu0 0.0
  %2555 = vmatpush2.xpose.msra.mxu0 0.0
  %2556 = vmatprep.subr.mxu0 0.0
  %2557 = vmatpush2.xpose.msra.mxu0 0.0
  %2558 = vmatprep.subr.mxu0 0.0
  %2559 = vmatpush2.xpose.msra.mxu0 0.0
  %2560 = vmatprep.subr.mxu0 0.0
  %2561 = vmatpush2.xpose.msra.mxu0 0.0
  %2562 = vmatprep.subr.mxu0 0.0
  %2563 = vmatpush2.xpose.msra.mxu0 0.0
  %2564 = vmatprep.mubr.f32.mxu0 0.0
  %2565 = vmatmul.mubr.f32.gmra.mxu0 %v1702
  %v2566 = vpop.f32.mrf.mxu0
  %v2567 = vadd.f32 %v2493, %v2566
  %v2568 = vpop.f32.mrf.mxu0
  %2569 = vmatprep.mubr.f32.mxu0 0.0
  %2570 = vmatmul.mubr.f32.gmra.mxu0 %v1705
  %v2571 = vpop.f32.mrf.mxu0
  %v2572 = vadd.f32 %v2493, %v2571
  %v2573 = vpop.f32.mrf.mxu0
  %2574 = vmatprep.mubr.f32.mxu0 0.0
  %2575 = vmatmul.mubr.f32.gmra.mxu0 %v1708
  %v2576 = vpop.f32.mrf.mxu0
  %v2577 = vadd.f32 %v2493, %v2576
  %v2578 = vpop.f32.mrf.mxu0
  %2579 = vmatprep.mubr.f32.mxu0 0.0
  %2580 = vmatmul.mubr.f32.gmra.mxu0 %v1711
  %v2581 = vpop.f32.mrf.mxu0
  %v2582 = vadd.f32 %v2493, %v2581
  %v2583 = vpop.f32.mrf.mxu0
  %2584 = vdwg.mxu0
  %s2585 = scalar_lea.vmem %s7, 16
  %v2586 = vld [vmem:[%s2585] sm:$0xff]
  %v2587 = vld [vmem:[%s2585 + $0x8] sm:$0xff]
  %v2588 = vlaneseq
  %v2589 = vshrl.u32 %v2588, 7
  %v2590 = vsub.s32 1, %v2589
  %v2591 = vrot.slane %v1694, %v2590
  %v2593 = vsel %vm1265, %v2586, 0
  %v2596 = vsel %vm1265, %v2587, 0
  %2598 = vmatprep.subr.mxu0 0.0
  %2599 = vmatpush1.xpose.msra.mxu0 0.0
  %2600 = vmatprep.subr.mxu0 0.0
  %2601 = vmatpush1.xpose.msra.mxu0 0.0
  %2602 = vmatprep.subr.mxu0 0.0
  %2603 = vmatpush1.xpose.msra.mxu0 0.0
  %2604 = vmatprep.subr.mxu0 0.0
  %2605 = vmatpush1.xpose.msra.mxu0 0.0
  %2606 = vmatprep.subr.mxu0 0.0
  %2607 = vmatpush1.xpose.msra.mxu0 0.0
  %2608 = vmatprep.subr.mxu0 0.0
  %2609 = vmatpush1.xpose.msra.mxu0 0.0
  %2610 = vmatprep.subr.mxu0 0.0
  %2611 = vmatpush1.xpose.msra.mxu0 0.0
  %2612 = vmatprep.subr.mxu0 0.0
  %2613 = vmatpush1.xpose.msra.mxu0 0.0
  %2614 = vmatprep.subr.mxu0 0.0
  %2615 = vmatpush1.xpose.msra.mxu0 0.0
  %2616 = vmatprep.subr.mxu0 0.0
  %2617 = vmatpush1.xpose.msra.mxu0 0.0
  %2618 = vmatprep.subr.mxu0 0.0
  %2619 = vmatpush1.xpose.msra.mxu0 0.0
  %2620 = vmatprep.subr.mxu0 0.0
  %2621 = vmatpush1.xpose.msra.mxu0 0.0
  %2622 = vmatprep.subr.mxu0 0.0
  %2623 = vmatpush1.xpose.msra.mxu0 0.0
  %2624 = vmatprep.subr.mxu0 0.0
  %2625 = vmatpush1.xpose.msra.mxu0 0.0
  %2626 = vmatprep.subr.mxu0 0.0
  %2627 = vmatpush1.xpose.msra.mxu0 %v2596
  %2628 = vmatprep.subr.mxu0 0.0
  %2629 = vmatpush1.xpose.msra.mxu0 %v2593
  %2630 = vmatprep.subr.mxu0 0.0
  %2631 = vmatpush2.xpose.msra.mxu0 0.0
  %2632 = vmatprep.subr.mxu0 0.0
  %2633 = vmatpush2.xpose.msra.mxu0 0.0
  %2634 = vmatprep.subr.mxu0 0.0
  %2635 = vmatpush2.xpose.msra.mxu0 0.0
  %2636 = vmatprep.subr.mxu0 0.0
  %2637 = vmatpush2.xpose.msra.mxu0 0.0
  %2638 = vmatprep.subr.mxu0 0.0
  %2639 = vmatpush2.xpose.msra.mxu0 0.0
  %2640 = vmatprep.subr.mxu0 0.0
  %2641 = vmatpush2.xpose.msra.mxu0 0.0
  %2642 = vmatprep.subr.mxu0 0.0
  %2643 = vmatpush2.xpose.msra.mxu0 0.0
  %2644 = vmatprep.subr.mxu0 0.0
  %2645 = vmatpush2.xpose.msra.mxu0 0.0
  %2646 = vmatprep.subr.mxu0 0.0
  %2647 = vmatpush2.xpose.msra.mxu0 0.0
  %2648 = vmatprep.subr.mxu0 0.0
  %2649 = vmatpush2.xpose.msra.mxu0 0.0
  %2650 = vmatprep.subr.mxu0 0.0
  %2651 = vmatpush2.xpose.msra.mxu0 0.0
  %2652 = vmatprep.subr.mxu0 0.0
  %2653 = vmatpush2.xpose.msra.mxu0 0.0
  %2654 = vmatprep.subr.mxu0 0.0
  %2655 = vmatpush2.xpose.msra.mxu0 0.0
  %2656 = vmatprep.subr.mxu0 0.0
  %2657 = vmatpush2.xpose.msra.mxu0 0.0
  %2658 = vmatprep.subr.mxu0 0.0
  %2659 = vmatpush2.xpose.msra.mxu0 0.0
  %2660 = vmatprep.subr.mxu0 0.0
  %2661 = vmatpush2.xpose.msra.mxu0 0.0
  %2662 = vmatprep.mubr.f32.mxu0 0.0
  %2663 = vmatmul.mubr.f32.gmra.mxu0 %v1702
  %v2664 = vpop.f32.mrf.mxu0
  %v2665 = vadd.f32 %v2591, %v2664
  %v2666 = vpop.f32.mrf.mxu0
  %2667 = vmatprep.mubr.f32.mxu0 0.0
  %2668 = vmatmul.mubr.f32.gmra.mxu0 %v1705
  %v2669 = vpop.f32.mrf.mxu0
  %v2670 = vadd.f32 %v2591, %v2669
  %v2671 = vpop.f32.mrf.mxu0
  %2672 = vmatprep.mubr.f32.mxu0 0.0
  %2673 = vmatmul.mubr.f32.gmra.mxu0 %v1708
  %v2674 = vpop.f32.mrf.mxu0
  %v2675 = vadd.f32 %v2591, %v2674
  %v2676 = vpop.f32.mrf.mxu0
  %2677 = vmatprep.mubr.f32.mxu0 0.0
  %2678 = vmatmul.mubr.f32.gmra.mxu0 %v1711
  %v2679 = vpop.f32.mrf.mxu0
  %v2680 = vadd.f32 %v2591, %v2679
  %v2681 = vpop.f32.mrf.mxu0
  %2682 = vdwg.mxu0
  %v2683 = vmul.f32 %v2469, 0.25
  %v2684 = vmul.f32 %v2474, 0.25
  %v2685 = vmul.f32 %v2479, 0.25
  %v2686 = vmul.f32 %v2484, 0.25
  %v2688 = vsel %vm2002, %v2683, 0
  %v2691 = vsel %vm2002, %v2684, 0
  %v2694 = vsel %vm2002, %v2567, 0
  %v2697 = vsel %vm2002, %v2572, 0
  %2699 = vmatprep.subr.mxu0 0.0
  %2700 = vmatpush1.xpose.msra.mxu0 0.0
  %2701 = vmatprep.subr.mxu0 0.0
  %2702 = vmatpush1.xpose.msra.mxu0 0.0
  %2703 = vmatprep.subr.mxu0 0.0
  %2704 = vmatpush1.xpose.msra.mxu0 0.0
  %2705 = vmatprep.subr.mxu0 0.0
  %2706 = vmatpush1.xpose.msra.mxu0 0.0
  %2707 = vmatprep.subr.mxu0 0.0
  %2708 = vmatpush1.xpose.msra.mxu0 0.0
  %2709 = vmatprep.subr.mxu0 0.0
  %2710 = vmatpush1.xpose.msra.mxu0 0.0
  %2711 = vmatprep.subr.mxu0 0.0
  %2712 = vmatpush1.xpose.msra.mxu0 0.0
  %2713 = vmatprep.subr.mxu0 0.0
  %2714 = vmatpush1.xpose.msra.mxu0 0.0
  %2715 = vmatprep.subr.mxu0 0.0
  %2716 = vmatpush1.xpose.msra.mxu0 0.0
  %2717 = vmatprep.subr.mxu0 0.0
  %2718 = vmatpush1.xpose.msra.mxu0 0.0
  %2719 = vmatprep.subr.mxu0 0.0
  %2720 = vmatpush1.xpose.msra.mxu0 0.0
  %2721 = vmatprep.subr.mxu0 0.0
  %2722 = vmatpush1.xpose.msra.mxu0 0.0
  %2723 = vmatprep.subr.mxu0 0.0
  %2724 = vmatpush1.xpose.msra.mxu0 0.0
  %2725 = vmatprep.subr.mxu0 0.0
  %2726 = vmatpush1.xpose.msra.mxu0 0.0
  %2727 = vmatprep.subr.mxu0 0.0
  %2728 = vmatpush1.xpose.msra.mxu0 %v2697
  %2729 = vmatprep.subr.mxu0 0.0
  %2730 = vmatpush1.xpose.msra.mxu0 %v2694
  %2731 = vmatprep.subr.mxu0 0.0
  %2732 = vmatpush2.xpose.msra.mxu0 0.0
  %2733 = vmatprep.subr.mxu0 0.0
  %2734 = vmatpush2.xpose.msra.mxu0 0.0
  %2735 = vmatprep.subr.mxu0 0.0
  %2736 = vmatpush2.xpose.msra.mxu0 0.0
  %2737 = vmatprep.subr.mxu0 0.0
  %2738 = vmatpush2.xpose.msra.mxu0 0.0
  %2739 = vmatprep.subr.mxu0 0.0
  %2740 = vmatpush2.xpose.msra.mxu0 0.0
  %2741 = vmatprep.subr.mxu0 0.0
  %2742 = vmatpush2.xpose.msra.mxu0 0.0
  %2743 = vmatprep.subr.mxu0 0.0
  %2744 = vmatpush2.xpose.msra.mxu0 0.0
  %2745 = vmatprep.subr.mxu0 0.0
  %2746 = vmatpush2.xpose.msra.mxu0 0.0
  %2747 = vmatprep.subr.mxu0 0.0
  %2748 = vmatpush2.xpose.msra.mxu0 0.0
  %2749 = vmatprep.subr.mxu0 0.0
  %2750 = vmatpush2.xpose.msra.mxu0 0.0
  %2751 = vmatprep.subr.mxu0 0.0
  %2752 = vmatpush2.xpose.msra.mxu0 0.0
  %2753 = vmatprep.subr.mxu0 0.0
  %2754 = vmatpush2.xpose.msra.mxu0 0.0
  %2755 = vmatprep.subr.mxu0 0.0
  %2756 = vmatpush2.xpose.msra.mxu0 0.0
  %2757 = vmatprep.subr.mxu0 0.0
  %2758 = vmatpush2.xpose.msra.mxu0 0.0
  %2759 = vmatprep.subr.mxu0 0.0
  %2760 = vmatpush2.xpose.msra.mxu0 0.0
  %2761 = vmatprep.subr.mxu0 0.0
  %2762 = vmatpush2.xpose.msra.mxu0 0.0
  %2763 = vmatprep.mubr.f32.mxu0 0.0
  %2764 = vmatmul.mubr.f32.gmra.mxu0 %v2688
  %v2765 = vpop.f32.mrf.mxu0
  %v2766 = vadd.f32 0.0, %v2765
  %v2767 = vpop.f32.mrf.mxu0
  %2768 = vmatprep.mubr.f32.mxu0 0.0
  %2769 = vmatmul.mubr.f32.gmra.mxu0 %v2691
  %v2770 = vpop.f32.mrf.mxu0
  %v2771 = vadd.f32 0.0, %v2770
  %v2772 = vpop.f32.mrf.mxu0
  %2773 = vdwg.mxu0
  %v2775 = vsel %vm2002, %v2685, 0
  %v2778 = vsel %vm2002, %v2686, 0
  %v2781 = vsel %vm2002, %v2577, 0
  %v2784 = vsel %vm2002, %v2582, 0
  %2786 = vmatprep.subr.mxu0 0.0
  %2787 = vmatpush1.xpose.msra.mxu0 0.0
  %2788 = vmatprep.subr.mxu0 0.0
  %2789 = vmatpush1.xpose.msra.mxu0 0.0
  %2790 = vmatprep.subr.mxu0 0.0
  %2791 = vmatpush1.xpose.msra.mxu0 0.0
  %2792 = vmatprep.subr.mxu0 0.0
  %2793 = vmatpush1.xpose.msra.mxu0 0.0
  %2794 = vmatprep.subr.mxu0 0.0
  %2795 = vmatpush1.xpose.msra.mxu0 0.0
  %2796 = vmatprep.subr.mxu0 0.0
  %2797 = vmatpush1.xpose.msra.mxu0 0.0
  %2798 = vmatprep.subr.mxu0 0.0
  %2799 = vmatpush1.xpose.msra.mxu0 0.0
  %2800 = vmatprep.subr.mxu0 0.0
  %2801 = vmatpush1.xpose.msra.mxu0 0.0
  %2802 = vmatprep.subr.mxu0 0.0
  %2803 = vmatpush1.xpose.msra.mxu0 0.0
  %2804 = vmatprep.subr.mxu0 0.0
  %2805 = vmatpush1.xpose.msra.mxu0 0.0
  %2806 = vmatprep.subr.mxu0 0.0
  %2807 = vmatpush1.xpose.msra.mxu0 0.0
  %2808 = vmatprep.subr.mxu0 0.0
  %2809 = vmatpush1.xpose.msra.mxu0 0.0
  %2810 = vmatprep.subr.mxu0 0.0
  %2811 = vmatpush1.xpose.msra.mxu0 0.0
  %2812 = vmatprep.subr.mxu0 0.0
  %2813 = vmatpush1.xpose.msra.mxu0 0.0
  %2814 = vmatprep.subr.mxu0 0.0
  %2815 = vmatpush1.xpose.msra.mxu0 %v2784
  %2816 = vmatprep.subr.mxu0 0.0
  %2817 = vmatpush1.xpose.msra.mxu0 %v2781
  %2818 = vmatprep.subr.mxu0 0.0
  %2819 = vmatpush2.xpose.msra.mxu0 0.0
  %2820 = vmatprep.subr.mxu0 0.0
  %2821 = vmatpush2.xpose.msra.mxu0 0.0
  %2822 = vmatprep.subr.mxu0 0.0
  %2823 = vmatpush2.xpose.msra.mxu0 0.0
  %2824 = vmatprep.subr.mxu0 0.0
  %2825 = vmatpush2.xpose.msra.mxu0 0.0
  %2826 = vmatprep.subr.mxu0 0.0
  %2827 = vmatpush2.xpose.msra.mxu0 0.0
  %2828 = vmatprep.subr.mxu0 0.0
  %2829 = vmatpush2.xpose.msra.mxu0 0.0
  %2830 = vmatprep.subr.mxu0 0.0
  %2831 = vmatpush2.xpose.msra.mxu0 0.0
  %2832 = vmatprep.subr.mxu0 0.0
  %2833 = vmatpush2.xpose.msra.mxu0 0.0
  %2834 = vmatprep.subr.mxu0 0.0
  %2835 = vmatpush2.xpose.msra.mxu0 0.0
  %2836 = vmatprep.subr.mxu0 0.0
  %2837 = vmatpush2.xpose.msra.mxu0 0.0
  %2838 = vmatprep.subr.mxu0 0.0
  %2839 = vmatpush2.xpose.msra.mxu0 0.0
  %2840 = vmatprep.subr.mxu0 0.0
  %2841 = vmatpush2.xpose.msra.mxu0 0.0
  %2842 = vmatprep.subr.mxu0 0.0
  %2843 = vmatpush2.xpose.msra.mxu0 0.0
  %2844 = vmatprep.subr.mxu0 0.0
  %2845 = vmatpush2.xpose.msra.mxu0 0.0
  %2846 = vmatprep.subr.mxu0 0.0
  %2847 = vmatpush2.xpose.msra.mxu0 0.0
  %2848 = vmatprep.subr.mxu0 0.0
  %2849 = vmatpush2.xpose.msra.mxu0 0.0
  %2850 = vmatprep.mubr.f32.mxu0 0.0
  %2851 = vmatmul.mubr.f32.gmra.mxu0 %v2775
  %v2852 = vpop.f32.mrf.mxu0
  %v2853 = vadd.f32 0.0, %v2852
  %v2854 = vpop.f32.mrf.mxu0
  %2855 = vmatprep.mubr.f32.mxu0 0.0
  %2856 = vmatmul.mubr.f32.gmra.mxu0 %v2778
  %v2857 = vpop.f32.mrf.mxu0
  %v2858 = vadd.f32 0.0, %v2857
  %v2859 = vpop.f32.mrf.mxu0
  %2860 = vdwg.mxu0
  %v2861 = vsel %vm1692, %v2766, -1e+30
  %v2862 = vsel %vm1692, %v2771, -1e+30
  %v2863 = vsel %vm1692, %v2853, -1e+30
  %v2864 = vsel %vm1692, %v2858, -1e+30
  %v2865 = vsel %vm2002, %v2861, -inf
  %2866 = vmax.xlane.f32.xlu0 %v2865
  %v2867 = vpop.xlane.xlu0 %2866
  %v2868 = vsel %vm2002, %v2862, -inf
  %2869 = vmax.xlane.f32.xlu0 %v2868
  %v2870 = vpop.xlane.xlu0 %2869
  %v2871 = vsel %vm2002, %v2863, -inf
  %2872 = vmax.xlane.f32.xlu0 %v2871
  %v2873 = vpop.xlane.xlu0 %2872
  %v2874 = vsel %vm2002, %v2864, -inf
  %2875 = vmax.xlane.f32.xlu0 %v2874
  %v2876 = vpop.xlane.xlu0 %2875
  %v2877 = vsub.f32 %v2861, %v2867
  %v2878 = vsub.f32 %v2862, %v2870
  %v2879 = vsub.f32 %v2863, %v2873
  %v2880 = vsub.f32 %v2864, %v2876
  %v2881 = vmul.f32 %v2877, 1.442695
  %v2882 = vpow.pop %v2881
  %v2883 = vmul.f32 %v2878, 1.442695
  %v2884 = vpow.pop %v2883
  %v2885 = vmul.f32 %v2879, 1.442695
  %v2886 = vpow.pop %v2885
  %v2887 = vmul.f32 %v2880, 1.442695
  %v2888 = vpow.pop %v2887
  %v2889 = vsel %vm2002, %v2882, 0.0
  %2890 = vadd.xlane.f32.xlu0 %v2889
  %v2891 = vpop.xlane.xlu0 %2890
  %v2892 = vsel %vm2002, %v2884, 0.0
  %2893 = vadd.xlane.f32.xlu0 %v2892
  %v2894 = vpop.xlane.xlu0 %2893
  %v2895 = vsel %vm2002, %v2886, 0.0
  %2896 = vadd.xlane.f32.xlu0 %v2895
  %v2897 = vpop.xlane.xlu0 %2896
  %v2898 = vsel %vm2002, %v2888, 0.0
  %2899 = vadd.xlane.f32.xlu0 %v2898
  %v2900 = vpop.xlane.xlu0 %2899
  %v2901 = vrcp.pop %v2891
  %v2902 = vrcp.pop %v2894
  %v2903 = vrcp.pop %v2897
  %v2904 = vrcp.pop %v2900
  %v2905 = vmul.f32 %v2882, %v2901
  %v2906 = vmul.f32 %v2884, %v2902
  %v2907 = vmul.f32 %v2886, %v2903
  %v2908 = vmul.f32 %v2888, %v2904
  %v2910 = vsel %vm2002, %v2905, 0
  %v2913 = vsel %vm2002, %v2906, 0
  %2915 = vmatprep.subr.mxu0 0.0
  %2916 = vmatpush1.msra.mxu0 0.0
  %2917 = vmatprep.subr.mxu0 0.0
  %2918 = vmatpush1.msra.mxu0 0.0
  %2919 = vmatprep.subr.mxu0 0.0
  %2920 = vmatpush1.msra.mxu0 0.0
  %2921 = vmatprep.subr.mxu0 0.0
  %2922 = vmatpush1.msra.mxu0 0.0
  %2923 = vmatprep.subr.mxu0 0.0
  %2924 = vmatpush1.msra.mxu0 0.0
  %2925 = vmatprep.subr.mxu0 0.0
  %2926 = vmatpush1.msra.mxu0 0.0
  %2927 = vmatprep.subr.mxu0 0.0
  %2928 = vmatpush1.msra.mxu0 0.0
  %2929 = vmatprep.subr.mxu0 0.0
  %2930 = vmatpush1.msra.mxu0 0.0
  %2931 = vmatprep.subr.mxu0 0.0
  %2932 = vmatpush1.msra.mxu0 0.0
  %2933 = vmatprep.subr.mxu0 0.0
  %2934 = vmatpush1.msra.mxu0 0.0
  %2935 = vmatprep.subr.mxu0 0.0
  %2936 = vmatpush1.msra.mxu0 0.0
  %2937 = vmatprep.subr.mxu0 0.0
  %2938 = vmatpush1.msra.mxu0 0.0
  %2939 = vmatprep.subr.mxu0 0.0
  %2940 = vmatpush1.msra.mxu0 0.0
  %2941 = vmatprep.subr.mxu0 0.0
  %2942 = vmatpush1.msra.mxu0 0.0
  %2943 = vmatprep.subr.mxu0 0.0
  %2944 = vmatpush1.msra.mxu0 %v2670
  %2945 = vmatprep.subr.mxu0 0.0
  %2946 = vmatpush1.msra.mxu0 %v2665
  %2947 = vmatprep.subr.mxu0 0.0
  %2948 = vmatpush2.msra.mxu0 0.0
  %2949 = vmatprep.subr.mxu0 0.0
  %2950 = vmatpush2.msra.mxu0 0.0
  %2951 = vmatprep.subr.mxu0 0.0
  %2952 = vmatpush2.msra.mxu0 0.0
  %2953 = vmatprep.subr.mxu0 0.0
  %2954 = vmatpush2.msra.mxu0 0.0
  %2955 = vmatprep.subr.mxu0 0.0
  %2956 = vmatpush2.msra.mxu0 0.0
  %2957 = vmatprep.subr.mxu0 0.0
  %2958 = vmatpush2.msra.mxu0 0.0
  %2959 = vmatprep.subr.mxu0 0.0
  %2960 = vmatpush2.msra.mxu0 0.0
  %2961 = vmatprep.subr.mxu0 0.0
  %2962 = vmatpush2.msra.mxu0 0.0
  %2963 = vmatprep.subr.mxu0 0.0
  %2964 = vmatpush2.msra.mxu0 0.0
  %2965 = vmatprep.subr.mxu0 0.0
  %2966 = vmatpush2.msra.mxu0 0.0
  %2967 = vmatprep.subr.mxu0 0.0
  %2968 = vmatpush2.msra.mxu0 0.0
  %2969 = vmatprep.subr.mxu0 0.0
  %2970 = vmatpush2.msra.mxu0 0.0
  %2971 = vmatprep.subr.mxu0 0.0
  %2972 = vmatpush2.msra.mxu0 0.0
  %2973 = vmatprep.subr.mxu0 0.0
  %2974 = vmatpush2.msra.mxu0 0.0
  %2975 = vmatprep.subr.mxu0 0.0
  %2976 = vmatpush2.msra.mxu0 0.0
  %2977 = vmatprep.subr.mxu0 0.0
  %2978 = vmatpush2.msra.mxu0 0.0
  %2979 = vmatprep.mubr.f32.mxu0 0.0
  %2980 = vmatmul.mubr.f32.gmra.mxu0 %v2910
  %v2981 = vpop.f32.mrf.mxu0
  %v2982 = vadd.f32 0.0, %v2981
  %v2983 = vpop.f32.mrf.mxu0
  %2984 = vmatprep.mubr.f32.mxu0 0.0
  %2985 = vmatmul.mubr.f32.gmra.mxu0 %v2913
  %v2986 = vpop.f32.mrf.mxu0
  %v2987 = vadd.f32 0.0, %v2986
  %v2988 = vpop.f32.mrf.mxu0
  %2989 = vdwg.mxu0
  %v2991 = vsel %vm2002, %v2907, 0
  %v2994 = vsel %vm2002, %v2908, 0
  %2996 = vmatprep.subr.mxu0 0.0
  %2997 = vmatpush1.msra.mxu0 0.0
  %2998 = vmatprep.subr.mxu0 0.0
  %2999 = vmatpush1.msra.mxu0 0.0
  %3000 = vmatprep.subr.mxu0 0.0
  %3001 = vmatpush1.msra.mxu0 0.0
  %3002 = vmatprep.subr.mxu0 0.0
  %3003 = vmatpush1.msra.mxu0 0.0
  %3004 = vmatprep.subr.mxu0 0.0
  %3005 = vmatpush1.msra.mxu0 0.0
  %3006 = vmatprep.subr.mxu0 0.0
  %3007 = vmatpush1.msra.mxu0 0.0
  %3008 = vmatprep.subr.mxu0 0.0
  %3009 = vmatpush1.msra.mxu0 0.0
  %3010 = vmatprep.subr.mxu0 0.0
  %3011 = vmatpush1.msra.mxu0 0.0
  %3012 = vmatprep.subr.mxu0 0.0
  %3013 = vmatpush1.msra.mxu0 0.0
  %3014 = vmatprep.subr.mxu0 0.0
  %3015 = vmatpush1.msra.mxu0 0.0
  %3016 = vmatprep.subr.mxu0 0.0
  %3017 = vmatpush1.msra.mxu0 0.0
  %3018 = vmatprep.subr.mxu0 0.0
  %3019 = vmatpush1.msra.mxu0 0.0
  %3020 = vmatprep.subr.mxu0 0.0
  %3021 = vmatpush1.msra.mxu0 0.0
  %3022 = vmatprep.subr.mxu0 0.0
  %3023 = vmatpush1.msra.mxu0 0.0
  %3024 = vmatprep.subr.mxu0 0.0
  %3025 = vmatpush1.msra.mxu0 %v2680
  %3026 = vmatprep.subr.mxu0 0.0
  %3027 = vmatpush1.msra.mxu0 %v2675
  %3028 = vmatprep.subr.mxu0 0.0
  %3029 = vmatpush2.msra.mxu0 0.0
  %3030 = vmatprep.subr.mxu0 0.0
  %3031 = vmatpush2.msra.mxu0 0.0
  %3032 = vmatprep.subr.mxu0 0.0
  %3033 = vmatpush2.msra.mxu0 0.0
  %3034 = vmatprep.subr.mxu0 0.0
  %3035 = vmatpush2.msra.mxu0 0.0
  %3036 = vmatprep.subr.mxu0 0.0
  %3037 = vmatpush2.msra.mxu0 0.0
  %3038 = vmatprep.subr.mxu0 0.0
  %3039 = vmatpush2.msra.mxu0 0.0
  %3040 = vmatprep.subr.mxu0 0.0
  %3041 = vmatpush2.msra.mxu0 0.0
  %3042 = vmatprep.subr.mxu0 0.0
  %3043 = vmatpush2.msra.mxu0 0.0
  %3044 = vmatprep.subr.mxu0 0.0
  %3045 = vmatpush2.msra.mxu0 0.0
  %3046 = vmatprep.subr.mxu0 0.0
  %3047 = vmatpush2.msra.mxu0 0.0
  %3048 = vmatprep.subr.mxu0 0.0
  %3049 = vmatpush2.msra.mxu0 0.0
  %3050 = vmatprep.subr.mxu0 0.0
  %3051 = vmatpush2.msra.mxu0 0.0
  %3052 = vmatprep.subr.mxu0 0.0
  %3053 = vmatpush2.msra.mxu0 0.0
  %3054 = vmatprep.subr.mxu0 0.0
  %3055 = vmatpush2.msra.mxu0 0.0
  %3056 = vmatprep.subr.mxu0 0.0
  %3057 = vmatpush2.msra.mxu0 0.0
  %3058 = vmatprep.subr.mxu0 0.0
  %3059 = vmatpush2.msra.mxu0 0.0
  %3060 = vmatprep.mubr.f32.mxu0 0.0
  %3061 = vmatmul.mubr.f32.gmra.mxu0 %v2991
  %v3062 = vpop.f32.mrf.mxu0
  %v3063 = vadd.f32 0.0, %v3062
  %v3064 = vpop.f32.mrf.mxu0
  %3065 = vmatprep.mubr.f32.mxu0 0.0
  %3066 = vmatmul.mubr.f32.gmra.mxu0 %v2994
  %v3067 = vpop.f32.mrf.mxu0
  %v3068 = vadd.f32 0.0, %v3067
  %v3069 = vpop.f32.mrf.mxu0
  %3070 = vdwg.mxu0
  %s3071 = scalar_lea.vmem %s8, 16
  %v3072 = vld [vmem:[%s3071] sm:$0xff]
  %v3073 = vld [vmem:[%s3071 + $0x8] sm:$0xff]
  %v3075 = vsel %vm2002, %v2982, 0
  %v3078 = vsel %vm2002, %v2987, 0
  %v3081 = vsel %vm2002, %v3063, 0
  %v3084 = vsel %vm2002, %v3068, 0
  %3086 = vmatprep.subr.mxu0 0.0
  %3087 = vmatpush1.msra.mxu0 0.0
  %3088 = vmatprep.subr.mxu0 0.0
  %3089 = vmatpush1.msra.mxu0 0.0
  %3090 = vmatprep.subr.mxu0 0.0
  %3091 = vmatpush1.msra.mxu0 0.0
  %3092 = vmatprep.subr.mxu0 0.0
  %3093 = vmatpush1.msra.mxu0 0.0
  %3094 = vmatprep.subr.mxu0 0.0
  %3095 = vmatpush1.msra.mxu0 0.0
  %3096 = vmatprep.subr.mxu0 0.0
  %3097 = vmatpush1.msra.mxu0 0.0
  %3098 = vmatprep.subr.mxu0 0.0
  %3099 = vmatpush1.msra.mxu0 0.0
  %3100 = vmatprep.subr.mxu0 0.0
  %3101 = vmatpush1.msra.mxu0 0.0
  %3102 = vmatprep.subr.mxu0 0.0
  %3103 = vmatpush1.msra.mxu0 0.0
  %3104 = vmatprep.subr.mxu0 0.0
  %3105 = vmatpush1.msra.mxu0 0.0
  %3106 = vmatprep.subr.mxu0 0.0
  %3107 = vmatpush1.msra.mxu0 0.0
  %3108 = vmatprep.subr.mxu0 0.0
  %3109 = vmatpush1.msra.mxu0 0.0
  %3110 = vmatprep.subr.mxu0 0.0
  %3111 = vmatpush1.msra.mxu0 0.0
  %3112 = vmatprep.subr.mxu0 0.0
  %3113 = vmatpush1.msra.mxu0 0.0
  %3114 = vmatprep.subr.mxu0 0.0
  %3115 = vmatpush1.msra.mxu0 %v3073
  %3116 = vmatprep.subr.mxu0 0.0
  %3117 = vmatpush1.msra.mxu0 %v3072
  %3118 = vmatprep.subr.mxu0 0.0
  %3119 = vmatpush2.msra.mxu0 0.0
  %3120 = vmatprep.subr.mxu0 0.0
  %3121 = vmatpush2.msra.mxu0 0.0
  %3122 = vmatprep.subr.mxu0 0.0
  %3123 = vmatpush2.msra.mxu0 0.0
  %3124 = vmatprep.subr.mxu0 0.0
  %3125 = vmatpush2.msra.mxu0 0.0
  %3126 = vmatprep.subr.mxu0 0.0
  %3127 = vmatpush2.msra.mxu0 0.0
  %3128 = vmatprep.subr.mxu0 0.0
  %3129 = vmatpush2.msra.mxu0 0.0
  %3130 = vmatprep.subr.mxu0 0.0
  %3131 = vmatpush2.msra.mxu0 0.0
  %3132 = vmatprep.subr.mxu0 0.0
  %3133 = vmatpush2.msra.mxu0 0.0
  %3134 = vmatprep.subr.mxu0 0.0
  %3135 = vmatpush2.msra.mxu0 0.0
  %3136 = vmatprep.subr.mxu0 0.0
  %3137 = vmatpush2.msra.mxu0 0.0
  %3138 = vmatprep.subr.mxu0 0.0
  %3139 = vmatpush2.msra.mxu0 0.0
  %3140 = vmatprep.subr.mxu0 0.0
  %3141 = vmatpush2.msra.mxu0 0.0
  %3142 = vmatprep.subr.mxu0 0.0
  %3143 = vmatpush2.msra.mxu0 0.0
  %3144 = vmatprep.subr.mxu0 0.0
  %3145 = vmatpush2.msra.mxu0 0.0
  %3146 = vmatprep.subr.mxu0 0.0
  %3147 = vmatpush2.msra.mxu0 0.0
  %3148 = vmatprep.subr.mxu0 0.0
  %3149 = vmatpush2.msra.mxu0 0.0
  %3150 = vmatprep.mubr.f32.mxu0 0.0
  %3151 = vmatmul.mubr.f32.gmra.mxu0 %v3075
  %v3152 = vpop.f32.mrf.mxu0
  %v3153 = vadd.f32 0.0, %v3152
  %v3154 = vpop.f32.mrf.mxu0
  %3155 = vmatprep.mubr.f32.mxu0 0.0
  %3156 = vmatmul.mubr.f32.gmra.mxu0 %v3078
  %v3157 = vpop.f32.mrf.mxu0
  %v3158 = vadd.f32 0.0, %v3157
  %v3159 = vpop.f32.mrf.mxu0
  %3160 = vmatprep.mubr.f32.mxu0 0.0
  %3161 = vmatmul.mubr.f32.gmra.mxu0 %v3081
  %v3162 = vpop.f32.mrf.mxu0
  %v3163 = vadd.f32 0.0, %v3162
  %v3164 = vpop.f32.mrf.mxu0
  %3165 = vmatprep.mubr.f32.mxu0 0.0
  %3166 = vmatmul.mubr.f32.gmra.mxu0 %v3084
  %v3167 = vpop.f32.mrf.mxu0
  %v3168 = vadd.f32 0.0, %v3167
  %v3169 = vpop.f32.mrf.mxu0
  %3170 = vdwg.mxu0
  %v3172 = vsel %vm2002, %v2298, 0
  %v3175 = vsel %vm2002, %v2303, 0
  %v3178 = vsel %vm2002, %v2379, 0
  %v3181 = vsel %vm2002, %v2384, 0
  %3183 = vmatprep.subr.mxu0 0.0
  %3184 = vmatpush1.msra.mxu0 0.0
  %3185 = vmatprep.subr.mxu0 0.0
  %3186 = vmatpush1.msra.mxu0 0.0
  %3187 = vmatprep.subr.mxu0 0.0
  %3188 = vmatpush1.msra.mxu0 0.0
  %3189 = vmatprep.subr.mxu0 0.0
  %3190 = vmatpush1.msra.mxu0 0.0
  %3191 = vmatprep.subr.mxu0 0.0
  %3192 = vmatpush1.msra.mxu0 0.0
  %3193 = vmatprep.subr.mxu0 0.0
  %3194 = vmatpush1.msra.mxu0 0.0
  %3195 = vmatprep.subr.mxu0 0.0
  %3196 = vmatpush1.msra.mxu0 0.0
  %3197 = vmatprep.subr.mxu0 0.0
  %3198 = vmatpush1.msra.mxu0 0.0
  %3199 = vmatprep.subr.mxu0 0.0
  %3200 = vmatpush1.msra.mxu0 0.0
  %3201 = vmatprep.subr.mxu0 0.0
  %3202 = vmatpush1.msra.mxu0 0.0
  %3203 = vmatprep.subr.mxu0 0.0
  %3204 = vmatpush1.msra.mxu0 0.0
  %3205 = vmatprep.subr.mxu0 0.0
  %3206 = vmatpush1.msra.mxu0 0.0
  %3207 = vmatprep.subr.mxu0 0.0
  %3208 = vmatpush1.msra.mxu0 0.0
  %3209 = vmatprep.subr.mxu0 0.0
  %3210 = vmatpush1.msra.mxu0 0.0
  %3211 = vmatprep.subr.mxu0 0.0
  %3212 = vmatpush1.msra.mxu0 %v2388
  %3213 = vmatprep.subr.mxu0 0.0
  %3214 = vmatpush1.msra.mxu0 %v2387
  %3215 = vmatprep.subr.mxu0 0.0
  %3216 = vmatpush2.msra.mxu0 0.0
  %3217 = vmatprep.subr.mxu0 0.0
  %3218 = vmatpush2.msra.mxu0 0.0
  %3219 = vmatprep.subr.mxu0 0.0
  %3220 = vmatpush2.msra.mxu0 0.0
  %3221 = vmatprep.subr.mxu0 0.0
  %3222 = vmatpush2.msra.mxu0 0.0
  %3223 = vmatprep.subr.mxu0 0.0
  %3224 = vmatpush2.msra.mxu0 0.0
  %3225 = vmatprep.subr.mxu0 0.0
  %3226 = vmatpush2.msra.mxu0 0.0
  %3227 = vmatprep.subr.mxu0 0.0
  %3228 = vmatpush2.msra.mxu0 0.0
  %3229 = vmatprep.subr.mxu0 0.0
  %3230 = vmatpush2.msra.mxu0 0.0
  %3231 = vmatprep.subr.mxu0 0.0
  %3232 = vmatpush2.msra.mxu0 0.0
  %3233 = vmatprep.subr.mxu0 0.0
  %3234 = vmatpush2.msra.mxu0 0.0
  %3235 = vmatprep.subr.mxu0 0.0
  %3236 = vmatpush2.msra.mxu0 0.0
  %3237 = vmatprep.subr.mxu0 0.0
  %3238 = vmatpush2.msra.mxu0 0.0
  %3239 = vmatprep.subr.mxu0 0.0
  %3240 = vmatpush2.msra.mxu0 0.0
  %3241 = vmatprep.subr.mxu0 0.0
  %3242 = vmatpush2.msra.mxu0 0.0
  %3243 = vmatprep.subr.mxu0 0.0
  %3244 = vmatpush2.msra.mxu0 0.0
  %3245 = vmatprep.subr.mxu0 0.0
  %3246 = vmatpush2.msra.mxu0 0.0
  %3247 = vmatprep.mubr.f32.mxu0 0.0
  %3248 = vmatmul.mubr.f32.gmra.mxu0 %v3172
  %v3249 = vpop.f32.mrf.mxu0
  %v3250 = vadd.f32 %v3153, %v3249
  %v3251 = vpop.f32.mrf.mxu0
  %3252 = vmatprep.mubr.f32.mxu0 0.0
  %3253 = vmatmul.mubr.f32.gmra.mxu0 %v3175
  %v3254 = vpop.f32.mrf.mxu0
  %v3255 = vadd.f32 %v3158, %v3254
  %v3256 = vpop.f32.mrf.mxu0
  %3257 = vmatprep.mubr.f32.mxu0 0.0
  %3258 = vmatmul.mubr.f32.gmra.mxu0 %v3178
  %v3259 = vpop.f32.mrf.mxu0
  %v3260 = vadd.f32 %v3163, %v3259
  %v3261 = vpop.f32.mrf.mxu0
  %3262 = vmatprep.mubr.f32.mxu0 0.0
  %3263 = vmatmul.mubr.f32.gmra.mxu0 %v3181
  %v3264 = vpop.f32.mrf.mxu0
  %v3265 = vadd.f32 %v3168, %v3264
  %v3266 = vpop.f32.mrf.mxu0
  %3267 = vdwg.mxu0
  %s3268 = scalar_lea.vmem %s5, 32
  %v3269 = vld [vmem:[%s3268] sm:$0xff]
  %v3270 = vld [vmem:[%s3268 + $0x8] sm:$0xff]
  %v3271 = vlaneseq
  %v3272 = vshrl.u32 %v3271, 7
  %v3273 = vsub.s32 2, %v3272
  %v3274 = vrot.slane %v1693, %v3273
  %v3276 = vsel %vm1265, %v3269, 0
  %v3279 = vsel %vm1265, %v3270, 0
  %3281 = vmatprep.subr.mxu0 0.0
  %3282 = vmatpush1.xpose.msra.mxu0 0.0
  %3283 = vmatprep.subr.mxu0 0.0
  %3284 = vmatpush1.xpose.msra.mxu0 0.0
  %3285 = vmatprep.subr.mxu0 0.0
  %3286 = vmatpush1.xpose.msra.mxu0 0.0
  %3287 = vmatprep.subr.mxu0 0.0
  %3288 = vmatpush1.xpose.msra.mxu0 0.0
  %3289 = vmatprep.subr.mxu0 0.0
  %3290 = vmatpush1.xpose.msra.mxu0 0.0
  %3291 = vmatprep.subr.mxu0 0.0
  %3292 = vmatpush1.xpose.msra.mxu0 0.0
  %3293 = vmatprep.subr.mxu0 0.0
  %3294 = vmatpush1.xpose.msra.mxu0 0.0
  %3295 = vmatprep.subr.mxu0 0.0
  %3296 = vmatpush1.xpose.msra.mxu0 0.0
  %3297 = vmatprep.subr.mxu0 0.0
  %3298 = vmatpush1.xpose.msra.mxu0 0.0
  %3299 = vmatprep.subr.mxu0 0.0
  %3300 = vmatpush1.xpose.msra.mxu0 0.0
  %3301 = vmatprep.subr.mxu0 0.0
  %3302 = vmatpush1.xpose.msra.mxu0 0.0
  %3303 = vmatprep.subr.mxu0 0.0
  %3304 = vmatpush1.xpose.msra.mxu0 0.0
  %3305 = vmatprep.subr.mxu0 0.0
  %3306 = vmatpush1.xpose.msra.mxu0 0.0
  %3307 = vmatprep.subr.mxu0 0.0
  %3308 = vmatpush1.xpose.msra.mxu0 0.0
  %3309 = vmatprep.subr.mxu0 0.0
  %3310 = vmatpush1.xpose.msra.mxu0 %v3279
  %3311 = vmatprep.subr.mxu0 0.0
  %3312 = vmatpush1.xpose.msra.mxu0 %v3276
  %3313 = vmatprep.subr.mxu0 0.0
  %3314 = vmatpush2.xpose.msra.mxu0 0.0
  %3315 = vmatprep.subr.mxu0 0.0
  %3316 = vmatpush2.xpose.msra.mxu0 0.0
  %3317 = vmatprep.subr.mxu0 0.0
  %3318 = vmatpush2.xpose.msra.mxu0 0.0
  %3319 = vmatprep.subr.mxu0 0.0
  %3320 = vmatpush2.xpose.msra.mxu0 0.0
  %3321 = vmatprep.subr.mxu0 0.0
  %3322 = vmatpush2.xpose.msra.mxu0 0.0
  %3323 = vmatprep.subr.mxu0 0.0
  %3324 = vmatpush2.xpose.msra.mxu0 0.0
  %3325 = vmatprep.subr.mxu0 0.0
  %3326 = vmatpush2.xpose.msra.mxu0 0.0
  %3327 = vmatprep.subr.mxu0 0.0
  %3328 = vmatpush2.xpose.msra.mxu0 0.0
  %3329 = vmatprep.subr.mxu0 0.0
  %3330 = vmatpush2.xpose.msra.mxu0 0.0
  %3331 = vmatprep.subr.mxu0 0.0
  %3332 = vmatpush2.xpose.msra.mxu0 0.0
  %3333 = vmatprep.subr.mxu0 0.0
  %3334 = vmatpush2.xpose.msra.mxu0 0.0
  %3335 = vmatprep.subr.mxu0 0.0
  %3336 = vmatpush2.xpose.msra.mxu0 0.0
  %3337 = vmatprep.subr.mxu0 0.0
  %3338 = vmatpush2.xpose.msra.mxu0 0.0
  %3339 = vmatprep.subr.mxu0 0.0
  %3340 = vmatpush2.xpose.msra.mxu0 0.0
  %3341 = vmatprep.subr.mxu0 0.0
  %3342 = vmatpush2.xpose.msra.mxu0 0.0
  %3343 = vmatprep.subr.mxu0 0.0
  %3344 = vmatpush2.xpose.msra.mxu0 0.0
  %3345 = vmatprep.mubr.f32.mxu0 0.0
  %3346 = vmatmul.mubr.f32.gmra.mxu0 %v1702
  %v3347 = vpop.f32.mrf.mxu0
  %v3348 = vadd.f32 %v3274, %v3347
  %v3349 = vpop.f32.mrf.mxu0
  %3350 = vmatprep.mubr.f32.mxu0 0.0
  %3351 = vmatmul.mubr.f32.gmra.mxu0 %v1705
  %v3352 = vpop.f32.mrf.mxu0
  %v3353 = vadd.f32 %v3274, %v3352
  %v3354 = vpop.f32.mrf.mxu0
  %3355 = vmatprep.mubr.f32.mxu0 0.0
  %3356 = vmatmul.mubr.f32.gmra.mxu0 %v1708
  %v3357 = vpop.f32.mrf.mxu0
  %v3358 = vadd.f32 %v3274, %v3357
  %v3359 = vpop.f32.mrf.mxu0
  %3360 = vmatprep.mubr.f32.mxu0 0.0
  %3361 = vmatmul.mubr.f32.gmra.mxu0 %v1711
  %v3362 = vpop.f32.mrf.mxu0
  %v3363 = vadd.f32 %v3274, %v3362
  %v3364 = vpop.f32.mrf.mxu0
  %3365 = vdwg.mxu0
  %s3366 = scalar_lea.vmem %s6, 32
  %v3367 = vld [vmem:[%s3366] sm:$0xff]
  %v3368 = vld [vmem:[%s3366 + $0x8] sm:$0xff]
  %v3369 = vlaneseq
  %v3370 = vshrl.u32 %v3369, 7
  %v3371 = vsub.s32 6, %v3370
  %v3372 = vrot.slane %v1693, %v3371
  %v3374 = vsel %vm1265, %v3367, 0
  %v3377 = vsel %vm1265, %v3368, 0
  %3379 = vmatprep.subr.mxu0 0.0
  %3380 = vmatpush1.xpose.msra.mxu0 0.0
  %3381 = vmatprep.subr.mxu0 0.0
  %3382 = vmatpush1.xpose.msra.mxu0 0.0
  %3383 = vmatprep.subr.mxu0 0.0
  %3384 = vmatpush1.xpose.msra.mxu0 0.0
  %3385 = vmatprep.subr.mxu0 0.0
  %3386 = vmatpush1.xpose.msra.mxu0 0.0
  %3387 = vmatprep.subr.mxu0 0.0
  %3388 = vmatpush1.xpose.msra.mxu0 0.0
  %3389 = vmatprep.subr.mxu0 0.0
  %3390 = vmatpush1.xpose.msra.mxu0 0.0
  %3391 = vmatprep.subr.mxu0 0.0
  %3392 = vmatpush1.xpose.msra.mxu0 0.0
  %3393 = vmatprep.subr.mxu0 0.0
  %3394 = vmatpush1.xpose.msra.mxu0 0.0
  %3395 = vmatprep.subr.mxu0 0.0
  %3396 = vmatpush1.xpose.msra.mxu0 0.0
  %3397 = vmatprep.subr.mxu0 0.0
  %3398 = vmatpush1.xpose.msra.mxu0 0.0
  %3399 = vmatprep.subr.mxu0 0.0
  %3400 = vmatpush1.xpose.msra.mxu0 0.0
  %3401 = vmatprep.subr.mxu0 0.0
  %3402 = vmatpush1.xpose.msra.mxu0 0.0
  %3403 = vmatprep.subr.mxu0 0.0
  %3404 = vmatpush1.xpose.msra.mxu0 0.0
  %3405 = vmatprep.subr.mxu0 0.0
  %3406 = vmatpush1.xpose.msra.mxu0 0.0
  %3407 = vmatprep.subr.mxu0 0.0
  %3408 = vmatpush1.xpose.msra.mxu0 %v3377
  %3409 = vmatprep.subr.mxu0 0.0
  %3410 = vmatpush1.xpose.msra.mxu0 %v3374
  %3411 = vmatprep.subr.mxu0 0.0
  %3412 = vmatpush2.xpose.msra.mxu0 0.0
  %3413 = vmatprep.subr.mxu0 0.0
  %3414 = vmatpush2.xpose.msra.mxu0 0.0
  %3415 = vmatprep.subr.mxu0 0.0
  %3416 = vmatpush2.xpose.msra.mxu0 0.0
  %3417 = vmatprep.subr.mxu0 0.0
  %3418 = vmatpush2.xpose.msra.mxu0 0.0
  %3419 = vmatprep.subr.mxu0 0.0
  %3420 = vmatpush2.xpose.msra.mxu0 0.0
  %3421 = vmatprep.subr.mxu0 0.0
  %3422 = vmatpush2.xpose.msra.mxu0 0.0
  %3423 = vmatprep.subr.mxu0 0.0
  %3424 = vmatpush2.xpose.msra.mxu0 0.0
  %3425 = vmatprep.subr.mxu0 0.0
  %3426 = vmatpush2.xpose.msra.mxu0 0.0
  %3427 = vmatprep.subr.mxu0 0.0
  %3428 = vmatpush2.xpose.msra.mxu0 0.0
  %3429 = vmatprep.subr.mxu0 0.0
  %3430 = vmatpush2.xpose.msra.mxu0 0.0
  %3431 = vmatprep.subr.mxu0 0.0
  %3432 = vmatpush2.xpose.msra.mxu0 0.0
  %3433 = vmatprep.subr.mxu0 0.0
  %3434 = vmatpush2.xpose.msra.mxu0 0.0
  %3435 = vmatprep.subr.mxu0 0.0
  %3436 = vmatpush2.xpose.msra.mxu0 0.0
  %3437 = vmatprep.subr.mxu0 0.0
  %3438 = vmatpush2.xpose.msra.mxu0 0.0
  %3439 = vmatprep.subr.mxu0 0.0
  %3440 = vmatpush2.xpose.msra.mxu0 0.0
  %3441 = vmatprep.subr.mxu0 0.0
  %3442 = vmatpush2.xpose.msra.mxu0 0.0
  %3443 = vmatprep.mubr.f32.mxu0 0.0
  %3444 = vmatmul.mubr.f32.gmra.mxu0 %v1702
  %v3445 = vpop.f32.mrf.mxu0
  %v3446 = vadd.f32 %v3372, %v3445
  %v3447 = vpop.f32.mrf.mxu0
  %3448 = vmatprep.mubr.f32.mxu0 0.0
  %3449 = vmatmul.mubr.f32.gmra.mxu0 %v1705
  %v3450 = vpop.f32.mrf.mxu0
  %v3451 = vadd.f32 %v3372, %v3450
  %v3452 = vpop.f32.mrf.mxu0
  %3453 = vmatprep.mubr.f32.mxu0 0.0
  %3454 = vmatmul.mubr.f32.gmra.mxu0 %v1708
  %v3455 = vpop.f32.mrf.mxu0
  %v3456 = vadd.f32 %v3372, %v3455
  %v3457 = vpop.f32.mrf.mxu0
  %3458 = vmatprep.mubr.f32.mxu0 0.0
  %3459 = vmatmul.mubr.f32.gmra.mxu0 %v1711
  %v3460 = vpop.f32.mrf.mxu0
  %v3461 = vadd.f32 %v3372, %v3460
  %v3462 = vpop.f32.mrf.mxu0
  %3463 = vdwg.mxu0
  %s3464 = scalar_lea.vmem %s7, 32
  %v3465 = vld [vmem:[%s3464] sm:$0xff]
  %v3466 = vld [vmem:[%s3464 + $0x8] sm:$0xff]
  %v3467 = vlaneseq
  %v3468 = vshrl.u32 %v3467, 7
  %v3469 = vsub.s32 2, %v3468
  %v3470 = vrot.slane %v1694, %v3469
  %v3472 = vsel %vm1265, %v3465, 0
  %v3475 = vsel %vm1265, %v3466, 0
  %3477 = vmatprep.subr.mxu0 0.0
  %3478 = vmatpush1.xpose.msra.mxu0 0.0
  %3479 = vmatprep.subr.mxu0 0.0
  %3480 = vmatpush1.xpose.msra.mxu0 0.0
  %3481 = vmatprep.subr.mxu0 0.0
  %3482 = vmatpush1.xpose.msra.mxu0 0.0
  %3483 = vmatprep.subr.mxu0 0.0
  %3484 = vmatpush1.xpose.msra.mxu0 0.0
  %3485 = vmatprep.subr.mxu0 0.0
  %3486 = vmatpush1.xpose.msra.mxu0 0.0
  %3487 = vmatprep.subr.mxu0 0.0
  %3488 = vmatpush1.xpose.msra.mxu0 0.0
  %3489 = vmatprep.subr.mxu0 0.0
  %3490 = vmatpush1.xpose.msra.mxu0 0.0
  %3491 = vmatprep.subr.mxu0 0.0
  %3492 = vmatpush1.xpose.msra.mxu0 0.0
  %3493 = vmatprep.subr.mxu0 0.0
  %3494 = vmatpush1.xpose.msra.mxu0 0.0
  %3495 = vmatprep.subr.mxu0 0.0
  %3496 = vmatpush1.xpose.msra.mxu0 0.0
  %3497 = vmatprep.subr.mxu0 0.0
  %3498 = vmatpush1.xpose.msra.mxu0 0.0
  %3499 = vmatprep.subr.mxu0 0.0
  %3500 = vmatpush1.xpose.msra.mxu0 0.0
  %3501 = vmatprep.subr.mxu0 0.0
  %3502 = vmatpush1.xpose.msra.mxu0 0.0
  %3503 = vmatprep.subr.mxu0 0.0
  %3504 = vmatpush1.xpose.msra.mxu0 0.0
  %3505 = vmatprep.subr.mxu0 0.0
  %3506 = vmatpush1.xpose.msra.mxu0 %v3475
  %3507 = vmatprep.subr.mxu0 0.0
  %3508 = vmatpush1.xpose.msra.mxu0 %v3472
  %3509 = vmatprep.subr.mxu0 0.0
  %3510 = vmatpush2.xpose.msra.mxu0 0.0
  %3511 = vmatprep.subr.mxu0 0.0
  %3512 = vmatpush2.xpose.msra.mxu0 0.0
  %3513 = vmatprep.subr.mxu0 0.0
  %3514 = vmatpush2.xpose.msra.mxu0 0.0
  %3515 = vmatprep.subr.mxu0 0.0
  %3516 = vmatpush2.xpose.msra.mxu0 0.0
  %3517 = vmatprep.subr.mxu0 0.0
  %3518 = vmatpush2.xpose.msra.mxu0 0.0
  %3519 = vmatprep.subr.mxu0 0.0
  %3520 = vmatpush2.xpose.msra.mxu0 0.0
  %3521 = vmatprep.subr.mxu0 0.0
  %3522 = vmatpush2.xpose.msra.mxu0 0.0
  %3523 = vmatprep.subr.mxu0 0.0
  %3524 = vmatpush2.xpose.msra.mxu0 0.0
  %3525 = vmatprep.subr.mxu0 0.0
  %3526 = vmatpush2.xpose.msra.mxu0 0.0
  %3527 = vmatprep.subr.mxu0 0.0
  %3528 = vmatpush2.xpose.msra.mxu0 0.0
  %3529 = vmatprep.subr.mxu0 0.0
  %3530 = vmatpush2.xpose.msra.mxu0 0.0
  %3531 = vmatprep.subr.mxu0 0.0
  %3532 = vmatpush2.xpose.msra.mxu0 0.0
  %3533 = vmatprep.subr.mxu0 0.0
  %3534 = vmatpush2.xpose.msra.mxu0 0.0
  %3535 = vmatprep.subr.mxu0 0.0
  %3536 = vmatpush2.xpose.msra.mxu0 0.0
  %3537 = vmatprep.subr.mxu0 0.0
  %3538 = vmatpush2.xpose.msra.mxu0 0.0
  %3539 = vmatprep.subr.mxu0 0.0
  %3540 = vmatpush2.xpose.msra.mxu0 0.0
  %3541 = vmatprep.mubr.f32.mxu0 0.0
  %3542 = vmatmul.mubr.f32.gmra.mxu0 %v1702
  %v3543 = vpop.f32.mrf.mxu0
  %v3544 = vadd.f32 %v3470, %v3543
  %v3545 = vpop.f32.mrf.mxu0
  %3546 = vmatprep.mubr.f32.mxu0 0.0
  %3547 = vmatmul.mubr.f32.gmra.mxu0 %v1705
  %v3548 = vpop.f32.mrf.mxu0
  %v3549 = vadd.f32 %v3470, %v3548
  %v3550 = vpop.f32.mrf.mxu0
  %3551 = vmatprep.mubr.f32.mxu0 0.0
  %3552 = vmatmul.mubr.f32.gmra.mxu0 %v1708
  %v3553 = vpop.f32.mrf.mxu0
  %v3554 = vadd.f32 %v3470, %v3553
  %v3555 = vpop.f32.mrf.mxu0
  %3556 = vmatprep.mubr.f32.mxu0 0.0
  %3557 = vmatmul.mubr.f32.gmra.mxu0 %v1711
  %v3558 = vpop.f32.mrf.mxu0
  %v3559 = vadd.f32 %v3470, %v3558
  %v3560 = vpop.f32.mrf.mxu0
  %3561 = vdwg.mxu0
  %v3562 = vmul.f32 %v3348, 0.25
  %v3563 = vmul.f32 %v3353, 0.25
  %v3564 = vmul.f32 %v3358, 0.25
  %v3565 = vmul.f32 %v3363, 0.25
  %v3567 = vsel %vm2002, %v3562, 0
  %v3570 = vsel %vm2002, %v3563, 0
  %v3573 = vsel %vm2002, %v3446, 0
  %v3576 = vsel %vm2002, %v3451, 0
  %3578 = vmatprep.subr.mxu0 0.0
  %3579 = vmatpush1.xpose.msra.mxu0 0.0
  %3580 = vmatprep.subr.mxu0 0.0
  %3581 = vmatpush1.xpose.msra.mxu0 0.0
  %3582 = vmatprep.subr.mxu0 0.0
  %3583 = vmatpush1.xpose.msra.mxu0 0.0
  %3584 = vmatprep.subr.mxu0 0.0
  %3585 = vmatpush1.xpose.msra.mxu0 0.0
  %3586 = vmatprep.subr.mxu0 0.0
  %3587 = vmatpush1.xpose.msra.mxu0 0.0
  %3588 = vmatprep.subr.mxu0 0.0
  %3589 = vmatpush1.xpose.msra.mxu0 0.0
  %3590 = vmatprep.subr.mxu0 0.0
  %3591 = vmatpush1.xpose.msra.mxu0 0.0
  %3592 = vmatprep.subr.mxu0 0.0
  %3593 = vmatpush1.xpose.msra.mxu0 0.0
  %3594 = vmatprep.subr.mxu0 0.0
  %3595 = vmatpush1.xpose.msra.mxu0 0.0
  %3596 = vmatprep.subr.mxu0 0.0
  %3597 = vmatpush1.xpose.msra.mxu0 0.0
  %3598 = vmatprep.subr.mxu0 0.0
  %3599 = vmatpush1.xpose.msra.mxu0 0.0
  %3600 = vmatprep.subr.mxu0 0.0
  %3601 = vmatpush1.xpose.msra.mxu0 0.0
  %3602 = vmatprep.subr.mxu0 0.0
  %3603 = vmatpush1.xpose.msra.mxu0 0.0
  %3604 = vmatprep.subr.mxu0 0.0
  %3605 = vmatpush1.xpose.msra.mxu0 0.0
  %3606 = vmatprep.subr.mxu0 0.0
  %3607 = vmatpush1.xpose.msra.mxu0 %v3576
  %3608 = vmatprep.subr.mxu0 0.0
  %3609 = vmatpush1.xpose.msra.mxu0 %v3573
  %3610 = vmatprep.subr.mxu0 0.0
  %3611 = vmatpush2.xpose.msra.mxu0 0.0
  %3612 = vmatprep.subr.mxu0 0.0
  %3613 = vmatpush2.xpose.msra.mxu0 0.0
  %3614 = vmatprep.subr.mxu0 0.0
  %3615 = vmatpush2.xpose.msra.mxu0 0.0
  %3616 = vmatprep.subr.mxu0 0.0
  %3617 = vmatpush2.xpose.msra.mxu0 0.0
  %3618 = vmatprep.subr.mxu0 0.0
  %3619 = vmatpush2.xpose.msra.mxu0 0.0
  %3620 = vmatprep.subr.mxu0 0.0
  %3621 = vmatpush2.xpose.msra.mxu0 0.0
  %3622 = vmatprep.subr.mxu0 0.0
  %3623 = vmatpush2.xpose.msra.mxu0 0.0
  %3624 = vmatprep.subr.mxu0 0.0
  %3625 = vmatpush2.xpose.msra.mxu0 0.0
  %3626 = vmatprep.subr.mxu0 0.0
  %3627 = vmatpush2.xpose.msra.mxu0 0.0
  %3628 = vmatprep.subr.mxu0 0.0
  %3629 = vmatpush2.xpose.msra.mxu0 0.0
  %3630 = vmatprep.subr.mxu0 0.0
  %3631 = vmatpush2.xpose.msra.mxu0 0.0
  %3632 = vmatprep.subr.mxu0 0.0
  %3633 = vmatpush2.xpose.msra.mxu0 0.0
  %3634 = vmatprep.subr.mxu0 0.0
  %3635 = vmatpush2.xpose.msra.mxu0 0.0
  %3636 = vmatprep.subr.mxu0 0.0
  %3637 = vmatpush2.xpose.msra.mxu0 0.0
  %3638 = vmatprep.subr.mxu0 0.0
  %3639 = vmatpush2.xpose.msra.mxu0 0.0
  %3640 = vmatprep.subr.mxu0 0.0
  %3641 = vmatpush2.xpose.msra.mxu0 0.0
  %3642 = vmatprep.mubr.f32.mxu0 0.0
  %3643 = vmatmul.mubr.f32.gmra.mxu0 %v3567
  %v3644 = vpop.f32.mrf.mxu0
  %v3645 = vadd.f32 0.0, %v3644
  %v3646 = vpop.f32.mrf.mxu0
  %3647 = vmatprep.mubr.f32.mxu0 0.0
  %3648 = vmatmul.mubr.f32.gmra.mxu0 %v3570
  %v3649 = vpop.f32.mrf.mxu0
  %v3650 = vadd.f32 0.0, %v3649
  %v3651 = vpop.f32.mrf.mxu0
  %3652 = vdwg.mxu0
  %v3654 = vsel %vm2002, %v3564, 0
  %v3657 = vsel %vm2002, %v3565, 0
  %v3660 = vsel %vm2002, %v3456, 0
  %v3663 = vsel %vm2002, %v3461, 0
  %3665 = vmatprep.subr.mxu0 0.0
  %3666 = vmatpush1.xpose.msra.mxu0 0.0
  %3667 = vmatprep.subr.mxu0 0.0
  %3668 = vmatpush1.xpose.msra.mxu0 0.0
  %3669 = vmatprep.subr.mxu0 0.0
  %3670 = vmatpush1.xpose.msra.mxu0 0.0
  %3671 = vmatprep.subr.mxu0 0.0
  %3672 = vmatpush1.xpose.msra.mxu0 0.0
  %3673 = vmatprep.subr.mxu0 0.0
  %3674 = vmatpush1.xpose.msra.mxu0 0.0
  %3675 = vmatprep.subr.mxu0 0.0
  %3676 = vmatpush1.xpose.msra.mxu0 0.0
  %3677 = vmatprep.subr.mxu0 0.0
  %3678 = vmatpush1.xpose.msra.mxu0 0.0
  %3679 = vmatprep.subr.mxu0 0.0
  %3680 = vmatpush1.xpose.msra.mxu0 0.0
  %3681 = vmatprep.subr.mxu0 0.0
  %3682 = vmatpush1.xpose.msra.mxu0 0.0
  %3683 = vmatprep.subr.mxu0 0.0
  %3684 = vmatpush1.xpose.msra.mxu0 0.0
  %3685 = vmatprep.subr.mxu0 0.0
  %3686 = vmatpush1.xpose.msra.mxu0 0.0
  %3687 = vmatprep.subr.mxu0 0.0
  %3688 = vmatpush1.xpose.msra.mxu0 0.0
  %3689 = vmatprep.subr.mxu0 0.0
  %3690 = vmatpush1.xpose.msra.mxu0 0.0
  %3691 = vmatprep.subr.mxu0 0.0
  %3692 = vmatpush1.xpose.msra.mxu0 0.0
  %3693 = vmatprep.subr.mxu0 0.0
  %3694 = vmatpush1.xpose.msra.mxu0 %v3663
  %3695 = vmatprep.subr.mxu0 0.0
  %3696 = vmatpush1.xpose.msra.mxu0 %v3660
  %3697 = vmatprep.subr.mxu0 0.0
  %3698 = vmatpush2.xpose.msra.mxu0 0.0
  %3699 = vmatprep.subr.mxu0 0.0
  %3700 = vmatpush2.xpose.msra.mxu0 0.0
  %3701 = vmatprep.subr.mxu0 0.0
  %3702 = vmatpush2.xpose.msra.mxu0 0.0
  %3703 = vmatprep.subr.mxu0 0.0
  %3704 = vmatpush2.xpose.msra.mxu0 0.0
  %3705 = vmatprep.subr.mxu0 0.0
  %3706 = vmatpush2.xpose.msra.mxu0 0.0
  %3707 = vmatprep.subr.mxu0 0.0
  %3708 = vmatpush2.xpose.msra.mxu0 0.0
  %3709 = vmatprep.subr.mxu0 0.0
  %3710 = vmatpush2.xpose.msra.mxu0 0.0
  %3711 = vmatprep.subr.mxu0 0.0
  %3712 = vmatpush2.xpose.msra.mxu0 0.0
  %3713 = vmatprep.subr.mxu0 0.0
  %3714 = vmatpush2.xpose.msra.mxu0 0.0
  %3715 = vmatprep.subr.mxu0 0.0
  %3716 = vmatpush2.xpose.msra.mxu0 0.0
  %3717 = vmatprep.subr.mxu0 0.0
  %3718 = vmatpush2.xpose.msra.mxu0 0.0
  %3719 = vmatprep.subr.mxu0 0.0
  %3720 = vmatpush2.xpose.msra.mxu0 0.0
  %3721 = vmatprep.subr.mxu0 0.0
  %3722 = vmatpush2.xpose.msra.mxu0 0.0
  %3723 = vmatprep.subr.mxu0 0.0
  %3724 = vmatpush2.xpose.msra.mxu0 0.0
  %3725 = vmatprep.subr.mxu0 0.0
  %3726 = vmatpush2.xpose.msra.mxu0 0.0
  %3727 = vmatprep.subr.mxu0 0.0
  %3728 = vmatpush2.xpose.msra.mxu0 0.0
  %3729 = vmatprep.mubr.f32.mxu0 0.0
  %3730 = vmatmul.mubr.f32.gmra.mxu0 %v3654
  %v3731 = vpop.f32.mrf.mxu0
  %v3732 = vadd.f32 0.0, %v3731
  %v3733 = vpop.f32.mrf.mxu0
  %3734 = vmatprep.mubr.f32.mxu0 0.0
  %3735 = vmatmul.mubr.f32.gmra.mxu0 %v3657
  %v3736 = vpop.f32.mrf.mxu0
  %v3737 = vadd.f32 0.0, %v3736
  %v3738 = vpop.f32.mrf.mxu0
  %3739 = vdwg.mxu0
  %v3740 = vsel %vm1692, %v3645, -1e+30
  %v3741 = vsel %vm1692, %v3650, -1e+30
  %v3742 = vsel %vm1692, %v3732, -1e+30
  %v3743 = vsel %vm1692, %v3737, -1e+30
  %v3744 = vsel %vm2002, %v3740, -inf
  %3745 = vmax.xlane.f32.xlu0 %v3744
  %v3746 = vpop.xlane.xlu0 %3745
  %v3747 = vsel %vm2002, %v3741, -inf
  %3748 = vmax.xlane.f32.xlu0 %v3747
  %v3749 = vpop.xlane.xlu0 %3748
  %v3750 = vsel %vm2002, %v3742, -inf
  %3751 = vmax.xlane.f32.xlu0 %v3750
  %v3752 = vpop.xlane.xlu0 %3751
  %v3753 = vsel %vm2002, %v3743, -inf
  %3754 = vmax.xlane.f32.xlu0 %v3753
  %v3755 = vpop.xlane.xlu0 %3754
  %v3756 = vsub.f32 %v3740, %v3746
  %v3757 = vsub.f32 %v3741, %v3749
  %v3758 = vsub.f32 %v3742, %v3752
  %v3759 = vsub.f32 %v3743, %v3755
  %v3760 = vmul.f32 %v3756, 1.442695
  %v3761 = vpow.pop %v3760
  %v3762 = vmul.f32 %v3757, 1.442695
  %v3763 = vpow.pop %v3762
  %v3764 = vmul.f32 %v3758, 1.442695
  %v3765 = vpow.pop %v3764
  %v3766 = vmul.f32 %v3759, 1.442695
  %v3767 = vpow.pop %v3766
  %v3768 = vsel %vm2002, %v3761, 0.0
  %3769 = vadd.xlane.f32.xlu0 %v3768
  %v3770 = vpop.xlane.xlu0 %3769
  %v3771 = vsel %vm2002, %v3763, 0.0
  %3772 = vadd.xlane.f32.xlu0 %v3771
  %v3773 = vpop.xlane.xlu0 %3772
  %v3774 = vsel %vm2002, %v3765, 0.0
  %3775 = vadd.xlane.f32.xlu0 %v3774
  %v3776 = vpop.xlane.xlu0 %3775
  %v3777 = vsel %vm2002, %v3767, 0.0
  %3778 = vadd.xlane.f32.xlu0 %v3777
  %v3779 = vpop.xlane.xlu0 %3778
  %v3780 = vrcp.pop %v3770
  %v3781 = vrcp.pop %v3773
  %v3782 = vrcp.pop %v3776
  %v3783 = vrcp.pop %v3779
  %v3784 = vmul.f32 %v3761, %v3780
  %v3785 = vmul.f32 %v3763, %v3781
  %v3786 = vmul.f32 %v3765, %v3782
  %v3787 = vmul.f32 %v3767, %v3783
  %v3789 = vsel %vm2002, %v3784, 0
  %v3792 = vsel %vm2002, %v3785, 0
  %3794 = vmatprep.subr.mxu0 0.0
  %3795 = vmatpush1.msra.mxu0 0.0
  %3796 = vmatprep.subr.mxu0 0.0
  %3797 = vmatpush1.msra.mxu0 0.0
  %3798 = vmatprep.subr.mxu0 0.0
  %3799 = vmatpush1.msra.mxu0 0.0
  %3800 = vmatprep.subr.mxu0 0.0
  %3801 = vmatpush1.msra.mxu0 0.0
  %3802 = vmatprep.subr.mxu0 0.0
  %3803 = vmatpush1.msra.mxu0 0.0
  %3804 = vmatprep.subr.mxu0 0.0
  %3805 = vmatpush1.msra.mxu0 0.0
  %3806 = vmatprep.subr.mxu0 0.0
  %3807 = vmatpush1.msra.mxu0 0.0
  %3808 = vmatprep.subr.mxu0 0.0
  %3809 = vmatpush1.msra.mxu0 0.0
  %3810 = vmatprep.subr.mxu0 0.0
  %3811 = vmatpush1.msra.mxu0 0.0
  %3812 = vmatprep.subr.mxu0 0.0
  %3813 = vmatpush1.msra.mxu0 0.0
  %3814 = vmatprep.subr.mxu0 0.0
  %3815 = vmatpush1.msra.mxu0 0.0
  %3816 = vmatprep.subr.mxu0 0.0
  %3817 = vmatpush1.msra.mxu0 0.0
  %3818 = vmatprep.subr.mxu0 0.0
  %3819 = vmatpush1.msra.mxu0 0.0
  %3820 = vmatprep.subr.mxu0 0.0
  %3821 = vmatpush1.msra.mxu0 0.0
  %3822 = vmatprep.subr.mxu0 0.0
  %3823 = vmatpush1.msra.mxu0 %v3549
  %3824 = vmatprep.subr.mxu0 0.0
  %3825 = vmatpush1.msra.mxu0 %v3544
  %3826 = vmatprep.subr.mxu0 0.0
  %3827 = vmatpush2.msra.mxu0 0.0
  %3828 = vmatprep.subr.mxu0 0.0
  %3829 = vmatpush2.msra.mxu0 0.0
  %3830 = vmatprep.subr.mxu0 0.0
  %3831 = vmatpush2.msra.mxu0 0.0
  %3832 = vmatprep.subr.mxu0 0.0
  %3833 = vmatpush2.msra.mxu0 0.0
  %3834 = vmatprep.subr.mxu0 0.0
  %3835 = vmatpush2.msra.mxu0 0.0
  %3836 = vmatprep.subr.mxu0 0.0
  %3837 = vmatpush2.msra.mxu0 0.0
  %3838 = vmatprep.subr.mxu0 0.0
  %3839 = vmatpush2.msra.mxu0 0.0
  %3840 = vmatprep.subr.mxu0 0.0
  %3841 = vmatpush2.msra.mxu0 0.0
  %3842 = vmatprep.subr.mxu0 0.0
  %3843 = vmatpush2.msra.mxu0 0.0
  %3844 = vmatprep.subr.mxu0 0.0
  %3845 = vmatpush2.msra.mxu0 0.0
  %3846 = vmatprep.subr.mxu0 0.0
  %3847 = vmatpush2.msra.mxu0 0.0
  %3848 = vmatprep.subr.mxu0 0.0
  %3849 = vmatpush2.msra.mxu0 0.0
  %3850 = vmatprep.subr.mxu0 0.0
  %3851 = vmatpush2.msra.mxu0 0.0
  %3852 = vmatprep.subr.mxu0 0.0
  %3853 = vmatpush2.msra.mxu0 0.0
  %3854 = vmatprep.subr.mxu0 0.0
  %3855 = vmatpush2.msra.mxu0 0.0
  %3856 = vmatprep.subr.mxu0 0.0
  %3857 = vmatpush2.msra.mxu0 0.0
  %3858 = vmatprep.mubr.f32.mxu0 0.0
  %3859 = vmatmul.mubr.f32.gmra.mxu0 %v3789
  %v3860 = vpop.f32.mrf.mxu0
  %v3861 = vadd.f32 0.0, %v3860
  %v3862 = vpop.f32.mrf.mxu0
  %3863 = vmatprep.mubr.f32.mxu0 0.0
  %3864 = vmatmul.mubr.f32.gmra.mxu0 %v3792
  %v3865 = vpop.f32.mrf.mxu0
  %v3866 = vadd.f32 0.0, %v3865
  %v3867 = vpop.f32.mrf.mxu0
  %3868 = vdwg.mxu0
  %v3870 = vsel %vm2002, %v3786, 0
  %v3873 = vsel %vm2002, %v3787, 0
  %3875 = vmatprep.subr.mxu0 0.0
  %3876 = vmatpush1.msra.mxu0 0.0
  %3877 = vmatprep.subr.mxu0 0.0
  %3878 = vmatpush1.msra.mxu0 0.0
  %3879 = vmatprep.subr.mxu0 0.0
  %3880 = vmatpush1.msra.mxu0 0.0
  %3881 = vmatprep.subr.mxu0 0.0
  %3882 = vmatpush1.msra.mxu0 0.0
  %3883 = vmatprep.subr.mxu0 0.0
  %3884 = vmatpush1.msra.mxu0 0.0
  %3885 = vmatprep.subr.mxu0 0.0
  %3886 = vmatpush1.msra.mxu0 0.0
  %3887 = vmatprep.subr.mxu0 0.0
  %3888 = vmatpush1.msra.mxu0 0.0
  %3889 = vmatprep.subr.mxu0 0.0
  %3890 = vmatpush1.msra.mxu0 0.0
  %3891 = vmatprep.subr.mxu0 0.0
  %3892 = vmatpush1.msra.mxu0 0.0
  %3893 = vmatprep.subr.mxu0 0.0
  %3894 = vmatpush1.msra.mxu0 0.0
  %3895 = vmatprep.subr.mxu0 0.0
  %3896 = vmatpush1.msra.mxu0 0.0
  %3897 = vmatprep.subr.mxu0 0.0
  %3898 = vmatpush1.msra.mxu0 0.0
  %3899 = vmatprep.subr.mxu0 0.0
  %3900 = vmatpush1.msra.mxu0 0.0
  %3901 = vmatprep.subr.mxu0 0.0
  %3902 = vmatpush1.msra.mxu0 0.0
  %3903 = vmatprep.subr.mxu0 0.0
  %3904 = vmatpush1.msra.mxu0 %v3559
  %3905 = vmatprep.subr.mxu0 0.0
  %3906 = vmatpush1.msra.mxu0 %v3554
  %3907 = vmatprep.subr.mxu0 0.0
  %3908 = vmatpush2.msra.mxu0 0.0
  %3909 = vmatprep.subr.mxu0 0.0
  %3910 = vmatpush2.msra.mxu0 0.0
  %3911 = vmatprep.subr.mxu0 0.0
  %3912 = vmatpush2.msra.mxu0 0.0
  %3913 = vmatprep.subr.mxu0 0.0
  %3914 = vmatpush2.msra.mxu0 0.0
  %3915 = vmatprep.subr.mxu0 0.0
  %3916 = vmatpush2.msra.mxu0 0.0
  %3917 = vmatprep.subr.mxu0 0.0
  %3918 = vmatpush2.msra.mxu0 0.0
  %3919 = vmatprep.subr.mxu0 0.0
  %3920 = vmatpush2.msra.mxu0 0.0
  %3921 = vmatprep.subr.mxu0 0.0
  %3922 = vmatpush2.msra.mxu0 0.0
  %3923 = vmatprep.subr.mxu0 0.0
  %3924 = vmatpush2.msra.mxu0 0.0
  %3925 = vmatprep.subr.mxu0 0.0
  %3926 = vmatpush2.msra.mxu0 0.0
  %3927 = vmatprep.subr.mxu0 0.0
  %3928 = vmatpush2.msra.mxu0 0.0
  %3929 = vmatprep.subr.mxu0 0.0
  %3930 = vmatpush2.msra.mxu0 0.0
  %3931 = vmatprep.subr.mxu0 0.0
  %3932 = vmatpush2.msra.mxu0 0.0
  %3933 = vmatprep.subr.mxu0 0.0
  %3934 = vmatpush2.msra.mxu0 0.0
  %3935 = vmatprep.subr.mxu0 0.0
  %3936 = vmatpush2.msra.mxu0 0.0
  %3937 = vmatprep.subr.mxu0 0.0
  %3938 = vmatpush2.msra.mxu0 0.0
  %3939 = vmatprep.mubr.f32.mxu0 0.0
  %3940 = vmatmul.mubr.f32.gmra.mxu0 %v3870
  %v3941 = vpop.f32.mrf.mxu0
  %v3942 = vadd.f32 0.0, %v3941
  %v3943 = vpop.f32.mrf.mxu0
  %3944 = vmatprep.mubr.f32.mxu0 0.0
  %3945 = vmatmul.mubr.f32.gmra.mxu0 %v3873
  %v3946 = vpop.f32.mrf.mxu0
  %v3947 = vadd.f32 0.0, %v3946
  %v3948 = vpop.f32.mrf.mxu0
  %3949 = vdwg.mxu0
  %s3950 = scalar_lea.vmem %s8, 32
  %v3951 = vld [vmem:[%s3950] sm:$0xff]
  %v3952 = vld [vmem:[%s3950 + $0x8] sm:$0xff]
  %v3954 = vsel %vm2002, %v3861, 0
  %v3957 = vsel %vm2002, %v3866, 0
  %v3960 = vsel %vm2002, %v3942, 0
  %v3963 = vsel %vm2002, %v3947, 0
  %3965 = vmatprep.subr.mxu0 0.0
  %3966 = vmatpush1.msra.mxu0 0.0
  %3967 = vmatprep.subr.mxu0 0.0
  %3968 = vmatpush1.msra.mxu0 0.0
  %3969 = vmatprep.subr.mxu0 0.0
  %3970 = vmatpush1.msra.mxu0 0.0
  %3971 = vmatprep.subr.mxu0 0.0
  %3972 = vmatpush1.msra.mxu0 0.0
  %3973 = vmatprep.subr.mxu0 0.0
  %3974 = vmatpush1.msra.mxu0 0.0
  %3975 = vmatprep.subr.mxu0 0.0
  %3976 = vmatpush1.msra.mxu0 0.0
  %3977 = vmatprep.subr.mxu0 0.0
  %3978 = vmatpush1.msra.mxu0 0.0
  %3979 = vmatprep.subr.mxu0 0.0
  %3980 = vmatpush1.msra.mxu0 0.0
  %3981 = vmatprep.subr.mxu0 0.0
  %3982 = vmatpush1.msra.mxu0 0.0
  %3983 = vmatprep.subr.mxu0 0.0
  %3984 = vmatpush1.msra.mxu0 0.0
  %3985 = vmatprep.subr.mxu0 0.0
  %3986 = vmatpush1.msra.mxu0 0.0
  %3987 = vmatprep.subr.mxu0 0.0
  %3988 = vmatpush1.msra.mxu0 0.0
  %3989 = vmatprep.subr.mxu0 0.0
  %3990 = vmatpush1.msra.mxu0 0.0
  %3991 = vmatprep.subr.mxu0 0.0
  %3992 = vmatpush1.msra.mxu0 0.0
  %3993 = vmatprep.subr.mxu0 0.0
  %3994 = vmatpush1.msra.mxu0 %v3952
  %3995 = vmatprep.subr.mxu0 0.0
  %3996 = vmatpush1.msra.mxu0 %v3951
  %3997 = vmatprep.subr.mxu0 0.0
  %3998 = vmatpush2.msra.mxu0 0.0
  %3999 = vmatprep.subr.mxu0 0.0
  %4000 = vmatpush2.msra.mxu0 0.0
  %4001 = vmatprep.subr.mxu0 0.0
  %4002 = vmatpush2.msra.mxu0 0.0
  %4003 = vmatprep.subr.mxu0 0.0
  %4004 = vmatpush2.msra.mxu0 0.0
  %4005 = vmatprep.subr.mxu0 0.0
  %4006 = vmatpush2.msra.mxu0 0.0
  %4007 = vmatprep.subr.mxu0 0.0
  %4008 = vmatpush2.msra.mxu0 0.0
  %4009 = vmatprep.subr.mxu0 0.0
  %4010 = vmatpush2.msra.mxu0 0.0
  %4011 = vmatprep.subr.mxu0 0.0
  %4012 = vmatpush2.msra.mxu0 0.0
  %4013 = vmatprep.subr.mxu0 0.0
  %4014 = vmatpush2.msra.mxu0 0.0
  %4015 = vmatprep.subr.mxu0 0.0
  %4016 = vmatpush2.msra.mxu0 0.0
  %4017 = vmatprep.subr.mxu0 0.0
  %4018 = vmatpush2.msra.mxu0 0.0
  %4019 = vmatprep.subr.mxu0 0.0
  %4020 = vmatpush2.msra.mxu0 0.0
  %4021 = vmatprep.subr.mxu0 0.0
  %4022 = vmatpush2.msra.mxu0 0.0
  %4023 = vmatprep.subr.mxu0 0.0
  %4024 = vmatpush2.msra.mxu0 0.0
  %4025 = vmatprep.subr.mxu0 0.0
  %4026 = vmatpush2.msra.mxu0 0.0
  %4027 = vmatprep.subr.mxu0 0.0
  %4028 = vmatpush2.msra.mxu0 0.0
  %4029 = vmatprep.mubr.f32.mxu0 0.0
  %4030 = vmatmul.mubr.f32.gmra.mxu0 %v3954
  %v4031 = vpop.f32.mrf.mxu0
  %v4032 = vadd.f32 0.0, %v4031
  %v4033 = vpop.f32.mrf.mxu0
  %4034 = vmatprep.mubr.f32.mxu0 0.0
  %4035 = vmatmul.mubr.f32.gmra.mxu0 %v3957
  %v4036 = vpop.f32.mrf.mxu0
  %v4037 = vadd.f32 0.0, %v4036
  %v4038 = vpop.f32.mrf.mxu0
  %4039 = vmatprep.mubr.f32.mxu0 0.0
  %4040 = vmatmul.mubr.f32.gmra.mxu0 %v3960
  %v4041 = vpop.f32.mrf.mxu0
  %v4042 = vadd.f32 0.0, %v4041
  %v4043 = vpop.f32.mrf.mxu0
  %4044 = vmatprep.mubr.f32.mxu0 0.0
  %4045 = vmatmul.mubr.f32.gmra.mxu0 %v3963
  %v4046 = vpop.f32.mrf.mxu0
  %v4047 = vadd.f32 0.0, %v4046
  %v4048 = vpop.f32.mrf.mxu0
  %4049 = vdwg.mxu0
  %v4050 = vadd.f32 %v3250, %v4032
  %v4051 = vadd.f32 %v3255, %v4037
  %v4052 = vadd.f32 %v3260, %v4042
  %v4053 = vadd.f32 %v3265, %v4047
  %s4054 = scalar_lea.vmem %s5, 48
  %v4055 = vld [vmem:[%s4054] sm:$0xff]
  %v4056 = vld [vmem:[%s4054 + $0x8] sm:$0xff]
  %v4057 = vlaneseq
  %v4058 = vshrl.u32 %v4057, 7
  %v4059 = vsub.s32 3, %v4058
  %v4060 = vrot.slane %v1693, %v4059
  %v4062 = vsel %vm1265, %v4055, 0
  %v4065 = vsel %vm1265, %v4056, 0
  %4067 = vmatprep.subr.mxu0 0.0
  %4068 = vmatpush1.xpose.msra.mxu0 0.0
  %4069 = vmatprep.subr.mxu0 0.0
  %4070 = vmatpush1.xpose.msra.mxu0 0.0
  %4071 = vmatprep.subr.mxu0 0.0
  %4072 = vmatpush1.xpose.msra.mxu0 0.0
  %4073 = vmatprep.subr.mxu0 0.0
  %4074 = vmatpush1.xpose.msra.mxu0 0.0
  %4075 = vmatprep.subr.mxu0 0.0
  %4076 = vmatpush1.xpose.msra.mxu0 0.0
  %4077 = vmatprep.subr.mxu0 0.0
  %4078 = vmatpush1.xpose.msra.mxu0 0.0
  %4079 = vmatprep.subr.mxu0 0.0
  %4080 = vmatpush1.xpose.msra.mxu0 0.0
  %4081 = vmatprep.subr.mxu0 0.0
  %4082 = vmatpush1.xpose.msra.mxu0 0.0
  %4083 = vmatprep.subr.mxu0 0.0
  %4084 = vmatpush1.xpose.msra.mxu0 0.0
  %4085 = vmatprep.subr.mxu0 0.0
  %4086 = vmatpush1.xpose.msra.mxu0 0.0
  %4087 = vmatprep.subr.mxu0 0.0
  %4088 = vmatpush1.xpose.msra.mxu0 0.0
  %4089 = vmatprep.subr.mxu0 0.0
  %4090 = vmatpush1.xpose.msra.mxu0 0.0
  %4091 = vmatprep.subr.mxu0 0.0
  %4092 = vmatpush1.xpose.msra.mxu0 0.0
  %4093 = vmatprep.subr.mxu0 0.0
  %4094 = vmatpush1.xpose.msra.mxu0 0.0
  %4095 = vmatprep.subr.mxu0 0.0
  %4096 = vmatpush1.xpose.msra.mxu0 %v4065
  %4097 = vmatprep.subr.mxu0 0.0
  %4098 = vmatpush1.xpose.msra.mxu0 %v4062
  %4099 = vmatprep.subr.mxu0 0.0
  %4100 = vmatpush2.xpose.msra.mxu0 0.0
  %4101 = vmatprep.subr.mxu0 0.0
  %4102 = vmatpush2.xpose.msra.mxu0 0.0
  %4103 = vmatprep.subr.mxu0 0.0
  %4104 = vmatpush2.xpose.msra.mxu0 0.0
  %4105 = vmatprep.subr.mxu0 0.0
  %4106 = vmatpush2.xpose.msra.mxu0 0.0
  %4107 = vmatprep.subr.mxu0 0.0
  %4108 = vmatpush2.xpose.msra.mxu0 0.0
  %4109 = vmatprep.subr.mxu0 0.0
  %4110 = vmatpush2.xpose.msra.mxu0 0.0
  %4111 = vmatprep.subr.mxu0 0.0
  %4112 = vmatpush2.xpose.msra.mxu0 0.0
  %4113 = vmatprep.subr.mxu0 0.0
  %4114 = vmatpush2.xpose.msra.mxu0 0.0
  %4115 = vmatprep.subr.mxu0 0.0
  %4116 = vmatpush2.xpose.msra.mxu0 0.0
  %4117 = vmatprep.subr.mxu0 0.0
  %4118 = vmatpush2.xpose.msra.mxu0 0.0
  %4119 = vmatprep.subr.mxu0 0.0
  %4120 = vmatpush2.xpose.msra.mxu0 0.0
  %4121 = vmatprep.subr.mxu0 0.0
  %4122 = vmatpush2.xpose.msra.mxu0 0.0
  %4123 = vmatprep.subr.mxu0 0.0
  %4124 = vmatpush2.xpose.msra.mxu0 0.0
  %4125 = vmatprep.subr.mxu0 0.0
  %4126 = vmatpush2.xpose.msra.mxu0 0.0
  %4127 = vmatprep.subr.mxu0 0.0
  %4128 = vmatpush2.xpose.msra.mxu0 0.0
  %4129 = vmatprep.subr.mxu0 0.0
  %4130 = vmatpush2.xpose.msra.mxu0 0.0
  %4131 = vmatprep.mubr.f32.mxu0 0.0
  %4132 = vmatmul.mubr.f32.gmra.mxu0 %v1702
  %v4133 = vpop.f32.mrf.mxu0
  %v4134 = vadd.f32 %v4060, %v4133
  %v4135 = vpop.f32.mrf.mxu0
  %4136 = vmatprep.mubr.f32.mxu0 0.0
  %4137 = vmatmul.mubr.f32.gmra.mxu0 %v1705
  %v4138 = vpop.f32.mrf.mxu0
  %v4139 = vadd.f32 %v4060, %v4138
  %v4140 = vpop.f32.mrf.mxu0
  %4141 = vmatprep.mubr.f32.mxu0 0.0
  %4142 = vmatmul.mubr.f32.gmra.mxu0 %v1708
  %v4143 = vpop.f32.mrf.mxu0
  %v4144 = vadd.f32 %v4060, %v4143
  %v4145 = vpop.f32.mrf.mxu0
  %4146 = vmatprep.mubr.f32.mxu0 0.0
  %4147 = vmatmul.mubr.f32.gmra.mxu0 %v1711
  %v4148 = vpop.f32.mrf.mxu0
  %v4149 = vadd.f32 %v4060, %v4148
  %v4150 = vpop.f32.mrf.mxu0
  %4151 = vdwg.mxu0
  %s4152 = scalar_lea.vmem %s6, 48
  %v4153 = vld [vmem:[%s4152] sm:$0xff]
  %v4154 = vld [vmem:[%s4152 + $0x8] sm:$0xff]
  %v4155 = vlaneseq
  %v4156 = vshrl.u32 %v4155, 7
  %v4157 = vsub.s32 7, %v4156
  %v4158 = vrot.slane %v1693, %v4157
  %v4160 = vsel %vm1265, %v4153, 0
  %v4163 = vsel %vm1265, %v4154, 0
  %4165 = vmatprep.subr.mxu0 0.0
  %4166 = vmatpush1.xpose.msra.mxu0 0.0
  %4167 = vmatprep.subr.mxu0 0.0
  %4168 = vmatpush1.xpose.msra.mxu0 0.0
  %4169 = vmatprep.subr.mxu0 0.0
  %4170 = vmatpush1.xpose.msra.mxu0 0.0
  %4171 = vmatprep.subr.mxu0 0.0
  %4172 = vmatpush1.xpose.msra.mxu0 0.0
  %4173 = vmatprep.subr.mxu0 0.0
  %4174 = vmatpush1.xpose.msra.mxu0 0.0
  %4175 = vmatprep.subr.mxu0 0.0
  %4176 = vmatpush1.xpose.msra.mxu0 0.0
  %4177 = vmatprep.subr.mxu0 0.0
  %4178 = vmatpush1.xpose.msra.mxu0 0.0
  %4179 = vmatprep.subr.mxu0 0.0
  %4180 = vmatpush1.xpose.msra.mxu0 0.0
  %4181 = vmatprep.subr.mxu0 0.0
  %4182 = vmatpush1.xpose.msra.mxu0 0.0
  %4183 = vmatprep.subr.mxu0 0.0
  %4184 = vmatpush1.xpose.msra.mxu0 0.0
  %4185 = vmatprep.subr.mxu0 0.0
  %4186 = vmatpush1.xpose.msra.mxu0 0.0
  %4187 = vmatprep.subr.mxu0 0.0
  %4188 = vmatpush1.xpose.msra.mxu0 0.0
  %4189 = vmatprep.subr.mxu0 0.0
  %4190 = vmatpush1.xpose.msra.mxu0 0.0
  %4191 = vmatprep.subr.mxu0 0.0
  %4192 = vmatpush1.xpose.msra.mxu0 0.0
  %4193 = vmatprep.subr.mxu0 0.0
  %4194 = vmatpush1.xpose.msra.mxu0 %v4163
  %4195 = vmatprep.subr.mxu0 0.0
  %4196 = vmatpush1.xpose.msra.mxu0 %v4160
  %4197 = vmatprep.subr.mxu0 0.0
  %4198 = vmatpush2.xpose.msra.mxu0 0.0
  %4199 = vmatprep.subr.mxu0 0.0
  %4200 = vmatpush2.xpose.msra.mxu0 0.0
  %4201 = vmatprep.subr.mxu0 0.0
  %4202 = vmatpush2.xpose.msra.mxu0 0.0
  %4203 = vmatprep.subr.mxu0 0.0
  %4204 = vmatpush2.xpose.msra.mxu0 0.0
  %4205 = vmatprep.subr.mxu0 0.0
  %4206 = vmatpush2.xpose.msra.mxu0 0.0
  %4207 = vmatprep.subr.mxu0 0.0
  %4208 = vmatpush2.xpose.msra.mxu0 0.0
  %4209 = vmatprep.subr.mxu0 0.0
  %4210 = vmatpush2.xpose.msra.mxu0 0.0
  %4211 = vmatprep.subr.mxu0 0.0
  %4212 = vmatpush2.xpose.msra.mxu0 0.0
  %4213 = vmatprep.subr.mxu0 0.0
  %4214 = vmatpush2.xpose.msra.mxu0 0.0
  %4215 = vmatprep.subr.mxu0 0.0
  %4216 = vmatpush2.xpose.msra.mxu0 0.0
  %4217 = vmatprep.subr.mxu0 0.0
  %4218 = vmatpush2.xpose.msra.mxu0 0.0
  %4219 = vmatprep.subr.mxu0 0.0
  %4220 = vmatpush2.xpose.msra.mxu0 0.0
  %4221 = vmatprep.subr.mxu0 0.0
  %4222 = vmatpush2.xpose.msra.mxu0 0.0
  %4223 = vmatprep.subr.mxu0 0.0
  %4224 = vmatpush2.xpose.msra.mxu0 0.0
  %4225 = vmatprep.subr.mxu0 0.0
  %4226 = vmatpush2.xpose.msra.mxu0 0.0
  %4227 = vmatprep.subr.mxu0 0.0
  %4228 = vmatpush2.xpose.msra.mxu0 0.0
  %4229 = vmatprep.mubr.f32.mxu0 0.0
  %4230 = vmatmul.mubr.f32.gmra.mxu0 %v1702
  %v4231 = vpop.f32.mrf.mxu0
  %v4232 = vadd.f32 %v4158, %v4231
  %v4233 = vpop.f32.mrf.mxu0
  %4234 = vmatprep.mubr.f32.mxu0 0.0
  %4235 = vmatmul.mubr.f32.gmra.mxu0 %v1705
  %v4236 = vpop.f32.mrf.mxu0
  %v4237 = vadd.f32 %v4158, %v4236
  %v4238 = vpop.f32.mrf.mxu0
  %4239 = vmatprep.mubr.f32.mxu0 0.0
  %4240 = vmatmul.mubr.f32.gmra.mxu0 %v1708
  %v4241 = vpop.f32.mrf.mxu0
  %v4242 = vadd.f32 %v4158, %v4241
  %v4243 = vpop.f32.mrf.mxu0
  %4244 = vmatprep.mubr.f32.mxu0 0.0
  %4245 = vmatmul.mubr.f32.gmra.mxu0 %v1711
  %v4246 = vpop.f32.mrf.mxu0
  %v4247 = vadd.f32 %v4158, %v4246
  %v4248 = vpop.f32.mrf.mxu0
  %4249 = vdwg.mxu0
  %s4250 = scalar_lea.vmem %s7, 48
  %v4251 = vld [vmem:[%s4250] sm:$0xff]
  %v4252 = vld [vmem:[%s4250 + $0x8] sm:$0xff]
  %v4253 = vlaneseq
  %v4254 = vshrl.u32 %v4253, 7
  %v4255 = vsub.s32 3, %v4254
  %v4256 = vrot.slane %v1694, %v4255
  %v4258 = vsel %vm1265, %v4251, 0
  %v4261 = vsel %vm1265, %v4252, 0
  %4263 = vmatprep.subr.mxu0 0.0
  %4264 = vmatpush1.xpose.msra.mxu0 0.0
  %4265 = vmatprep.subr.mxu0 0.0
  %4266 = vmatpush1.xpose.msra.mxu0 0.0
  %4267 = vmatprep.subr.mxu0 0.0
  %4268 = vmatpush1.xpose.msra.mxu0 0.0
  %4269 = vmatprep.subr.mxu0 0.0
  %4270 = vmatpush1.xpose.msra.mxu0 0.0
  %4271 = vmatprep.subr.mxu0 0.0
  %4272 = vmatpush1.xpose.msra.mxu0 0.0
  %4273 = vmatprep.subr.mxu0 0.0
  %4274 = vmatpush1.xpose.msra.mxu0 0.0
  %4275 = vmatprep.subr.mxu0 0.0
  %4276 = vmatpush1.xpose.msra.mxu0 0.0
  %4277 = vmatprep.subr.mxu0 0.0
  %4278 = vmatpush1.xpose.msra.mxu0 0.0
  %4279 = vmatprep.subr.mxu0 0.0
  %4280 = vmatpush1.xpose.msra.mxu0 0.0
  %4281 = vmatprep.subr.mxu0 0.0
  %4282 = vmatpush1.xpose.msra.mxu0 0.0
  %4283 = vmatprep.subr.mxu0 0.0
  %4284 = vmatpush1.xpose.msra.mxu0 0.0
  %4285 = vmatprep.subr.mxu0 0.0
  %4286 = vmatpush1.xpose.msra.mxu0 0.0
  %4287 = vmatprep.subr.mxu0 0.0
  %4288 = vmatpush1.xpose.msra.mxu0 0.0
  %4289 = vmatprep.subr.mxu0 0.0
  %4290 = vmatpush1.xpose.msra.mxu0 0.0
  %4291 = vmatprep.subr.mxu0 0.0
  %4292 = vmatpush1.xpose.msra.mxu0 %v4261
  %4293 = vmatprep.subr.mxu0 0.0
  %4294 = vmatpush1.xpose.msra.mxu0 %v4258
  %4295 = vmatprep.subr.mxu0 0.0
  %4296 = vmatpush2.xpose.msra.mxu0 0.0
  %4297 = vmatprep.subr.mxu0 0.0
  %4298 = vmatpush2.xpose.msra.mxu0 0.0
  %4299 = vmatprep.subr.mxu0 0.0
  %4300 = vmatpush2.xpose.msra.mxu0 0.0
  %4301 = vmatprep.subr.mxu0 0.0
  %4302 = vmatpush2.xpose.msra.mxu0 0.0
  %4303 = vmatprep.subr.mxu0 0.0
  %4304 = vmatpush2.xpose.msra.mxu0 0.0
  %4305 = vmatprep.subr.mxu0 0.0
  %4306 = vmatpush2.xpose.msra.mxu0 0.0
  %4307 = vmatprep.subr.mxu0 0.0
  %4308 = vmatpush2.xpose.msra.mxu0 0.0
  %4309 = vmatprep.subr.mxu0 0.0
  %4310 = vmatpush2.xpose.msra.mxu0 0.0
  %4311 = vmatprep.subr.mxu0 0.0
  %4312 = vmatpush2.xpose.msra.mxu0 0.0
  %4313 = vmatprep.subr.mxu0 0.0
  %4314 = vmatpush2.xpose.msra.mxu0 0.0
  %4315 = vmatprep.subr.mxu0 0.0
  %4316 = vmatpush2.xpose.msra.mxu0 0.0
  %4317 = vmatprep.subr.mxu0 0.0
  %4318 = vmatpush2.xpose.msra.mxu0 0.0
  %4319 = vmatprep.subr.mxu0 0.0
  %4320 = vmatpush2.xpose.msra.mxu0 0.0
  %4321 = vmatprep.subr.mxu0 0.0
  %4322 = vmatpush2.xpose.msra.mxu0 0.0
  %4323 = vmatprep.subr.mxu0 0.0
  %4324 = vmatpush2.xpose.msra.mxu0 0.0
  %4325 = vmatprep.subr.mxu0 0.0
  %4326 = vmatpush2.xpose.msra.mxu0 0.0
  %4327 = vmatprep.mubr.f32.mxu0 0.0
  %4328 = vmatmul.mubr.f32.gmra.mxu0 %v1702
  %v4329 = vpop.f32.mrf.mxu0
  %v4330 = vadd.f32 %v4256, %v4329
  %v4331 = vpop.f32.mrf.mxu0
  %4332 = vmatprep.mubr.f32.mxu0 0.0
  %4333 = vmatmul.mubr.f32.gmra.mxu0 %v1705
  %v4334 = vpop.f32.mrf.mxu0
  %v4335 = vadd.f32 %v4256, %v4334
  %v4336 = vpop.f32.mrf.mxu0
  %4337 = vmatprep.mubr.f32.mxu0 0.0
  %4338 = vmatmul.mubr.f32.gmra.mxu0 %v1708
  %v4339 = vpop.f32.mrf.mxu0
  %v4340 = vadd.f32 %v4256, %v4339
  %v4341 = vpop.f32.mrf.mxu0
  %4342 = vmatprep.mubr.f32.mxu0 0.0
  %4343 = vmatmul.mubr.f32.gmra.mxu0 %v1711
  %v4344 = vpop.f32.mrf.mxu0
  %v4345 = vadd.f32 %v4256, %v4344
  %v4346 = vpop.f32.mrf.mxu0
  %4347 = vdwg.mxu0
  %v4348 = vmul.f32 %v4134, 0.25
  %v4349 = vmul.f32 %v4139, 0.25
  %v4350 = vmul.f32 %v4144, 0.25
  %v4351 = vmul.f32 %v4149, 0.25
  %v4353 = vsel %vm2002, %v4348, 0
  %v4356 = vsel %vm2002, %v4349, 0
  %v4359 = vsel %vm2002, %v4232, 0
  %v4362 = vsel %vm2002, %v4237, 0
  %4364 = vmatprep.subr.mxu0 0.0
  %4365 = vmatpush1.xpose.msra.mxu0 0.0
  %4366 = vmatprep.subr.mxu0 0.0
  %4367 = vmatpush1.xpose.msra.mxu0 0.0
  %4368 = vmatprep.subr.mxu0 0.0
  %4369 = vmatpush1.xpose.msra.mxu0 0.0
  %4370 = vmatprep.subr.mxu0 0.0
  %4371 = vmatpush1.xpose.msra.mxu0 0.0
  %4372 = vmatprep.subr.mxu0 0.0
  %4373 = vmatpush1.xpose.msra.mxu0 0.0
  %4374 = vmatprep.subr.mxu0 0.0
  %4375 = vmatpush1.xpose.msra.mxu0 0.0
  %4376 = vmatprep.subr.mxu0 0.0
  %4377 = vmatpush1.xpose.msra.mxu0 0.0
  %4378 = vmatprep.subr.mxu0 0.0
  %4379 = vmatpush1.xpose.msra.mxu0 0.0
  %4380 = vmatprep.subr.mxu0 0.0
  %4381 = vmatpush1.xpose.msra.mxu0 0.0
  %4382 = vmatprep.subr.mxu0 0.0
  %4383 = vmatpush1.xpose.msra.mxu0 0.0
  %4384 = vmatprep.subr.mxu0 0.0
  %4385 = vmatpush1.xpose.msra.mxu0 0.0
  %4386 = vmatprep.subr.mxu0 0.0
  %4387 = vmatpush1.xpose.msra.mxu0 0.0
  %4388 = vmatprep.subr.mxu0 0.0
  %4389 = vmatpush1.xpose.msra.mxu0 0.0
  %4390 = vmatprep.subr.mxu0 0.0
  %4391 = vmatpush1.xpose.msra.mxu0 0.0
  %4392 = vmatprep.subr.mxu0 0.0
  %4393 = vmatpush1.xpose.msra.mxu0 %v4362
  %4394 = vmatprep.subr.mxu0 0.0
  %4395 = vmatpush1.xpose.msra.mxu0 %v4359
  %4396 = vmatprep.subr.mxu0 0.0
  %4397 = vmatpush2.xpose.msra.mxu0 0.0
  %4398 = vmatprep.subr.mxu0 0.0
  %4399 = vmatpush2.xpose.msra.mxu0 0.0
  %4400 = vmatprep.subr.mxu0 0.0
  %4401 = vmatpush2.xpose.msra.mxu0 0.0
  %4402 = vmatprep.subr.mxu0 0.0
  %4403 = vmatpush2.xpose.msra.mxu0 0.0
  %4404 = vmatprep.subr.mxu0 0.0
  %4405 = vmatpush2.xpose.msra.mxu0 0.0
  %4406 = vmatprep.subr.mxu0 0.0
  %4407 = vmatpush2.xpose.msra.mxu0 0.0
  %4408 = vmatprep.subr.mxu0 0.0
  %4409 = vmatpush2.xpose.msra.mxu0 0.0
  %4410 = vmatprep.subr.mxu0 0.0
  %4411 = vmatpush2.xpose.msra.mxu0 0.0
  %4412 = vmatprep.subr.mxu0 0.0
  %4413 = vmatpush2.xpose.msra.mxu0 0.0
  %4414 = vmatprep.subr.mxu0 0.0
  %4415 = vmatpush2.xpose.msra.mxu0 0.0
  %4416 = vmatprep.subr.mxu0 0.0
  %4417 = vmatpush2.xpose.msra.mxu0 0.0
  %4418 = vmatprep.subr.mxu0 0.0
  %4419 = vmatpush2.xpose.msra.mxu0 0.0
  %4420 = vmatprep.subr.mxu0 0.0
  %4421 = vmatpush2.xpose.msra.mxu0 0.0
  %4422 = vmatprep.subr.mxu0 0.0
  %4423 = vmatpush2.xpose.msra.mxu0 0.0
  %4424 = vmatprep.subr.mxu0 0.0
  %4425 = vmatpush2.xpose.msra.mxu0 0.0
  %4426 = vmatprep.subr.mxu0 0.0
  %4427 = vmatpush2.xpose.msra.mxu0 0.0
  %4428 = vmatprep.mubr.f32.mxu0 0.0
  %4429 = vmatmul.mubr.f32.gmra.mxu0 %v4353
  %v4430 = vpop.f32.mrf.mxu0
  %v4431 = vadd.f32 0.0, %v4430
  %v4432 = vpop.f32.mrf.mxu0
  %4433 = vmatprep.mubr.f32.mxu0 0.0
  %4434 = vmatmul.mubr.f32.gmra.mxu0 %v4356
  %v4435 = vpop.f32.mrf.mxu0
  %v4436 = vadd.f32 0.0, %v4435
  %v4437 = vpop.f32.mrf.mxu0
  %4438 = vdwg.mxu0
  %v4440 = vsel %vm2002, %v4350, 0
  %v4443 = vsel %vm2002, %v4351, 0
  %v4446 = vsel %vm2002, %v4242, 0
  %v4449 = vsel %vm2002, %v4247, 0
  %4451 = vmatprep.subr.mxu0 0.0
  %4452 = vmatpush1.xpose.msra.mxu0 0.0
  %4453 = vmatprep.subr.mxu0 0.0
  %4454 = vmatpush1.xpose.msra.mxu0 0.0
  %4455 = vmatprep.subr.mxu0 0.0
  %4456 = vmatpush1.xpose.msra.mxu0 0.0
  %4457 = vmatprep.subr.mxu0 0.0
  %4458 = vmatpush1.xpose.msra.mxu0 0.0
  %4459 = vmatprep.subr.mxu0 0.0
  %4460 = vmatpush1.xpose.msra.mxu0 0.0
  %4461 = vmatprep.subr.mxu0 0.0
  %4462 = vmatpush1.xpose.msra.mxu0 0.0
  %4463 = vmatprep.subr.mxu0 0.0
  %4464 = vmatpush1.xpose.msra.mxu0 0.0
  %4465 = vmatprep.subr.mxu0 0.0
  %4466 = vmatpush1.xpose.msra.mxu0 0.0
  %4467 = vmatprep.subr.mxu0 0.0
  %4468 = vmatpush1.xpose.msra.mxu0 0.0
  %4469 = vmatprep.subr.mxu0 0.0
  %4470 = vmatpush1.xpose.msra.mxu0 0.0
  %4471 = vmatprep.subr.mxu0 0.0
  %4472 = vmatpush1.xpose.msra.mxu0 0.0
  %4473 = vmatprep.subr.mxu0 0.0
  %4474 = vmatpush1.xpose.msra.mxu0 0.0
  %4475 = vmatprep.subr.mxu0 0.0
  %4476 = vmatpush1.xpose.msra.mxu0 0.0
  %4477 = vmatprep.subr.mxu0 0.0
  %4478 = vmatpush1.xpose.msra.mxu0 0.0
  %4479 = vmatprep.subr.mxu0 0.0
  %4480 = vmatpush1.xpose.msra.mxu0 %v4449
  %4481 = vmatprep.subr.mxu0 0.0
  %4482 = vmatpush1.xpose.msra.mxu0 %v4446
  %4483 = vmatprep.subr.mxu0 0.0
  %4484 = vmatpush2.xpose.msra.mxu0 0.0
  %4485 = vmatprep.subr.mxu0 0.0
  %4486 = vmatpush2.xpose.msra.mxu0 0.0
  %4487 = vmatprep.subr.mxu0 0.0
  %4488 = vmatpush2.xpose.msra.mxu0 0.0
  %4489 = vmatprep.subr.mxu0 0.0
  %4490 = vmatpush2.xpose.msra.mxu0 0.0
  %4491 = vmatprep.subr.mxu0 0.0
  %4492 = vmatpush2.xpose.msra.mxu0 0.0
  %4493 = vmatprep.subr.mxu0 0.0
  %4494 = vmatpush2.xpose.msra.mxu0 0.0
  %4495 = vmatprep.subr.mxu0 0.0
  %4496 = vmatpush2.xpose.msra.mxu0 0.0
  %4497 = vmatprep.subr.mxu0 0.0
  %4498 = vmatpush2.xpose.msra.mxu0 0.0
  %4499 = vmatprep.subr.mxu0 0.0
  %4500 = vmatpush2.xpose.msra.mxu0 0.0
  %4501 = vmatprep.subr.mxu0 0.0
  %4502 = vmatpush2.xpose.msra.mxu0 0.0
  %4503 = vmatprep.subr.mxu0 0.0
  %4504 = vmatpush2.xpose.msra.mxu0 0.0
  %4505 = vmatprep.subr.mxu0 0.0
  %4506 = vmatpush2.xpose.msra.mxu0 0.0
  %4507 = vmatprep.subr.mxu0 0.0
  %4508 = vmatpush2.xpose.msra.mxu0 0.0
  %4509 = vmatprep.subr.mxu0 0.0
  %4510 = vmatpush2.xpose.msra.mxu0 0.0
  %4511 = vmatprep.subr.mxu0 0.0
  %4512 = vmatpush2.xpose.msra.mxu0 0.0
  %4513 = vmatprep.subr.mxu0 0.0
  %4514 = vmatpush2.xpose.msra.mxu0 0.0
  %4515 = vmatprep.mubr.f32.mxu0 0.0
  %4516 = vmatmul.mubr.f32.gmra.mxu0 %v4440
  %v4517 = vpop.f32.mrf.mxu0
  %v4518 = vadd.f32 0.0, %v4517
  %v4519 = vpop.f32.mrf.mxu0
  %4520 = vmatprep.mubr.f32.mxu0 0.0
  %4521 = vmatmul.mubr.f32.gmra.mxu0 %v4443
  %v4522 = vpop.f32.mrf.mxu0
  %v4523 = vadd.f32 0.0, %v4522
  %v4524 = vpop.f32.mrf.mxu0
  %4525 = vdwg.mxu0
  %v4526 = vsel %vm1692, %v4431, -1e+30
  %v4527 = vsel %vm1692, %v4436, -1e+30
  %v4528 = vsel %vm1692, %v4518, -1e+30
  %v4529 = vsel %vm1692, %v4523, -1e+30
  %v4530 = vsel %vm2002, %v4526, -inf
  %4531 = vmax.xlane.f32.xlu0 %v4530
  %v4532 = vpop.xlane.xlu0 %4531
  %v4533 = vsel %vm2002, %v4527, -inf
  %4534 = vmax.xlane.f32.xlu0 %v4533
  %v4535 = vpop.xlane.xlu0 %4534
  %v4536 = vsel %vm2002, %v4528, -inf
  %4537 = vmax.xlane.f32.xlu0 %v4536
  %v4538 = vpop.xlane.xlu0 %4537
  %v4539 = vsel %vm2002, %v4529, -inf
  %4540 = vmax.xlane.f32.xlu0 %v4539
  %v4541 = vpop.xlane.xlu0 %4540
  %v4542 = vsub.f32 %v4526, %v4532
  %v4543 = vsub.f32 %v4527, %v4535
  %v4544 = vsub.f32 %v4528, %v4538
  %v4545 = vsub.f32 %v4529, %v4541
  %v4546 = vmul.f32 %v4542, 1.442695
  %v4547 = vpow.pop %v4546
  %v4548 = vmul.f32 %v4543, 1.442695
  %v4549 = vpow.pop %v4548
  %v4550 = vmul.f32 %v4544, 1.442695
  %v4551 = vpow.pop %v4550
  %v4552 = vmul.f32 %v4545, 1.442695
  %v4553 = vpow.pop %v4552
  %v4554 = vsel %vm2002, %v4547, 0.0
  %4555 = vadd.xlane.f32.xlu0 %v4554
  %v4556 = vpop.xlane.xlu0 %4555
  %v4557 = vsel %vm2002, %v4549, 0.0
  %4558 = vadd.xlane.f32.xlu0 %v4557
  %v4559 = vpop.xlane.xlu0 %4558
  %v4560 = vsel %vm2002, %v4551, 0.0
  %4561 = vadd.xlane.f32.xlu0 %v4560
  %v4562 = vpop.xlane.xlu0 %4561
  %v4563 = vsel %vm2002, %v4553, 0.0
  %4564 = vadd.xlane.f32.xlu0 %v4563
  %v4565 = vpop.xlane.xlu0 %4564
  %v4566 = vrcp.pop %v4556
  %v4567 = vrcp.pop %v4559
  %v4568 = vrcp.pop %v4562
  %v4569 = vrcp.pop %v4565
  %v4570 = vmul.f32 %v4547, %v4566
  %v4571 = vmul.f32 %v4549, %v4567
  %v4572 = vmul.f32 %v4551, %v4568
  %v4573 = vmul.f32 %v4553, %v4569
  %v4575 = vsel %vm2002, %v4570, 0
  %v4578 = vsel %vm2002, %v4571, 0
  %4580 = vmatprep.subr.mxu0 0.0
  %4581 = vmatpush1.msra.mxu0 0.0
  %4582 = vmatprep.subr.mxu0 0.0
  %4583 = vmatpush1.msra.mxu0 0.0
  %4584 = vmatprep.subr.mxu0 0.0
  %4585 = vmatpush1.msra.mxu0 0.0
  %4586 = vmatprep.subr.mxu0 0.0
  %4587 = vmatpush1.msra.mxu0 0.0
  %4588 = vmatprep.subr.mxu0 0.0
  %4589 = vmatpush1.msra.mxu0 0.0
  %4590 = vmatprep.subr.mxu0 0.0
  %4591 = vmatpush1.msra.mxu0 0.0
  %4592 = vmatprep.subr.mxu0 0.0
  %4593 = vmatpush1.msra.mxu0 0.0
  %4594 = vmatprep.subr.mxu0 0.0
  %4595 = vmatpush1.msra.mxu0 0.0
  %4596 = vmatprep.subr.mxu0 0.0
  %4597 = vmatpush1.msra.mxu0 0.0
  %4598 = vmatprep.subr.mxu0 0.0
  %4599 = vmatpush1.msra.mxu0 0.0
  %4600 = vmatprep.subr.mxu0 0.0
  %4601 = vmatpush1.msra.mxu0 0.0
  %4602 = vmatprep.subr.mxu0 0.0
  %4603 = vmatpush1.msra.mxu0 0.0
  %4604 = vmatprep.subr.mxu0 0.0
  %4605 = vmatpush1.msra.mxu0 0.0
  %4606 = vmatprep.subr.mxu0 0.0
  %4607 = vmatpush1.msra.mxu0 0.0
  %4608 = vmatprep.subr.mxu0 0.0
  %4609 = vmatpush1.msra.mxu0 %v4335
  %4610 = vmatprep.subr.mxu0 0.0
  %4611 = vmatpush1.msra.mxu0 %v4330
  %4612 = vmatprep.subr.mxu0 0.0
  %4613 = vmatpush2.msra.mxu0 0.0
  %4614 = vmatprep.subr.mxu0 0.0
  %4615 = vmatpush2.msra.mxu0 0.0
  %4616 = vmatprep.subr.mxu0 0.0
  %4617 = vmatpush2.msra.mxu0 0.0
  %4618 = vmatprep.subr.mxu0 0.0
  %4619 = vmatpush2.msra.mxu0 0.0
  %4620 = vmatprep.subr.mxu0 0.0
  %4621 = vmatpush2.msra.mxu0 0.0
  %4622 = vmatprep.subr.mxu0 0.0
  %4623 = vmatpush2.msra.mxu0 0.0
  %4624 = vmatprep.subr.mxu0 0.0
  %4625 = vmatpush2.msra.mxu0 0.0
  %4626 = vmatprep.subr.mxu0 0.0
  %4627 = vmatpush2.msra.mxu0 0.0
  %4628 = vmatprep.subr.mxu0 0.0
  %4629 = vmatpush2.msra.mxu0 0.0
  %4630 = vmatprep.subr.mxu0 0.0
  %4631 = vmatpush2.msra.mxu0 0.0
  %4632 = vmatprep.subr.mxu0 0.0
  %4633 = vmatpush2.msra.mxu0 0.0
  %4634 = vmatprep.subr.mxu0 0.0
  %4635 = vmatpush2.msra.mxu0 0.0
  %4636 = vmatprep.subr.mxu0 0.0
  %4637 = vmatpush2.msra.mxu0 0.0
  %4638 = vmatprep.subr.mxu0 0.0
  %4639 = vmatpush2.msra.mxu0 0.0
  %4640 = vmatprep.subr.mxu0 0.0
  %4641 = vmatpush2.msra.mxu0 0.0
  %4642 = vmatprep.subr.mxu0 0.0
  %4643 = vmatpush2.msra.mxu0 0.0
  %4644 = vmatprep.mubr.f32.mxu0 0.0
  %4645 = vmatmul.mubr.f32.gmra.mxu0 %v4575
  %v4646 = vpop.f32.mrf.mxu0
  %v4647 = vadd.f32 0.0, %v4646
  %v4648 = vpop.f32.mrf.mxu0
  %4649 = vmatprep.mubr.f32.mxu0 0.0
  %4650 = vmatmul.mubr.f32.gmra.mxu0 %v4578
  %v4651 = vpop.f32.mrf.mxu0
  %v4652 = vadd.f32 0.0, %v4651
  %v4653 = vpop.f32.mrf.mxu0
  %4654 = vdwg.mxu0
  %v4656 = vsel %vm2002, %v4572, 0
  %v4659 = vsel %vm2002, %v4573, 0
  %4661 = vmatprep.subr.mxu0 0.0
  %4662 = vmatpush1.msra.mxu0 0.0
  %4663 = vmatprep.subr.mxu0 0.0
  %4664 = vmatpush1.msra.mxu0 0.0
  %4665 = vmatprep.subr.mxu0 0.0
  %4666 = vmatpush1.msra.mxu0 0.0
  %4667 = vmatprep.subr.mxu0 0.0
  %4668 = vmatpush1.msra.mxu0 0.0
  %4669 = vmatprep.subr.mxu0 0.0
  %4670 = vmatpush1.msra.mxu0 0.0
  %4671 = vmatprep.subr.mxu0 0.0
  %4672 = vmatpush1.msra.mxu0 0.0
  %4673 = vmatprep.subr.mxu0 0.0
  %4674 = vmatpush1.msra.mxu0 0.0
  %4675 = vmatprep.subr.mxu0 0.0
  %4676 = vmatpush1.msra.mxu0 0.0
  %4677 = vmatprep.subr.mxu0 0.0
  %4678 = vmatpush1.msra.mxu0 0.0
  %4679 = vmatprep.subr.mxu0 0.0
  %4680 = vmatpush1.msra.mxu0 0.0
  %4681 = vmatprep.subr.mxu0 0.0
  %4682 = vmatpush1.msra.mxu0 0.0
  %4683 = vmatprep.subr.mxu0 0.0
  %4684 = vmatpush1.msra.mxu0 0.0
  %4685 = vmatprep.subr.mxu0 0.0
  %4686 = vmatpush1.msra.mxu0 0.0
  %4687 = vmatprep.subr.mxu0 0.0
  %4688 = vmatpush1.msra.mxu0 0.0
  %4689 = vmatprep.subr.mxu0 0.0
  %4690 = vmatpush1.msra.mxu0 %v4345
  %4691 = vmatprep.subr.mxu0 0.0
  %4692 = vmatpush1.msra.mxu0 %v4340
  %4693 = vmatprep.subr.mxu0 0.0
  %4694 = vmatpush2.msra.mxu0 0.0
  %4695 = vmatprep.subr.mxu0 0.0
  %4696 = vmatpush2.msra.mxu0 0.0
  %4697 = vmatprep.subr.mxu0 0.0
  %4698 = vmatpush2.msra.mxu0 0.0
  %4699 = vmatprep.subr.mxu0 0.0
  %4700 = vmatpush2.msra.mxu0 0.0
  %4701 = vmatprep.subr.mxu0 0.0
  %4702 = vmatpush2.msra.mxu0 0.0
  %4703 = vmatprep.subr.mxu0 0.0
  %4704 = vmatpush2.msra.mxu0 0.0
  %4705 = vmatprep.subr.mxu0 0.0
  %4706 = vmatpush2.msra.mxu0 0.0
  %4707 = vmatprep.subr.mxu0 0.0
  %4708 = vmatpush2.msra.mxu0 0.0
  %4709 = vmatprep.subr.mxu0 0.0
  %4710 = vmatpush2.msra.mxu0 0.0
  %4711 = vmatprep.subr.mxu0 0.0
  %4712 = vmatpush2.msra.mxu0 0.0
  %4713 = vmatprep.subr.mxu0 0.0
  %4714 = vmatpush2.msra.mxu0 0.0
  %4715 = vmatprep.subr.mxu0 0.0
  %4716 = vmatpush2.msra.mxu0 0.0
  %4717 = vmatprep.subr.mxu0 0.0
  %4718 = vmatpush2.msra.mxu0 0.0
  %4719 = vmatprep.subr.mxu0 0.0
  %4720 = vmatpush2.msra.mxu0 0.0
  %4721 = vmatprep.subr.mxu0 0.0
  %4722 = vmatpush2.msra.mxu0 0.0
  %4723 = vmatprep.subr.mxu0 0.0
  %4724 = vmatpush2.msra.mxu0 0.0
  %4725 = vmatprep.mubr.f32.mxu0 0.0
  %4726 = vmatmul.mubr.f32.gmra.mxu0 %v4656
  %v4727 = vpop.f32.mrf.mxu0
  %v4728 = vadd.f32 0.0, %v4727
  %v4729 = vpop.f32.mrf.mxu0
  %4730 = vmatprep.mubr.f32.mxu0 0.0
  %4731 = vmatmul.mubr.f32.gmra.mxu0 %v4659
  %v4732 = vpop.f32.mrf.mxu0
  %v4733 = vadd.f32 0.0, %v4732
  %v4734 = vpop.f32.mrf.mxu0
  %4735 = vdwg.mxu0
  %s4736 = scalar_lea.vmem %s8, 48
  %v4737 = vld [vmem:[%s4736] sm:$0xff]
  %v4738 = vld [vmem:[%s4736 + $0x8] sm:$0xff]
  %v4740 = vsel %vm2002, %v4647, 0
  %v4743 = vsel %vm2002, %v4652, 0
  %v4746 = vsel %vm2002, %v4728, 0
  %v4749 = vsel %vm2002, %v4733, 0
  %4751 = vmatprep.subr.mxu0 0.0
  %4752 = vmatpush1.msra.mxu0 0.0
  %4753 = vmatprep.subr.mxu0 0.0
  %4754 = vmatpush1.msra.mxu0 0.0
  %4755 = vmatprep.subr.mxu0 0.0
  %4756 = vmatpush1.msra.mxu0 0.0
  %4757 = vmatprep.subr.mxu0 0.0
  %4758 = vmatpush1.msra.mxu0 0.0
  %4759 = vmatprep.subr.mxu0 0.0
  %4760 = vmatpush1.msra.mxu0 0.0
  %4761 = vmatprep.subr.mxu0 0.0
  %4762 = vmatpush1.msra.mxu0 0.0
  %4763 = vmatprep.subr.mxu0 0.0
  %4764 = vmatpush1.msra.mxu0 0.0
  %4765 = vmatprep.subr.mxu0 0.0
  %4766 = vmatpush1.msra.mxu0 0.0
  %4767 = vmatprep.subr.mxu0 0.0
  %4768 = vmatpush1.msra.mxu0 0.0
  %4769 = vmatprep.subr.mxu0 0.0
  %4770 = vmatpush1.msra.mxu0 0.0
  %4771 = vmatprep.subr.mxu0 0.0
  %4772 = vmatpush1.msra.mxu0 0.0
  %4773 = vmatprep.subr.mxu0 0.0
  %4774 = vmatpush1.msra.mxu0 0.0
  %4775 = vmatprep.subr.mxu0 0.0
  %4776 = vmatpush1.msra.mxu0 0.0
  %4777 = vmatprep.subr.mxu0 0.0
  %4778 = vmatpush1.msra.mxu0 0.0
  %4779 = vmatprep.subr.mxu0 0.0
  %4780 = vmatpush1.msra.mxu0 %v4738
  %4781 = vmatprep.subr.mxu0 0.0
  %4782 = vmatpush1.msra.mxu0 %v4737
  %4783 = vmatprep.subr.mxu0 0.0
  %4784 = vmatpush2.msra.mxu0 0.0
  %4785 = vmatprep.subr.mxu0 0.0
  %4786 = vmatpush2.msra.mxu0 0.0
  %4787 = vmatprep.subr.mxu0 0.0
  %4788 = vmatpush2.msra.mxu0 0.0
  %4789 = vmatprep.subr.mxu0 0.0
  %4790 = vmatpush2.msra.mxu0 0.0
  %4791 = vmatprep.subr.mxu0 0.0
  %4792 = vmatpush2.msra.mxu0 0.0
  %4793 = vmatprep.subr.mxu0 0.0
  %4794 = vmatpush2.msra.mxu0 0.0
  %4795 = vmatprep.subr.mxu0 0.0
  %4796 = vmatpush2.msra.mxu0 0.0
  %4797 = vmatprep.subr.mxu0 0.0
  %4798 = vmatpush2.msra.mxu0 0.0
  %4799 = vmatprep.subr.mxu0 0.0
  %4800 = vmatpush2.msra.mxu0 0.0
  %4801 = vmatprep.subr.mxu0 0.0
  %4802 = vmatpush2.msra.mxu0 0.0
  %4803 = vmatprep.subr.mxu0 0.0
  %4804 = vmatpush2.msra.mxu0 0.0
  %4805 = vmatprep.subr.mxu0 0.0
  %4806 = vmatpush2.msra.mxu0 0.0
  %4807 = vmatprep.subr.mxu0 0.0
  %4808 = vmatpush2.msra.mxu0 0.0
  %4809 = vmatprep.subr.mxu0 0.0
  %4810 = vmatpush2.msra.mxu0 0.0
  %4811 = vmatprep.subr.mxu0 0.0
  %4812 = vmatpush2.msra.mxu0 0.0
  %4813 = vmatprep.subr.mxu0 0.0
  %4814 = vmatpush2.msra.mxu0 0.0
  %4815 = vmatprep.mubr.f32.mxu0 0.0
  %4816 = vmatmul.mubr.f32.gmra.mxu0 %v4740
  %v4817 = vpop.f32.mrf.mxu0
  %v4818 = vadd.f32 0.0, %v4817
  %v4819 = vpop.f32.mrf.mxu0
  %4820 = vmatprep.mubr.f32.mxu0 0.0
  %4821 = vmatmul.mubr.f32.gmra.mxu0 %v4743
  %v4822 = vpop.f32.mrf.mxu0
  %v4823 = vadd.f32 0.0, %v4822
  %v4824 = vpop.f32.mrf.mxu0
  %4825 = vmatprep.mubr.f32.mxu0 0.0
  %4826 = vmatmul.mubr.f32.gmra.mxu0 %v4746
  %v4827 = vpop.f32.mrf.mxu0
  %v4828 = vadd.f32 0.0, %v4827
  %v4829 = vpop.f32.mrf.mxu0
  %4830 = vmatprep.mubr.f32.mxu0 0.0
  %4831 = vmatmul.mubr.f32.gmra.mxu0 %v4749
  %v4832 = vpop.f32.mrf.mxu0
  %v4833 = vadd.f32 0.0, %v4832
  %v4834 = vpop.f32.mrf.mxu0
  %4835 = vdwg.mxu0
  %v4836 = vadd.f32 %v4050, %v4818
  %v4837 = vadd.f32 %v4051, %v4823
  %v4838 = vadd.f32 %v4052, %v4828
  %v4839 = vadd.f32 %v4053, %v4833
  %v4840 = vadd.f32 %v1686, %v4836
  %v4841 = vadd.f32 %v1687, %v4837
  %v4842 = vadd.f32 %v1688, %v4838
  %v4843 = vadd.f32 %v1689, %v4839
  %v4844 = vld [vmem:[%s12 + $0xa] sm:$0x1]
  %v4845 = vlaneseq
  %v4846 = vshrl.u32 %v4845, 7
  %v4847 = vsub.s32 0, %v4846
  %v4848 = vrot.slane %v4844, %v4847
  %v4849 = vadd.f32 %v4840, %v4848
  %v4850 = vadd.f32 %v4841, %v4848
  %v4851 = vadd.f32 %v4842, %v4848
  %v4852 = vadd.f32 %v4843, %v4848
  %v4853 = vld [vmem:[%s12 + $0xb] sm:$0x1]
  %v4854 = vld [vmem:[%s12 + $0xc] sm:$0x1]
  %v4855 = vsel %vm1265, %v4849, 0.0
  %4856 = vadd.xlane.f32.xlu0 %v4855
  %v4857 = vpop.xlane.xlu0 %4856
  %v4858 = vsel %vm1265, %v4850, 0.0
  %4859 = vadd.xlane.f32.xlu0 %v4858
  %v4860 = vpop.xlane.xlu0 %4859
  %v4861 = vsel %vm1265, %v4851, 0.0
  %4862 = vadd.xlane.f32.xlu0 %v4861
  %v4863 = vpop.xlane.xlu0 %4862
  %v4864 = vsel %vm1265, %v4852, 0.0
  %4865 = vadd.xlane.f32.xlu0 %v4864
  %v4866 = vpop.xlane.xlu0 %4865
  %v4867 = vmul.f32 %v4857, %v1633
  %v4868 = vmul.f32 %v4860, %v1633
  %v4869 = vmul.f32 %v4863, %v1633
  %v4870 = vmul.f32 %v4866, %v1633
  %v4871 = vsub.f32 %v4849, %v4867
  %v4872 = vsub.f32 %v4850, %v4868
  %v4873 = vsub.f32 %v4851, %v4869
  %v4874 = vsub.f32 %v4852, %v4870
  %v4875 = vmul.f32 %v4871, %v4871
  %v4876 = vmul.f32 %v4872, %v4872
  %v4877 = vmul.f32 %v4873, %v4873
  %v4878 = vmul.f32 %v4874, %v4874
  %v4879 = vsel %vm1265, %v4875, 0.0
  %4880 = vadd.xlane.f32.xlu0 %v4879
  %v4881 = vpop.xlane.xlu0 %4880
  %v4882 = vsel %vm1265, %v4876, 0.0
  %4883 = vadd.xlane.f32.xlu0 %v4882
  %v4884 = vpop.xlane.xlu0 %4883
  %v4885 = vsel %vm1265, %v4877, 0.0
  %4886 = vadd.xlane.f32.xlu0 %v4885
  %v4887 = vpop.xlane.xlu0 %4886
  %v4888 = vsel %vm1265, %v4878, 0.0
  %4889 = vadd.xlane.f32.xlu0 %v4888
  %v4890 = vpop.xlane.xlu0 %4889
  %v4891 = vmul.f32 %v4881, %v1633
  %v4892 = vmul.f32 %v4884, %v1633
  %v4893 = vmul.f32 %v4887, %v1633
  %v4894 = vmul.f32 %v4890, %v1633
  %v4895 = vadd.f32 %v4891, 1e-05
  %v4896 = vadd.f32 %v4892, 1e-05
  %v4897 = vadd.f32 %v4893, 1e-05
  %v4898 = vadd.f32 %v4894, 1e-05
  %v4899 = vrsqrt.pop %v4895
  %v4900 = vrsqrt.pop %v4896
  %v4901 = vrsqrt.pop %v4897
  %v4902 = vrsqrt.pop %v4898
  %v4903 = vmul.f32 %v4871, %v4899
  %v4904 = vmul.f32 %v4872, %v4900
  %v4905 = vmul.f32 %v4873, %v4901
  %v4906 = vmul.f32 %v4874, %v4902
  %v4907 = vlaneseq
  %v4908 = vshrl.u32 %v4907, 7
  %v4909 = vsub.s32 0, %v4908
  %v4910 = vrot.slane %v4853, %v4909
  %v4911 = vmul.f32 %v4903, %v4910
  %v4912 = vmul.f32 %v4904, %v4910
  %v4913 = vmul.f32 %v4905, %v4910
  %v4914 = vmul.f32 %v4906, %v4910
  %v4915 = vlaneseq
  %v4916 = vshrl.u32 %v4915, 7
  %v4917 = vsub.s32 0, %v4916
  %v4918 = vrot.slane %v4854, %v4917
  %v4919 = vadd.f32 %v4911, %v4918
  %v4920 = vadd.f32 %v4912, %v4918
  %v4921 = vadd.f32 %v4913, %v4918
  %v4922 = vadd.f32 %v4914, %v4918
  %v4923 = vld [vmem:[%s9] sm:$0xff]
  %v4924 = vld [vmem:[%s9 + $0x8] sm:$0xff]
  %v4925 = vld [vmem:[%s9 + $0x10] sm:$0xff]
  %v4926 = vld [vmem:[%s9 + $0x18] sm:$0xff]
  %v4927 = vld [vmem:[%s9 + $0x20] sm:$0xff]
  %v4928 = vld [vmem:[%s9 + $0x28] sm:$0xff]
  %v4929 = vld [vmem:[%s9 + $0x30] sm:$0xff]
  %v4930 = vld [vmem:[%s9 + $0x38] sm:$0xff]
  %v4931 = vld [vmem:[%s12 + $0xd] sm:$0x1]
  %v4932 = vlaneseq
  %v4933 = vshrl.u32 %v4932, 7
  %v4934 = vsub.s32 0, %v4933
  %v4935 = vrot.slane %v4931, %v4934
  %v4937 = vsel %vm1265, %v4919, 0
  %v4940 = vsel %vm1265, %v4920, 0
  %v4943 = vsel %vm1265, %v4921, 0
  %v4946 = vsel %vm1265, %v4922, 0
  %4948 = vmatprep.subr.mxu0 0.0
  %4949 = vmatpush1.msra.mxu0 0.0
  %4950 = vmatprep.subr.mxu0 0.0
  %4951 = vmatpush1.msra.mxu0 0.0
  %4952 = vmatprep.subr.mxu0 0.0
  %4953 = vmatpush1.msra.mxu0 0.0
  %4954 = vmatprep.subr.mxu0 0.0
  %4955 = vmatpush1.msra.mxu0 0.0
  %4956 = vmatprep.subr.mxu0 0.0
  %4957 = vmatpush1.msra.mxu0 0.0
  %4958 = vmatprep.subr.mxu0 0.0
  %4959 = vmatpush1.msra.mxu0 0.0
  %4960 = vmatprep.subr.mxu0 0.0
  %4961 = vmatpush1.msra.mxu0 0.0
  %4962 = vmatprep.subr.mxu0 0.0
  %4963 = vmatpush1.msra.mxu0 0.0
  %4964 = vmatprep.subr.mxu0 0.0
  %4965 = vmatpush1.msra.mxu0 %v4930
  %4966 = vmatprep.subr.mxu0 0.0
  %4967 = vmatpush1.msra.mxu0 %v4929
  %4968 = vmatprep.subr.mxu0 0.0
  %4969 = vmatpush1.msra.mxu0 %v4928
  %4970 = vmatprep.subr.mxu0 0.0
  %4971 = vmatpush1.msra.mxu0 %v4927
  %4972 = vmatprep.subr.mxu0 0.0
  %4973 = vmatpush1.msra.mxu0 %v4926
  %4974 = vmatprep.subr.mxu0 0.0
  %4975 = vmatpush1.msra.mxu0 %v4925
  %4976 = vmatprep.subr.mxu0 0.0
  %4977 = vmatpush1.msra.mxu0 %v4924
  %4978 = vmatprep.subr.mxu0 0.0
  %4979 = vmatpush1.msra.mxu0 %v4923
  %4980 = vmatprep.subr.mxu0 0.0
  %4981 = vmatpush2.msra.mxu0 0.0
  %4982 = vmatprep.subr.mxu0 0.0
  %4983 = vmatpush2.msra.mxu0 0.0
  %4984 = vmatprep.subr.mxu0 0.0
  %4985 = vmatpush2.msra.mxu0 0.0
  %4986 = vmatprep.subr.mxu0 0.0
  %4987 = vmatpush2.msra.mxu0 0.0
  %4988 = vmatprep.subr.mxu0 0.0
  %4989 = vmatpush2.msra.mxu0 0.0
  %4990 = vmatprep.subr.mxu0 0.0
  %4991 = vmatpush2.msra.mxu0 0.0
  %4992 = vmatprep.subr.mxu0 0.0
  %4993 = vmatpush2.msra.mxu0 0.0
  %4994 = vmatprep.subr.mxu0 0.0
  %4995 = vmatpush2.msra.mxu0 0.0
  %4996 = vmatprep.subr.mxu0 0.0
  %4997 = vmatpush2.msra.mxu0 0.0
  %4998 = vmatprep.subr.mxu0 0.0
  %4999 = vmatpush2.msra.mxu0 0.0
  %5000 = vmatprep.subr.mxu0 0.0
  %5001 = vmatpush2.msra.mxu0 0.0
  %5002 = vmatprep.subr.mxu0 0.0
  %5003 = vmatpush2.msra.mxu0 0.0
  %5004 = vmatprep.subr.mxu0 0.0
  %5005 = vmatpush2.msra.mxu0 0.0
  %5006 = vmatprep.subr.mxu0 0.0
  %5007 = vmatpush2.msra.mxu0 0.0
  %5008 = vmatprep.subr.mxu0 0.0
  %5009 = vmatpush2.msra.mxu0 0.0
  %5010 = vmatprep.subr.mxu0 0.0
  %5011 = vmatpush2.msra.mxu0 0.0
  %5012 = vmatprep.mubr.f32.mxu0 0.0
  %5013 = vmatmul.mubr.f32.gmra.mxu0 %v4937
  %v5014 = vpop.f32.mrf.mxu0
  %v5015 = vadd.f32 %v4935, %v5014
  %v5016 = vpop.f32.mrf.mxu0
  %5017 = vmatprep.mubr.f32.mxu0 0.0
  %5018 = vmatmul.mubr.f32.gmra.mxu0 %v4940
  %v5019 = vpop.f32.mrf.mxu0
  %v5020 = vadd.f32 %v4935, %v5019
  %v5021 = vpop.f32.mrf.mxu0
  %5022 = vmatprep.mubr.f32.mxu0 0.0
  %5023 = vmatmul.mubr.f32.gmra.mxu0 %v4943
  %v5024 = vpop.f32.mrf.mxu0
  %v5025 = vadd.f32 %v4935, %v5024
  %v5026 = vpop.f32.mrf.mxu0
  %5027 = vmatprep.mubr.f32.mxu0 0.0
  %5028 = vmatmul.mubr.f32.gmra.mxu0 %v4946
  %v5029 = vpop.f32.mrf.mxu0
  %v5030 = vadd.f32 %v4935, %v5029
  %v5031 = vpop.f32.mrf.mxu0
  %5032 = vdwg.mxu0
  %v5033 = vmul.f32 %v5015, 0.5
  %v5034 = vmul.f32 %v5020, 0.5
  %v5035 = vmul.f32 %v5025, 0.5
  %v5036 = vmul.f32 %v5030, 0.5
  %v5037 = vmul.f32 %v5015, 0.044715
  %v5038 = vmul.f32 %v5020, 0.044715
  %v5039 = vmul.f32 %v5025, 0.044715
  %v5040 = vmul.f32 %v5030, 0.044715
  %v5041 = vmul.f32 %v5037, %v5015
  %v5042 = vmul.f32 %v5038, %v5020
  %v5043 = vmul.f32 %v5039, %v5025
  %v5044 = vmul.f32 %v5040, %v5030
  %v5045 = vmul.f32 %v5041, %v5015
  %v5046 = vmul.f32 %v5042, %v5020
  %v5047 = vmul.f32 %v5043, %v5025
  %v5048 = vmul.f32 %v5044, %v5030
  %v5049 = vadd.f32 %v5015, %v5045
  %v5050 = vadd.f32 %v5020, %v5046
  %v5051 = vadd.f32 %v5025, %v5047
  %v5052 = vadd.f32 %v5030, %v5048
  %v5053 = vmul.f32 %v5049, 0.7978846
  %v5054 = vmul.f32 %v5050, 0.7978846
  %v5055 = vmul.f32 %v5051, 0.7978846
  %v5056 = vmul.f32 %v5052, 0.7978846
  %v5057 = vtanh.pop %v5053
  %v5058 = vtanh.pop %v5054
  %v5059 = vtanh.pop %v5055
  %v5060 = vtanh.pop %v5056
  %v5061 = vadd.f32 %v5057, 1.0
  %v5062 = vadd.f32 %v5058, 1.0
  %v5063 = vadd.f32 %v5059, 1.0
  %v5064 = vadd.f32 %v5060, 1.0
  %v5065 = vmul.f32 %v5033, %v5061
  %v5066 = vmul.f32 %v5034, %v5062
  %v5067 = vmul.f32 %v5035, %v5063
  %v5068 = vmul.f32 %v5036, %v5064
  %v5069 = vld [vmem:[%s10] sm:$0xff]
  %v5070 = vld [vmem:[%s10 + $0x8] sm:$0xff]
  %v5071 = vld [vmem:[%s10 + $0x10] sm:$0xff]
  %v5072 = vld [vmem:[%s10 + $0x18] sm:$0xff]
  %v5073 = vld [vmem:[%s10 + $0x20] sm:$0xff]
  %v5074 = vld [vmem:[%s10 + $0x28] sm:$0xff]
  %v5075 = vld [vmem:[%s10 + $0x30] sm:$0xff]
  %v5076 = vld [vmem:[%s10 + $0x38] sm:$0xff]
  %v5077 = vld [vmem:[%s10 + $0x40] sm:$0xff]
  %v5078 = vld [vmem:[%s10 + $0x48] sm:$0xff]
  %v5079 = vld [vmem:[%s10 + $0x50] sm:$0xff]
  %v5080 = vld [vmem:[%s10 + $0x58] sm:$0xff]
  %v5081 = vld [vmem:[%s10 + $0x60] sm:$0xff]
  %v5082 = vld [vmem:[%s10 + $0x68] sm:$0xff]
  %v5083 = vld [vmem:[%s10 + $0x70] sm:$0xff]
  %v5084 = vld [vmem:[%s10 + $0x78] sm:$0xff]
  %5085 = vmatprep.subr.mxu0 0.0
  %5086 = vmatpush1.msra.mxu0 %v5084
  %5087 = vmatprep.subr.mxu0 0.0
  %5088 = vmatpush1.msra.mxu0 %v5083
  %5089 = vmatprep.subr.mxu0 0.0
  %5090 = vmatpush1.msra.mxu0 %v5082
  %5091 = vmatprep.subr.mxu0 0.0
  %5092 = vmatpush1.msra.mxu0 %v5081
  %5093 = vmatprep.subr.mxu0 0.0
  %5094 = vmatpush1.msra.mxu0 %v5080
  %5095 = vmatprep.subr.mxu0 0.0
  %5096 = vmatpush1.msra.mxu0 %v5079
  %5097 = vmatprep.subr.mxu0 0.0
  %5098 = vmatpush1.msra.mxu0 %v5078
  %5099 = vmatprep.subr.mxu0 0.0
  %5100 = vmatpush1.msra.mxu0 %v5077
  %5101 = vmatprep.subr.mxu0 0.0
  %5102 = vmatpush1.msra.mxu0 %v5076
  %5103 = vmatprep.subr.mxu0 0.0
  %5104 = vmatpush1.msra.mxu0 %v5075
  %5105 = vmatprep.subr.mxu0 0.0
  %5106 = vmatpush1.msra.mxu0 %v5074
  %5107 = vmatprep.subr.mxu0 0.0
  %5108 = vmatpush1.msra.mxu0 %v5073
  %5109 = vmatprep.subr.mxu0 0.0
  %5110 = vmatpush1.msra.mxu0 %v5072
  %5111 = vmatprep.subr.mxu0 0.0
  %5112 = vmatpush1.msra.mxu0 %v5071
  %5113 = vmatprep.subr.mxu0 0.0
  %5114 = vmatpush1.msra.mxu0 %v5070
  %5115 = vmatprep.subr.mxu0 0.0
  %5116 = vmatpush1.msra.mxu0 %v5069
  %5117 = vmatprep.subr.mxu0 0.0
  %5118 = vmatpush2.msra.mxu0 0.0
  %5119 = vmatprep.subr.mxu0 0.0
  %5120 = vmatpush2.msra.mxu0 0.0
  %5121 = vmatprep.subr.mxu0 0.0
  %5122 = vmatpush2.msra.mxu0 0.0
  %5123 = vmatprep.subr.mxu0 0.0
  %5124 = vmatpush2.msra.mxu0 0.0
  %5125 = vmatprep.subr.mxu0 0.0
  %5126 = vmatpush2.msra.mxu0 0.0
  %5127 = vmatprep.subr.mxu0 0.0
  %5128 = vmatpush2.msra.mxu0 0.0
  %5129 = vmatprep.subr.mxu0 0.0
  %5130 = vmatpush2.msra.mxu0 0.0
  %5131 = vmatprep.subr.mxu0 0.0
  %5132 = vmatpush2.msra.mxu0 0.0
  %5133 = vmatprep.subr.mxu0 0.0
  %5134 = vmatpush2.msra.mxu0 0.0
  %5135 = vmatprep.subr.mxu0 0.0
  %5136 = vmatpush2.msra.mxu0 0.0
  %5137 = vmatprep.subr.mxu0 0.0
  %5138 = vmatpush2.msra.mxu0 0.0
  %5139 = vmatprep.subr.mxu0 0.0
  %5140 = vmatpush2.msra.mxu0 0.0
  %5141 = vmatprep.subr.mxu0 0.0
  %5142 = vmatpush2.msra.mxu0 0.0
  %5143 = vmatprep.subr.mxu0 0.0
  %5144 = vmatpush2.msra.mxu0 0.0
  %5145 = vmatprep.subr.mxu0 0.0
  %5146 = vmatpush2.msra.mxu0 0.0
  %5147 = vmatprep.subr.mxu0 0.0
  %5148 = vmatpush2.msra.mxu0 0.0
  %5149 = vmatprep.mubr.f32.mxu0 0.0
  %5150 = vmatmul.mubr.f32.gmra.mxu0 %v5065
  %v5151 = vpop.f32.mrf.mxu0
  %v5152 = vadd.f32 0.0, %v5151
  %v5153 = vpop.f32.mrf.mxu0
  %5154 = vmatprep.mubr.f32.mxu0 0.0
  %5155 = vmatmul.mubr.f32.gmra.mxu0 %v5066
  %v5156 = vpop.f32.mrf.mxu0
  %v5157 = vadd.f32 0.0, %v5156
  %v5158 = vpop.f32.mrf.mxu0
  %5159 = vmatprep.mubr.f32.mxu0 0.0
  %5160 = vmatmul.mubr.f32.gmra.mxu0 %v5067
  %v5161 = vpop.f32.mrf.mxu0
  %v5162 = vadd.f32 0.0, %v5161
  %v5163 = vpop.f32.mrf.mxu0
  %5164 = vmatprep.mubr.f32.mxu0 0.0
  %5165 = vmatmul.mubr.f32.gmra.mxu0 %v5068
  %v5166 = vpop.f32.mrf.mxu0
  %v5167 = vadd.f32 0.0, %v5166
  %v5168 = vpop.f32.mrf.mxu0
  %5169 = vdwg.mxu0
  %v5170 = vadd.f32 %v4919, %v5152
  %v5171 = vadd.f32 %v4920, %v5157
  %v5172 = vadd.f32 %v4921, %v5162
  %v5173 = vadd.f32 %v4922, %v5167
  %v5174 = vld [vmem:[%s12 + $0xe] sm:$0x1]
  %v5175 = vlaneseq
  %v5176 = vshrl.u32 %v5175, 7
  %v5177 = vsub.s32 0, %v5176
  %v5178 = vrot.slane %v5174, %v5177
  %v5179 = vadd.f32 %v5170, %v5178
  %v5180 = vadd.f32 %v5171, %v5178
  %v5181 = vadd.f32 %v5172, %v5178
  %v5182 = vadd.f32 %v5173, %v5178
  %v5183 = vld [vmem:[%s12 + $0xf] sm:$0x1]
  %v5184 = vld [vmem:[%s12 + $0x10] sm:$0x1]
  %v5185 = vsel %vm1265, %v5179, 0.0
  %5186 = vadd.xlane.f32.xlu0 %v5185
  %v5187 = vpop.xlane.xlu0 %5186
  %v5188 = vsel %vm1265, %v5180, 0.0
  %5189 = vadd.xlane.f32.xlu0 %v5188
  %v5190 = vpop.xlane.xlu0 %5189
  %v5191 = vsel %vm1265, %v5181, 0.0
  %5192 = vadd.xlane.f32.xlu0 %v5191
  %v5193 = vpop.xlane.xlu0 %5192
  %v5194 = vsel %vm1265, %v5182, 0.0
  %5195 = vadd.xlane.f32.xlu0 %v5194
  %v5196 = vpop.xlane.xlu0 %5195
  %v5197 = vmul.f32 %v5187, %v1633
  %v5198 = vmul.f32 %v5190, %v1633
  %v5199 = vmul.f32 %v5193, %v1633
  %v5200 = vmul.f32 %v5196, %v1633
  %v5201 = vsub.f32 %v5179, %v5197
  %v5202 = vsub.f32 %v5180, %v5198
  %v5203 = vsub.f32 %v5181, %v5199
  %v5204 = vsub.f32 %v5182, %v5200
  %v5205 = vmul.f32 %v5201, %v5201
  %v5206 = vmul.f32 %v5202, %v5202
  %v5207 = vmul.f32 %v5203, %v5203
  %v5208 = vmul.f32 %v5204, %v5204
  %v5209 = vsel %vm1265, %v5205, 0.0
  %5210 = vadd.xlane.f32.xlu0 %v5209
  %v5211 = vpop.xlane.xlu0 %5210
  %v5212 = vsel %vm1265, %v5206, 0.0
  %5213 = vadd.xlane.f32.xlu0 %v5212
  %v5214 = vpop.xlane.xlu0 %5213
  %v5215 = vsel %vm1265, %v5207, 0.0
  %5216 = vadd.xlane.f32.xlu0 %v5215
  %v5217 = vpop.xlane.xlu0 %5216
  %v5218 = vsel %vm1265, %v5208, 0.0
  %5219 = vadd.xlane.f32.xlu0 %v5218
  %v5220 = vpop.xlane.xlu0 %5219
  %v5221 = vmul.f32 %v5211, %v1633
  %v5222 = vmul.f32 %v5214, %v1633
  %v5223 = vmul.f32 %v5217, %v1633
  %v5224 = vmul.f32 %v5220, %v1633
  %v5225 = vadd.f32 %v5221, 1e-05
  %v5226 = vadd.f32 %v5222, 1e-05
  %v5227 = vadd.f32 %v5223, 1e-05
  %v5228 = vadd.f32 %v5224, 1e-05
  %v5229 = vrsqrt.pop %v5225
  %v5230 = vrsqrt.pop %v5226
  %v5231 = vrsqrt.pop %v5227
  %v5232 = vrsqrt.pop %v5228
  %v5233 = vmul.f32 %v5201, %v5229
  %v5234 = vmul.f32 %v5202, %v5230
  %v5235 = vmul.f32 %v5203, %v5231
  %v5236 = vmul.f32 %v5204, %v5232
  %v5237 = vlaneseq
  %v5238 = vshrl.u32 %v5237, 7
  %v5239 = vsub.s32 0, %v5238
  %v5240 = vrot.slane %v5183, %v5239
  %v5241 = vmul.f32 %v5233, %v5240
  %v5242 = vmul.f32 %v5234, %v5240
  %v5243 = vmul.f32 %v5235, %v5240
  %v5244 = vmul.f32 %v5236, %v5240
  %v5245 = vlaneseq
  %v5246 = vshrl.u32 %v5245, 7
  %v5247 = vsub.s32 0, %v5246
  %v5248 = vrot.slane %v5184, %v5247
  %v5249 = vadd.f32 %v5241, %v5248
  %v5250 = vadd.f32 %v5242, %v5248
  %v5251 = vadd.f32 %v5243, %v5248
  %v5252 = vadd.f32 %v5244, %v5248
  %s5253 = scalar_lea.vmem %s11, 16
  %v5254 = vld [vmem:[%s5253] sm:$0xff]
  %v5255 = vld [vmem:[%s5253 + $0x8] sm:$0xf]
  %s5256 = scalar_lea.vmem %s5, 64
  %v5257 = vld [vmem:[%s5256] sm:$0xff]
  %v5258 = vld [vmem:[%s5256 + $0x8] sm:$0xff]
  %v5259 = vlaneseq
  %v5260 = vshrl.u32 %v5259, 7
  %v5261 = vsub.s32 0, %v5260
  %v5262 = vrot.slane %v5254, %v5261
  %v5264 = vsel %vm1265, %v5249, 0
  %v5267 = vsel %vm1265, %v5250, 0
  %v5270 = vsel %vm1265, %v5251, 0
  %v5273 = vsel %vm1265, %v5252, 0
  %v5276 = vsel %vm1265, %v5257, 0
  %v5279 = vsel %vm1265, %v5258, 0
  %5281 = vmatprep.subr.mxu0 0.0
  %5282 = vmatpush1.xpose.msra.mxu0 0.0
  %5283 = vmatprep.subr.mxu0 0.0
  %5284 = vmatpush1.xpose.msra.mxu0 0.0
  %5285 = vmatprep.subr.mxu0 0.0
  %5286 = vmatpush1.xpose.msra.mxu0 0.0
  %5287 = vmatprep.subr.mxu0 0.0
  %5288 = vmatpush1.xpose.msra.mxu0 0.0
  %5289 = vmatprep.subr.mxu0 0.0
  %5290 = vmatpush1.xpose.msra.mxu0 0.0
  %5291 = vmatprep.subr.mxu0 0.0
  %5292 = vmatpush1.xpose.msra.mxu0 0.0
  %5293 = vmatprep.subr.mxu0 0.0
  %5294 = vmatpush1.xpose.msra.mxu0 0.0
  %5295 = vmatprep.subr.mxu0 0.0
  %5296 = vmatpush1.xpose.msra.mxu0 0.0
  %5297 = vmatprep.subr.mxu0 0.0
  %5298 = vmatpush1.xpose.msra.mxu0 0.0
  %5299 = vmatprep.subr.mxu0 0.0
  %5300 = vmatpush1.xpose.msra.mxu0 0.0
  %5301 = vmatprep.subr.mxu0 0.0
  %5302 = vmatpush1.xpose.msra.mxu0 0.0
  %5303 = vmatprep.subr.mxu0 0.0
  %5304 = vmatpush1.xpose.msra.mxu0 0.0
  %5305 = vmatprep.subr.mxu0 0.0
  %5306 = vmatpush1.xpose.msra.mxu0 0.0
  %5307 = vmatprep.subr.mxu0 0.0
  %5308 = vmatpush1.xpose.msra.mxu0 0.0
  %5309 = vmatprep.subr.mxu0 0.0
  %5310 = vmatpush1.xpose.msra.mxu0 %v5279
  %5311 = vmatprep.subr.mxu0 0.0
  %5312 = vmatpush1.xpose.msra.mxu0 %v5276
  %5313 = vmatprep.subr.mxu0 0.0
  %5314 = vmatpush2.xpose.msra.mxu0 0.0
  %5315 = vmatprep.subr.mxu0 0.0
  %5316 = vmatpush2.xpose.msra.mxu0 0.0
  %5317 = vmatprep.subr.mxu0 0.0
  %5318 = vmatpush2.xpose.msra.mxu0 0.0
  %5319 = vmatprep.subr.mxu0 0.0
  %5320 = vmatpush2.xpose.msra.mxu0 0.0
  %5321 = vmatprep.subr.mxu0 0.0
  %5322 = vmatpush2.xpose.msra.mxu0 0.0
  %5323 = vmatprep.subr.mxu0 0.0
  %5324 = vmatpush2.xpose.msra.mxu0 0.0
  %5325 = vmatprep.subr.mxu0 0.0
  %5326 = vmatpush2.xpose.msra.mxu0 0.0
  %5327 = vmatprep.subr.mxu0 0.0
  %5328 = vmatpush2.xpose.msra.mxu0 0.0
  %5329 = vmatprep.subr.mxu0 0.0
  %5330 = vmatpush2.xpose.msra.mxu0 0.0
  %5331 = vmatprep.subr.mxu0 0.0
  %5332 = vmatpush2.xpose.msra.mxu0 0.0
  %5333 = vmatprep.subr.mxu0 0.0
  %5334 = vmatpush2.xpose.msra.mxu0 0.0
  %5335 = vmatprep.subr.mxu0 0.0
  %5336 = vmatpush2.xpose.msra.mxu0 0.0
  %5337 = vmatprep.subr.mxu0 0.0
  %5338 = vmatpush2.xpose.msra.mxu0 0.0
  %5339 = vmatprep.subr.mxu0 0.0
  %5340 = vmatpush2.xpose.msra.mxu0 0.0
  %5341 = vmatprep.subr.mxu0 0.0
  %5342 = vmatpush2.xpose.msra.mxu0 0.0
  %5343 = vmatprep.subr.mxu0 0.0
  %5344 = vmatpush2.xpose.msra.mxu0 0.0
  %5345 = vmatprep.mubr.f32.mxu0 0.0
  %5346 = vmatmul.mubr.f32.gmra.mxu0 %v5264
  %v5347 = vpop.f32.mrf.mxu0
  %v5348 = vadd.f32 %v5262, %v5347
  %v5349 = vpop.f32.mrf.mxu0
  %5350 = vmatprep.mubr.f32.mxu0 0.0
  %5351 = vmatmul.mubr.f32.gmra.mxu0 %v5267
  %v5352 = vpop.f32.mrf.mxu0
  %v5353 = vadd.f32 %v5262, %v5352
  %v5354 = vpop.f32.mrf.mxu0
  %5355 = vmatprep.mubr.f32.mxu0 0.0
  %5356 = vmatmul.mubr.f32.gmra.mxu0 %v5270
  %v5357 = vpop.f32.mrf.mxu0
  %v5358 = vadd.f32 %v5262, %v5357
  %v5359 = vpop.f32.mrf.mxu0
  %5360 = vmatprep.mubr.f32.mxu0 0.0
  %5361 = vmatmul.mubr.f32.gmra.mxu0 %v5273
  %v5362 = vpop.f32.mrf.mxu0
  %v5363 = vadd.f32 %v5262, %v5362
  %v5364 = vpop.f32.mrf.mxu0
  %5365 = vdwg.mxu0
  %s5366 = scalar_lea.vmem %s6, 64
  %v5367 = vld [vmem:[%s5366] sm:$0xff]
  %v5368 = vld [vmem:[%s5366 + $0x8] sm:$0xff]
  %v5369 = vlaneseq
  %v5370 = vshrl.u32 %v5369, 7
  %v5371 = vsub.s32 4, %v5370
  %v5372 = vrot.slane %v5254, %v5371
  %v5374 = vsel %vm1265, %v5367, 0
  %v5377 = vsel %vm1265, %v5368, 0
  %5379 = vmatprep.subr.mxu0 0.0
  %5380 = vmatpush1.xpose.msra.mxu0 0.0
  %5381 = vmatprep.subr.mxu0 0.0
  %5382 = vmatpush1.xpose.msra.mxu0 0.0
  %5383 = vmatprep.subr.mxu0 0.0
  %5384 = vmatpush1.xpose.msra.mxu0 0.0
  %5385 = vmatprep.subr.mxu0 0.0
  %5386 = vmatpush1.xpose.msra.mxu0 0.0
  %5387 = vmatprep.subr.mxu0 0.0
  %5388 = vmatpush1.xpose.msra.mxu0 0.0
  %5389 = vmatprep.subr.mxu0 0.0
  %5390 = vmatpush1.xpose.msra.mxu0 0.0
  %5391 = vmatprep.subr.mxu0 0.0
  %5392 = vmatpush1.xpose.msra.mxu0 0.0
  %5393 = vmatprep.subr.mxu0 0.0
  %5394 = vmatpush1.xpose.msra.mxu0 0.0
  %5395 = vmatprep.subr.mxu0 0.0
  %5396 = vmatpush1.xpose.msra.mxu0 0.0
  %5397 = vmatprep.subr.mxu0 0.0
  %5398 = vmatpush1.xpose.msra.mxu0 0.0
  %5399 = vmatprep.subr.mxu0 0.0
  %5400 = vmatpush1.xpose.msra.mxu0 0.0
  %5401 = vmatprep.subr.mxu0 0.0
  %5402 = vmatpush1.xpose.msra.mxu0 0.0
  %5403 = vmatprep.subr.mxu0 0.0
  %5404 = vmatpush1.xpose.msra.mxu0 0.0
  %5405 = vmatprep.subr.mxu0 0.0
  %5406 = vmatpush1.xpose.msra.mxu0 0.0
  %5407 = vmatprep.subr.mxu0 0.0
  %5408 = vmatpush1.xpose.msra.mxu0 %v5377
  %5409 = vmatprep.subr.mxu0 0.0
  %5410 = vmatpush1.xpose.msra.mxu0 %v5374
  %5411 = vmatprep.subr.mxu0 0.0
  %5412 = vmatpush2.xpose.msra.mxu0 0.0
  %5413 = vmatprep.subr.mxu0 0.0
  %5414 = vmatpush2.xpose.msra.mxu0 0.0
  %5415 = vmatprep.subr.mxu0 0.0
  %5416 = vmatpush2.xpose.msra.mxu0 0.0
  %5417 = vmatprep.subr.mxu0 0.0
  %5418 = vmatpush2.xpose.msra.mxu0 0.0
  %5419 = vmatprep.subr.mxu0 0.0
  %5420 = vmatpush2.xpose.msra.mxu0 0.0
  %5421 = vmatprep.subr.mxu0 0.0
  %5422 = vmatpush2.xpose.msra.mxu0 0.0
  %5423 = vmatprep.subr.mxu0 0.0
  %5424 = vmatpush2.xpose.msra.mxu0 0.0
  %5425 = vmatprep.subr.mxu0 0.0
  %5426 = vmatpush2.xpose.msra.mxu0 0.0
  %5427 = vmatprep.subr.mxu0 0.0
  %5428 = vmatpush2.xpose.msra.mxu0 0.0
  %5429 = vmatprep.subr.mxu0 0.0
  %5430 = vmatpush2.xpose.msra.mxu0 0.0
  %5431 = vmatprep.subr.mxu0 0.0
  %5432 = vmatpush2.xpose.msra.mxu0 0.0
  %5433 = vmatprep.subr.mxu0 0.0
  %5434 = vmatpush2.xpose.msra.mxu0 0.0
  %5435 = vmatprep.subr.mxu0 0.0
  %5436 = vmatpush2.xpose.msra.mxu0 0.0
  %5437 = vmatprep.subr.mxu0 0.0
  %5438 = vmatpush2.xpose.msra.mxu0 0.0
  %5439 = vmatprep.subr.mxu0 0.0
  %5440 = vmatpush2.xpose.msra.mxu0 0.0
  %5441 = vmatprep.subr.mxu0 0.0
  %5442 = vmatpush2.xpose.msra.mxu0 0.0
  %5443 = vmatprep.mubr.f32.mxu0 0.0
  %5444 = vmatmul.mubr.f32.gmra.mxu0 %v5264
  %v5445 = vpop.f32.mrf.mxu0
  %v5446 = vadd.f32 %v5372, %v5445
  %v5447 = vpop.f32.mrf.mxu0
  %5448 = vmatprep.mubr.f32.mxu0 0.0
  %5449 = vmatmul.mubr.f32.gmra.mxu0 %v5267
  %v5450 = vpop.f32.mrf.mxu0
  %v5451 = vadd.f32 %v5372, %v5450
  %v5452 = vpop.f32.mrf.mxu0
  %5453 = vmatprep.mubr.f32.mxu0 0.0
  %5454 = vmatmul.mubr.f32.gmra.mxu0 %v5270
  %v5455 = vpop.f32.mrf.mxu0
  %v5456 = vadd.f32 %v5372, %v5455
  %v5457 = vpop.f32.mrf.mxu0
  %5458 = vmatprep.mubr.f32.mxu0 0.0
  %5459 = vmatmul.mubr.f32.gmra.mxu0 %v5273
  %v5460 = vpop.f32.mrf.mxu0
  %v5461 = vadd.f32 %v5372, %v5460
  %v5462 = vpop.f32.mrf.mxu0
  %5463 = vdwg.mxu0
  %s5464 = scalar_lea.vmem %s7, 64
  %v5465 = vld [vmem:[%s5464] sm:$0xff]
  %v5466 = vld [vmem:[%s5464 + $0x8] sm:$0xff]
  %v5467 = vlaneseq
  %v5468 = vshrl.u32 %v5467, 7
  %v5469 = vsub.s32 0, %v5468
  %v5470 = vrot.slane %v5255, %v5469
  %v5472 = vsel %vm1265, %v5465, 0
  %v5475 = vsel %vm1265, %v5466, 0
  %5477 = vmatprep.subr.mxu0 0.0
  %5478 = vmatpush1.xpose.msra.mxu0 0.0
  %5479 = vmatprep.subr.mxu0 0.0
  %5480 = vmatpush1.xpose.msra.mxu0 0.0
  %5481 = vmatprep.subr.mxu0 0.0
  %5482 = vmatpush1.xpose.msra.mxu0 0.0
  %5483 = vmatprep.subr.mxu0 0.0
  %5484 = vmatpush1.xpose.msra.mxu0 0.0
  %5485 = vmatprep.subr.mxu0 0.0
  %5486 = vmatpush1.xpose.msra.mxu0 0.0
  %5487 = vmatprep.subr.mxu0 0.0
  %5488 = vmatpush1.xpose.msra.mxu0 0.0
  %5489 = vmatprep.subr.mxu0 0.0
  %5490 = vmatpush1.xpose.msra.mxu0 0.0
  %5491 = vmatprep.subr.mxu0 0.0
  %5492 = vmatpush1.xpose.msra.mxu0 0.0
  %5493 = vmatprep.subr.mxu0 0.0
  %5494 = vmatpush1.xpose.msra.mxu0 0.0
  %5495 = vmatprep.subr.mxu0 0.0
  %5496 = vmatpush1.xpose.msra.mxu0 0.0
  %5497 = vmatprep.subr.mxu0 0.0
  %5498 = vmatpush1.xpose.msra.mxu0 0.0
  %5499 = vmatprep.subr.mxu0 0.0
  %5500 = vmatpush1.xpose.msra.mxu0 0.0
  %5501 = vmatprep.subr.mxu0 0.0
  %5502 = vmatpush1.xpose.msra.mxu0 0.0
  %5503 = vmatprep.subr.mxu0 0.0
  %5504 = vmatpush1.xpose.msra.mxu0 0.0
  %5505 = vmatprep.subr.mxu0 0.0
  %5506 = vmatpush1.xpose.msra.mxu0 %v5475
  %5507 = vmatprep.subr.mxu0 0.0
  %5508 = vmatpush1.xpose.msra.mxu0 %v5472
  %5509 = vmatprep.subr.mxu0 0.0
  %5510 = vmatpush2.xpose.msra.mxu0 0.0
  %5511 = vmatprep.subr.mxu0 0.0
  %5512 = vmatpush2.xpose.msra.mxu0 0.0
  %5513 = vmatprep.subr.mxu0 0.0
  %5514 = vmatpush2.xpose.msra.mxu0 0.0
  %5515 = vmatprep.subr.mxu0 0.0
  %5516 = vmatpush2.xpose.msra.mxu0 0.0
  %5517 = vmatprep.subr.mxu0 0.0
  %5518 = vmatpush2.xpose.msra.mxu0 0.0
  %5519 = vmatprep.subr.mxu0 0.0
  %5520 = vmatpush2.xpose.msra.mxu0 0.0
  %5521 = vmatprep.subr.mxu0 0.0
  %5522 = vmatpush2.xpose.msra.mxu0 0.0
  %5523 = vmatprep.subr.mxu0 0.0
  %5524 = vmatpush2.xpose.msra.mxu0 0.0
  %5525 = vmatprep.subr.mxu0 0.0
  %5526 = vmatpush2.xpose.msra.mxu0 0.0
  %5527 = vmatprep.subr.mxu0 0.0
  %5528 = vmatpush2.xpose.msra.mxu0 0.0
  %5529 = vmatprep.subr.mxu0 0.0
  %5530 = vmatpush2.xpose.msra.mxu0 0.0
  %5531 = vmatprep.subr.mxu0 0.0
  %5532 = vmatpush2.xpose.msra.mxu0 0.0
  %5533 = vmatprep.subr.mxu0 0.0
  %5534 = vmatpush2.xpose.msra.mxu0 0.0
  %5535 = vmatprep.subr.mxu0 0.0
  %5536 = vmatpush2.xpose.msra.mxu0 0.0
  %5537 = vmatprep.subr.mxu0 0.0
  %5538 = vmatpush2.xpose.msra.mxu0 0.0
  %5539 = vmatprep.subr.mxu0 0.0
  %5540 = vmatpush2.xpose.msra.mxu0 0.0
  %5541 = vmatprep.mubr.f32.mxu0 0.0
  %5542 = vmatmul.mubr.f32.gmra.mxu0 %v5264
  %v5543 = vpop.f32.mrf.mxu0
  %v5544 = vadd.f32 %v5470, %v5543
  %v5545 = vpop.f32.mrf.mxu0
  %5546 = vmatprep.mubr.f32.mxu0 0.0
  %5547 = vmatmul.mubr.f32.gmra.mxu0 %v5267
  %v5548 = vpop.f32.mrf.mxu0
  %v5549 = vadd.f32 %v5470, %v5548
  %v5550 = vpop.f32.mrf.mxu0
  %5551 = vmatprep.mubr.f32.mxu0 0.0
  %5552 = vmatmul.mubr.f32.gmra.mxu0 %v5270
  %v5553 = vpop.f32.mrf.mxu0
  %v5554 = vadd.f32 %v5470, %v5553
  %v5555 = vpop.f32.mrf.mxu0
  %5556 = vmatprep.mubr.f32.mxu0 0.0
  %5557 = vmatmul.mubr.f32.gmra.mxu0 %v5273
  %v5558 = vpop.f32.mrf.mxu0
  %v5559 = vadd.f32 %v5470, %v5558
  %v5560 = vpop.f32.mrf.mxu0
  %5561 = vdwg.mxu0
  %v5562 = vmul.f32 %v5348, 0.25
  %v5563 = vmul.f32 %v5353, 0.25
  %v5564 = vmul.f32 %v5358, 0.25
  %v5565 = vmul.f32 %v5363, 0.25
  %v5567 = vsel %vm2002, %v5562, 0
  %v5570 = vsel %vm2002, %v5563, 0
  %v5573 = vsel %vm2002, %v5446, 0
  %v5576 = vsel %vm2002, %v5451, 0
  %5578 = vmatprep.subr.mxu0 0.0
  %5579 = vmatpush1.xpose.msra.mxu0 0.0
  %5580 = vmatprep.subr.mxu0 0.0
  %5581 = vmatpush1.xpose.msra.mxu0 0.0
  %5582 = vmatprep.subr.mxu0 0.0
  %5583 = vmatpush1.xpose.msra.mxu0 0.0
  %5584 = vmatprep.subr.mxu0 0.0
  %5585 = vmatpush1.xpose.msra.mxu0 0.0
  %5586 = vmatprep.subr.mxu0 0.0
  %5587 = vmatpush1.xpose.msra.mxu0 0.0
  %5588 = vmatprep.subr.mxu0 0.0
  %5589 = vmatpush1.xpose.msra.mxu0 0.0
  %5590 = vmatprep.subr.mxu0 0.0
  %5591 = vmatpush1.xpose.msra.mxu0 0.0
  %5592 = vmatprep.subr.mxu0 0.0
  %5593 = vmatpush1.xpose.msra.mxu0 0.0
  %5594 = vmatprep.subr.mxu0 0.0
  %5595 = vmatpush1.xpose.msra.mxu0 0.0
  %5596 = vmatprep.subr.mxu0 0.0
  %5597 = vmatpush1.xpose.msra.mxu0 0.0
  %5598 = vmatprep.subr.mxu0 0.0
  %5599 = vmatpush1.xpose.msra.mxu0 0.0
  %5600 = vmatprep.subr.mxu0 0.0
  %5601 = vmatpush1.xpose.msra.mxu0 0.0
  %5602 = vmatprep.subr.mxu0 0.0
  %5603 = vmatpush1.xpose.msra.mxu0 0.0
  %5604 = vmatprep.subr.mxu0 0.0
  %5605 = vmatpush1.xpose.msra.mxu0 0.0
  %5606 = vmatprep.subr.mxu0 0.0
  %5607 = vmatpush1.xpose.msra.mxu0 %v5576
  %5608 = vmatprep.subr.mxu0 0.0
  %5609 = vmatpush1.xpose.msra.mxu0 %v5573
  %5610 = vmatprep.subr.mxu0 0.0
  %5611 = vmatpush2.xpose.msra.mxu0 0.0
  %5612 = vmatprep.subr.mxu0 0.0
  %5613 = vmatpush2.xpose.msra.mxu0 0.0
  %5614 = vmatprep.subr.mxu0 0.0
  %5615 = vmatpush2.xpose.msra.mxu0 0.0
  %5616 = vmatprep.subr.mxu0 0.0
  %5617 = vmatpush2.xpose.msra.mxu0 0.0
  %5618 = vmatprep.subr.mxu0 0.0
  %5619 = vmatpush2.xpose.msra.mxu0 0.0
  %5620 = vmatprep.subr.mxu0 0.0
  %5621 = vmatpush2.xpose.msra.mxu0 0.0
  %5622 = vmatprep.subr.mxu0 0.0
  %5623 = vmatpush2.xpose.msra.mxu0 0.0
  %5624 = vmatprep.subr.mxu0 0.0
  %5625 = vmatpush2.xpose.msra.mxu0 0.0
  %5626 = vmatprep.subr.mxu0 0.0
  %5627 = vmatpush2.xpose.msra.mxu0 0.0
  %5628 = vmatprep.subr.mxu0 0.0
  %5629 = vmatpush2.xpose.msra.mxu0 0.0
  %5630 = vmatprep.subr.mxu0 0.0
  %5631 = vmatpush2.xpose.msra.mxu0 0.0
  %5632 = vmatprep.subr.mxu0 0.0
  %5633 = vmatpush2.xpose.msra.mxu0 0.0
  %5634 = vmatprep.subr.mxu0 0.0
  %5635 = vmatpush2.xpose.msra.mxu0 0.0
  %5636 = vmatprep.subr.mxu0 0.0
  %5637 = vmatpush2.xpose.msra.mxu0 0.0
  %5638 = vmatprep.subr.mxu0 0.0
  %5639 = vmatpush2.xpose.msra.mxu0 0.0
  %5640 = vmatprep.subr.mxu0 0.0
  %5641 = vmatpush2.xpose.msra.mxu0 0.0
  %5642 = vmatprep.mubr.f32.mxu0 0.0
  %5643 = vmatmul.mubr.f32.gmra.mxu0 %v5567
  %v5644 = vpop.f32.mrf.mxu0
  %v5645 = vadd.f32 0.0, %v5644
  %v5646 = vpop.f32.mrf.mxu0
  %5647 = vmatprep.mubr.f32.mxu0 0.0
  %5648 = vmatmul.mubr.f32.gmra.mxu0 %v5570
  %v5649 = vpop.f32.mrf.mxu0
  %v5650 = vadd.f32 0.0, %v5649
  %v5651 = vpop.f32.mrf.mxu0
  %5652 = vdwg.mxu0
  %v5654 = vsel %vm2002, %v5564, 0
  %v5657 = vsel %vm2002, %v5565, 0
  %v5660 = vsel %vm2002, %v5456, 0
  %v5663 = vsel %vm2002, %v5461, 0
  %5665 = vmatprep.subr.mxu0 0.0
  %5666 = vmatpush1.xpose.msra.mxu0 0.0
  %5667 = vmatprep.subr.mxu0 0.0
  %5668 = vmatpush1.xpose.msra.mxu0 0.0
  %5669 = vmatprep.subr.mxu0 0.0
  %5670 = vmatpush1.xpose.msra.mxu0 0.0
  %5671 = vmatprep.subr.mxu0 0.0
  %5672 = vmatpush1.xpose.msra.mxu0 0.0
  %5673 = vmatprep.subr.mxu0 0.0
  %5674 = vmatpush1.xpose.msra.mxu0 0.0
  %5675 = vmatprep.subr.mxu0 0.0
  %5676 = vmatpush1.xpose.msra.mxu0 0.0
  %5677 = vmatprep.subr.mxu0 0.0
  %5678 = vmatpush1.xpose.msra.mxu0 0.0
  %5679 = vmatprep.subr.mxu0 0.0
  %5680 = vmatpush1.xpose.msra.mxu0 0.0
  %5681 = vmatprep.subr.mxu0 0.0
  %5682 = vmatpush1.xpose.msra.mxu0 0.0
  %5683 = vmatprep.subr.mxu0 0.0
  %5684 = vmatpush1.xpose.msra.mxu0 0.0
  %5685 = vmatprep.subr.mxu0 0.0
  %5686 = vmatpush1.xpose.msra.mxu0 0.0
  %5687 = vmatprep.subr.mxu0 0.0
  %5688 = vmatpush1.xpose.msra.mxu0 0.0
  %5689 = vmatprep.subr.mxu0 0.0
  %5690 = vmatpush1.xpose.msra.mxu0 0.0
  %5691 = vmatprep.subr.mxu0 0.0
  %5692 = vmatpush1.xpose.msra.mxu0 0.0
  %5693 = vmatprep.subr.mxu0 0.0
  %5694 = vmatpush1.xpose.msra.mxu0 %v5663
  %5695 = vmatprep.subr.mxu0 0.0
  %5696 = vmatpush1.xpose.msra.mxu0 %v5660
  %5697 = vmatprep.subr.mxu0 0.0
  %5698 = vmatpush2.xpose.msra.mxu0 0.0
  %5699 = vmatprep.subr.mxu0 0.0
  %5700 = vmatpush2.xpose.msra.mxu0 0.0
  %5701 = vmatprep.subr.mxu0 0.0
  %5702 = vmatpush2.xpose.msra.mxu0 0.0
  %5703 = vmatprep.subr.mxu0 0.0
  %5704 = vmatpush2.xpose.msra.mxu0 0.0
  %5705 = vmatprep.subr.mxu0 0.0
  %5706 = vmatpush2.xpose.msra.mxu0 0.0
  %5707 = vmatprep.subr.mxu0 0.0
  %5708 = vmatpush2.xpose.msra.mxu0 0.0
  %5709 = vmatprep.subr.mxu0 0.0
  %5710 = vmatpush2.xpose.msra.mxu0 0.0
  %5711 = vmatprep.subr.mxu0 0.0
  %5712 = vmatpush2.xpose.msra.mxu0 0.0
  %5713 = vmatprep.subr.mxu0 0.0
  %5714 = vmatpush2.xpose.msra.mxu0 0.0
  %5715 = vmatprep.subr.mxu0 0.0
  %5716 = vmatpush2.xpose.msra.mxu0 0.0
  %5717 = vmatprep.subr.mxu0 0.0
  %5718 = vmatpush2.xpose.msra.mxu0 0.0
  %5719 = vmatprep.subr.mxu0 0.0
  %5720 = vmatpush2.xpose.msra.mxu0 0.0
  %5721 = vmatprep.subr.mxu0 0.0
  %5722 = vmatpush2.xpose.msra.mxu0 0.0
  %5723 = vmatprep.subr.mxu0 0.0
  %5724 = vmatpush2.xpose.msra.mxu0 0.0
  %5725 = vmatprep.subr.mxu0 0.0
  %5726 = vmatpush2.xpose.msra.mxu0 0.0
  %5727 = vmatprep.subr.mxu0 0.0
  %5728 = vmatpush2.xpose.msra.mxu0 0.0
  %5729 = vmatprep.mubr.f32.mxu0 0.0
  %5730 = vmatmul.mubr.f32.gmra.mxu0 %v5654
  %v5731 = vpop.f32.mrf.mxu0
  %v5732 = vadd.f32 0.0, %v5731
  %v5733 = vpop.f32.mrf.mxu0
  %5734 = vmatprep.mubr.f32.mxu0 0.0
  %5735 = vmatmul.mubr.f32.gmra.mxu0 %v5657
  %v5736 = vpop.f32.mrf.mxu0
  %v5737 = vadd.f32 0.0, %v5736
  %v5738 = vpop.f32.mrf.mxu0
  %5739 = vdwg.mxu0
  %v5740 = vsel %vm1692, %v5645, -1e+30
  %v5741 = vsel %vm1692, %v5650, -1e+30
  %v5742 = vsel %vm1692, %v5732, -1e+30
  %v5743 = vsel %vm1692, %v5737, -1e+30
  %v5744 = vsel %vm2002, %v5740, -inf
  %5745 = vmax.xlane.f32.xlu0 %v5744
  %v5746 = vpop.xlane.xlu0 %5745
  %v5747 = vsel %vm2002, %v5741, -inf
  %5748 = vmax.xlane.f32.xlu0 %v5747
  %v5749 = vpop.xlane.xlu0 %5748
  %v5750 = vsel %vm2002, %v5742, -inf
  %5751 = vmax.xlane.f32.xlu0 %v5750
  %v5752 = vpop.xlane.xlu0 %5751
  %v5753 = vsel %vm2002, %v5743, -inf
  %5754 = vmax.xlane.f32.xlu0 %v5753
  %v5755 = vpop.xlane.xlu0 %5754
  %v5756 = vsub.f32 %v5740, %v5746
  %v5757 = vsub.f32 %v5741, %v5749
  %v5758 = vsub.f32 %v5742, %v5752
  %v5759 = vsub.f32 %v5743, %v5755
  %v5760 = vmul.f32 %v5756, 1.442695
  %v5761 = vpow.pop %v5760
  %v5762 = vmul.f32 %v5757, 1.442695
  %v5763 = vpow.pop %v5762
  %v5764 = vmul.f32 %v5758, 1.442695
  %v5765 = vpow.pop %v5764
  %v5766 = vmul.f32 %v5759, 1.442695
  %v5767 = vpow.pop %v5766
  %v5768 = vsel %vm2002, %v5761, 0.0
  %5769 = vadd.xlane.f32.xlu0 %v5768
  %v5770 = vpop.xlane.xlu0 %5769
  %v5771 = vsel %vm2002, %v5763, 0.0
  %5772 = vadd.xlane.f32.xlu0 %v5771
  %v5773 = vpop.xlane.xlu0 %5772
  %v5774 = vsel %vm2002, %v5765, 0.0
  %5775 = vadd.xlane.f32.xlu0 %v5774
  %v5776 = vpop.xlane.xlu0 %5775
  %v5777 = vsel %vm2002, %v5767, 0.0
  %5778 = vadd.xlane.f32.xlu0 %v5777
  %v5779 = vpop.xlane.xlu0 %5778
  %v5780 = vrcp.pop %v5770
  %v5781 = vrcp.pop %v5773
  %v5782 = vrcp.pop %v5776
  %v5783 = vrcp.pop %v5779
  %v5784 = vmul.f32 %v5761, %v5780
  %v5785 = vmul.f32 %v5763, %v5781
  %v5786 = vmul.f32 %v5765, %v5782
  %v5787 = vmul.f32 %v5767, %v5783
  %v5789 = vsel %vm2002, %v5784, 0
  %v5792 = vsel %vm2002, %v5785, 0
  %5794 = vmatprep.subr.mxu0 0.0
  %5795 = vmatpush1.msra.mxu0 0.0
  %5796 = vmatprep.subr.mxu0 0.0
  %5797 = vmatpush1.msra.mxu0 0.0
  %5798 = vmatprep.subr.mxu0 0.0
  %5799 = vmatpush1.msra.mxu0 0.0
  %5800 = vmatprep.subr.mxu0 0.0
  %5801 = vmatpush1.msra.mxu0 0.0
  %5802 = vmatprep.subr.mxu0 0.0
  %5803 = vmatpush1.msra.mxu0 0.0
  %5804 = vmatprep.subr.mxu0 0.0
  %5805 = vmatpush1.msra.mxu0 0.0
  %5806 = vmatprep.subr.mxu0 0.0
  %5807 = vmatpush1.msra.mxu0 0.0
  %5808 = vmatprep.subr.mxu0 0.0
  %5809 = vmatpush1.msra.mxu0 0.0
  %5810 = vmatprep.subr.mxu0 0.0
  %5811 = vmatpush1.msra.mxu0 0.0
  %5812 = vmatprep.subr.mxu0 0.0
  %5813 = vmatpush1.msra.mxu0 0.0
  %5814 = vmatprep.subr.mxu0 0.0
  %5815 = vmatpush1.msra.mxu0 0.0
  %5816 = vmatprep.subr.mxu0 0.0
  %5817 = vmatpush1.msra.mxu0 0.0
  %5818 = vmatprep.subr.mxu0 0.0
  %5819 = vmatpush1.msra.mxu0 0.0
  %5820 = vmatprep.subr.mxu0 0.0
  %5821 = vmatpush1.msra.mxu0 0.0
  %5822 = vmatprep.subr.mxu0 0.0
  %5823 = vmatpush1.msra.mxu0 %v5549
  %5824 = vmatprep.subr.mxu0 0.0
  %5825 = vmatpush1.msra.mxu0 %v5544
  %5826 = vmatprep.subr.mxu0 0.0
  %5827 = vmatpush2.msra.mxu0 0.0
  %5828 = vmatprep.subr.mxu0 0.0
  %5829 = vmatpush2.msra.mxu0 0.0
  %5830 = vmatprep.subr.mxu0 0.0
  %5831 = vmatpush2.msra.mxu0 0.0
  %5832 = vmatprep.subr.mxu0 0.0
  %5833 = vmatpush2.msra.mxu0 0.0
  %5834 = vmatprep.subr.mxu0 0.0
  %5835 = vmatpush2.msra.mxu0 0.0
  %5836 = vmatprep.subr.mxu0 0.0
  %5837 = vmatpush2.msra.mxu0 0.0
  %5838 = vmatprep.subr.mxu0 0.0
  %5839 = vmatpush2.msra.mxu0 0.0
  %5840 = vmatprep.subr.mxu0 0.0
  %5841 = vmatpush2.msra.mxu0 0.0
  %5842 = vmatprep.subr.mxu0 0.0
  %5843 = vmatpush2.msra.mxu0 0.0
  %5844 = vmatprep.subr.mxu0 0.0
  %5845 = vmatpush2.msra.mxu0 0.0
  %5846 = vmatprep.subr.mxu0 0.0
  %5847 = vmatpush2.msra.mxu0 0.0
  %5848 = vmatprep.subr.mxu0 0.0
  %5849 = vmatpush2.msra.mxu0 0.0
  %5850 = vmatprep.subr.mxu0 0.0
  %5851 = vmatpush2.msra.mxu0 0.0
  %5852 = vmatprep.subr.mxu0 0.0
  %5853 = vmatpush2.msra.mxu0 0.0
  %5854 = vmatprep.subr.mxu0 0.0
  %5855 = vmatpush2.msra.mxu0 0.0
  %5856 = vmatprep.subr.mxu0 0.0
  %5857 = vmatpush2.msra.mxu0 0.0
  %5858 = vmatprep.mubr.f32.mxu0 0.0
  %5859 = vmatmul.mubr.f32.gmra.mxu0 %v5789
  %v5860 = vpop.f32.mrf.mxu0
  %v5861 = vadd.f32 0.0, %v5860
  %v5862 = vpop.f32.mrf.mxu0
  %5863 = vmatprep.mubr.f32.mxu0 0.0
  %5864 = vmatmul.mubr.f32.gmra.mxu0 %v5792
  %v5865 = vpop.f32.mrf.mxu0
  %v5866 = vadd.f32 0.0, %v5865
  %v5867 = vpop.f32.mrf.mxu0
  %5868 = vdwg.mxu0
  %v5870 = vsel %vm2002, %v5786, 0
  %v5873 = vsel %vm2002, %v5787, 0
  %5875 = vmatprep.subr.mxu0 0.0
  %5876 = vmatpush1.msra.mxu0 0.0
  %5877 = vmatprep.subr.mxu0 0.0
  %5878 = vmatpush1.msra.mxu0 0.0
  %5879 = vmatprep.subr.mxu0 0.0
  %5880 = vmatpush1.msra.mxu0 0.0
  %5881 = vmatprep.subr.mxu0 0.0
  %5882 = vmatpush1.msra.mxu0 0.0
  %5883 = vmatprep.subr.mxu0 0.0
  %5884 = vmatpush1.msra.mxu0 0.0
  %5885 = vmatprep.subr.mxu0 0.0
  %5886 = vmatpush1.msra.mxu0 0.0
  %5887 = vmatprep.subr.mxu0 0.0
  %5888 = vmatpush1.msra.mxu0 0.0
  %5889 = vmatprep.subr.mxu0 0.0
  %5890 = vmatpush1.msra.mxu0 0.0
  %5891 = vmatprep.subr.mxu0 0.0
  %5892 = vmatpush1.msra.mxu0 0.0
  %5893 = vmatprep.subr.mxu0 0.0
  %5894 = vmatpush1.msra.mxu0 0.0
  %5895 = vmatprep.subr.mxu0 0.0
  %5896 = vmatpush1.msra.mxu0 0.0
  %5897 = vmatprep.subr.mxu0 0.0
  %5898 = vmatpush1.msra.mxu0 0.0
  %5899 = vmatprep.subr.mxu0 0.0
  %5900 = vmatpush1.msra.mxu0 0.0
  %5901 = vmatprep.subr.mxu0 0.0
  %5902 = vmatpush1.msra.mxu0 0.0
  %5903 = vmatprep.subr.mxu0 0.0
  %5904 = vmatpush1.msra.mxu0 %v5559
  %5905 = vmatprep.subr.mxu0 0.0
  %5906 = vmatpush1.msra.mxu0 %v5554
  %5907 = vmatprep.subr.mxu0 0.0
  %5908 = vmatpush2.msra.mxu0 0.0
  %5909 = vmatprep.subr.mxu0 0.0
  %5910 = vmatpush2.msra.mxu0 0.0
  %5911 = vmatprep.subr.mxu0 0.0
  %5912 = vmatpush2.msra.mxu0 0.0
  %5913 = vmatprep.subr.mxu0 0.0
  %5914 = vmatpush2.msra.mxu0 0.0
  %5915 = vmatprep.subr.mxu0 0.0
  %5916 = vmatpush2.msra.mxu0 0.0
  %5917 = vmatprep.subr.mxu0 0.0
  %5918 = vmatpush2.msra.mxu0 0.0
  %5919 = vmatprep.subr.mxu0 0.0
  %5920 = vmatpush2.msra.mxu0 0.0
  %5921 = vmatprep.subr.mxu0 0.0
  %5922 = vmatpush2.msra.mxu0 0.0
  %5923 = vmatprep.subr.mxu0 0.0
  %5924 = vmatpush2.msra.mxu0 0.0
  %5925 = vmatprep.subr.mxu0 0.0
  %5926 = vmatpush2.msra.mxu0 0.0
  %5927 = vmatprep.subr.mxu0 0.0
  %5928 = vmatpush2.msra.mxu0 0.0
  %5929 = vmatprep.subr.mxu0 0.0
  %5930 = vmatpush2.msra.mxu0 0.0
  %5931 = vmatprep.subr.mxu0 0.0
  %5932 = vmatpush2.msra.mxu0 0.0
  %5933 = vmatprep.subr.mxu0 0.0
  %5934 = vmatpush2.msra.mxu0 0.0
  %5935 = vmatprep.subr.mxu0 0.0
  %5936 = vmatpush2.msra.mxu0 0.0
  %5937 = vmatprep.subr.mxu0 0.0
  %5938 = vmatpush2.msra.mxu0 0.0
  %5939 = vmatprep.mubr.f32.mxu0 0.0
  %5940 = vmatmul.mubr.f32.gmra.mxu0 %v5870
  %v5941 = vpop.f32.mrf.mxu0
  %v5942 = vadd.f32 0.0, %v5941
  %v5943 = vpop.f32.mrf.mxu0
  %5944 = vmatprep.mubr.f32.mxu0 0.0
  %5945 = vmatmul.mubr.f32.gmra.mxu0 %v5873
  %v5946 = vpop.f32.mrf.mxu0
  %v5947 = vadd.f32 0.0, %v5946
  %v5948 = vpop.f32.mrf.mxu0
  %5949 = vdwg.mxu0
  %s5950 = scalar_lea.vmem %s8, 64
  %v5951 = vld [vmem:[%s5950] sm:$0xff]
  %v5952 = vld [vmem:[%s5950 + $0x8] sm:$0xff]
  %s5953 = scalar_lea.vmem %s5, 80
  %v5954 = vld [vmem:[%s5953] sm:$0xff]
  %v5955 = vld [vmem:[%s5953 + $0x8] sm:$0xff]
  %v5956 = vlaneseq
  %v5957 = vshrl.u32 %v5956, 7
  %v5958 = vsub.s32 1, %v5957
  %v5959 = vrot.slane %v5254, %v5958
  %v5961 = vsel %vm1265, %v5954, 0
  %v5964 = vsel %vm1265, %v5955, 0
  %5966 = vmatprep.subr.mxu0 0.0
  %5967 = vmatpush1.xpose.msra.mxu0 0.0
  %5968 = vmatprep.subr.mxu0 0.0
  %5969 = vmatpush1.xpose.msra.mxu0 0.0
  %5970 = vmatprep.subr.mxu0 0.0
  %5971 = vmatpush1.xpose.msra.mxu0 0.0
  %5972 = vmatprep.subr.mxu0 0.0
  %5973 = vmatpush1.xpose.msra.mxu0 0.0
  %5974 = vmatprep.subr.mxu0 0.0
  %5975 = vmatpush1.xpose.msra.mxu0 0.0
  %5976 = vmatprep.subr.mxu0 0.0
  %5977 = vmatpush1.xpose.msra.mxu0 0.0
  %5978 = vmatprep.subr.mxu0 0.0
  %5979 = vmatpush1.xpose.msra.mxu0 0.0
  %5980 = vmatprep.subr.mxu0 0.0
  %5981 = vmatpush1.xpose.msra.mxu0 0.0
  %5982 = vmatprep.subr.mxu0 0.0
  %5983 = vmatpush1.xpose.msra.mxu0 0.0
  %5984 = vmatprep.subr.mxu0 0.0
  %5985 = vmatpush1.xpose.msra.mxu0 0.0
  %5986 = vmatprep.subr.mxu0 0.0
  %5987 = vmatpush1.xpose.msra.mxu0 0.0
  %5988 = vmatprep.subr.mxu0 0.0
  %5989 = vmatpush1.xpose.msra.mxu0 0.0
  %5990 = vmatprep.subr.mxu0 0.0
  %5991 = vmatpush1.xpose.msra.mxu0 0.0
  %5992 = vmatprep.subr.mxu0 0.0
  %5993 = vmatpush1.xpose.msra.mxu0 0.0
  %5994 = vmatprep.subr.mxu0 0.0
  %5995 = vmatpush1.xpose.msra.mxu0 %v5964
  %5996 = vmatprep.subr.mxu0 0.0
  %5997 = vmatpush1.xpose.msra.mxu0 %v5961
  %5998 = vmatprep.subr.mxu0 0.0
  %5999 = vmatpush2.xpose.msra.mxu0 0.0
  %6000 = vmatprep.subr.mxu0 0.0
  %6001 = vmatpush2.xpose.msra.mxu0 0.0
  %6002 = vmatprep.subr.mxu0 0.0
  %6003 = vmatpush2.xpose.msra.mxu0 0.0
  %6004 = vmatprep.subr.mxu0 0.0
  %6005 = vmatpush2.xpose.msra.mxu0 0.0
  %6006 = vmatprep.subr.mxu0 0.0
  %6007 = vmatpush2.xpose.msra.mxu0 0.0
  %6008 = vmatprep.subr.mxu0 0.0
  %6009 = vmatpush2.xpose.msra.mxu0 0.0
  %6010 = vmatprep.subr.mxu0 0.0
  %6011 = vmatpush2.xpose.msra.mxu0 0.0
  %6012 = vmatprep.subr.mxu0 0.0
  %6013 = vmatpush2.xpose.msra.mxu0 0.0
  %6014 = vmatprep.subr.mxu0 0.0
  %6015 = vmatpush2.xpose.msra.mxu0 0.0
  %6016 = vmatprep.subr.mxu0 0.0
  %6017 = vmatpush2.xpose.msra.mxu0 0.0
  %6018 = vmatprep.subr.mxu0 0.0
  %6019 = vmatpush2.xpose.msra.mxu0 0.0
  %6020 = vmatprep.subr.mxu0 0.0
  %6021 = vmatpush2.xpose.msra.mxu0 0.0
  %6022 = vmatprep.subr.mxu0 0.0
  %6023 = vmatpush2.xpose.msra.mxu0 0.0
  %6024 = vmatprep.subr.mxu0 0.0
  %6025 = vmatpush2.xpose.msra.mxu0 0.0
  %6026 = vmatprep.subr.mxu0 0.0
  %6027 = vmatpush2.xpose.msra.mxu0 0.0
  %6028 = vmatprep.subr.mxu0 0.0
  %6029 = vmatpush2.xpose.msra.mxu0 0.0
  %6030 = vmatprep.mubr.f32.mxu0 0.0
  %6031 = vmatmul.mubr.f32.gmra.mxu0 %v5264
  %v6032 = vpop.f32.mrf.mxu0
  %v6033 = vadd.f32 %v5959, %v6032
  %v6034 = vpop.f32.mrf.mxu0
  %6035 = vmatprep.mubr.f32.mxu0 0.0
  %6036 = vmatmul.mubr.f32.gmra.mxu0 %v5267
  %v6037 = vpop.f32.mrf.mxu0
  %v6038 = vadd.f32 %v5959, %v6037
  %v6039 = vpop.f32.mrf.mxu0
  %6040 = vmatprep.mubr.f32.mxu0 0.0
  %6041 = vmatmul.mubr.f32.gmra.mxu0 %v5270
  %v6042 = vpop.f32.mrf.mxu0
  %v6043 = vadd.f32 %v5959, %v6042
  %v6044 = vpop.f32.mrf.mxu0
  %6045 = vmatprep.mubr.f32.mxu0 0.0
  %6046 = vmatmul.mubr.f32.gmra.mxu0 %v5273
  %v6047 = vpop.f32.mrf.mxu0
  %v6048 = vadd.f32 %v5959, %v6047
  %v6049 = vpop.f32.mrf.mxu0
  %6050 = vdwg.mxu0
  %s6051 = scalar_lea.vmem %s6, 80
  %v6052 = vld [vmem:[%s6051] sm:$0xff]
  %v6053 = vld [vmem:[%s6051 + $0x8] sm:$0xff]
  %v6054 = vlaneseq
  %v6055 = vshrl.u32 %v6054, 7
  %v6056 = vsub.s32 5, %v6055
  %v6057 = vrot.slane %v5254, %v6056
  %v6059 = vsel %vm1265, %v6052, 0
  %v6062 = vsel %vm1265, %v6053, 0
  %6064 = vmatprep.subr.mxu0 0.0
  %6065 = vmatpush1.xpose.msra.mxu0 0.0
  %6066 = vmatprep.subr.mxu0 0.0
  %6067 = vmatpush1.xpose.msra.mxu0 0.0
  %6068 = vmatprep.subr.mxu0 0.0
  %6069 = vmatpush1.xpose.msra.mxu0 0.0
  %6070 = vmatprep.subr.mxu0 0.0
  %6071 = vmatpush1.xpose.msra.mxu0 0.0
  %6072 = vmatprep.subr.mxu0 0.0
  %6073 = vmatpush1.xpose.msra.mxu0 0.0
  %6074 = vmatprep.subr.mxu0 0.0
  %6075 = vmatpush1.xpose.msra.mxu0 0.0
  %6076 = vmatprep.subr.mxu0 0.0
  %6077 = vmatpush1.xpose.msra.mxu0 0.0
  %6078 = vmatprep.subr.mxu0 0.0
  %6079 = vmatpush1.xpose.msra.mxu0 0.0
  %6080 = vmatprep.subr.mxu0 0.0
  %6081 = vmatpush1.xpose.msra.mxu0 0.0
  %6082 = vmatprep.subr.mxu0 0.0
  %6083 = vmatpush1.xpose.msra.mxu0 0.0
  %6084 = vmatprep.subr.mxu0 0.0
  %6085 = vmatpush1.xpose.msra.mxu0 0.0
  %6086 = vmatprep.subr.mxu0 0.0
  %6087 = vmatpush1.xpose.msra.mxu0 0.0
  %6088 = vmatprep.subr.mxu0 0.0
  %6089 = vmatpush1.xpose.msra.mxu0 0.0
  %6090 = vmatprep.subr.mxu0 0.0
  %6091 = vmatpush1.xpose.msra.mxu0 0.0
  %6092 = vmatprep.subr.mxu0 0.0
  %6093 = vmatpush1.xpose.msra.mxu0 %v6062
  %6094 = vmatprep.subr.mxu0 0.0
  %6095 = vmatpush1.xpose.msra.mxu0 %v6059
  %6096 = vmatprep.subr.mxu0 0.0
  %6097 = vmatpush2.xpose.msra.mxu0 0.0
  %6098 = vmatprep.subr.mxu0 0.0
  %6099 = vmatpush2.xpose.msra.mxu0 0.0
  %6100 = vmatprep.subr.mxu0 0.0
  %6101 = vmatpush2.xpose.msra.mxu0 0.0
  %6102 = vmatprep.subr.mxu0 0.0
  %6103 = vmatpush2.xpose.msra.mxu0 0.0
  %6104 = vmatprep.subr.mxu0 0.0
  %6105 = vmatpush2.xpose.msra.mxu0 0.0
  %6106 = vmatprep.subr.mxu0 0.0
  %6107 = vmatpush2.xpose.msra.mxu0 0.0
  %6108 = vmatprep.subr.mxu0 0.0
  %6109 = vmatpush2.xpose.msra.mxu0 0.0
  %6110 = vmatprep.subr.mxu0 0.0
  %6111 = vmatpush2.xpose.msra.mxu0 0.0
  %6112 = vmatprep.subr.mxu0 0.0
  %6113 = vmatpush2.xpose.msra.mxu0 0.0
  %6114 = vmatprep.subr.mxu0 0.0
  %6115 = vmatpush2.xpose.msra.mxu0 0.0
  %6116 = vmatprep.subr.mxu0 0.0
  %6117 = vmatpush2.xpose.msra.mxu0 0.0
  %6118 = vmatprep.subr.mxu0 0.0
  %6119 = vmatpush2.xpose.msra.mxu0 0.0
  %6120 = vmatprep.subr.mxu0 0.0
  %6121 = vmatpush2.xpose.msra.mxu0 0.0
  %6122 = vmatprep.subr.mxu0 0.0
  %6123 = vmatpush2.xpose.msra.mxu0 0.0
  %6124 = vmatprep.subr.mxu0 0.0
  %6125 = vmatpush2.xpose.msra.mxu0 0.0
  %6126 = vmatprep.subr.mxu0 0.0
  %6127 = vmatpush2.xpose.msra.mxu0 0.0
  %6128 = vmatprep.mubr.f32.mxu0 0.0
  %6129 = vmatmul.mubr.f32.gmra.mxu0 %v5264
  %v6130 = vpop.f32.mrf.mxu0
  %v6131 = vadd.f32 %v6057, %v6130
  %v6132 = vpop.f32.mrf.mxu0
  %6133 = vmatprep.mubr.f32.mxu0 0.0
  %6134 = vmatmul.mubr.f32.gmra.mxu0 %v5267
  %v6135 = vpop.f32.mrf.mxu0
  %v6136 = vadd.f32 %v6057, %v6135
  %v6137 = vpop.f32.mrf.mxu0
  %6138 = vmatprep.mubr.f32.mxu0 0.0
  %6139 = vmatmul.mubr.f32.gmra.mxu0 %v5270
  %v6140 = vpop.f32.mrf.mxu0
  %v6141 = vadd.f32 %v6057, %v6140
  %v6142 = vpop.f32.mrf.mxu0
  %6143 = vmatprep.mubr.f32.mxu0 0.0
  %6144 = vmatmul.mubr.f32.gmra.mxu0 %v5273
  %v6145 = vpop.f32.mrf.mxu0
  %v6146 = vadd.f32 %v6057, %v6145
  %v6147 = vpop.f32.mrf.mxu0
  %6148 = vdwg.mxu0
  %s6149 = scalar_lea.vmem %s7, 80
  %v6150 = vld [vmem:[%s6149] sm:$0xff]
  %v6151 = vld [vmem:[%s6149 + $0x8] sm:$0xff]
  %v6152 = vlaneseq
  %v6153 = vshrl.u32 %v6152, 7
  %v6154 = vsub.s32 1, %v6153
  %v6155 = vrot.slane %v5255, %v6154
  %v6157 = vsel %vm1265, %v6150, 0
  %v6160 = vsel %vm1265, %v6151, 0
  %6162 = vmatprep.subr.mxu0 0.0
  %6163 = vmatpush1.xpose.msra.mxu0 0.0
  %6164 = vmatprep.subr.mxu0 0.0
  %6165 = vmatpush1.xpose.msra.mxu0 0.0
  %6166 = vmatprep.subr.mxu0 0.0
  %6167 = vmatpush1.xpose.msra.mxu0 0.0
  %6168 = vmatprep.subr.mxu0 0.0
  %6169 = vmatpush1.xpose.msra.mxu0 0.0
  %6170 = vmatprep.subr.mxu0 0.0
  %6171 = vmatpush1.xpose.msra.mxu0 0.0
  %6172 = vmatprep.subr.mxu0 0.0
  %6173 = vmatpush1.xpose.msra.mxu0 0.0
  %6174 = vmatprep.subr.mxu0 0.0
  %6175 = vmatpush1.xpose.msra.mxu0 0.0
  %6176 = vmatprep.subr.mxu0 0.0
  %6177 = vmatpush1.xpose.msra.mxu0 0.0
  %6178 = vmatprep.subr.mxu0 0.0
  %6179 = vmatpush1.xpose.msra.mxu0 0.0
  %6180 = vmatprep.subr.mxu0 0.0
  %6181 = vmatpush1.xpose.msra.mxu0 0.0
  %6182 = vmatprep.subr.mxu0 0.0
  %6183 = vmatpush1.xpose.msra.mxu0 0.0
  %6184 = vmatprep.subr.mxu0 0.0
  %6185 = vmatpush1.xpose.msra.mxu0 0.0
  %6186 = vmatprep.subr.mxu0 0.0
  %6187 = vmatpush1.xpose.msra.mxu0 0.0
  %6188 = vmatprep.subr.mxu0 0.0
  %6189 = vmatpush1.xpose.msra.mxu0 0.0
  %6190 = vmatprep.subr.mxu0 0.0
  %6191 = vmatpush1.xpose.msra.mxu0 %v6160
  %6192 = vmatprep.subr.mxu0 0.0
  %6193 = vmatpush1.xpose.msra.mxu0 %v6157
  %6194 = vmatprep.subr.mxu0 0.0
  %6195 = vmatpush2.xpose.msra.mxu0 0.0
  %6196 = vmatprep.subr.mxu0 0.0
  %6197 = vmatpush2.xpose.msra.mxu0 0.0
  %6198 = vmatprep.subr.mxu0 0.0
  %6199 = vmatpush2.xpose.msra.mxu0 0.0
  %6200 = vmatprep.subr.mxu0 0.0
  %6201 = vmatpush2.xpose.msra.mxu0 0.0
  %6202 = vmatprep.subr.mxu0 0.0
  %6203 = vmatpush2.xpose.msra.mxu0 0.0
  %6204 = vmatprep.subr.mxu0 0.0
  %6205 = vmatpush2.xpose.msra.mxu0 0.0
  %6206 = vmatprep.subr.mxu0 0.0
  %6207 = vmatpush2.xpose.msra.mxu0 0.0
  %6208 = vmatprep.subr.mxu0 0.0
  %6209 = vmatpush2.xpose.msra.mxu0 0.0
  %6210 = vmatprep.subr.mxu0 0.0
  %6211 = vmatpush2.xpose.msra.mxu0 0.0
  %6212 = vmatprep.subr.mxu0 0.0
  %6213 = vmatpush2.xpose.msra.mxu0 0.0
  %6214 = vmatprep.subr.mxu0 0.0
  %6215 = vmatpush2.xpose.msra.mxu0 0.0
  %6216 = vmatprep.subr.mxu0 0.0
  %6217 = vmatpush2.xpose.msra.mxu0 0.0
  %6218 = vmatprep.subr.mxu0 0.0
  %6219 = vmatpush2.xpose.msra.mxu0 0.0
  %6220 = vmatprep.subr.mxu0 0.0
  %6221 = vmatpush2.xpose.msra.mxu0 0.0
  %6222 = vmatprep.subr.mxu0 0.0
  %6223 = vmatpush2.xpose.msra.mxu0 0.0
  %6224 = vmatprep.subr.mxu0 0.0
  %6225 = vmatpush2.xpose.msra.mxu0 0.0
  %6226 = vmatprep.mubr.f32.mxu0 0.0
  %6227 = vmatmul.mubr.f32.gmra.mxu0 %v5264
  %v6228 = vpop.f32.mrf.mxu0
  %v6229 = vadd.f32 %v6155, %v6228
  %v6230 = vpop.f32.mrf.mxu0
  %6231 = vmatprep.mubr.f32.mxu0 0.0
  %6232 = vmatmul.mubr.f32.gmra.mxu0 %v5267
  %v6233 = vpop.f32.mrf.mxu0
  %v6234 = vadd.f32 %v6155, %v6233
  %v6235 = vpop.f32.mrf.mxu0
  %6236 = vmatprep.mubr.f32.mxu0 0.0
  %6237 = vmatmul.mubr.f32.gmra.mxu0 %v5270
  %v6238 = vpop.f32.mrf.mxu0
  %v6239 = vadd.f32 %v6155, %v6238
  %v6240 = vpop.f32.mrf.mxu0
  %6241 = vmatprep.mubr.f32.mxu0 0.0
  %6242 = vmatmul.mubr.f32.gmra.mxu0 %v5273
  %v6243 = vpop.f32.mrf.mxu0
  %v6244 = vadd.f32 %v6155, %v6243
  %v6245 = vpop.f32.mrf.mxu0
  %6246 = vdwg.mxu0
  %v6247 = vmul.f32 %v6033, 0.25
  %v6248 = vmul.f32 %v6038, 0.25
  %v6249 = vmul.f32 %v6043, 0.25
  %v6250 = vmul.f32 %v6048, 0.25
  %v6252 = vsel %vm2002, %v6247, 0
  %v6255 = vsel %vm2002, %v6248, 0
  %v6258 = vsel %vm2002, %v6131, 0
  %v6261 = vsel %vm2002, %v6136, 0
  %6263 = vmatprep.subr.mxu0 0.0
  %6264 = vmatpush1.xpose.msra.mxu0 0.0
  %6265 = vmatprep.subr.mxu0 0.0
  %6266 = vmatpush1.xpose.msra.mxu0 0.0
  %6267 = vmatprep.subr.mxu0 0.0
  %6268 = vmatpush1.xpose.msra.mxu0 0.0
  %6269 = vmatprep.subr.mxu0 0.0
  %6270 = vmatpush1.xpose.msra.mxu0 0.0
  %6271 = vmatprep.subr.mxu0 0.0
  %6272 = vmatpush1.xpose.msra.mxu0 0.0
  %6273 = vmatprep.subr.mxu0 0.0
  %6274 = vmatpush1.xpose.msra.mxu0 0.0
  %6275 = vmatprep.subr.mxu0 0.0
  %6276 = vmatpush1.xpose.msra.mxu0 0.0
  %6277 = vmatprep.subr.mxu0 0.0
  %6278 = vmatpush1.xpose.msra.mxu0 0.0
  %6279 = vmatprep.subr.mxu0 0.0
  %6280 = vmatpush1.xpose.msra.mxu0 0.0
  %6281 = vmatprep.subr.mxu0 0.0
  %6282 = vmatpush1.xpose.msra.mxu0 0.0
  %6283 = vmatprep.subr.mxu0 0.0
  %6284 = vmatpush1.xpose.msra.mxu0 0.0
  %6285 = vmatprep.subr.mxu0 0.0
  %6286 = vmatpush1.xpose.msra.mxu0 0.0
  %6287 = vmatprep.subr.mxu0 0.0
  %6288 = vmatpush1.xpose.msra.mxu0 0.0
  %6289 = vmatprep.subr.mxu0 0.0
  %6290 = vmatpush1.xpose.msra.mxu0 0.0
  %6291 = vmatprep.subr.mxu0 0.0
  %6292 = vmatpush1.xpose.msra.mxu0 %v6261
  %6293 = vmatprep.subr.mxu0 0.0
  %6294 = vmatpush1.xpose.msra.mxu0 %v6258
  %6295 = vmatprep.subr.mxu0 0.0
  %6296 = vmatpush2.xpose.msra.mxu0 0.0
  %6297 = vmatprep.subr.mxu0 0.0
  %6298 = vmatpush2.xpose.msra.mxu0 0.0
  %6299 = vmatprep.subr.mxu0 0.0
  %6300 = vmatpush2.xpose.msra.mxu0 0.0
  %6301 = vmatprep.subr.mxu0 0.0
  %6302 = vmatpush2.xpose.msra.mxu0 0.0
  %6303 = vmatprep.subr.mxu0 0.0
  %6304 = vmatpush2.xpose.msra.mxu0 0.0
  %6305 = vmatprep.subr.mxu0 0.0
  %6306 = vmatpush2.xpose.msra.mxu0 0.0
  %6307 = vmatprep.subr.mxu0 0.0
  %6308 = vmatpush2.xpose.msra.mxu0 0.0
  %6309 = vmatprep.subr.mxu0 0.0
  %6310 = vmatpush2.xpose.msra.mxu0 0.0
  %6311 = vmatprep.subr.mxu0 0.0
  %6312 = vmatpush2.xpose.msra.mxu0 0.0
  %6313 = vmatprep.subr.mxu0 0.0
  %6314 = vmatpush2.xpose.msra.mxu0 0.0
  %6315 = vmatprep.subr.mxu0 0.0
  %6316 = vmatpush2.xpose.msra.mxu0 0.0
  %6317 = vmatprep.subr.mxu0 0.0
  %6318 = vmatpush2.xpose.msra.mxu0 0.0
  %6319 = vmatprep.subr.mxu0 0.0
  %6320 = vmatpush2.xpose.msra.mxu0 0.0
  %6321 = vmatprep.subr.mxu0 0.0
  %6322 = vmatpush2.xpose.msra.mxu0 0.0
  %6323 = vmatprep.subr.mxu0 0.0
  %6324 = vmatpush2.xpose.msra.mxu0 0.0
  %6325 = vmatprep.subr.mxu0 0.0
  %6326 = vmatpush2.xpose.msra.mxu0 0.0
  %6327 = vmatprep.mubr.f32.mxu0 0.0
  %6328 = vmatmul.mubr.f32.gmra.mxu0 %v6252
  %v6329 = vpop.f32.mrf.mxu0
  %v6330 = vadd.f32 0.0, %v6329
  %v6331 = vpop.f32.mrf.mxu0
  %6332 = vmatprep.mubr.f32.mxu0 0.0
  %6333 = vmatmul.mubr.f32.gmra.mxu0 %v6255
  %v6334 = vpop.f32.mrf.mxu0
  %v6335 = vadd.f32 0.0, %v6334
  %v6336 = vpop.f32.mrf.mxu0
  %6337 = vdwg.mxu0
  %v6339 = vsel %vm2002, %v6249, 0
  %v6342 = vsel %vm2002, %v6250, 0
  %v6345 = vsel %vm2002, %v6141, 0
  %v6348 = vsel %vm2002, %v6146, 0
  %6350 = vmatprep.subr.mxu0 0.0
  %6351 = vmatpush1.xpose.msra.mxu0 0.0
  %6352 = vmatprep.subr.mxu0 0.0
  %6353 = vmatpush1.xpose.msra.mxu0 0.0
  %6354 = vmatprep.subr.mxu0 0.0
  %6355 = vmatpush1.xpose.msra.mxu0 0.0
  %6356 = vmatprep.subr.mxu0 0.0
  %6357 = vmatpush1.xpose.msra.mxu0 0.0
  %6358 = vmatprep.subr.mxu0 0.0
  %6359 = vmatpush1.xpose.msra.mxu0 0.0
  %6360 = vmatprep.subr.mxu0 0.0
  %6361 = vmatpush1.xpose.msra.mxu0 0.0
  %6362 = vmatprep.subr.mxu0 0.0
  %6363 = vmatpush1.xpose.msra.mxu0 0.0
  %6364 = vmatprep.subr.mxu0 0.0
  %6365 = vmatpush1.xpose.msra.mxu0 0.0
  %6366 = vmatprep.subr.mxu0 0.0
  %6367 = vmatpush1.xpose.msra.mxu0 0.0
  %6368 = vmatprep.subr.mxu0 0.0
  %6369 = vmatpush1.xpose.msra.mxu0 0.0
  %6370 = vmatprep.subr.mxu0 0.0
  %6371 = vmatpush1.xpose.msra.mxu0 0.0
  %6372 = vmatprep.subr.mxu0 0.0
  %6373 = vmatpush1.xpose.msra.mxu0 0.0
  %6374 = vmatprep.subr.mxu0 0.0
  %6375 = vmatpush1.xpose.msra.mxu0 0.0
  %6376 = vmatprep.subr.mxu0 0.0
  %6377 = vmatpush1.xpose.msra.mxu0 0.0
  %6378 = vmatprep.subr.mxu0 0.0
  %6379 = vmatpush1.xpose.msra.mxu0 %v6348
  %6380 = vmatprep.subr.mxu0 0.0
  %6381 = vmatpush1.xpose.msra.mxu0 %v6345
  %6382 = vmatprep.subr.mxu0 0.0
  %6383 = vmatpush2.xpose.msra.mxu0 0.0
  %6384 = vmatprep.subr.mxu0 0.0
  %6385 = vmatpush2.xpose.msra.mxu0 0.0
  %6386 = vmatprep.subr.mxu0 0.0
  %6387 = vmatpush2.xpose.msra.mxu0 0.0
  %6388 = vmatprep.subr.mxu0 0.0
  %6389 = vmatpush2.xpose.msra.mxu0 0.0
  %6390 = vmatprep.subr.mxu0 0.0
  %6391 = vmatpush2.xpose.msra.mxu0 0.0
  %6392 = vmatprep.subr.mxu0 0.0
  %6393 = vmatpush2.xpose.msra.mxu0 0.0
  %6394 = vmatprep.subr.mxu0 0.0
  %6395 = vmatpush2.xpose.msra.mxu0 0.0
  %6396 = vmatprep.subr.mxu0 0.0
  %6397 = vmatpush2.xpose.msra.mxu0 0.0
  %6398 = vmatprep.subr.mxu0 0.0
  %6399 = vmatpush2.xpose.msra.mxu0 0.0
  %6400 = vmatprep.subr.mxu0 0.0
  %6401 = vmatpush2.xpose.msra.mxu0 0.0
  %6402 = vmatprep.subr.mxu0 0.0
  %6403 = vmatpush2.xpose.msra.mxu0 0.0
  %6404 = vmatprep.subr.mxu0 0.0
  %6405 = vmatpush2.xpose.msra.mxu0 0.0
  %6406 = vmatprep.subr.mxu0 0.0
  %6407 = vmatpush2.xpose.msra.mxu0 0.0
  %6408 = vmatprep.subr.mxu0 0.0
  %6409 = vmatpush2.xpose.msra.mxu0 0.0
  %6410 = vmatprep.subr.mxu0 0.0
  %6411 = vmatpush2.xpose.msra.mxu0 0.0
  %6412 = vmatprep.subr.mxu0 0.0
  %6413 = vmatpush2.xpose.msra.mxu0 0.0
  %6414 = vmatprep.mubr.f32.mxu0 0.0
  %6415 = vmatmul.mubr.f32.gmra.mxu0 %v6339
  %v6416 = vpop.f32.mrf.mxu0
  %v6417 = vadd.f32 0.0, %v6416
  %v6418 = vpop.f32.mrf.mxu0
  %6419 = vmatprep.mubr.f32.mxu0 0.0
  %6420 = vmatmul.mubr.f32.gmra.mxu0 %v6342
  %v6421 = vpop.f32.mrf.mxu0
  %v6422 = vadd.f32 0.0, %v6421
  %v6423 = vpop.f32.mrf.mxu0
  %6424 = vdwg.mxu0
  %v6425 = vsel %vm1692, %v6330, -1e+30
  %v6426 = vsel %vm1692, %v6335, -1e+30
  %v6427 = vsel %vm1692, %v6417, -1e+30
  %v6428 = vsel %vm1692, %v6422, -1e+30
  %v6429 = vsel %vm2002, %v6425, -inf
  %6430 = vmax.xlane.f32.xlu0 %v6429
  %v6431 = vpop.xlane.xlu0 %6430
  %v6432 = vsel %vm2002, %v6426, -inf
  %6433 = vmax.xlane.f32.xlu0 %v6432
  %v6434 = vpop.xlane.xlu0 %6433
  %v6435 = vsel %vm2002, %v6427, -inf
  %6436 = vmax.xlane.f32.xlu0 %v6435
  %v6437 = vpop.xlane.xlu0 %6436
  %v6438 = vsel %vm2002, %v6428, -inf
  %6439 = vmax.xlane.f32.xlu0 %v6438
  %v6440 = vpop.xlane.xlu0 %6439
  %v6441 = vsub.f32 %v6425, %v6431
  %v6442 = vsub.f32 %v6426, %v6434
  %v6443 = vsub.f32 %v6427, %v6437
  %v6444 = vsub.f32 %v6428, %v6440
  %v6445 = vmul.f32 %v6441, 1.442695
  %v6446 = vpow.pop %v6445
  %v6447 = vmul.f32 %v6442, 1.442695
  %v6448 = vpow.pop %v6447
  %v6449 = vmul.f32 %v6443, 1.442695
  %v6450 = vpow.pop %v6449
  %v6451 = vmul.f32 %v6444, 1.442695
  %v6452 = vpow.pop %v6451
  %v6453 = vsel %vm2002, %v6446, 0.0
  %6454 = vadd.xlane.f32.xlu0 %v6453
  %v6455 = vpop.xlane.xlu0 %6454
  %v6456 = vsel %vm2002, %v6448, 0.0
  %6457 = vadd.xlane.f32.xlu0 %v6456
  %v6458 = vpop.xlane.xlu0 %6457
  %v6459 = vsel %vm2002, %v6450, 0.0
  %6460 = vadd.xlane.f32.xlu0 %v6459
  %v6461 = vpop.xlane.xlu0 %6460
  %v6462 = vsel %vm2002, %v6452, 0.0
  %6463 = vadd.xlane.f32.xlu0 %v6462
  %v6464 = vpop.xlane.xlu0 %6463
  %v6465 = vrcp.pop %v6455
  %v6466 = vrcp.pop %v6458
  %v6467 = vrcp.pop %v6461
  %v6468 = vrcp.pop %v6464
  %v6469 = vmul.f32 %v6446, %v6465
  %v6470 = vmul.f32 %v6448, %v6466
  %v6471 = vmul.f32 %v6450, %v6467
  %v6472 = vmul.f32 %v6452, %v6468
  %v6474 = vsel %vm2002, %v6469, 0
  %v6477 = vsel %vm2002, %v6470, 0
  %6479 = vmatprep.subr.mxu0 0.0
  %6480 = vmatpush1.msra.mxu0 0.0
  %6481 = vmatprep.subr.mxu0 0.0
  %6482 = vmatpush1.msra.mxu0 0.0
  %6483 = vmatprep.subr.mxu0 0.0
  %6484 = vmatpush1.msra.mxu0 0.0
  %6485 = vmatprep.subr.mxu0 0.0
  %6486 = vmatpush1.msra.mxu0 0.0
  %6487 = vmatprep.subr.mxu0 0.0
  %6488 = vmatpush1.msra.mxu0 0.0
  %6489 = vmatprep.subr.mxu0 0.0
  %6490 = vmatpush1.msra.mxu0 0.0
  %6491 = vmatprep.subr.mxu0 0.0
  %6492 = vmatpush1.msra.mxu0 0.0
  %6493 = vmatprep.subr.mxu0 0.0
  %6494 = vmatpush1.msra.mxu0 0.0
  %6495 = vmatprep.subr.mxu0 0.0
  %6496 = vmatpush1.msra.mxu0 0.0
  %6497 = vmatprep.subr.mxu0 0.0
  %6498 = vmatpush1.msra.mxu0 0.0
  %6499 = vmatprep.subr.mxu0 0.0
  %6500 = vmatpush1.msra.mxu0 0.0
  %6501 = vmatprep.subr.mxu0 0.0
  %6502 = vmatpush1.msra.mxu0 0.0
  %6503 = vmatprep.subr.mxu0 0.0
  %6504 = vmatpush1.msra.mxu0 0.0
  %6505 = vmatprep.subr.mxu0 0.0
  %6506 = vmatpush1.msra.mxu0 0.0
  %6507 = vmatprep.subr.mxu0 0.0
  %6508 = vmatpush1.msra.mxu0 %v6234
  %6509 = vmatprep.subr.mxu0 0.0
  %6510 = vmatpush1.msra.mxu0 %v6229
  %6511 = vmatprep.subr.mxu0 0.0
  %6512 = vmatpush2.msra.mxu0 0.0
  %6513 = vmatprep.subr.mxu0 0.0
  %6514 = vmatpush2.msra.mxu0 0.0
  %6515 = vmatprep.subr.mxu0 0.0
  %6516 = vmatpush2.msra.mxu0 0.0
  %6517 = vmatprep.subr.mxu0 0.0
  %6518 = vmatpush2.msra.mxu0 0.0
  %6519 = vmatprep.subr.mxu0 0.0
  %6520 = vmatpush2.msra.mxu0 0.0
  %6521 = vmatprep.subr.mxu0 0.0
  %6522 = vmatpush2.msra.mxu0 0.0
  %6523 = vmatprep.subr.mxu0 0.0
  %6524 = vmatpush2.msra.mxu0 0.0
  %6525 = vmatprep.subr.mxu0 0.0
  %6526 = vmatpush2.msra.mxu0 0.0
  %6527 = vmatprep.subr.mxu0 0.0
  %6528 = vmatpush2.msra.mxu0 0.0
  %6529 = vmatprep.subr.mxu0 0.0
  %6530 = vmatpush2.msra.mxu0 0.0
  %6531 = vmatprep.subr.mxu0 0.0
  %6532 = vmatpush2.msra.mxu0 0.0
  %6533 = vmatprep.subr.mxu0 0.0
  %6534 = vmatpush2.msra.mxu0 0.0
  %6535 = vmatprep.subr.mxu0 0.0
  %6536 = vmatpush2.msra.mxu0 0.0
  %6537 = vmatprep.subr.mxu0 0.0
  %6538 = vmatpush2.msra.mxu0 0.0
  %6539 = vmatprep.subr.mxu0 0.0
  %6540 = vmatpush2.msra.mxu0 0.0
  %6541 = vmatprep.subr.mxu0 0.0
  %6542 = vmatpush2.msra.mxu0 0.0
  %6543 = vmatprep.mubr.f32.mxu0 0.0
  %6544 = vmatmul.mubr.f32.gmra.mxu0 %v6474
  %v6545 = vpop.f32.mrf.mxu0
  %v6546 = vadd.f32 0.0, %v6545
  %v6547 = vpop.f32.mrf.mxu0
  %6548 = vmatprep.mubr.f32.mxu0 0.0
  %6549 = vmatmul.mubr.f32.gmra.mxu0 %v6477
  %v6550 = vpop.f32.mrf.mxu0
  %v6551 = vadd.f32 0.0, %v6550
  %v6552 = vpop.f32.mrf.mxu0
  %6553 = vdwg.mxu0
  %v6555 = vsel %vm2002, %v6471, 0
  %v6558 = vsel %vm2002, %v6472, 0
  %6560 = vmatprep.subr.mxu0 0.0
  %6561 = vmatpush1.msra.mxu0 0.0
  %6562 = vmatprep.subr.mxu0 0.0
  %6563 = vmatpush1.msra.mxu0 0.0
  %6564 = vmatprep.subr.mxu0 0.0
  %6565 = vmatpush1.msra.mxu0 0.0
  %6566 = vmatprep.subr.mxu0 0.0
  %6567 = vmatpush1.msra.mxu0 0.0
  %6568 = vmatprep.subr.mxu0 0.0
  %6569 = vmatpush1.msra.mxu0 0.0
  %6570 = vmatprep.subr.mxu0 0.0
  %6571 = vmatpush1.msra.mxu0 0.0
  %6572 = vmatprep.subr.mxu0 0.0
  %6573 = vmatpush1.msra.mxu0 0.0
  %6574 = vmatprep.subr.mxu0 0.0
  %6575 = vmatpush1.msra.mxu0 0.0
  %6576 = vmatprep.subr.mxu0 0.0
  %6577 = vmatpush1.msra.mxu0 0.0
  %6578 = vmatprep.subr.mxu0 0.0
  %6579 = vmatpush1.msra.mxu0 0.0
  %6580 = vmatprep.subr.mxu0 0.0
  %6581 = vmatpush1.msra.mxu0 0.0
  %6582 = vmatprep.subr.mxu0 0.0
  %6583 = vmatpush1.msra.mxu0 0.0
  %6584 = vmatprep.subr.mxu0 0.0
  %6585 = vmatpush1.msra.mxu0 0.0
  %6586 = vmatprep.subr.mxu0 0.0
  %6587 = vmatpush1.msra.mxu0 0.0
  %6588 = vmatprep.subr.mxu0 0.0
  %6589 = vmatpush1.msra.mxu0 %v6244
  %6590 = vmatprep.subr.mxu0 0.0
  %6591 = vmatpush1.msra.mxu0 %v6239
  %6592 = vmatprep.subr.mxu0 0.0
  %6593 = vmatpush2.msra.mxu0 0.0
  %6594 = vmatprep.subr.mxu0 0.0
  %6595 = vmatpush2.msra.mxu0 0.0
  %6596 = vmatprep.subr.mxu0 0.0
  %6597 = vmatpush2.msra.mxu0 0.0
  %6598 = vmatprep.subr.mxu0 0.0
  %6599 = vmatpush2.msra.mxu0 0.0
  %6600 = vmatprep.subr.mxu0 0.0
  %6601 = vmatpush2.msra.mxu0 0.0
  %6602 = vmatprep.subr.mxu0 0.0
  %6603 = vmatpush2.msra.mxu0 0.0
  %6604 = vmatprep.subr.mxu0 0.0
  %6605 = vmatpush2.msra.mxu0 0.0
  %6606 = vmatprep.subr.mxu0 0.0
  %6607 = vmatpush2.msra.mxu0 0.0
  %6608 = vmatprep.subr.mxu0 0.0
  %6609 = vmatpush2.msra.mxu0 0.0
  %6610 = vmatprep.subr.mxu0 0.0
  %6611 = vmatpush2.msra.mxu0 0.0
  %6612 = vmatprep.subr.mxu0 0.0
  %6613 = vmatpush2.msra.mxu0 0.0
  %6614 = vmatprep.subr.mxu0 0.0
  %6615 = vmatpush2.msra.mxu0 0.0
  %6616 = vmatprep.subr.mxu0 0.0
  %6617 = vmatpush2.msra.mxu0 0.0
  %6618 = vmatprep.subr.mxu0 0.0
  %6619 = vmatpush2.msra.mxu0 0.0
  %6620 = vmatprep.subr.mxu0 0.0
  %6621 = vmatpush2.msra.mxu0 0.0
  %6622 = vmatprep.subr.mxu0 0.0
  %6623 = vmatpush2.msra.mxu0 0.0
  %6624 = vmatprep.mubr.f32.mxu0 0.0
  %6625 = vmatmul.mubr.f32.gmra.mxu0 %v6555
  %v6626 = vpop.f32.mrf.mxu0
  %v6627 = vadd.f32 0.0, %v6626
  %v6628 = vpop.f32.mrf.mxu0
  %6629 = vmatprep.mubr.f32.mxu0 0.0
  %6630 = vmatmul.mubr.f32.gmra.mxu0 %v6558
  %v6631 = vpop.f32.mrf.mxu0
  %v6632 = vadd.f32 0.0, %v6631
  %v6633 = vpop.f32.mrf.mxu0
  %6634 = vdwg.mxu0
  %s6635 = scalar_lea.vmem %s8, 80
  %v6636 = vld [vmem:[%s6635] sm:$0xff]
  %v6637 = vld [vmem:[%s6635 + $0x8] sm:$0xff]
  %v6639 = vsel %vm2002, %v6546, 0
  %v6642 = vsel %vm2002, %v6551, 0
  %v6645 = vsel %vm2002, %v6627, 0
  %v6648 = vsel %vm2002, %v6632, 0
  %6650 = vmatprep.subr.mxu0 0.0
  %6651 = vmatpush1.msra.mxu0 0.0
  %6652 = vmatprep.subr.mxu0 0.0
  %6653 = vmatpush1.msra.mxu0 0.0
  %6654 = vmatprep.subr.mxu0 0.0
  %6655 = vmatpush1.msra.mxu0 0.0
  %6656 = vmatprep.subr.mxu0 0.0
  %6657 = vmatpush1.msra.mxu0 0.0
  %6658 = vmatprep.subr.mxu0 0.0
  %6659 = vmatpush1.msra.mxu0 0.0
  %6660 = vmatprep.subr.mxu0 0.0
  %6661 = vmatpush1.msra.mxu0 0.0
  %6662 = vmatprep.subr.mxu0 0.0
  %6663 = vmatpush1.msra.mxu0 0.0
  %6664 = vmatprep.subr.mxu0 0.0
  %6665 = vmatpush1.msra.mxu0 0.0
  %6666 = vmatprep.subr.mxu0 0.0
  %6667 = vmatpush1.msra.mxu0 0.0
  %6668 = vmatprep.subr.mxu0 0.0
  %6669 = vmatpush1.msra.mxu0 0.0
  %6670 = vmatprep.subr.mxu0 0.0
  %6671 = vmatpush1.msra.mxu0 0.0
  %6672 = vmatprep.subr.mxu0 0.0
  %6673 = vmatpush1.msra.mxu0 0.0
  %6674 = vmatprep.subr.mxu0 0.0
  %6675 = vmatpush1.msra.mxu0 0.0
  %6676 = vmatprep.subr.mxu0 0.0
  %6677 = vmatpush1.msra.mxu0 0.0
  %6678 = vmatprep.subr.mxu0 0.0
  %6679 = vmatpush1.msra.mxu0 %v6637
  %6680 = vmatprep.subr.mxu0 0.0
  %6681 = vmatpush1.msra.mxu0 %v6636
  %6682 = vmatprep.subr.mxu0 0.0
  %6683 = vmatpush2.msra.mxu0 0.0
  %6684 = vmatprep.subr.mxu0 0.0
  %6685 = vmatpush2.msra.mxu0 0.0
  %6686 = vmatprep.subr.mxu0 0.0
  %6687 = vmatpush2.msra.mxu0 0.0
  %6688 = vmatprep.subr.mxu0 0.0
  %6689 = vmatpush2.msra.mxu0 0.0
  %6690 = vmatprep.subr.mxu0 0.0
  %6691 = vmatpush2.msra.mxu0 0.0
  %6692 = vmatprep.subr.mxu0 0.0
  %6693 = vmatpush2.msra.mxu0 0.0
  %6694 = vmatprep.subr.mxu0 0.0
  %6695 = vmatpush2.msra.mxu0 0.0
  %6696 = vmatprep.subr.mxu0 0.0
  %6697 = vmatpush2.msra.mxu0 0.0
  %6698 = vmatprep.subr.mxu0 0.0
  %6699 = vmatpush2.msra.mxu0 0.0
  %6700 = vmatprep.subr.mxu0 0.0
  %6701 = vmatpush2.msra.mxu0 0.0
  %6702 = vmatprep.subr.mxu0 0.0
  %6703 = vmatpush2.msra.mxu0 0.0
  %6704 = vmatprep.subr.mxu0 0.0
  %6705 = vmatpush2.msra.mxu0 0.0
  %6706 = vmatprep.subr.mxu0 0.0
  %6707 = vmatpush2.msra.mxu0 0.0
  %6708 = vmatprep.subr.mxu0 0.0
  %6709 = vmatpush2.msra.mxu0 0.0
  %6710 = vmatprep.subr.mxu0 0.0
  %6711 = vmatpush2.msra.mxu0 0.0
  %6712 = vmatprep.subr.mxu0 0.0
  %6713 = vmatpush2.msra.mxu0 0.0
  %6714 = vmatprep.mubr.f32.mxu0 0.0
  %6715 = vmatmul.mubr.f32.gmra.mxu0 %v6639
  %v6716 = vpop.f32.mrf.mxu0
  %v6717 = vadd.f32 0.0, %v6716
  %v6718 = vpop.f32.mrf.mxu0
  %6719 = vmatprep.mubr.f32.mxu0 0.0
  %6720 = vmatmul.mubr.f32.gmra.mxu0 %v6642
  %v6721 = vpop.f32.mrf.mxu0
  %v6722 = vadd.f32 0.0, %v6721
  %v6723 = vpop.f32.mrf.mxu0
  %6724 = vmatprep.mubr.f32.mxu0 0.0
  %6725 = vmatmul.mubr.f32.gmra.mxu0 %v6645
  %v6726 = vpop.f32.mrf.mxu0
  %v6727 = vadd.f32 0.0, %v6726
  %v6728 = vpop.f32.mrf.mxu0
  %6729 = vmatprep.mubr.f32.mxu0 0.0
  %6730 = vmatmul.mubr.f32.gmra.mxu0 %v6648
  %v6731 = vpop.f32.mrf.mxu0
  %v6732 = vadd.f32 0.0, %v6731
  %v6733 = vpop.f32.mrf.mxu0
  %6734 = vdwg.mxu0
  %v6736 = vsel %vm2002, %v5861, 0
  %v6739 = vsel %vm2002, %v5866, 0
  %v6742 = vsel %vm2002, %v5942, 0
  %v6745 = vsel %vm2002, %v5947, 0
  %6747 = vmatprep.subr.mxu0 0.0
  %6748 = vmatpush1.msra.mxu0 0.0
  %6749 = vmatprep.subr.mxu0 0.0
  %6750 = vmatpush1.msra.mxu0 0.0
  %6751 = vmatprep.subr.mxu0 0.0
  %6752 = vmatpush1.msra.mxu0 0.0
  %6753 = vmatprep.subr.mxu0 0.0
  %6754 = vmatpush1.msra.mxu0 0.0
  %6755 = vmatprep.subr.mxu0 0.0
  %6756 = vmatpush1.msra.mxu0 0.0
  %6757 = vmatprep.subr.mxu0 0.0
  %6758 = vmatpush1.msra.mxu0 0.0
  %6759 = vmatprep.subr.mxu0 0.0
  %6760 = vmatpush1.msra.mxu0 0.0
  %6761 = vmatprep.subr.mxu0 0.0
  %6762 = vmatpush1.msra.mxu0 0.0
  %6763 = vmatprep.subr.mxu0 0.0
  %6764 = vmatpush1.msra.mxu0 0.0
  %6765 = vmatprep.subr.mxu0 0.0
  %6766 = vmatpush1.msra.mxu0 0.0
  %6767 = vmatprep.subr.mxu0 0.0
  %6768 = vmatpush1.msra.mxu0 0.0
  %6769 = vmatprep.subr.mxu0 0.0
  %6770 = vmatpush1.msra.mxu0 0.0
  %6771 = vmatprep.subr.mxu0 0.0
  %6772 = vmatpush1.msra.mxu0 0.0
  %6773 = vmatprep.subr.mxu0 0.0
  %6774 = vmatpush1.msra.mxu0 0.0
  %6775 = vmatprep.subr.mxu0 0.0
  %6776 = vmatpush1.msra.mxu0 %v5952
  %6777 = vmatprep.subr.mxu0 0.0
  %6778 = vmatpush1.msra.mxu0 %v5951
  %6779 = vmatprep.subr.mxu0 0.0
  %6780 = vmatpush2.msra.mxu0 0.0
  %6781 = vmatprep.subr.mxu0 0.0
  %6782 = vmatpush2.msra.mxu0 0.0
  %6783 = vmatprep.subr.mxu0 0.0
  %6784 = vmatpush2.msra.mxu0 0.0
  %6785 = vmatprep.subr.mxu0 0.0
  %6786 = vmatpush2.msra.mxu0 0.0
  %6787 = vmatprep.subr.mxu0 0.0
  %6788 = vmatpush2.msra.mxu0 0.0
  %6789 = vmatprep.subr.mxu0 0.0
  %6790 = vmatpush2.msra.mxu0 0.0
  %6791 = vmatprep.subr.mxu0 0.0
  %6792 = vmatpush2.msra.mxu0 0.0
  %6793 = vmatprep.subr.mxu0 0.0
  %6794 = vmatpush2.msra.mxu0 0.0
  %6795 = vmatprep.subr.mxu0 0.0
  %6796 = vmatpush2.msra.mxu0 0.0
  %6797 = vmatprep.subr.mxu0 0.0
  %6798 = vmatpush2.msra.mxu0 0.0
  %6799 = vmatprep.subr.mxu0 0.0
  %6800 = vmatpush2.msra.mxu0 0.0
  %6801 = vmatprep.subr.mxu0 0.0
  %6802 = vmatpush2.msra.mxu0 0.0
  %6803 = vmatprep.subr.mxu0 0.0
  %6804 = vmatpush2.msra.mxu0 0.0
  %6805 = vmatprep.subr.mxu0 0.0
  %6806 = vmatpush2.msra.mxu0 0.0
  %6807 = vmatprep.subr.mxu0 0.0
  %6808 = vmatpush2.msra.mxu0 0.0
  %6809 = vmatprep.subr.mxu0 0.0
  %6810 = vmatpush2.msra.mxu0 0.0
  %6811 = vmatprep.mubr.f32.mxu0 0.0
  %6812 = vmatmul.mubr.f32.gmra.mxu0 %v6736
  %v6813 = vpop.f32.mrf.mxu0
  %v6814 = vadd.f32 %v6717, %v6813
  %v6815 = vpop.f32.mrf.mxu0
  %6816 = vmatprep.mubr.f32.mxu0 0.0
  %6817 = vmatmul.mubr.f32.gmra.mxu0 %v6739
  %v6818 = vpop.f32.mrf.mxu0
  %v6819 = vadd.f32 %v6722, %v6818
  %v6820 = vpop.f32.mrf.mxu0
  %6821 = vmatprep.mubr.f32.mxu0 0.0
  %6822 = vmatmul.mubr.f32.gmra.mxu0 %v6742
  %v6823 = vpop.f32.mrf.mxu0
  %v6824 = vadd.f32 %v6727, %v6823
  %v6825 = vpop.f32.mrf.mxu0
  %6826 = vmatprep.mubr.f32.mxu0 0.0
  %6827 = vmatmul.mubr.f32.gmra.mxu0 %v6745
  %v6828 = vpop.f32.mrf.mxu0
  %v6829 = vadd.f32 %v6732, %v6828
  %v6830 = vpop.f32.mrf.mxu0
  %6831 = vdwg.mxu0
  %s6832 = scalar_lea.vmem %s5, 96
  %v6833 = vld [vmem:[%s6832] sm:$0xff]
  %v6834 = vld [vmem:[%s6832 + $0x8] sm:$0xff]
  %v6835 = vlaneseq
  %v6836 = vshrl.u32 %v6835, 7
  %v6837 = vsub.s32 2, %v6836
  %v6838 = vrot.slane %v5254, %v6837
  %v6840 = vsel %vm1265, %v6833, 0
  %v6843 = vsel %vm1265, %v6834, 0
  %6845 = vmatprep.subr.mxu0 0.0
  %6846 = vmatpush1.xpose.msra.mxu0 0.0
  %6847 = vmatprep.subr.mxu0 0.0
  %6848 = vmatpush1.xpose.msra.mxu0 0.0
  %6849 = vmatprep.subr.mxu0 0.0
  %6850 = vmatpush1.xpose.msra.mxu0 0.0
  %6851 = vmatprep.subr.mxu0 0.0
  %6852 = vmatpush1.xpose.msra.mxu0 0.0
  %6853 = vmatprep.subr.mxu0 0.0
  %6854 = vmatpush1.xpose.msra.mxu0 0.0
  %6855 = vmatprep.subr.mxu0 0.0
  %6856 = vmatpush1.xpose.msra.mxu0 0.0
  %6857 = vmatprep.subr.mxu0 0.0
  %6858 = vmatpush1.xpose.msra.mxu0 0.0
  %6859 = vmatprep.subr.mxu0 0.0
  %6860 = vmatpush1.xpose.msra.mxu0 0.0
  %6861 = vmatprep.subr.mxu0 0.0
  %6862 = vmatpush1.xpose.msra.mxu0 0.0
  %6863 = vmatprep.subr.mxu0 0.0
  %6864 = vmatpush1.xpose.msra.mxu0 0.0
  %6865 = vmatprep.subr.mxu0 0.0
  %6866 = vmatpush1.xpose.msra.mxu0 0.0
  %6867 = vmatprep.subr.mxu0 0.0
  %6868 = vmatpush1.xpose.msra.mxu0 0.0
  %6869 = vmatprep.subr.mxu0 0.0
  %6870 = vmatpush1.xpose.msra.mxu0 0.0
  %6871 = vmatprep.subr.mxu0 0.0
  %6872 = vmatpush1.xpose.msra.mxu0 0.0
  %6873 = vmatprep.subr.mxu0 0.0
  %6874 = vmatpush1.xpose.msra.mxu0 %v6843
  %6875 = vmatprep.subr.mxu0 0.0
  %6876 = vmatpush1.xpose.msra.mxu0 %v6840
  %6877 = vmatprep.subr.mxu0 0.0
  %6878 = vmatpush2.xpose.msra.mxu0 0.0
  %6879 = vmatprep.subr.mxu0 0.0
  %6880 = vmatpush2.xpose.msra.mxu0 0.0
  %6881 = vmatprep.subr.mxu0 0.0
  %6882 = vmatpush2.xpose.msra.mxu0 0.0
  %6883 = vmatprep.subr.mxu0 0.0
  %6884 = vmatpush2.xpose.msra.mxu0 0.0
  %6885 = vmatprep.subr.mxu0 0.0
  %6886 = vmatpush2.xpose.msra.mxu0 0.0
  %6887 = vmatprep.subr.mxu0 0.0
  %6888 = vmatpush2.xpose.msra.mxu0 0.0
  %6889 = vmatprep.subr.mxu0 0.0
  %6890 = vmatpush2.xpose.msra.mxu0 0.0
  %6891 = vmatprep.subr.mxu0 0.0
  %6892 = vmatpush2.xpose.msra.mxu0 0.0
  %6893 = vmatprep.subr.mxu0 0.0
  %6894 = vmatpush2.xpose.msra.mxu0 0.0
  %6895 = vmatprep.subr.mxu0 0.0
  %6896 = vmatpush2.xpose.msra.mxu0 0.0
  %6897 = vmatprep.subr.mxu0 0.0
  %6898 = vmatpush2.xpose.msra.mxu0 0.0
  %6899 = vmatprep.subr.mxu0 0.0
  %6900 = vmatpush2.xpose.msra.mxu0 0.0
  %6901 = vmatprep.subr.mxu0 0.0
  %6902 = vmatpush2.xpose.msra.mxu0 0.0
  %6903 = vmatprep.subr.mxu0 0.0
  %6904 = vmatpush2.xpose.msra.mxu0 0.0
  %6905 = vmatprep.subr.mxu0 0.0
  %6906 = vmatpush2.xpose.msra.mxu0 0.0
  %6907 = vmatprep.subr.mxu0 0.0
  %6908 = vmatpush2.xpose.msra.mxu0 0.0
  %6909 = vmatprep.mubr.f32.mxu0 0.0
  %6910 = vmatmul.mubr.f32.gmra.mxu0 %v5264
  %v6911 = vpop.f32.mrf.mxu0
  %v6912 = vadd.f32 %v6838, %v6911
  %v6913 = vpop.f32.mrf.mxu0
  %6914 = vmatprep.mubr.f32.mxu0 0.0
  %6915 = vmatmul.mubr.f32.gmra.mxu0 %v5267
  %v6916 = vpop.f32.mrf.mxu0
  %v6917 = vadd.f32 %v6838, %v6916
  %v6918 = vpop.f32.mrf.mxu0
  %6919 = vmatprep.mubr.f32.mxu0 0.0
  %6920 = vmatmul.mubr.f32.gmra.mxu0 %v5270
  %v6921 = vpop.f32.mrf.mxu0
  %v6922 = vadd.f32 %v6838, %v6921
  %v6923 = vpop.f32.mrf.mxu0
  %6924 = vmatprep.mubr.f32.mxu0 0.0
  %6925 = vmatmul.mubr.f32.gmra.mxu0 %v5273
  %v6926 = vpop.f32.mrf.mxu0
  %v6927 = vadd.f32 %v6838, %v6926
  %v6928 = vpop.f32.mrf.mxu0
  %6929 = vdwg.mxu0
  %s6930 = scalar_lea.vmem %s6, 96
  %v6931 = vld [vmem:[%s6930] sm:$0xff]
  %v6932 = vld [vmem:[%s6930 + $0x8] sm:$0xff]
  %v6933 = vlaneseq
  %v6934 = vshrl.u32 %v6933, 7
  %v6935 = vsub.s32 6, %v6934
  %v6936 = vrot.slane %v5254, %v6935
  %v6938 = vsel %vm1265, %v6931, 0
  %v6941 = vsel %vm1265, %v6932, 0
  %6943 = vmatprep.subr.mxu0 0.0
  %6944 = vmatpush1.xpose.msra.mxu0 0.0
  %6945 = vmatprep.subr.mxu0 0.0
  %6946 = vmatpush1.xpose.msra.mxu0 0.0
  %6947 = vmatprep.subr.mxu0 0.0
  %6948 = vmatpush1.xpose.msra.mxu0 0.0
  %6949 = vmatprep.subr.mxu0 0.0
  %6950 = vmatpush1.xpose.msra.mxu0 0.0
  %6951 = vmatprep.subr.mxu0 0.0
  %6952 = vmatpush1.xpose.msra.mxu0 0.0
  %6953 = vmatprep.subr.mxu0 0.0
  %6954 = vmatpush1.xpose.msra.mxu0 0.0
  %6955 = vmatprep.subr.mxu0 0.0
  %6956 = vmatpush1.xpose.msra.mxu0 0.0
  %6957 = vmatprep.subr.mxu0 0.0
  %6958 = vmatpush1.xpose.msra.mxu0 0.0
  %6959 = vmatprep.subr.mxu0 0.0
  %6960 = vmatpush1.xpose.msra.mxu0 0.0
  %6961 = vmatprep.subr.mxu0 0.0
  %6962 = vmatpush1.xpose.msra.mxu0 0.0
  %6963 = vmatprep.subr.mxu0 0.0
  %6964 = vmatpush1.xpose.msra.mxu0 0.0
  %6965 = vmatprep.subr.mxu0 0.0
  %6966 = vmatpush1.xpose.msra.mxu0 0.0
  %6967 = vmatprep.subr.mxu0 0.0
  %6968 = vmatpush1.xpose.msra.mxu0 0.0
  %6969 = vmatprep.subr.mxu0 0.0
  %6970 = vmatpush1.xpose.msra.mxu0 0.0
  %6971 = vmatprep.subr.mxu0 0.0
  %6972 = vmatpush1.xpose.msra.mxu0 %v6941
  %6973 = vmatprep.subr.mxu0 0.0
  %6974 = vmatpush1.xpose.msra.mxu0 %v6938
  %6975 = vmatprep.subr.mxu0 0.0
  %6976 = vmatpush2.xpose.msra.mxu0 0.0
  %6977 = vmatprep.subr.mxu0 0.0
  %6978 = vmatpush2.xpose.msra.mxu0 0.0
  %6979 = vmatprep.subr.mxu0 0.0
  %6980 = vmatpush2.xpose.msra.mxu0 0.0
  %6981 = vmatprep.subr.mxu0 0.0
  %6982 = vmatpush2.xpose.msra.mxu0 0.0
  %6983 = vmatprep.subr.mxu0 0.0
  %6984 = vmatpush2.xpose.msra.mxu0 0.0
  %6985 = vmatprep.subr.mxu0 0.0
  %6986 = vmatpush2.xpose.msra.mxu0 0.0
  %6987 = vmatprep.subr.mxu0 0.0
  %6988 = vmatpush2.xpose.msra.mxu0 0.0
  %6989 = vmatprep.subr.mxu0 0.0
  %6990 = vmatpush2.xpose.msra.mxu0 0.0
  %6991 = vmatprep.subr.mxu0 0.0
  %6992 = vmatpush2.xpose.msra.mxu0 0.0
  %6993 = vmatprep.subr.mxu0 0.0
  %6994 = vmatpush2.xpose.msra.mxu0 0.0
  %6995 = vmatprep.subr.mxu0 0.0
  %6996 = vmatpush2.xpose.msra.mxu0 0.0
  %6997 = vmatprep.subr.mxu0 0.0
  %6998 = vmatpush2.xpose.msra.mxu0 0.0
  %6999 = vmatprep.subr.mxu0 0.0
  %7000 = vmatpush2.xpose.msra.mxu0 0.0
  %7001 = vmatprep.subr.mxu0 0.0
  %7002 = vmatpush2.xpose.msra.mxu0 0.0
  %7003 = vmatprep.subr.mxu0 0.0
  %7004 = vmatpush2.xpose.msra.mxu0 0.0
  %7005 = vmatprep.subr.mxu0 0.0
  %7006 = vmatpush2.xpose.msra.mxu0 0.0
  %7007 = vmatprep.mubr.f32.mxu0 0.0
  %7008 = vmatmul.mubr.f32.gmra.mxu0 %v5264
  %v7009 = vpop.f32.mrf.mxu0
  %v7010 = vadd.f32 %v6936, %v7009
  %v7011 = vpop.f32.mrf.mxu0
  %7012 = vmatprep.mubr.f32.mxu0 0.0
  %7013 = vmatmul.mubr.f32.gmra.mxu0 %v5267
  %v7014 = vpop.f32.mrf.mxu0
  %v7015 = vadd.f32 %v6936, %v7014
  %v7016 = vpop.f32.mrf.mxu0
  %7017 = vmatprep.mubr.f32.mxu0 0.0
  %7018 = vmatmul.mubr.f32.gmra.mxu0 %v5270
  %v7019 = vpop.f32.mrf.mxu0
  %v7020 = vadd.f32 %v6936, %v7019
  %v7021 = vpop.f32.mrf.mxu0
  %7022 = vmatprep.mubr.f32.mxu0 0.0
  %7023 = vmatmul.mubr.f32.gmra.mxu0 %v5273
  %v7024 = vpop.f32.mrf.mxu0
  %v7025 = vadd.f32 %v6936, %v7024
  %v7026 = vpop.f32.mrf.mxu0
  %7027 = vdwg.mxu0
  %s7028 = scalar_lea.vmem %s7, 96
  %v7029 = vld [vmem:[%s7028] sm:$0xff]
  %v7030 = vld [vmem:[%s7028 + $0x8] sm:$0xff]
  %v7031 = vlaneseq
  %v7032 = vshrl.u32 %v7031, 7
  %v7033 = vsub.s32 2, %v7032
  %v7034 = vrot.slane %v5255, %v7033
  %v7036 = vsel %vm1265, %v7029, 0
  %v7039 = vsel %vm1265, %v7030, 0
  %7041 = vmatprep.subr.mxu0 0.0
  %7042 = vmatpush1.xpose.msra.mxu0 0.0
  %7043 = vmatprep.subr.mxu0 0.0
  %7044 = vmatpush1.xpose.msra.mxu0 0.0
  %7045 = vmatprep.subr.mxu0 0.0
  %7046 = vmatpush1.xpose.msra.mxu0 0.0
  %7047 = vmatprep.subr.mxu0 0.0
  %7048 = vmatpush1.xpose.msra.mxu0 0.0
  %7049 = vmatprep.subr.mxu0 0.0
  %7050 = vmatpush1.xpose.msra.mxu0 0.0
  %7051 = vmatprep.subr.mxu0 0.0
  %7052 = vmatpush1.xpose.msra.mxu0 0.0
  %7053 = vmatprep.subr.mxu0 0.0
  %7054 = vmatpush1.xpose.msra.mxu0 0.0
  %7055 = vmatprep.subr.mxu0 0.0
  %7056 = vmatpush1.xpose.msra.mxu0 0.0
  %7057 = vmatprep.subr.mxu0 0.0
  %7058 = vmatpush1.xpose.msra.mxu0 0.0
  %7059 = vmatprep.subr.mxu0 0.0
  %7060 = vmatpush1.xpose.msra.mxu0 0.0
  %7061 = vmatprep.subr.mxu0 0.0
  %7062 = vmatpush1.xpose.msra.mxu0 0.0
  %7063 = vmatprep.subr.mxu0 0.0
  %7064 = vmatpush1.xpose.msra.mxu0 0.0
  %7065 = vmatprep.subr.mxu0 0.0
  %7066 = vmatpush1.xpose.msra.mxu0 0.0
  %7067 = vmatprep.subr.mxu0 0.0
  %7068 = vmatpush1.xpose.msra.mxu0 0.0
  %7069 = vmatprep.subr.mxu0 0.0
  %7070 = vmatpush1.xpose.msra.mxu0 %v7039
  %7071 = vmatprep.subr.mxu0 0.0
  %7072 = vmatpush1.xpose.msra.mxu0 %v7036
  %7073 = vmatprep.subr.mxu0 0.0
  %7074 = vmatpush2.xpose.msra.mxu0 0.0
  %7075 = vmatprep.subr.mxu0 0.0
  %7076 = vmatpush2.xpose.msra.mxu0 0.0
  %7077 = vmatprep.subr.mxu0 0.0
  %7078 = vmatpush2.xpose.msra.mxu0 0.0
  %7079 = vmatprep.subr.mxu0 0.0
  %7080 = vmatpush2.xpose.msra.mxu0 0.0
  %7081 = vmatprep.subr.mxu0 0.0
  %7082 = vmatpush2.xpose.msra.mxu0 0.0
  %7083 = vmatprep.subr.mxu0 0.0
  %7084 = vmatpush2.xpose.msra.mxu0 0.0
  %7085 = vmatprep.subr.mxu0 0.0
  %7086 = vmatpush2.xpose.msra.mxu0 0.0
  %7087 = vmatprep.subr.mxu0 0.0
  %7088 = vmatpush2.xpose.msra.mxu0 0.0
  %7089 = vmatprep.subr.mxu0 0.0
  %7090 = vmatpush2.xpose.msra.mxu0 0.0
  %7091 = vmatprep.subr.mxu0 0.0
  %7092 = vmatpush2.xpose.msra.mxu0 0.0
  %7093 = vmatprep.subr.mxu0 0.0
  %7094 = vmatpush2.xpose.msra.mxu0 0.0
  %7095 = vmatprep.subr.mxu0 0.0
  %7096 = vmatpush2.xpose.msra.mxu0 0.0
  %7097 = vmatprep.subr.mxu0 0.0
  %7098 = vmatpush2.xpose.msra.mxu0 0.0
  %7099 = vmatprep.subr.mxu0 0.0
  %7100 = vmatpush2.xpose.msra.mxu0 0.0
  %7101 = vmatprep.subr.mxu0 0.0
  %7102 = vmatpush2.xpose.msra.mxu0 0.0
  %7103 = vmatprep.subr.mxu0 0.0
  %7104 = vmatpush2.xpose.msra.mxu0 0.0
  %7105 = vmatprep.mubr.f32.mxu0 0.0
  %7106 = vmatmul.mubr.f32.gmra.mxu0 %v5264
  %v7107 = vpop.f32.mrf.mxu0
  %v7108 = vadd.f32 %v7034, %v7107
  %v7109 = vpop.f32.mrf.mxu0
  %7110 = vmatprep.mubr.f32.mxu0 0.0
  %7111 = vmatmul.mubr.f32.gmra.mxu0 %v5267
  %v7112 = vpop.f32.mrf.mxu0
  %v7113 = vadd.f32 %v7034, %v7112
  %v7114 = vpop.f32.mrf.mxu0
  %7115 = vmatprep.mubr.f32.mxu0 0.0
  %7116 = vmatmul.mubr.f32.gmra.mxu0 %v5270
  %v7117 = vpop.f32.mrf.mxu0
  %v7118 = vadd.f32 %v7034, %v7117
  %v7119 = vpop.f32.mrf.mxu0
  %7120 = vmatprep.mubr.f32.mxu0 0.0
  %7121 = vmatmul.mubr.f32.gmra.mxu0 %v5273
  %v7122 = vpop.f32.mrf.mxu0
  %v7123 = vadd.f32 %v7034, %v7122
  %v7124 = vpop.f32.mrf.mxu0
  %7125 = vdwg.mxu0
  %v7126 = vmul.f32 %v6912, 0.25
  %v7127 = vmul.f32 %v6917, 0.25
  %v7128 = vmul.f32 %v6922, 0.25
  %v7129 = vmul.f32 %v6927, 0.25
  %v7131 = vsel %vm2002, %v7126, 0
  %v7134 = vsel %vm2002, %v7127, 0
  %v7137 = vsel %vm2002, %v7010, 0
  %v7140 = vsel %vm2002, %v7015, 0
  %7142 = vmatprep.subr.mxu0 0.0
  %7143 = vmatpush1.xpose.msra.mxu0 0.0
  %7144 = vmatprep.subr.mxu0 0.0
  %7145 = vmatpush1.xpose.msra.mxu0 0.0
  %7146 = vmatprep.subr.mxu0 0.0
  %7147 = vmatpush1.xpose.msra.mxu0 0.0
  %7148 = vmatprep.subr.mxu0 0.0
  %7149 = vmatpush1.xpose.msra.mxu0 0.0
  %7150 = vmatprep.subr.mxu0 0.0
  %7151 = vmatpush1.xpose.msra.mxu0 0.0
  %7152 = vmatprep.subr.mxu0 0.0
  %7153 = vmatpush1.xpose.msra.mxu0 0.0
  %7154 = vmatprep.subr.mxu0 0.0
  %7155 = vmatpush1.xpose.msra.mxu0 0.0
  %7156 = vmatprep.subr.mxu0 0.0
  %7157 = vmatpush1.xpose.msra.mxu0 0.0
  %7158 = vmatprep.subr.mxu0 0.0
  %7159 = vmatpush1.xpose.msra.mxu0 0.0
  %7160 = vmatprep.subr.mxu0 0.0
  %7161 = vmatpush1.xpose.msra.mxu0 0.0
  %7162 = vmatprep.subr.mxu0 0.0
  %7163 = vmatpush1.xpose.msra.mxu0 0.0
  %7164 = vmatprep.subr.mxu0 0.0
  %7165 = vmatpush1.xpose.msra.mxu0 0.0
  %7166 = vmatprep.subr.mxu0 0.0
  %7167 = vmatpush1.xpose.msra.mxu0 0.0
  %7168 = vmatprep.subr.mxu0 0.0
  %7169 = vmatpush1.xpose.msra.mxu0 0.0
  %7170 = vmatprep.subr.mxu0 0.0
  %7171 = vmatpush1.xpose.msra.mxu0 %v7140
  %7172 = vmatprep.subr.mxu0 0.0
  %7173 = vmatpush1.xpose.msra.mxu0 %v7137
  %7174 = vmatprep.subr.mxu0 0.0
  %7175 = vmatpush2.xpose.msra.mxu0 0.0
  %7176 = vmatprep.subr.mxu0 0.0
  %7177 = vmatpush2.xpose.msra.mxu0 0.0
  %7178 = vmatprep.subr.mxu0 0.0
  %7179 = vmatpush2.xpose.msra.mxu0 0.0
  %7180 = vmatprep.subr.mxu0 0.0
  %7181 = vmatpush2.xpose.msra.mxu0 0.0
  %7182 = vmatprep.subr.mxu0 0.0
  %7183 = vmatpush2.xpose.msra.mxu0 0.0
  %7184 = vmatprep.subr.mxu0 0.0
  %7185 = vmatpush2.xpose.msra.mxu0 0.0
  %7186 = vmatprep.subr.mxu0 0.0
  %7187 = vmatpush2.xpose.msra.mxu0 0.0
  %7188 = vmatprep.subr.mxu0 0.0
  %7189 = vmatpush2.xpose.msra.mxu0 0.0
  %7190 = vmatprep.subr.mxu0 0.0
  %7191 = vmatpush2.xpose.msra.mxu0 0.0
  %7192 = vmatprep.subr.mxu0 0.0
  %7193 = vmatpush2.xpose.msra.mxu0 0.0
  %7194 = vmatprep.subr.mxu0 0.0
  %7195 = vmatpush2.xpose.msra.mxu0 0.0
  %7196 = vmatprep.subr.mxu0 0.0
  %7197 = vmatpush2.xpose.msra.mxu0 0.0
  %7198 = vmatprep.subr.mxu0 0.0
  %7199 = vmatpush2.xpose.msra.mxu0 0.0
  %7200 = vmatprep.subr.mxu0 0.0
  %7201 = vmatpush2.xpose.msra.mxu0 0.0
  %7202 = vmatprep.subr.mxu0 0.0
  %7203 = vmatpush2.xpose.msra.mxu0 0.0
  %7204 = vmatprep.subr.mxu0 0.0
  %7205 = vmatpush2.xpose.msra.mxu0 0.0
  %7206 = vmatprep.mubr.f32.mxu0 0.0
  %7207 = vmatmul.mubr.f32.gmra.mxu0 %v7131
  %v7208 = vpop.f32.mrf.mxu0
  %v7209 = vadd.f32 0.0, %v7208
  %v7210 = vpop.f32.mrf.mxu0
  %7211 = vmatprep.mubr.f32.mxu0 0.0
  %7212 = vmatmul.mubr.f32.gmra.mxu0 %v7134
  %v7213 = vpop.f32.mrf.mxu0
  %v7214 = vadd.f32 0.0, %v7213
  %v7215 = vpop.f32.mrf.mxu0
  %7216 = vdwg.mxu0
  %v7218 = vsel %vm2002, %v7128, 0
  %v7221 = vsel %vm2002, %v7129, 0
  %v7224 = vsel %vm2002, %v7020, 0
  %v7227 = vsel %vm2002, %v7025, 0
  %7229 = vmatprep.subr.mxu0 0.0
  %7230 = vmatpush1.xpose.msra.mxu0 0.0
  %7231 = vmatprep.subr.mxu0 0.0
  %7232 = vmatpush1.xpose.msra.mxu0 0.0
  %7233 = vmatprep.subr.mxu0 0.0
  %7234 = vmatpush1.xpose.msra.mxu0 0.0
  %7235 = vmatprep.subr.mxu0 0.0
  %7236 = vmatpush1.xpose.msra.mxu0 0.0
  %7237 = vmatprep.subr.mxu0 0.0
  %7238 = vmatpush1.xpose.msra.mxu0 0.0
  %7239 = vmatprep.subr.mxu0 0.0
  %7240 = vmatpush1.xpose.msra.mxu0 0.0
  %7241 = vmatprep.subr.mxu0 0.0
  %7242 = vmatpush1.xpose.msra.mxu0 0.0
  %7243 = vmatprep.subr.mxu0 0.0
  %7244 = vmatpush1.xpose.msra.mxu0 0.0
  %7245 = vmatprep.subr.mxu0 0.0
  %7246 = vmatpush1.xpose.msra.mxu0 0.0
  %7247 = vmatprep.subr.mxu0 0.0
  %7248 = vmatpush1.xpose.msra.mxu0 0.0
  %7249 = vmatprep.subr.mxu0 0.0
  %7250 = vmatpush1.xpose.msra.mxu0 0.0
  %7251 = vmatprep.subr.mxu0 0.0
  %7252 = vmatpush1.xpose.msra.mxu0 0.0
  %7253 = vmatprep.subr.mxu0 0.0
  %7254 = vmatpush1.xpose.msra.mxu0 0.0
  %7255 = vmatprep.subr.mxu0 0.0
  %7256 = vmatpush1.xpose.msra.mxu0 0.0
  %7257 = vmatprep.subr.mxu0 0.0
  %7258 = vmatpush1.xpose.msra.mxu0 %v7227
  %7259 = vmatprep.subr.mxu0 0.0
  %7260 = vmatpush1.xpose.msra.mxu0 %v7224
  %7261 = vmatprep.subr.mxu0 0.0
  %7262 = vmatpush2.xpose.msra.mxu0 0.0
  %7263 = vmatprep.subr.mxu0 0.0
  %7264 = vmatpush2.xpose.msra.mxu0 0.0
  %7265 = vmatprep.subr.mxu0 0.0
  %7266 = vmatpush2.xpose.msra.mxu0 0.0
  %7267 = vmatprep.subr.mxu0 0.0
  %7268 = vmatpush2.xpose.msra.mxu0 0.0
  %7269 = vmatprep.subr.mxu0 0.0
  %7270 = vmatpush2.xpose.msra.mxu0 0.0
  %7271 = vmatprep.subr.mxu0 0.0
  %7272 = vmatpush2.xpose.msra.mxu0 0.0
  %7273 = vmatprep.subr.mxu0 0.0
  %7274 = vmatpush2.xpose.msra.mxu0 0.0
  %7275 = vmatprep.subr.mxu0 0.0
  %7276 = vmatpush2.xpose.msra.mxu0 0.0
  %7277 = vmatprep.subr.mxu0 0.0
  %7278 = vmatpush2.xpose.msra.mxu0 0.0
  %7279 = vmatprep.subr.mxu0 0.0
  %7280 = vmatpush2.xpose.msra.mxu0 0.0
  %7281 = vmatprep.subr.mxu0 0.0
  %7282 = vmatpush2.xpose.msra.mxu0 0.0
  %7283 = vmatprep.subr.mxu0 0.0
  %7284 = vmatpush2.xpose.msra.mxu0 0.0
  %7285 = vmatprep.subr.mxu0 0.0
  %7286 = vmatpush2.xpose.msra.mxu0 0.0
  %7287 = vmatprep.subr.mxu0 0.0
  %7288 = vmatpush2.xpose.msra.mxu0 0.0
  %7289 = vmatprep.subr.mxu0 0.0
  %7290 = vmatpush2.xpose.msra.mxu0 0.0
  %7291 = vmatprep.subr.mxu0 0.0
  %7292 = vmatpush2.xpose.msra.mxu0 0.0
  %7293 = vmatprep.mubr.f32.mxu0 0.0
  %7294 = vmatmul.mubr.f32.gmra.mxu0 %v7218
  %v7295 = vpop.f32.mrf.mxu0
  %v7296 = vadd.f32 0.0, %v7295
  %v7297 = vpop.f32.mrf.mxu0
  %7298 = vmatprep.mubr.f32.mxu0 0.0
  %7299 = vmatmul.mubr.f32.gmra.mxu0 %v7221
  %v7300 = vpop.f32.mrf.mxu0
  %v7301 = vadd.f32 0.0, %v7300
  %v7302 = vpop.f32.mrf.mxu0
  %7303 = vdwg.mxu0
  %v7304 = vsel %vm1692, %v7209, -1e+30
  %v7305 = vsel %vm1692, %v7214, -1e+30
  %v7306 = vsel %vm1692, %v7296, -1e+30
  %v7307 = vsel %vm1692, %v7301, -1e+30
  %v7308 = vsel %vm2002, %v7304, -inf
  %7309 = vmax.xlane.f32.xlu0 %v7308
  %v7310 = vpop.xlane.xlu0 %7309
  %v7311 = vsel %vm2002, %v7305, -inf
  %7312 = vmax.xlane.f32.xlu0 %v7311
  %v7313 = vpop.xlane.xlu0 %7312
  %v7314 = vsel %vm2002, %v7306, -inf
  %7315 = vmax.xlane.f32.xlu0 %v7314
  %v7316 = vpop.xlane.xlu0 %7315
  %v7317 = vsel %vm2002, %v7307, -inf
  %7318 = vmax.xlane.f32.xlu0 %v7317
  %v7319 = vpop.xlane.xlu0 %7318
  %v7320 = vsub.f32 %v7304, %v7310
  %v7321 = vsub.f32 %v7305, %v7313
  %v7322 = vsub.f32 %v7306, %v7316
  %v7323 = vsub.f32 %v7307, %v7319
  %v7324 = vmul.f32 %v7320, 1.442695
  %v7325 = vpow.pop %v7324
  %v7326 = vmul.f32 %v7321, 1.442695
  %v7327 = vpow.pop %v7326
  %v7328 = vmul.f32 %v7322, 1.442695
  %v7329 = vpow.pop %v7328
  %v7330 = vmul.f32 %v7323, 1.442695
  %v7331 = vpow.pop %v7330
  %v7332 = vsel %vm2002, %v7325, 0.0
  %7333 = vadd.xlane.f32.xlu0 %v7332
  %v7334 = vpop.xlane.xlu0 %7333
  %v7335 = vsel %vm2002, %v7327, 0.0
  %7336 = vadd.xlane.f32.xlu0 %v7335
  %v7337 = vpop.xlane.xlu0 %7336
  %v7338 = vsel %vm2002, %v7329, 0.0
  %7339 = vadd.xlane.f32.xlu0 %v7338
  %v7340 = vpop.xlane.xlu0 %7339
  %v7341 = vsel %vm2002, %v7331, 0.0
  %7342 = vadd.xlane.f32.xlu0 %v7341
  %v7343 = vpop.xlane.xlu0 %7342
  %v7344 = vrcp.pop %v7334
  %v7345 = vrcp.pop %v7337
  %v7346 = vrcp.pop %v7340
  %v7347 = vrcp.pop %v7343
  %v7348 = vmul.f32 %v7325, %v7344
  %v7349 = vmul.f32 %v7327, %v7345
  %v7350 = vmul.f32 %v7329, %v7346
  %v7351 = vmul.f32 %v7331, %v7347
  %v7353 = vsel %vm2002, %v7348, 0
  %v7356 = vsel %vm2002, %v7349, 0
  %7358 = vmatprep.subr.mxu0 0.0
  %7359 = vmatpush1.msra.mxu0 0.0
  %7360 = vmatprep.subr.mxu0 0.0
  %7361 = vmatpush1.msra.mxu0 0.0
  %7362 = vmatprep.subr.mxu0 0.0
  %7363 = vmatpush1.msra.mxu0 0.0
  %7364 = vmatprep.subr.mxu0 0.0
  %7365 = vmatpush1.msra.mxu0 0.0
  %7366 = vmatprep.subr.mxu0 0.0
  %7367 = vmatpush1.msra.mxu0 0.0
  %7368 = vmatprep.subr.mxu0 0.0
  %7369 = vmatpush1.msra.mxu0 0.0
  %7370 = vmatprep.subr.mxu0 0.0
  %7371 = vmatpush1.msra.mxu0 0.0
  %7372 = vmatprep.subr.mxu0 0.0
  %7373 = vmatpush1.msra.mxu0 0.0
  %7374 = vmatprep.subr.mxu0 0.0
  %7375 = vmatpush1.msra.mxu0 0.0
  %7376 = vmatprep.subr.mxu0 0.0
  %7377 = vmatpush1.msra.mxu0 0.0
  %7378 = vmatprep.subr.mxu0 0.0
  %7379 = vmatpush1.msra.mxu0 0.0
  %7380 = vmatprep.subr.mxu0 0.0
  %7381 = vmatpush1.msra.mxu0 0.0
  %7382 = vmatprep.subr.mxu0 0.0
  %7383 = vmatpush1.msra.mxu0 0.0
  %7384 = vmatprep.subr.mxu0 0.0
  %7385 = vmatpush1.msra.mxu0 0.0
  %7386 = vmatprep.subr.mxu0 0.0
  %7387 = vmatpush1.msra.mxu0 %v7113
  %7388 = vmatprep.subr.mxu0 0.0
  %7389 = vmatpush1.msra.mxu0 %v7108
  %7390 = vmatprep.subr.mxu0 0.0
  %7391 = vmatpush2.msra.mxu0 0.0
  %7392 = vmatprep.subr.mxu0 0.0
  %7393 = vmatpush2.msra.mxu0 0.0
  %7394 = vmatprep.subr.mxu0 0.0
  %7395 = vmatpush2.msra.mxu0 0.0
  %7396 = vmatprep.subr.mxu0 0.0
  %7397 = vmatpush2.msra.mxu0 0.0
  %7398 = vmatprep.subr.mxu0 0.0
  %7399 = vmatpush2.msra.mxu0 0.0
  %7400 = vmatprep.subr.mxu0 0.0
  %7401 = vmatpush2.msra.mxu0 0.0
  %7402 = vmatprep.subr.mxu0 0.0
  %7403 = vmatpush2.msra.mxu0 0.0
  %7404 = vmatprep.subr.mxu0 0.0
  %7405 = vmatpush2.msra.mxu0 0.0
  %7406 = vmatprep.subr.mxu0 0.0
  %7407 = vmatpush2.msra.mxu0 0.0
  %7408 = vmatprep.subr.mxu0 0.0
  %7409 = vmatpush2.msra.mxu0 0.0
  %7410 = vmatprep.subr.mxu0 0.0
  %7411 = vmatpush2.msra.mxu0 0.0
  %7412 = vmatprep.subr.mxu0 0.0
  %7413 = vmatpush2.msra.mxu0 0.0
  %7414 = vmatprep.subr.mxu0 0.0
  %7415 = vmatpush2.msra.mxu0 0.0
  %7416 = vmatprep.subr.mxu0 0.0
  %7417 = vmatpush2.msra.mxu0 0.0
  %7418 = vmatprep.subr.mxu0 0.0
  %7419 = vmatpush2.msra.mxu0 0.0
  %7420 = vmatprep.subr.mxu0 0.0
  %7421 = vmatpush2.msra.mxu0 0.0
  %7422 = vmatprep.mubr.f32.mxu0 0.0
  %7423 = vmatmul.mubr.f32.gmra.mxu0 %v7353
  %v7424 = vpop.f32.mrf.mxu0
  %v7425 = vadd.f32 0.0, %v7424
  %v7426 = vpop.f32.mrf.mxu0
  %7427 = vmatprep.mubr.f32.mxu0 0.0
  %7428 = vmatmul.mubr.f32.gmra.mxu0 %v7356
  %v7429 = vpop.f32.mrf.mxu0
  %v7430 = vadd.f32 0.0, %v7429
  %v7431 = vpop.f32.mrf.mxu0
  %7432 = vdwg.mxu0
  %v7434 = vsel %vm2002, %v7350, 0
  %v7437 = vsel %vm2002, %v7351, 0
  %7439 = vmatprep.subr.mxu0 0.0
  %7440 = vmatpush1.msra.mxu0 0.0
  %7441 = vmatprep.subr.mxu0 0.0
  %7442 = vmatpush1.msra.mxu0 0.0
  %7443 = vmatprep.subr.mxu0 0.0
  %7444 = vmatpush1.msra.mxu0 0.0
  %7445 = vmatprep.subr.mxu0 0.0
  %7446 = vmatpush1.msra.mxu0 0.0
  %7447 = vmatprep.subr.mxu0 0.0
  %7448 = vmatpush1.msra.mxu0 0.0
  %7449 = vmatprep.subr.mxu0 0.0
  %7450 = vmatpush1.msra.mxu0 0.0
  %7451 = vmatprep.subr.mxu0 0.0
  %7452 = vmatpush1.msra.mxu0 0.0
  %7453 = vmatprep.subr.mxu0 0.0
  %7454 = vmatpush1.msra.mxu0 0.0
  %7455 = vmatprep.subr.mxu0 0.0
  %7456 = vmatpush1.msra.mxu0 0.0
  %7457 = vmatprep.subr.mxu0 0.0
  %7458 = vmatpush1.msra.mxu0 0.0
  %7459 = vmatprep.subr.mxu0 0.0
  %7460 = vmatpush1.msra.mxu0 0.0
  %7461 = vmatprep.subr.mxu0 0.0
  %7462 = vmatpush1.msra.mxu0 0.0
  %7463 = vmatprep.subr.mxu0 0.0
  %7464 = vmatpush1.msra.mxu0 0.0
  %7465 = vmatprep.subr.mxu0 0.0
  %7466 = vmatpush1.msra.mxu0 0.0
  %7467 = vmatprep.subr.mxu0 0.0
  %7468 = vmatpush1.msra.mxu0 %v7123
  %7469 = vmatprep.subr.mxu0 0.0
  %7470 = vmatpush1.msra.mxu0 %v7118
  %7471 = vmatprep.subr.mxu0 0.0
  %7472 = vmatpush2.msra.mxu0 0.0
  %7473 = vmatprep.subr.mxu0 0.0
  %7474 = vmatpush2.msra.mxu0 0.0
  %7475 = vmatprep.subr.mxu0 0.0
  %7476 = vmatpush2.msra.mxu0 0.0
  %7477 = vmatprep.subr.mxu0 0.0
  %7478 = vmatpush2.msra.mxu0 0.0
  %7479 = vmatprep.subr.mxu0 0.0
  %7480 = vmatpush2.msra.mxu0 0.0
  %7481 = vmatprep.subr.mxu0 0.0
  %7482 = vmatpush2.msra.mxu0 0.0
  %7483 = vmatprep.subr.mxu0 0.0
  %7484 = vmatpush2.msra.mxu0 0.0
  %7485 = vmatprep.subr.mxu0 0.0
  %7486 = vmatpush2.msra.mxu0 0.0
  %7487 = vmatprep.subr.mxu0 0.0
  %7488 = vmatpush2.msra.mxu0 0.0
  %7489 = vmatprep.subr.mxu0 0.0
  %7490 = vmatpush2.msra.mxu0 0.0
  %7491 = vmatprep.subr.mxu0 0.0
  %7492 = vmatpush2.msra.mxu0 0.0
  %7493 = vmatprep.subr.mxu0 0.0
  %7494 = vmatpush2.msra.mxu0 0.0
  %7495 = vmatprep.subr.mxu0 0.0
  %7496 = vmatpush2.msra.mxu0 0.0
  %7497 = vmatprep.subr.mxu0 0.0
  %7498 = vmatpush2.msra.mxu0 0.0
  %7499 = vmatprep.subr.mxu0 0.0
  %7500 = vmatpush2.msra.mxu0 0.0
  %7501 = vmatprep.subr.mxu0 0.0
  %7502 = vmatpush2.msra.mxu0 0.0
  %7503 = vmatprep.mubr.f32.mxu0 0.0
  %7504 = vmatmul.mubr.f32.gmra.mxu0 %v7434
  %v7505 = vpop.f32.mrf.mxu0
  %v7506 = vadd.f32 0.0, %v7505
  %v7507 = vpop.f32.mrf.mxu0
  %7508 = vmatprep.mubr.f32.mxu0 0.0
  %7509 = vmatmul.mubr.f32.gmra.mxu0 %v7437
  %v7510 = vpop.f32.mrf.mxu0
  %v7511 = vadd.f32 0.0, %v7510
  %v7512 = vpop.f32.mrf.mxu0
  %7513 = vdwg.mxu0
  %s7514 = scalar_lea.vmem %s8, 96
  %v7515 = vld [vmem:[%s7514] sm:$0xff]
  %v7516 = vld [vmem:[%s7514 + $0x8] sm:$0xff]
  %v7518 = vsel %vm2002, %v7425, 0
  %v7521 = vsel %vm2002, %v7430, 0
  %v7524 = vsel %vm2002, %v7506, 0
  %v7527 = vsel %vm2002, %v7511, 0
  %7529 = vmatprep.subr.mxu0 0.0
  %7530 = vmatpush1.msra.mxu0 0.0
  %7531 = vmatprep.subr.mxu0 0.0
  %7532 = vmatpush1.msra.mxu0 0.0
  %7533 = vmatprep.subr.mxu0 0.0
  %7534 = vmatpush1.msra.mxu0 0.0
  %7535 = vmatprep.subr.mxu0 0.0
  %7536 = vmatpush1.msra.mxu0 0.0
  %7537 = vmatprep.subr.mxu0 0.0
  %7538 = vmatpush1.msra.mxu0 0.0
  %7539 = vmatprep.subr.mxu0 0.0
  %7540 = vmatpush1.msra.mxu0 0.0
  %7541 = vmatprep.subr.mxu0 0.0
  %7542 = vmatpush1.msra.mxu0 0.0
  %7543 = vmatprep.subr.mxu0 0.0
  %7544 = vmatpush1.msra.mxu0 0.0
  %7545 = vmatprep.subr.mxu0 0.0
  %7546 = vmatpush1.msra.mxu0 0.0
  %7547 = vmatprep.subr.mxu0 0.0
  %7548 = vmatpush1.msra.mxu0 0.0
  %7549 = vmatprep.subr.mxu0 0.0
  %7550 = vmatpush1.msra.mxu0 0.0
  %7551 = vmatprep.subr.mxu0 0.0
  %7552 = vmatpush1.msra.mxu0 0.0
  %7553 = vmatprep.subr.mxu0 0.0
  %7554 = vmatpush1.msra.mxu0 0.0
  %7555 = vmatprep.subr.mxu0 0.0
  %7556 = vmatpush1.msra.mxu0 0.0
  %7557 = vmatprep.subr.mxu0 0.0
  %7558 = vmatpush1.msra.mxu0 %v7516
  %7559 = vmatprep.subr.mxu0 0.0
  %7560 = vmatpush1.msra.mxu0 %v7515
  %7561 = vmatprep.subr.mxu0 0.0
  %7562 = vmatpush2.msra.mxu0 0.0
  %7563 = vmatprep.subr.mxu0 0.0
  %7564 = vmatpush2.msra.mxu0 0.0
  %7565 = vmatprep.subr.mxu0 0.0
  %7566 = vmatpush2.msra.mxu0 0.0
  %7567 = vmatprep.subr.mxu0 0.0
  %7568 = vmatpush2.msra.mxu0 0.0
  %7569 = vmatprep.subr.mxu0 0.0
  %7570 = vmatpush2.msra.mxu0 0.0
  %7571 = vmatprep.subr.mxu0 0.0
  %7572 = vmatpush2.msra.mxu0 0.0
  %7573 = vmatprep.subr.mxu0 0.0
  %7574 = vmatpush2.msra.mxu0 0.0
  %7575 = vmatprep.subr.mxu0 0.0
  %7576 = vmatpush2.msra.mxu0 0.0
  %7577 = vmatprep.subr.mxu0 0.0
  %7578 = vmatpush2.msra.mxu0 0.0
  %7579 = vmatprep.subr.mxu0 0.0
  %7580 = vmatpush2.msra.mxu0 0.0
  %7581 = vmatprep.subr.mxu0 0.0
  %7582 = vmatpush2.msra.mxu0 0.0
  %7583 = vmatprep.subr.mxu0 0.0
  %7584 = vmatpush2.msra.mxu0 0.0
  %7585 = vmatprep.subr.mxu0 0.0
  %7586 = vmatpush2.msra.mxu0 0.0
  %7587 = vmatprep.subr.mxu0 0.0
  %7588 = vmatpush2.msra.mxu0 0.0
  %7589 = vmatprep.subr.mxu0 0.0
  %7590 = vmatpush2.msra.mxu0 0.0
  %7591 = vmatprep.subr.mxu0 0.0
  %7592 = vmatpush2.msra.mxu0 0.0
  %7593 = vmatprep.mubr.f32.mxu0 0.0
  %7594 = vmatmul.mubr.f32.gmra.mxu0 %v7518
  %v7595 = vpop.f32.mrf.mxu0
  %v7596 = vadd.f32 0.0, %v7595
  %v7597 = vpop.f32.mrf.mxu0
  %7598 = vmatprep.mubr.f32.mxu0 0.0
  %7599 = vmatmul.mubr.f32.gmra.mxu0 %v7521
  %v7600 = vpop.f32.mrf.mxu0
  %v7601 = vadd.f32 0.0, %v7600
  %v7602 = vpop.f32.mrf.mxu0
  %7603 = vmatprep.mubr.f32.mxu0 0.0
  %7604 = vmatmul.mubr.f32.gmra.mxu0 %v7524
  %v7605 = vpop.f32.mrf.mxu0
  %v7606 = vadd.f32 0.0, %v7605
  %v7607 = vpop.f32.mrf.mxu0
  %7608 = vmatprep.mubr.f32.mxu0 0.0
  %7609 = vmatmul.mubr.f32.gmra.mxu0 %v7527
  %v7610 = vpop.f32.mrf.mxu0
  %v7611 = vadd.f32 0.0, %v7610
  %v7612 = vpop.f32.mrf.mxu0
  %7613 = vdwg.mxu0
  %v7614 = vadd.f32 %v6814, %v7596
  %v7615 = vadd.f32 %v6819, %v7601
  %v7616 = vadd.f32 %v6824, %v7606
  %v7617 = vadd.f32 %v6829, %v7611
  %s7618 = scalar_lea.vmem %s5, 112
  %v7619 = vld [vmem:[%s7618] sm:$0xff]
  %v7620 = vld [vmem:[%s7618 + $0x8] sm:$0xff]
  %v7621 = vlaneseq
  %v7622 = vshrl.u32 %v7621, 7
  %v7623 = vsub.s32 3, %v7622
  %v7624 = vrot.slane %v5254, %v7623
  %v7626 = vsel %vm1265, %v7619, 0
  %v7629 = vsel %vm1265, %v7620, 0
  %7631 = vmatprep.subr.mxu0 0.0
  %7632 = vmatpush1.xpose.msra.mxu0 0.0
  %7633 = vmatprep.subr.mxu0 0.0
  %7634 = vmatpush1.xpose.msra.mxu0 0.0
  %7635 = vmatprep.subr.mxu0 0.0
  %7636 = vmatpush1.xpose.msra.mxu0 0.0
  %7637 = vmatprep.subr.mxu0 0.0
  %7638 = vmatpush1.xpose.msra.mxu0 0.0
  %7639 = vmatprep.subr.mxu0 0.0
  %7640 = vmatpush1.xpose.msra.mxu0 0.0
  %7641 = vmatprep.subr.mxu0 0.0
  %7642 = vmatpush1.xpose.msra.mxu0 0.0
  %7643 = vmatprep.subr.mxu0 0.0
  %7644 = vmatpush1.xpose.msra.mxu0 0.0
  %7645 = vmatprep.subr.mxu0 0.0
  %7646 = vmatpush1.xpose.msra.mxu0 0.0
  %7647 = vmatprep.subr.mxu0 0.0
  %7648 = vmatpush1.xpose.msra.mxu0 0.0
  %7649 = vmatprep.subr.mxu0 0.0
  %7650 = vmatpush1.xpose.msra.mxu0 0.0
  %7651 = vmatprep.subr.mxu0 0.0
  %7652 = vmatpush1.xpose.msra.mxu0 0.0
  %7653 = vmatprep.subr.mxu0 0.0
  %7654 = vmatpush1.xpose.msra.mxu0 0.0
  %7655 = vmatprep.subr.mxu0 0.0
  %7656 = vmatpush1.xpose.msra.mxu0 0.0
  %7657 = vmatprep.subr.mxu0 0.0
  %7658 = vmatpush1.xpose.msra.mxu0 0.0
  %7659 = vmatprep.subr.mxu0 0.0
  %7660 = vmatpush1.xpose.msra.mxu0 %v7629
  %7661 = vmatprep.subr.mxu0 0.0
  %7662 = vmatpush1.xpose.msra.mxu0 %v7626
  %7663 = vmatprep.subr.mxu0 0.0
  %7664 = vmatpush2.xpose.msra.mxu0 0.0
  %7665 = vmatprep.subr.mxu0 0.0
  %7666 = vmatpush2.xpose.msra.mxu0 0.0
  %7667 = vmatprep.subr.mxu0 0.0
  %7668 = vmatpush2.xpose.msra.mxu0 0.0
  %7669 = vmatprep.subr.mxu0 0.0
  %7670 = vmatpush2.xpose.msra.mxu0 0.0
  %7671 = vmatprep.subr.mxu0 0.0
  %7672 = vmatpush2.xpose.msra.mxu0 0.0
  %7673 = vmatprep.subr.mxu0 0.0
  %7674 = vmatpush2.xpose.msra.mxu0 0.0
  %7675 = vmatprep.subr.mxu0 0.0
  %7676 = vmatpush2.xpose.msra.mxu0 0.0
  %7677 = vmatprep.subr.mxu0 0.0
  %7678 = vmatpush2.xpose.msra.mxu0 0.0
  %7679 = vmatprep.subr.mxu0 0.0
  %7680 = vmatpush2.xpose.msra.mxu0 0.0
  %7681 = vmatprep.subr.mxu0 0.0
  %7682 = vmatpush2.xpose.msra.mxu0 0.0
  %7683 = vmatprep.subr.mxu0 0.0
  %7684 = vmatpush2.xpose.msra.mxu0 0.0
  %7685 = vmatprep.subr.mxu0 0.0
  %7686 = vmatpush2.xpose.msra.mxu0 0.0
  %7687 = vmatprep.subr.mxu0 0.0
  %7688 = vmatpush2.xpose.msra.mxu0 0.0
  %7689 = vmatprep.subr.mxu0 0.0
  %7690 = vmatpush2.xpose.msra.mxu0 0.0
  %7691 = vmatprep.subr.mxu0 0.0
  %7692 = vmatpush2.xpose.msra.mxu0 0.0
  %7693 = vmatprep.subr.mxu0 0.0
  %7694 = vmatpush2.xpose.msra.mxu0 0.0
  %7695 = vmatprep.mubr.f32.mxu0 0.0
  %7696 = vmatmul.mubr.f32.gmra.mxu0 %v5264
  %v7697 = vpop.f32.mrf.mxu0
  %v7698 = vadd.f32 %v7624, %v7697
  %v7699 = vpop.f32.mrf.mxu0
  %7700 = vmatprep.mubr.f32.mxu0 0.0
  %7701 = vmatmul.mubr.f32.gmra.mxu0 %v5267
  %v7702 = vpop.f32.mrf.mxu0
  %v7703 = vadd.f32 %v7624, %v7702
  %v7704 = vpop.f32.mrf.mxu0
  %7705 = vmatprep.mubr.f32.mxu0 0.0
  %7706 = vmatmul.mubr.f32.gmra.mxu0 %v5270
  %v7707 = vpop.f32.mrf.mxu0
  %v7708 = vadd.f32 %v7624, %v7707
  %v7709 = vpop.f32.mrf.mxu0
  %7710 = vmatprep.mubr.f32.mxu0 0.0
  %7711 = vmatmul.mubr.f32.gmra.mxu0 %v5273
  %v7712 = vpop.f32.mrf.mxu0
  %v7713 = vadd.f32 %v7624, %v7712
  %v7714 = vpop.f32.mrf.mxu0
  %7715 = vdwg.mxu0
  %s7716 = scalar_lea.vmem %s6, 112
  %v7717 = vld [vmem:[%s7716] sm:$0xff]
  %v7718 = vld [vmem:[%s7716 + $0x8] sm:$0xff]
  %v7719 = vlaneseq
  %v7720 = vshrl.u32 %v7719, 7
  %v7721 = vsub.s32 7, %v7720
  %v7722 = vrot.slane %v5254, %v7721
  %v7724 = vsel %vm1265, %v7717, 0
  %v7727 = vsel %vm1265, %v7718, 0
  %7729 = vmatprep.subr.mxu0 0.0
  %7730 = vmatpush1.xpose.msra.mxu0 0.0
  %7731 = vmatprep.subr.mxu0 0.0
  %7732 = vmatpush1.xpose.msra.mxu0 0.0
  %7733 = vmatprep.subr.mxu0 0.0
  %7734 = vmatpush1.xpose.msra.mxu0 0.0
  %7735 = vmatprep.subr.mxu0 0.0
  %7736 = vmatpush1.xpose.msra.mxu0 0.0
  %7737 = vmatprep.subr.mxu0 0.0
  %7738 = vmatpush1.xpose.msra.mxu0 0.0
  %7739 = vmatprep.subr.mxu0 0.0
  %7740 = vmatpush1.xpose.msra.mxu0 0.0
  %7741 = vmatprep.subr.mxu0 0.0
  %7742 = vmatpush1.xpose.msra.mxu0 0.0
  %7743 = vmatprep.subr.mxu0 0.0
  %7744 = vmatpush1.xpose.msra.mxu0 0.0
  %7745 = vmatprep.subr.mxu0 0.0
  %7746 = vmatpush1.xpose.msra.mxu0 0.0
  %7747 = vmatprep.subr.mxu0 0.0
  %7748 = vmatpush1.xpose.msra.mxu0 0.0
  %7749 = vmatprep.subr.mxu0 0.0
  %7750 = vmatpush1.xpose.msra.mxu0 0.0
  %7751 = vmatprep.subr.mxu0 0.0
  %7752 = vmatpush1.xpose.msra.mxu0 0.0
  %7753 = vmatprep.subr.mxu0 0.0
  %7754 = vmatpush1.xpose.msra.mxu0 0.0
  %7755 = vmatprep.subr.mxu0 0.0
  %7756 = vmatpush1.xpose.msra.mxu0 0.0
  %7757 = vmatprep.subr.mxu0 0.0
  %7758 = vmatpush1.xpose.msra.mxu0 %v7727
  %7759 = vmatprep.subr.mxu0 0.0
  %7760 = vmatpush1.xpose.msra.mxu0 %v7724
  %7761 = vmatprep.subr.mxu0 0.0
  %7762 = vmatpush2.xpose.msra.mxu0 0.0
  %7763 = vmatprep.subr.mxu0 0.0
  %7764 = vmatpush2.xpose.msra.mxu0 0.0
  %7765 = vmatprep.subr.mxu0 0.0
  %7766 = vmatpush2.xpose.msra.mxu0 0.0
  %7767 = vmatprep.subr.mxu0 0.0
  %7768 = vmatpush2.xpose.msra.mxu0 0.0
  %7769 = vmatprep.subr.mxu0 0.0
  %7770 = vmatpush2.xpose.msra.mxu0 0.0
  %7771 = vmatprep.subr.mxu0 0.0
  %7772 = vmatpush2.xpose.msra.mxu0 0.0
  %7773 = vmatprep.subr.mxu0 0.0
  %7774 = vmatpush2.xpose.msra.mxu0 0.0
  %7775 = vmatprep.subr.mxu0 0.0
  %7776 = vmatpush2.xpose.msra.mxu0 0.0
  %7777 = vmatprep.subr.mxu0 0.0
  %7778 = vmatpush2.xpose.msra.mxu0 0.0
  %7779 = vmatprep.subr.mxu0 0.0
  %7780 = vmatpush2.xpose.msra.mxu0 0.0
  %7781 = vmatprep.subr.mxu0 0.0
  %7782 = vmatpush2.xpose.msra.mxu0 0.0
  %7783 = vmatprep.subr.mxu0 0.0
  %7784 = vmatpush2.xpose.msra.mxu0 0.0
  %7785 = vmatprep.subr.mxu0 0.0
  %7786 = vmatpush2.xpose.msra.mxu0 0.0
  %7787 = vmatprep.subr.mxu0 0.0
  %7788 = vmatpush2.xpose.msra.mxu0 0.0
  %7789 = vmatprep.subr.mxu0 0.0
  %7790 = vmatpush2.xpose.msra.mxu0 0.0
  %7791 = vmatprep.subr.mxu0 0.0
  %7792 = vmatpush2.xpose.msra.mxu0 0.0
  %7793 = vmatprep.mubr.f32.mxu0 0.0
  %7794 = vmatmul.mubr.f32.gmra.mxu0 %v5264
  %v7795 = vpop.f32.mrf.mxu0
  %v7796 = vadd.f32 %v7722, %v7795
  %v7797 = vpop.f32.mrf.mxu0
  %7798 = vmatprep.mubr.f32.mxu0 0.0
  %7799 = vmatmul.mubr.f32.gmra.mxu0 %v5267
  %v7800 = vpop.f32.mrf.mxu0
  %v7801 = vadd.f32 %v7722, %v7800
  %v7802 = vpop.f32.mrf.mxu0
  %7803 = vmatprep.mubr.f32.mxu0 0.0
  %7804 = vmatmul.mubr.f32.gmra.mxu0 %v5270
  %v7805 = vpop.f32.mrf.mxu0
  %v7806 = vadd.f32 %v7722, %v7805
  %v7807 = vpop.f32.mrf.mxu0
  %7808 = vmatprep.mubr.f32.mxu0 0.0
  %7809 = vmatmul.mubr.f32.gmra.mxu0 %v5273
  %v7810 = vpop.f32.mrf.mxu0
  %v7811 = vadd.f32 %v7722, %v7810
  %v7812 = vpop.f32.mrf.mxu0
  %7813 = vdwg.mxu0
  %s7814 = scalar_lea.vmem %s7, 112
  %v7815 = vld [vmem:[%s7814] sm:$0xff]
  %v7816 = vld [vmem:[%s7814 + $0x8] sm:$0xff]
  %v7817 = vlaneseq
  %v7818 = vshrl.u32 %v7817, 7
  %v7819 = vsub.s32 3, %v7818
  %v7820 = vrot.slane %v5255, %v7819
  %v7822 = vsel %vm1265, %v7815, 0
  %v7825 = vsel %vm1265, %v7816, 0
  %7827 = vmatprep.subr.mxu0 0.0
  %7828 = vmatpush1.xpose.msra.mxu0 0.0
  %7829 = vmatprep.subr.mxu0 0.0
  %7830 = vmatpush1.xpose.msra.mxu0 0.0
  %7831 = vmatprep.subr.mxu0 0.0
  %7832 = vmatpush1.xpose.msra.mxu0 0.0
  %7833 = vmatprep.subr.mxu0 0.0
  %7834 = vmatpush1.xpose.msra.mxu0 0.0
  %7835 = vmatprep.subr.mxu0 0.0
  %7836 = vmatpush1.xpose.msra.mxu0 0.0
  %7837 = vmatprep.subr.mxu0 0.0
  %7838 = vmatpush1.xpose.msra.mxu0 0.0
  %7839 = vmatprep.subr.mxu0 0.0
  %7840 = vmatpush1.xpose.msra.mxu0 0.0
  %7841 = vmatprep.subr.mxu0 0.0
  %7842 = vmatpush1.xpose.msra.mxu0 0.0
  %7843 = vmatprep.subr.mxu0 0.0
  %7844 = vmatpush1.xpose.msra.mxu0 0.0
  %7845 = vmatprep.subr.mxu0 0.0
  %7846 = vmatpush1.xpose.msra.mxu0 0.0
  %7847 = vmatprep.subr.mxu0 0.0
  %7848 = vmatpush1.xpose.msra.mxu0 0.0
  %7849 = vmatprep.subr.mxu0 0.0
  %7850 = vmatpush1.xpose.msra.mxu0 0.0
  %7851 = vmatprep.subr.mxu0 0.0
  %7852 = vmatpush1.xpose.msra.mxu0 0.0
  %7853 = vmatprep.subr.mxu0 0.0
  %7854 = vmatpush1.xpose.msra.mxu0 0.0
  %7855 = vmatprep.subr.mxu0 0.0
  %7856 = vmatpush1.xpose.msra.mxu0 %v7825
  %7857 = vmatprep.subr.mxu0 0.0
  %7858 = vmatpush1.xpose.msra.mxu0 %v7822
  %7859 = vmatprep.subr.mxu0 0.0
  %7860 = vmatpush2.xpose.msra.mxu0 0.0
  %7861 = vmatprep.subr.mxu0 0.0
  %7862 = vmatpush2.xpose.msra.mxu0 0.0
  %7863 = vmatprep.subr.mxu0 0.0
  %7864 = vmatpush2.xpose.msra.mxu0 0.0
  %7865 = vmatprep.subr.mxu0 0.0
  %7866 = vmatpush2.xpose.msra.mxu0 0.0
  %7867 = vmatprep.subr.mxu0 0.0
  %7868 = vmatpush2.xpose.msra.mxu0 0.0
  %7869 = vmatprep.subr.mxu0 0.0
  %7870 = vmatpush2.xpose.msra.mxu0 0.0
  %7871 = vmatprep.subr.mxu0 0.0
  %7872 = vmatpush2.xpose.msra.mxu0 0.0
  %7873 = vmatprep.subr.mxu0 0.0
  %7874 = vmatpush2.xpose.msra.mxu0 0.0
  %7875 = vmatprep.subr.mxu0 0.0
  %7876 = vmatpush2.xpose.msra.mxu0 0.0
  %7877 = vmatprep.subr.mxu0 0.0
  %7878 = vmatpush2.xpose.msra.mxu0 0.0
  %7879 = vmatprep.subr.mxu0 0.0
  %7880 = vmatpush2.xpose.msra.mxu0 0.0
  %7881 = vmatprep.subr.mxu0 0.0
  %7882 = vmatpush2.xpose.msra.mxu0 0.0
  %7883 = vmatprep.subr.mxu0 0.0
  %7884 = vmatpush2.xpose.msra.mxu0 0.0
  %7885 = vmatprep.subr.mxu0 0.0
  %7886 = vmatpush2.xpose.msra.mxu0 0.0
  %7887 = vmatprep.subr.mxu0 0.0
  %7888 = vmatpush2.xpose.msra.mxu0 0.0
  %7889 = vmatprep.subr.mxu0 0.0
  %7890 = vmatpush2.xpose.msra.mxu0 0.0
  %7891 = vmatprep.mubr.f32.mxu0 0.0
  %7892 = vmatmul.mubr.f32.gmra.mxu0 %v5264
  %v7893 = vpop.f32.mrf.mxu0
  %v7894 = vadd.f32 %v7820, %v7893
  %v7895 = vpop.f32.mrf.mxu0
  %7896 = vmatprep.mubr.f32.mxu0 0.0
  %7897 = vmatmul.mubr.f32.gmra.mxu0 %v5267
  %v7898 = vpop.f32.mrf.mxu0
  %v7899 = vadd.f32 %v7820, %v7898
  %v7900 = vpop.f32.mrf.mxu0
  %7901 = vmatprep.mubr.f32.mxu0 0.0
  %7902 = vmatmul.mubr.f32.gmra.mxu0 %v5270
  %v7903 = vpop.f32.mrf.mxu0
  %v7904 = vadd.f32 %v7820, %v7903
  %v7905 = vpop.f32.mrf.mxu0
  %7906 = vmatprep.mubr.f32.mxu0 0.0
  %7907 = vmatmul.mubr.f32.gmra.mxu0 %v5273
  %v7908 = vpop.f32.mrf.mxu0
  %v7909 = vadd.f32 %v7820, %v7908
  %v7910 = vpop.f32.mrf.mxu0
  %7911 = vdwg.mxu0
  %v7912 = vmul.f32 %v7698, 0.25
  %v7913 = vmul.f32 %v7703, 0.25
  %v7914 = vmul.f32 %v7708, 0.25
  %v7915 = vmul.f32 %v7713, 0.25
  %v7917 = vsel %vm2002, %v7912, 0
  %v7920 = vsel %vm2002, %v7913, 0
  %v7923 = vsel %vm2002, %v7796, 0
  %v7926 = vsel %vm2002, %v7801, 0
  %7928 = vmatprep.subr.mxu0 0.0
  %7929 = vmatpush1.xpose.msra.mxu0 0.0
  %7930 = vmatprep.subr.mxu0 0.0
  %7931 = vmatpush1.xpose.msra.mxu0 0.0
  %7932 = vmatprep.subr.mxu0 0.0
  %7933 = vmatpush1.xpose.msra.mxu0 0.0
  %7934 = vmatprep.subr.mxu0 0.0
  %7935 = vmatpush1.xpose.msra.mxu0 0.0
  %7936 = vmatprep.subr.mxu0 0.0
  %7937 = vmatpush1.xpose.msra.mxu0 0.0
  %7938 = vmatprep.subr.mxu0 0.0
  %7939 = vmatpush1.xpose.msra.mxu0 0.0
  %7940 = vmatprep.subr.mxu0 0.0
  %7941 = vmatpush1.xpose.msra.mxu0 0.0
  %7942 = vmatprep.subr.mxu0 0.0
  %7943 = vmatpush1.xpose.msra.mxu0 0.0
  %7944 = vmatprep.subr.mxu0 0.0
  %7945 = vmatpush1.xpose.msra.mxu0 0.0
  %7946 = vmatprep.subr.mxu0 0.0
  %7947 = vmatpush1.xpose.msra.mxu0 0.0
  %7948 = vmatprep.subr.mxu0 0.0
  %7949 = vmatpush1.xpose.msra.mxu0 0.0
  %7950 = vmatprep.subr.mxu0 0.0
  %7951 = vmatpush1.xpose.msra.mxu0 0.0
  %7952 = vmatprep.subr.mxu0 0.0
  %7953 = vmatpush1.xpose.msra.mxu0 0.0
  %7954 = vmatprep.subr.mxu0 0.0
  %7955 = vmatpush1.xpose.msra.mxu0 0.0
  %7956 = vmatprep.subr.mxu0 0.0
  %7957 = vmatpush1.xpose.msra.mxu0 %v7926
  %7958 = vmatprep.subr.mxu0 0.0
  %7959 = vmatpush1.xpose.msra.mxu0 %v7923
  %7960 = vmatprep.subr.mxu0 0.0
  %7961 = vmatpush2.xpose.msra.mxu0 0.0
  %7962 = vmatprep.subr.mxu0 0.0
  %7963 = vmatpush2.xpose.msra.mxu0 0.0
  %7964 = vmatprep.subr.mxu0 0.0
  %7965 = vmatpush2.xpose.msra.mxu0 0.0
  %7966 = vmatprep.subr.mxu0 0.0
  %7967 = vmatpush2.xpose.msra.mxu0 0.0
  %7968 = vmatprep.subr.mxu0 0.0
  %7969 = vmatpush2.xpose.msra.mxu0 0.0
  %7970 = vmatprep.subr.mxu0 0.0
  %7971 = vmatpush2.xpose.msra.mxu0 0.0
  %7972 = vmatprep.subr.mxu0 0.0
  %7973 = vmatpush2.xpose.msra.mxu0 0.0
  %7974 = vmatprep.subr.mxu0 0.0
  %7975 = vmatpush2.xpose.msra.mxu0 0.0
  %7976 = vmatprep.subr.mxu0 0.0
  %7977 = vmatpush2.xpose.msra.mxu0 0.0
  %7978 = vmatprep.subr.mxu0 0.0
  %7979 = vmatpush2.xpose.msra.mxu0 0.0
  %7980 = vmatprep.subr.mxu0 0.0
  %7981 = vmatpush2.xpose.msra.mxu0 0.0
  %7982 = vmatprep.subr.mxu0 0.0
  %7983 = vmatpush2.xpose.msra.mxu0 0.0
  %7984 = vmatprep.subr.mxu0 0.0
  %7985 = vmatpush2.xpose.msra.mxu0 0.0
  %7986 = vmatprep.subr.mxu0 0.0
  %7987 = vmatpush2.xpose.msra.mxu0 0.0
  %7988 = vmatprep.subr.mxu0 0.0
  %7989 = vmatpush2.xpose.msra.mxu0 0.0
  %7990 = vmatprep.subr.mxu0 0.0
  %7991 = vmatpush2.xpose.msra.mxu0 0.0
  %7992 = vmatprep.mubr.f32.mxu0 0.0
  %7993 = vmatmul.mubr.f32.gmra.mxu0 %v7917
  %v7994 = vpop.f32.mrf.mxu0
  %v7995 = vadd.f32 0.0, %v7994
  %v7996 = vpop.f32.mrf.mxu0
  %7997 = vmatprep.mubr.f32.mxu0 0.0
  %7998 = vmatmul.mubr.f32.gmra.mxu0 %v7920
  %v7999 = vpop.f32.mrf.mxu0
  %v8000 = vadd.f32 0.0, %v7999
  %v8001 = vpop.f32.mrf.mxu0
  %8002 = vdwg.mxu0
  %v8004 = vsel %vm2002, %v7914, 0
  %v8007 = vsel %vm2002, %v7915, 0
  %v8010 = vsel %vm2002, %v7806, 0
  %v8013 = vsel %vm2002, %v7811, 0
  %8015 = vmatprep.subr.mxu0 0.0
  %8016 = vmatpush1.xpose.msra.mxu0 0.0
  %8017 = vmatprep.subr.mxu0 0.0
  %8018 = vmatpush1.xpose.msra.mxu0 0.0
  %8019 = vmatprep.subr.mxu0 0.0
  %8020 = vmatpush1.xpose.msra.mxu0 0.0
  %8021 = vmatprep.subr.mxu0 0.0
  %8022 = vmatpush1.xpose.msra.mxu0 0.0
  %8023 = vmatprep.subr.mxu0 0.0
  %8024 = vmatpush1.xpose.msra.mxu0 0.0
  %8025 = vmatprep.subr.mxu0 0.0
  %8026 = vmatpush1.xpose.msra.mxu0 0.0
  %8027 = vmatprep.subr.mxu0 0.0
  %8028 = vmatpush1.xpose.msra.mxu0 0.0
  %8029 = vmatprep.subr.mxu0 0.0
  %8030 = vmatpush1.xpose.msra.mxu0 0.0
  %8031 = vmatprep.subr.mxu0 0.0
  %8032 = vmatpush1.xpose.msra.mxu0 0.0
  %8033 = vmatprep.subr.mxu0 0.0
  %8034 = vmatpush1.xpose.msra.mxu0 0.0
  %8035 = vmatprep.subr.mxu0 0.0
  %8036 = vmatpush1.xpose.msra.mxu0 0.0
  %8037 = vmatprep.subr.mxu0 0.0
  %8038 = vmatpush1.xpose.msra.mxu0 0.0
  %8039 = vmatprep.subr.mxu0 0.0
  %8040 = vmatpush1.xpose.msra.mxu0 0.0
  %8041 = vmatprep.subr.mxu0 0.0
  %8042 = vmatpush1.xpose.msra.mxu0 0.0
  %8043 = vmatprep.subr.mxu0 0.0
  %8044 = vmatpush1.xpose.msra.mxu0 %v8013
  %8045 = vmatprep.subr.mxu0 0.0
  %8046 = vmatpush1.xpose.msra.mxu0 %v8010
  %8047 = vmatprep.subr.mxu0 0.0
  %8048 = vmatpush2.xpose.msra.mxu0 0.0
  %8049 = vmatprep.subr.mxu0 0.0
  %8050 = vmatpush2.xpose.msra.mxu0 0.0
  %8051 = vmatprep.subr.mxu0 0.0
  %8052 = vmatpush2.xpose.msra.mxu0 0.0
  %8053 = vmatprep.subr.mxu0 0.0
  %8054 = vmatpush2.xpose.msra.mxu0 0.0
  %8055 = vmatprep.subr.mxu0 0.0
  %8056 = vmatpush2.xpose.msra.mxu0 0.0
  %8057 = vmatprep.subr.mxu0 0.0
  %8058 = vmatpush2.xpose.msra.mxu0 0.0
  %8059 = vmatprep.subr.mxu0 0.0
  %8060 = vmatpush2.xpose.msra.mxu0 0.0
  %8061 = vmatprep.subr.mxu0 0.0
  %8062 = vmatpush2.xpose.msra.mxu0 0.0
  %8063 = vmatprep.subr.mxu0 0.0
  %8064 = vmatpush2.xpose.msra.mxu0 0.0
  %8065 = vmatprep.subr.mxu0 0.0
  %8066 = vmatpush2.xpose.msra.mxu0 0.0
  %8067 = vmatprep.subr.mxu0 0.0
  %8068 = vmatpush2.xpose.msra.mxu0 0.0
  %8069 = vmatprep.subr.mxu0 0.0
  %8070 = vmatpush2.xpose.msra.mxu0 0.0
  %8071 = vmatprep.subr.mxu0 0.0
  %8072 = vmatpush2.xpose.msra.mxu0 0.0
  %8073 = vmatprep.subr.mxu0 0.0
  %8074 = vmatpush2.xpose.msra.mxu0 0.0
  %8075 = vmatprep.subr.mxu0 0.0
  %8076 = vmatpush2.xpose.msra.mxu0 0.0
  %8077 = vmatprep.subr.mxu0 0.0
  %8078 = vmatpush2.xpose.msra.mxu0 0.0
  %8079 = vmatprep.mubr.f32.mxu0 0.0
  %8080 = vmatmul.mubr.f32.gmra.mxu0 %v8004
  %v8081 = vpop.f32.mrf.mxu0
  %v8082 = vadd.f32 0.0, %v8081
  %v8083 = vpop.f32.mrf.mxu0
  %8084 = vmatprep.mubr.f32.mxu0 0.0
  %8085 = vmatmul.mubr.f32.gmra.mxu0 %v8007
  %v8086 = vpop.f32.mrf.mxu0
  %v8087 = vadd.f32 0.0, %v8086
  %v8088 = vpop.f32.mrf.mxu0
  %8089 = vdwg.mxu0
  %v8090 = vsel %vm1692, %v7995, -1e+30
  %v8091 = vsel %vm1692, %v8000, -1e+30
  %v8092 = vsel %vm1692, %v8082, -1e+30
  %v8093 = vsel %vm1692, %v8087, -1e+30
  %v8094 = vsel %vm2002, %v8090, -inf
  %8095 = vmax.xlane.f32.xlu0 %v8094
  %v8096 = vpop.xlane.xlu0 %8095
  %v8097 = vsel %vm2002, %v8091, -inf
  %8098 = vmax.xlane.f32.xlu0 %v8097
  %v8099 = vpop.xlane.xlu0 %8098
  %v8100 = vsel %vm2002, %v8092, -inf
  %8101 = vmax.xlane.f32.xlu0 %v8100
  %v8102 = vpop.xlane.xlu0 %8101
  %v8103 = vsel %vm2002, %v8093, -inf
  %8104 = vmax.xlane.f32.xlu0 %v8103
  %v8105 = vpop.xlane.xlu0 %8104
  %v8106 = vsub.f32 %v8090, %v8096
  %v8107 = vsub.f32 %v8091, %v8099
  %v8108 = vsub.f32 %v8092, %v8102
  %v8109 = vsub.f32 %v8093, %v8105
  %v8110 = vmul.f32 %v8106, 1.442695
  %v8111 = vpow.pop %v8110
  %v8112 = vmul.f32 %v8107, 1.442695
  %v8113 = vpow.pop %v8112
  %v8114 = vmul.f32 %v8108, 1.442695
  %v8115 = vpow.pop %v8114
  %v8116 = vmul.f32 %v8109, 1.442695
  %v8117 = vpow.pop %v8116
  %v8118 = vsel %vm2002, %v8111, 0.0
  %8119 = vadd.xlane.f32.xlu0 %v8118
  %v8120 = vpop.xlane.xlu0 %8119
  %v8121 = vsel %vm2002, %v8113, 0.0
  %8122 = vadd.xlane.f32.xlu0 %v8121
  %v8123 = vpop.xlane.xlu0 %8122
  %v8124 = vsel %vm2002, %v8115, 0.0
  %8125 = vadd.xlane.f32.xlu0 %v8124
  %v8126 = vpop.xlane.xlu0 %8125
  %v8127 = vsel %vm2002, %v8117, 0.0
  %8128 = vadd.xlane.f32.xlu0 %v8127
  %v8129 = vpop.xlane.xlu0 %8128
  %v8130 = vrcp.pop %v8120
  %v8131 = vrcp.pop %v8123
  %v8132 = vrcp.pop %v8126
  %v8133 = vrcp.pop %v8129
  %v8134 = vmul.f32 %v8111, %v8130
  %v8135 = vmul.f32 %v8113, %v8131
  %v8136 = vmul.f32 %v8115, %v8132
  %v8137 = vmul.f32 %v8117, %v8133
  %v8139 = vsel %vm2002, %v8134, 0
  %v8142 = vsel %vm2002, %v8135, 0
  %8144 = vmatprep.subr.mxu0 0.0
  %8145 = vmatpush1.msra.mxu0 0.0
  %8146 = vmatprep.subr.mxu0 0.0
  %8147 = vmatpush1.msra.mxu0 0.0
  %8148 = vmatprep.subr.mxu0 0.0
  %8149 = vmatpush1.msra.mxu0 0.0
  %8150 = vmatprep.subr.mxu0 0.0
  %8151 = vmatpush1.msra.mxu0 0.0
  %8152 = vmatprep.subr.mxu0 0.0
  %8153 = vmatpush1.msra.mxu0 0.0
  %8154 = vmatprep.subr.mxu0 0.0
  %8155 = vmatpush1.msra.mxu0 0.0
  %8156 = vmatprep.subr.mxu0 0.0
  %8157 = vmatpush1.msra.mxu0 0.0
  %8158 = vmatprep.subr.mxu0 0.0
  %8159 = vmatpush1.msra.mxu0 0.0
  %8160 = vmatprep.subr.mxu0 0.0
  %8161 = vmatpush1.msra.mxu0 0.0
  %8162 = vmatprep.subr.mxu0 0.0
  %8163 = vmatpush1.msra.mxu0 0.0
  %8164 = vmatprep.subr.mxu0 0.0
  %8165 = vmatpush1.msra.mxu0 0.0
  %8166 = vmatprep.subr.mxu0 0.0
  %8167 = vmatpush1.msra.mxu0 0.0
  %8168 = vmatprep.subr.mxu0 0.0
  %8169 = vmatpush1.msra.mxu0 0.0
  %8170 = vmatprep.subr.mxu0 0.0
  %8171 = vmatpush1.msra.mxu0 0.0
  %8172 = vmatprep.subr.mxu0 0.0
  %8173 = vmatpush1.msra.mxu0 %v7899
  %8174 = vmatprep.subr.mxu0 0.0
  %8175 = vmatpush1.msra.mxu0 %v7894
  %8176 = vmatprep.subr.mxu0 0.0
  %8177 = vmatpush2.msra.mxu0 0.0
  %8178 = vmatprep.subr.mxu0 0.0
  %8179 = vmatpush2.msra.mxu0 0.0
  %8180 = vmatprep.subr.mxu0 0.0
  %8181 = vmatpush2.msra.mxu0 0.0
  %8182 = vmatprep.subr.mxu0 0.0
  %8183 = vmatpush2.msra.mxu0 0.0
  %8184 = vmatprep.subr.mxu0 0.0
  %8185 = vmatpush2.msra.mxu0 0.0
  %8186 = vmatprep.subr.mxu0 0.0
  %8187 = vmatpush2.msra.mxu0 0.0
  %8188 = vmatprep.subr.mxu0 0.0
  %8189 = vmatpush2.msra.mxu0 0.0
  %8190 = vmatprep.subr.mxu0 0.0
  %8191 = vmatpush2.msra.mxu0 0.0
  %8192 = vmatprep.subr.mxu0 0.0
  %8193 = vmatpush2.msra.mxu0 0.0
  %8194 = vmatprep.subr.mxu0 0.0
  %8195 = vmatpush2.msra.mxu0 0.0
  %8196 = vmatprep.subr.mxu0 0.0
  %8197 = vmatpush2.msra.mxu0 0.0
  %8198 = vmatprep.subr.mxu0 0.0
  %8199 = vmatpush2.msra.mxu0 0.0
  %8200 = vmatprep.subr.mxu0 0.0
  %8201 = vmatpush2.msra.mxu0 0.0
  %8202 = vmatprep.subr.mxu0 0.0
  %8203 = vmatpush2.msra.mxu0 0.0
  %8204 = vmatprep.subr.mxu0 0.0
  %8205 = vmatpush2.msra.mxu0 0.0
  %8206 = vmatprep.subr.mxu0 0.0
  %8207 = vmatpush2.msra.mxu0 0.0
  %8208 = vmatprep.mubr.f32.mxu0 0.0
  %8209 = vmatmul.mubr.f32.gmra.mxu0 %v8139
  %v8210 = vpop.f32.mrf.mxu0
  %v8211 = vadd.f32 0.0, %v8210
  %v8212 = vpop.f32.mrf.mxu0
  %8213 = vmatprep.mubr.f32.mxu0 0.0
  %8214 = vmatmul.mubr.f32.gmra.mxu0 %v8142
  %v8215 = vpop.f32.mrf.mxu0
  %v8216 = vadd.f32 0.0, %v8215
  %v8217 = vpop.f32.mrf.mxu0
  %8218 = vdwg.mxu0
  %v8220 = vsel %vm2002, %v8136, 0
  %v8223 = vsel %vm2002, %v8137, 0
  %8225 = vmatprep.subr.mxu0 0.0
  %8226 = vmatpush1.msra.mxu0 0.0
  %8227 = vmatprep.subr.mxu0 0.0
  %8228 = vmatpush1.msra.mxu0 0.0
  %8229 = vmatprep.subr.mxu0 0.0
  %8230 = vmatpush1.msra.mxu0 0.0
  %8231 = vmatprep.subr.mxu0 0.0
  %8232 = vmatpush1.msra.mxu0 0.0
  %8233 = vmatprep.subr.mxu0 0.0
  %8234 = vmatpush1.msra.mxu0 0.0
  %8235 = vmatprep.subr.mxu0 0.0
  %8236 = vmatpush1.msra.mxu0 0.0
  %8237 = vmatprep.subr.mxu0 0.0
  %8238 = vmatpush1.msra.mxu0 0.0
  %8239 = vmatprep.subr.mxu0 0.0
  %8240 = vmatpush1.msra.mxu0 0.0
  %8241 = vmatprep.subr.mxu0 0.0
  %8242 = vmatpush1.msra.mxu0 0.0
  %8243 = vmatprep.subr.mxu0 0.0
  %8244 = vmatpush1.msra.mxu0 0.0
  %8245 = vmatprep.subr.mxu0 0.0
  %8246 = vmatpush1.msra.mxu0 0.0
  %8247 = vmatprep.subr.mxu0 0.0
  %8248 = vmatpush1.msra.mxu0 0.0
  %8249 = vmatprep.subr.mxu0 0.0
  %8250 = vmatpush1.msra.mxu0 0.0
  %8251 = vmatprep.subr.mxu0 0.0
  %8252 = vmatpush1.msra.mxu0 0.0
  %8253 = vmatprep.subr.mxu0 0.0
  %8254 = vmatpush1.msra.mxu0 %v7909
  %8255 = vmatprep.subr.mxu0 0.0
  %8256 = vmatpush1.msra.mxu0 %v7904
  %8257 = vmatprep.subr.mxu0 0.0
  %8258 = vmatpush2.msra.mxu0 0.0
  %8259 = vmatprep.subr.mxu0 0.0
  %8260 = vmatpush2.msra.mxu0 0.0
  %8261 = vmatprep.subr.mxu0 0.0
  %8262 = vmatpush2.msra.mxu0 0.0
  %8263 = vmatprep.subr.mxu0 0.0
  %8264 = vmatpush2.msra.mxu0 0.0
  %8265 = vmatprep.subr.mxu0 0.0
  %8266 = vmatpush2.msra.mxu0 0.0
  %8267 = vmatprep.subr.mxu0 0.0
  %8268 = vmatpush2.msra.mxu0 0.0
  %8269 = vmatprep.subr.mxu0 0.0
  %8270 = vmatpush2.msra.mxu0 0.0
  %8271 = vmatprep.subr.mxu0 0.0
  %8272 = vmatpush2.msra.mxu0 0.0
  %8273 = vmatprep.subr.mxu0 0.0
  %8274 = vmatpush2.msra.mxu0 0.0
  %8275 = vmatprep.subr.mxu0 0.0
  %8276 = vmatpush2.msra.mxu0 0.0
  %8277 = vmatprep.subr.mxu0 0.0
  %8278 = vmatpush2.msra.mxu0 0.0
  %8279 = vmatprep.subr.mxu0 0.0
  %8280 = vmatpush2.msra.mxu0 0.0
  %8281 = vmatprep.subr.mxu0 0.0
  %8282 = vmatpush2.msra.mxu0 0.0
  %8283 = vmatprep.subr.mxu0 0.0
  %8284 = vmatpush2.msra.mxu0 0.0
  %8285 = vmatprep.subr.mxu0 0.0
  %8286 = vmatpush2.msra.mxu0 0.0
  %8287 = vmatprep.subr.mxu0 0.0
  %8288 = vmatpush2.msra.mxu0 0.0
  %8289 = vmatprep.mubr.f32.mxu0 0.0
  %8290 = vmatmul.mubr.f32.gmra.mxu0 %v8220
  %v8291 = vpop.f32.mrf.mxu0
  %v8292 = vadd.f32 0.0, %v8291
  %v8293 = vpop.f32.mrf.mxu0
  %8294 = vmatprep.mubr.f32.mxu0 0.0
  %8295 = vmatmul.mubr.f32.gmra.mxu0 %v8223
  %v8296 = vpop.f32.mrf.mxu0
  %v8297 = vadd.f32 0.0, %v8296
  %v8298 = vpop.f32.mrf.mxu0
  %8299 = vdwg.mxu0
  %s8300 = scalar_lea.vmem %s8, 112
  %v8301 = vld [vmem:[%s8300] sm:$0xff]
  %v8302 = vld [vmem:[%s8300 + $0x8] sm:$0xff]
  %v8304 = vsel %vm2002, %v8211, 0
  %v8307 = vsel %vm2002, %v8216, 0
  %v8310 = vsel %vm2002, %v8292, 0
  %v8313 = vsel %vm2002, %v8297, 0
  %8315 = vmatprep.subr.mxu0 0.0
  %8316 = vmatpush1.msra.mxu0 0.0
  %8317 = vmatprep.subr.mxu0 0.0
  %8318 = vmatpush1.msra.mxu0 0.0
  %8319 = vmatprep.subr.mxu0 0.0
  %8320 = vmatpush1.msra.mxu0 0.0
  %8321 = vmatprep.subr.mxu0 0.0
  %8322 = vmatpush1.msra.mxu0 0.0
  %8323 = vmatprep.subr.mxu0 0.0
  %8324 = vmatpush1.msra.mxu0 0.0
  %8325 = vmatprep.subr.mxu0 0.0
  %8326 = vmatpush1.msra.mxu0 0.0
  %8327 = vmatprep.subr.mxu0 0.0
  %8328 = vmatpush1.msra.mxu0 0.0
  %8329 = vmatprep.subr.mxu0 0.0
  %8330 = vmatpush1.msra.mxu0 0.0
  %8331 = vmatprep.subr.mxu0 0.0
  %8332 = vmatpush1.msra.mxu0 0.0
  %8333 = vmatprep.subr.mxu0 0.0
  %8334 = vmatpush1.msra.mxu0 0.0
  %8335 = vmatprep.subr.mxu0 0.0
  %8336 = vmatpush1.msra.mxu0 0.0
  %8337 = vmatprep.subr.mxu0 0.0
  %8338 = vmatpush1.msra.mxu0 0.0
  %8339 = vmatprep.subr.mxu0 0.0
  %8340 = vmatpush1.msra.mxu0 0.0
  %8341 = vmatprep.subr.mxu0 0.0
  %8342 = vmatpush1.msra.mxu0 0.0
  %8343 = vmatprep.subr.mxu0 0.0
  %8344 = vmatpush1.msra.mxu0 %v8302
  %8345 = vmatprep.subr.mxu0 0.0
  %8346 = vmatpush1.msra.mxu0 %v8301
  %8347 = vmatprep.subr.mxu0 0.0
  %8348 = vmatpush2.msra.mxu0 0.0
  %8349 = vmatprep.subr.mxu0 0.0
  %8350 = vmatpush2.msra.mxu0 0.0
  %8351 = vmatprep.subr.mxu0 0.0
  %8352 = vmatpush2.msra.mxu0 0.0
  %8353 = vmatprep.subr.mxu0 0.0
  %8354 = vmatpush2.msra.mxu0 0.0
  %8355 = vmatprep.subr.mxu0 0.0
  %8356 = vmatpush2.msra.mxu0 0.0
  %8357 = vmatprep.subr.mxu0 0.0
  %8358 = vmatpush2.msra.mxu0 0.0
  %8359 = vmatprep.subr.mxu0 0.0
  %8360 = vmatpush2.msra.mxu0 0.0
  %8361 = vmatprep.subr.mxu0 0.0
  %8362 = vmatpush2.msra.mxu0 0.0
  %8363 = vmatprep.subr.mxu0 0.0
  %8364 = vmatpush2.msra.mxu0 0.0
  %8365 = vmatprep.subr.mxu0 0.0
  %8366 = vmatpush2.msra.mxu0 0.0
  %8367 = vmatprep.subr.mxu0 0.0
  %8368 = vmatpush2.msra.mxu0 0.0
  %8369 = vmatprep.subr.mxu0 0.0
  %8370 = vmatpush2.msra.mxu0 0.0
  %8371 = vmatprep.subr.mxu0 0.0
  %8372 = vmatpush2.msra.mxu0 0.0
  %8373 = vmatprep.subr.mxu0 0.0
  %8374 = vmatpush2.msra.mxu0 0.0
  %8375 = vmatprep.subr.mxu0 0.0
  %8376 = vmatpush2.msra.mxu0 0.0
  %8377 = vmatprep.subr.mxu0 0.0
  %8378 = vmatpush2.msra.mxu0 0.0
  %8379 = vmatprep.mubr.f32.mxu0 0.0
  %8380 = vmatmul.mubr.f32.gmra.mxu0 %v8304
  %v8381 = vpop.f32.mrf.mxu0
  %v8382 = vadd.f32 0.0, %v8381
  %v8383 = vpop.f32.mrf.mxu0
  %8384 = vmatprep.mubr.f32.mxu0 0.0
  %8385 = vmatmul.mubr.f32.gmra.mxu0 %v8307
  %v8386 = vpop.f32.mrf.mxu0
  %v8387 = vadd.f32 0.0, %v8386
  %v8388 = vpop.f32.mrf.mxu0
  %8389 = vmatprep.mubr.f32.mxu0 0.0
  %8390 = vmatmul.mubr.f32.gmra.mxu0 %v8310
  %v8391 = vpop.f32.mrf.mxu0
  %v8392 = vadd.f32 0.0, %v8391
  %v8393 = vpop.f32.mrf.mxu0
  %8394 = vmatprep.mubr.f32.mxu0 0.0
  %8395 = vmatmul.mubr.f32.gmra.mxu0 %v8313
  %v8396 = vpop.f32.mrf.mxu0
  %v8397 = vadd.f32 0.0, %v8396
  %v8398 = vpop.f32.mrf.mxu0
  %8399 = vdwg.mxu0
  %v8400 = vadd.f32 %v7614, %v8382
  %v8401 = vadd.f32 %v7615, %v8387
  %v8402 = vadd.f32 %v7616, %v8392
  %v8403 = vadd.f32 %v7617, %v8397
  %v8404 = vadd.f32 %v5249, %v8400
  %v8405 = vadd.f32 %v5250, %v8401
  %v8406 = vadd.f32 %v5251, %v8402
  %v8407 = vadd.f32 %v5252, %v8403
  %v8408 = vld [vmem:[%s12 + $0x11] sm:$0x1]
  %v8409 = vlaneseq
  %v8410 = vshrl.u32 %v8409, 7
  %v8411 = vsub.s32 0, %v8410
  %v8412 = vrot.slane %v8408, %v8411
  %v8413 = vadd.f32 %v8404, %v8412
  %v8414 = vadd.f32 %v8405, %v8412
  %v8415 = vadd.f32 %v8406, %v8412
  %v8416 = vadd.f32 %v8407, %v8412
  %v8417 = vld [vmem:[%s12 + $0x12] sm:$0x1]
  %v8418 = vld [vmem:[%s12 + $0x13] sm:$0x1]
  %v8419 = vsel %vm1265, %v8413, 0.0
  %8420 = vadd.xlane.f32.xlu0 %v8419
  %v8421 = vpop.xlane.xlu0 %8420
  %v8422 = vsel %vm1265, %v8414, 0.0
  %8423 = vadd.xlane.f32.xlu0 %v8422
  %v8424 = vpop.xlane.xlu0 %8423
  %v8425 = vsel %vm1265, %v8415, 0.0
  %8426 = vadd.xlane.f32.xlu0 %v8425
  %v8427 = vpop.xlane.xlu0 %8426
  %v8428 = vsel %vm1265, %v8416, 0.0
  %8429 = vadd.xlane.f32.xlu0 %v8428
  %v8430 = vpop.xlane.xlu0 %8429
  %v8431 = vmul.f32 %v8421, %v1633
  %v8432 = vmul.f32 %v8424, %v1633
  %v8433 = vmul.f32 %v8427, %v1633
  %v8434 = vmul.f32 %v8430, %v1633
  %v8435 = vsub.f32 %v8413, %v8431
  %v8436 = vsub.f32 %v8414, %v8432
  %v8437 = vsub.f32 %v8415, %v8433
  %v8438 = vsub.f32 %v8416, %v8434
  %v8439 = vmul.f32 %v8435, %v8435
  %v8440 = vmul.f32 %v8436, %v8436
  %v8441 = vmul.f32 %v8437, %v8437
  %v8442 = vmul.f32 %v8438, %v8438
  %v8443 = vsel %vm1265, %v8439, 0.0
  %8444 = vadd.xlane.f32.xlu0 %v8443
  %v8445 = vpop.xlane.xlu0 %8444
  %v8446 = vsel %vm1265, %v8440, 0.0
  %8447 = vadd.xlane.f32.xlu0 %v8446
  %v8448 = vpop.xlane.xlu0 %8447
  %v8449 = vsel %vm1265, %v8441, 0.0
  %8450 = vadd.xlane.f32.xlu0 %v8449
  %v8451 = vpop.xlane.xlu0 %8450
  %v8452 = vsel %vm1265, %v8442, 0.0
  %8453 = vadd.xlane.f32.xlu0 %v8452
  %v8454 = vpop.xlane.xlu0 %8453
  %v8455 = vmul.f32 %v8445, %v1633
  %v8456 = vmul.f32 %v8448, %v1633
  %v8457 = vmul.f32 %v8451, %v1633
  %v8458 = vmul.f32 %v8454, %v1633
  %v8459 = vadd.f32 %v8455, 1e-05
  %v8460 = vadd.f32 %v8456, 1e-05
  %v8461 = vadd.f32 %v8457, 1e-05
  %v8462 = vadd.f32 %v8458, 1e-05
  %v8463 = vrsqrt.pop %v8459
  %v8464 = vrsqrt.pop %v8460
  %v8465 = vrsqrt.pop %v8461
  %v8466 = vrsqrt.pop %v8462
  %v8467 = vmul.f32 %v8435, %v8463
  %v8468 = vmul.f32 %v8436, %v8464
  %v8469 = vmul.f32 %v8437, %v8465
  %v8470 = vmul.f32 %v8438, %v8466
  %v8471 = vlaneseq
  %v8472 = vshrl.u32 %v8471, 7
  %v8473 = vsub.s32 0, %v8472
  %v8474 = vrot.slane %v8417, %v8473
  %v8475 = vmul.f32 %v8467, %v8474
  %v8476 = vmul.f32 %v8468, %v8474
  %v8477 = vmul.f32 %v8469, %v8474
  %v8478 = vmul.f32 %v8470, %v8474
  %v8479 = vlaneseq
  %v8480 = vshrl.u32 %v8479, 7
  %v8481 = vsub.s32 0, %v8480
  %v8482 = vrot.slane %v8418, %v8481
  %v8483 = vadd.f32 %v8475, %v8482
  %v8484 = vadd.f32 %v8476, %v8482
  %v8485 = vadd.f32 %v8477, %v8482
  %v8486 = vadd.f32 %v8478, %v8482
  %s8487 = scalar_lea.vmem %s9, 64
  %v8488 = vld [vmem:[%s8487] sm:$0xff]
  %v8489 = vld [vmem:[%s8487 + $0x8] sm:$0xff]
  %v8490 = vld [vmem:[%s8487 + $0x10] sm:$0xff]
  %v8491 = vld [vmem:[%s8487 + $0x18] sm:$0xff]
  %v8492 = vld [vmem:[%s8487 + $0x20] sm:$0xff]
  %v8493 = vld [vmem:[%s8487 + $0x28] sm:$0xff]
  %v8494 = vld [vmem:[%s8487 + $0x30] sm:$0xff]
  %v8495 = vld [vmem:[%s8487 + $0x38] sm:$0xff]
  %v8496 = vld [vmem:[%s12 + $0x14] sm:$0x1]
  %v8497 = vlaneseq
  %v8498 = vshrl.u32 %v8497, 7
  %v8499 = vsub.s32 0, %v8498
  %v8500 = vrot.slane %v8496, %v8499
  %v8502 = vsel %vm1265, %v8483, 0
  %v8505 = vsel %vm1265, %v8484, 0
  %v8508 = vsel %vm1265, %v8485, 0
  %v8511 = vsel %vm1265, %v8486, 0
  %8513 = vmatprep.subr.mxu0 0.0
  %8514 = vmatpush1.msra.mxu0 0.0
  %8515 = vmatprep.subr.mxu0 0.0
  %8516 = vmatpush1.msra.mxu0 0.0
  %8517 = vmatprep.subr.mxu0 0.0
  %8518 = vmatpush1.msra.mxu0 0.0
  %8519 = vmatprep.subr.mxu0 0.0
  %8520 = vmatpush1.msra.mxu0 0.0
  %8521 = vmatprep.subr.mxu0 0.0
  %8522 = vmatpush1.msra.mxu0 0.0
  %8523 = vmatprep.subr.mxu0 0.0
  %8524 = vmatpush1.msra.mxu0 0.0
  %8525 = vmatprep.subr.mxu0 0.0
  %8526 = vmatpush1.msra.mxu0 0.0
  %8527 = vmatprep.subr.mxu0 0.0
  %8528 = vmatpush1.msra.mxu0 0.0
  %8529 = vmatprep.subr.mxu0 0.0
  %8530 = vmatpush1.msra.mxu0 %v8495
  %8531 = vmatprep.subr.mxu0 0.0
  %8532 = vmatpush1.msra.mxu0 %v8494
  %8533 = vmatprep.subr.mxu0 0.0
  %8534 = vmatpush1.msra.mxu0 %v8493
  %8535 = vmatprep.subr.mxu0 0.0
  %8536 = vmatpush1.msra.mxu0 %v8492
  %8537 = vmatprep.subr.mxu0 0.0
  %8538 = vmatpush1.msra.mxu0 %v8491
  %8539 = vmatprep.subr.mxu0 0.0
  %8540 = vmatpush1.msra.mxu0 %v8490
  %8541 = vmatprep.subr.mxu0 0.0
  %8542 = vmatpush1.msra.mxu0 %v8489
  %8543 = vmatprep.subr.mxu0 0.0
  %8544 = vmatpush1.msra.mxu0 %v8488
  %8545 = vmatprep.subr.mxu0 0.0
  %8546 = vmatpush2.msra.mxu0 0.0
  %8547 = vmatprep.subr.mxu0 0.0
  %8548 = vmatpush2.msra.mxu0 0.0
  %8549 = vmatprep.subr.mxu0 0.0
  %8550 = vmatpush2.msra.mxu0 0.0
  %8551 = vmatprep.subr.mxu0 0.0
  %8552 = vmatpush2.msra.mxu0 0.0
  %8553 = vmatprep.subr.mxu0 0.0
  %8554 = vmatpush2.msra.mxu0 0.0
  %8555 = vmatprep.subr.mxu0 0.0
  %8556 = vmatpush2.msra.mxu0 0.0
  %8557 = vmatprep.subr.mxu0 0.0
  %8558 = vmatpush2.msra.mxu0 0.0
  %8559 = vmatprep.subr.mxu0 0.0
  %8560 = vmatpush2.msra.mxu0 0.0
  %8561 = vmatprep.subr.mxu0 0.0
  %8562 = vmatpush2.msra.mxu0 0.0
  %8563 = vmatprep.subr.mxu0 0.0
  %8564 = vmatpush2.msra.mxu0 0.0
  %8565 = vmatprep.subr.mxu0 0.0
  %8566 = vmatpush2.msra.mxu0 0.0
  %8567 = vmatprep.subr.mxu0 0.0
  %8568 = vmatpush2.msra.mxu0 0.0
  %8569 = vmatprep.subr.mxu0 0.0
  %8570 = vmatpush2.msra.mxu0 0.0
  %8571 = vmatprep.subr.mxu0 0.0
  %8572 = vmatpush2.msra.mxu0 0.0
  %8573 = vmatprep.subr.mxu0 0.0
  %8574 = vmatpush2.msra.mxu0 0.0
  %8575 = vmatprep.subr.mxu0 0.0
  %8576 = vmatpush2.msra.mxu0 0.0
  %8577 = vmatprep.mubr.f32.mxu0 0.0
  %8578 = vmatmul.mubr.f32.gmra.mxu0 %v8502
  %v8579 = vpop.f32.mrf.mxu0
  %v8580 = vadd.f32 %v8500, %v8579
  %v8581 = vpop.f32.mrf.mxu0
  %8582 = vmatprep.mubr.f32.mxu0 0.0
  %8583 = vmatmul.mubr.f32.gmra.mxu0 %v8505
  %v8584 = vpop.f32.mrf.mxu0
  %v8585 = vadd.f32 %v8500, %v8584
  %v8586 = vpop.f32.mrf.mxu0
  %8587 = vmatprep.mubr.f32.mxu0 0.0
  %8588 = vmatmul.mubr.f32.gmra.mxu0 %v8508
  %v8589 = vpop.f32.mrf.mxu0
  %v8590 = vadd.f32 %v8500, %v8589
  %v8591 = vpop.f32.mrf.mxu0
  %8592 = vmatprep.mubr.f32.mxu0 0.0
  %8593 = vmatmul.mubr.f32.gmra.mxu0 %v8511
  %v8594 = vpop.f32.mrf.mxu0
  %v8595 = vadd.f32 %v8500, %v8594
  %v8596 = vpop.f32.mrf.mxu0
  %8597 = vdwg.mxu0
  %v8598 = vmul.f32 %v8580, 0.5
  %v8599 = vmul.f32 %v8585, 0.5
  %v8600 = vmul.f32 %v8590, 0.5
  %v8601 = vmul.f32 %v8595, 0.5
  %v8602 = vmul.f32 %v8580, 0.044715
  %v8603 = vmul.f32 %v8585, 0.044715
  %v8604 = vmul.f32 %v8590, 0.044715
  %v8605 = vmul.f32 %v8595, 0.044715
  %v8606 = vmul.f32 %v8602, %v8580
  %v8607 = vmul.f32 %v8603, %v8585
  %v8608 = vmul.f32 %v8604, %v8590
  %v8609 = vmul.f32 %v8605, %v8595
  %v8610 = vmul.f32 %v8606, %v8580
  %v8611 = vmul.f32 %v8607, %v8585
  %v8612 = vmul.f32 %v8608, %v8590
  %v8613 = vmul.f32 %v8609, %v8595
  %v8614 = vadd.f32 %v8580, %v8610
  %v8615 = vadd.f32 %v8585, %v8611
  %v8616 = vadd.f32 %v8590, %v8612
  %v8617 = vadd.f32 %v8595, %v8613
  %v8618 = vmul.f32 %v8614, 0.7978846
  %v8619 = vmul.f32 %v8615, 0.7978846
  %v8620 = vmul.f32 %v8616, 0.7978846
  %v8621 = vmul.f32 %v8617, 0.7978846
  %v8622 = vtanh.pop %v8618
  %v8623 = vtanh.pop %v8619
  %v8624 = vtanh.pop %v8620
  %v8625 = vtanh.pop %v8621
  %v8626 = vadd.f32 %v8622, 1.0
  %v8627 = vadd.f32 %v8623, 1.0
  %v8628 = vadd.f32 %v8624, 1.0
  %v8629 = vadd.f32 %v8625, 1.0
  %v8630 = vmul.f32 %v8598, %v8626
  %v8631 = vmul.f32 %v8599, %v8627
  %v8632 = vmul.f32 %v8600, %v8628
  %v8633 = vmul.f32 %v8601, %v8629
  %s8634 = scalar_lea.vmem %s10, 128
  %v8635 = vld [vmem:[%s8634] sm:$0xff]
  %v8636 = vld [vmem:[%s8634 + $0x8] sm:$0xff]
  %v8637 = vld [vmem:[%s8634 + $0x10] sm:$0xff]
  %v8638 = vld [vmem:[%s8634 + $0x18] sm:$0xff]
  %v8639 = vld [vmem:[%s8634 + $0x20] sm:$0xff]
  %v8640 = vld [vmem:[%s8634 + $0x28] sm:$0xff]
  %v8641 = vld [vmem:[%s8634 + $0x30] sm:$0xff]
  %v8642 = vld [vmem:[%s8634 + $0x38] sm:$0xff]
  %v8643 = vld [vmem:[%s8634 + $0x40] sm:$0xff]
  %v8644 = vld [vmem:[%s8634 + $0x48] sm:$0xff]
  %v8645 = vld [vmem:[%s8634 + $0x50] sm:$0xff]
  %v8646 = vld [vmem:[%s8634 + $0x58] sm:$0xff]
  %v8647 = vld [vmem:[%s8634 + $0x60] sm:$0xff]
  %v8648 = vld [vmem:[%s8634 + $0x68] sm:$0xff]
  %v8649 = vld [vmem:[%s8634 + $0x70] sm:$0xff]
  %v8650 = vld [vmem:[%s8634 + $0x78] sm:$0xff]
  %8651 = vmatprep.subr.mxu0 0.0
  %8652 = vmatpush1.msra.mxu0 %v8650
  %8653 = vmatprep.subr.mxu0 0.0
  %8654 = vmatpush1.msra.mxu0 %v8649
  %8655 = vmatprep.subr.mxu0 0.0
  %8656 = vmatpush1.msra.mxu0 %v8648
  %8657 = vmatprep.subr.mxu0 0.0
  %8658 = vmatpush1.msra.mxu0 %v8647
  %8659 = vmatprep.subr.mxu0 0.0
  %8660 = vmatpush1.msra.mxu0 %v8646
  %8661 = vmatprep.subr.mxu0 0.0
  %8662 = vmatpush1.msra.mxu0 %v8645
  %8663 = vmatprep.subr.mxu0 0.0
  %8664 = vmatpush1.msra.mxu0 %v8644
  %8665 = vmatprep.subr.mxu0 0.0
  %8666 = vmatpush1.msra.mxu0 %v8643
  %8667 = vmatprep.subr.mxu0 0.0
  %8668 = vmatpush1.msra.mxu0 %v8642
  %8669 = vmatprep.subr.mxu0 0.0
  %8670 = vmatpush1.msra.mxu0 %v8641
  %8671 = vmatprep.subr.mxu0 0.0
  %8672 = vmatpush1.msra.mxu0 %v8640
  %8673 = vmatprep.subr.mxu0 0.0
  %8674 = vmatpush1.msra.mxu0 %v8639
  %8675 = vmatprep.subr.mxu0 0.0
  %8676 = vmatpush1.msra.mxu0 %v8638
  %8677 = vmatprep.subr.mxu0 0.0
  %8678 = vmatpush1.msra.mxu0 %v8637
  %8679 = vmatprep.subr.mxu0 0.0
  %8680 = vmatpush1.msra.mxu0 %v8636
  %8681 = vmatprep.subr.mxu0 0.0
  %8682 = vmatpush1.msra.mxu0 %v8635
  %8683 = vmatprep.subr.mxu0 0.0
  %8684 = vmatpush2.msra.mxu0 0.0
  %8685 = vmatprep.subr.mxu0 0.0
  %8686 = vmatpush2.msra.mxu0 0.0
  %8687 = vmatprep.subr.mxu0 0.0
  %8688 = vmatpush2.msra.mxu0 0.0
  %8689 = vmatprep.subr.mxu0 0.0
  %8690 = vmatpush2.msra.mxu0 0.0
  %8691 = vmatprep.subr.mxu0 0.0
  %8692 = vmatpush2.msra.mxu0 0.0
  %8693 = vmatprep.subr.mxu0 0.0
  %8694 = vmatpush2.msra.mxu0 0.0
  %8695 = vmatprep.subr.mxu0 0.0
  %8696 = vmatpush2.msra.mxu0 0.0
  %8697 = vmatprep.subr.mxu0 0.0
  %8698 = vmatpush2.msra.mxu0 0.0
  %8699 = vmatprep.subr.mxu0 0.0
  %8700 = vmatpush2.msra.mxu0 0.0
  %8701 = vmatprep.subr.mxu0 0.0
  %8702 = vmatpush2.msra.mxu0 0.0
  %8703 = vmatprep.subr.mxu0 0.0
  %8704 = vmatpush2.msra.mxu0 0.0
  %8705 = vmatprep.subr.mxu0 0.0
  %8706 = vmatpush2.msra.mxu0 0.0
  %8707 = vmatprep.subr.mxu0 0.0
  %8708 = vmatpush2.msra.mxu0 0.0
  %8709 = vmatprep.subr.mxu0 0.0
  %8710 = vmatpush2.msra.mxu0 0.0
  %8711 = vmatprep.subr.mxu0 0.0
  %8712 = vmatpush2.msra.mxu0 0.0
  %8713 = vmatprep.subr.mxu0 0.0
  %8714 = vmatpush2.msra.mxu0 0.0
  %8715 = vmatprep.mubr.f32.mxu0 0.0
  %8716 = vmatmul.mubr.f32.gmra.mxu0 %v8630
  %v8717 = vpop.f32.mrf.mxu0
  %v8718 = vadd.f32 0.0, %v8717
  %v8719 = vpop.f32.mrf.mxu0
  %8720 = vmatprep.mubr.f32.mxu0 0.0
  %8721 = vmatmul.mubr.f32.gmra.mxu0 %v8631
  %v8722 = vpop.f32.mrf.mxu0
  %v8723 = vadd.f32 0.0, %v8722
  %v8724 = vpop.f32.mrf.mxu0
  %8725 = vmatprep.mubr.f32.mxu0 0.0
  %8726 = vmatmul.mubr.f32.gmra.mxu0 %v8632
  %v8727 = vpop.f32.mrf.mxu0
  %v8728 = vadd.f32 0.0, %v8727
  %v8729 = vpop.f32.mrf.mxu0
  %8730 = vmatprep.mubr.f32.mxu0 0.0
  %8731 = vmatmul.mubr.f32.gmra.mxu0 %v8633
  %v8732 = vpop.f32.mrf.mxu0
  %v8733 = vadd.f32 0.0, %v8732
  %v8734 = vpop.f32.mrf.mxu0
  %8735 = vdwg.mxu0
  %v8736 = vadd.f32 %v8483, %v8718
  %v8737 = vadd.f32 %v8484, %v8723
  %v8738 = vadd.f32 %v8485, %v8728
  %v8739 = vadd.f32 %v8486, %v8733
  %v8740 = vld [vmem:[%s12 + $0x15] sm:$0x1]
  %v8741 = vlaneseq
  %v8742 = vshrl.u32 %v8741, 7
  %v8743 = vsub.s32 0, %v8742
  %v8744 = vrot.slane %v8740, %v8743
  %v8745 = vadd.f32 %v8736, %v8744
  %v8746 = vadd.f32 %v8737, %v8744
  %v8747 = vadd.f32 %v8738, %v8744
  %v8748 = vadd.f32 %v8739, %v8744
  %v8749 = vld [vmem:[%s12 + $0x16] sm:$0x1]
  %v8750 = vld [vmem:[%s12 + $0x17] sm:$0x1]
  %v8751 = vsel %vm1265, %v8745, 0.0
  %8752 = vadd.xlane.f32.xlu0 %v8751
  %v8753 = vpop.xlane.xlu0 %8752
  %v8754 = vsel %vm1265, %v8746, 0.0
  %8755 = vadd.xlane.f32.xlu0 %v8754
  %v8756 = vpop.xlane.xlu0 %8755
  %v8757 = vsel %vm1265, %v8747, 0.0
  %8758 = vadd.xlane.f32.xlu0 %v8757
  %v8759 = vpop.xlane.xlu0 %8758
  %v8760 = vsel %vm1265, %v8748, 0.0
  %8761 = vadd.xlane.f32.xlu0 %v8760
  %v8762 = vpop.xlane.xlu0 %8761
  %v8763 = vmul.f32 %v8753, %v1633
  %v8764 = vmul.f32 %v8756, %v1633
  %v8765 = vmul.f32 %v8759, %v1633
  %v8766 = vmul.f32 %v8762, %v1633
  %v8767 = vsub.f32 %v8745, %v8763
  %v8768 = vsub.f32 %v8746, %v8764
  %v8769 = vsub.f32 %v8747, %v8765
  %v8770 = vsub.f32 %v8748, %v8766
  %v8771 = vmul.f32 %v8767, %v8767
  %v8772 = vmul.f32 %v8768, %v8768
  %v8773 = vmul.f32 %v8769, %v8769
  %v8774 = vmul.f32 %v8770, %v8770
  %v8775 = vsel %vm1265, %v8771, 0.0
  %8776 = vadd.xlane.f32.xlu0 %v8775
  %v8777 = vpop.xlane.xlu0 %8776
  %v8778 = vsel %vm1265, %v8772, 0.0
  %8779 = vadd.xlane.f32.xlu0 %v8778
  %v8780 = vpop.xlane.xlu0 %8779
  %v8781 = vsel %vm1265, %v8773, 0.0
  %8782 = vadd.xlane.f32.xlu0 %v8781
  %v8783 = vpop.xlane.xlu0 %8782
  %v8784 = vsel %vm1265, %v8774, 0.0
  %8785 = vadd.xlane.f32.xlu0 %v8784
  %v8786 = vpop.xlane.xlu0 %8785
  %v8787 = vmul.f32 %v8777, %v1633
  %v8788 = vmul.f32 %v8780, %v1633
  %v8789 = vmul.f32 %v8783, %v1633
  %v8790 = vmul.f32 %v8786, %v1633
  %v8791 = vadd.f32 %v8787, 1e-05
  %v8792 = vadd.f32 %v8788, 1e-05
  %v8793 = vadd.f32 %v8789, 1e-05
  %v8794 = vadd.f32 %v8790, 1e-05
  %v8795 = vrsqrt.pop %v8791
  %v8796 = vrsqrt.pop %v8792
  %v8797 = vrsqrt.pop %v8793
  %v8798 = vrsqrt.pop %v8794
  %v8799 = vmul.f32 %v8767, %v8795
  %v8800 = vmul.f32 %v8768, %v8796
  %v8801 = vmul.f32 %v8769, %v8797
  %v8802 = vmul.f32 %v8770, %v8798
  %v8803 = vlaneseq
  %v8804 = vshrl.u32 %v8803, 7
  %v8805 = vsub.s32 0, %v8804
  %v8806 = vrot.slane %v8749, %v8805
  %v8807 = vmul.f32 %v8799, %v8806
  %v8808 = vmul.f32 %v8800, %v8806
  %v8809 = vmul.f32 %v8801, %v8806
  %v8810 = vmul.f32 %v8802, %v8806
  %v8811 = vlaneseq
  %v8812 = vshrl.u32 %v8811, 7
  %v8813 = vsub.s32 0, %v8812
  %v8814 = vrot.slane %v8750, %v8813
  %v8815 = vadd.f32 %v8807, %v8814
  %v8816 = vadd.f32 %v8808, %v8814
  %v8817 = vadd.f32 %v8809, %v8814
  %v8818 = vadd.f32 %v8810, %v8814
  %8819 = vst.msk [vmem:[%s13] sm:$0xff] %vm1265, %v8815
  %8820 = vst.msk [vmem:[%s13 + $0x8] sm:$0xff] %vm1265, %v8816
  %8821 = vst.msk [vmem:[%s13 + $0x10] sm:$0xff] %vm1265, %v8817
  %8822 = vst.msk [vmem:[%s13 + $0x18] sm:$0xff] %vm1265, %v8818
  %vm8823 = vcmask 0
  %8824 = vst.msk [vmem:[%s13 + $0xf] sm:$0x1] %vm8823, %v850
  // Predicated region
  $region54: #{_lambda_.1} parent=0 // pred_check
    _
  $region55: #{_lambda_.1} parent=0 // pred_check_branch
    %8826 = sbr.rel (0) target = $region57
  $region56: #{_lambda_.1} parent=0 // pred_region
    _
  $region57: #{_lambda_.1} parent=0 // pred_fallthru
    _
  // Predicated region
  $region58: #{_lambda_.1} parent=0 // pred_check
    _
  $region59: #{_lambda_.1} parent=0 // pred_check_branch
    %8828 = sbr.rel (0) target = $region61
  $region60: #{_lambda_.1} parent=0 // pred_region
    _
  $region61: #{_lambda_.1} parent=0 // pred_fallthru
    _

</llo_original>
